<compile_context>
chip_gen: v7x
topology: tpu7x:2x2x1
jax: 0.10.0
libtpu: 0.0.40
codegen_flags: <defaults>
</compile_context>

<pallas_src>
import functools

import jax
import jax.numpy as jnp
from jax.experimental import pallas as pl
from jax.experimental.pallas import tpu as pltpu

MXU_DTYPE = jnp.bfloat16          # MXU input dtype (f32 accumulate / epilogue)
LANES = 128


def _detect_vmem_limit():
    """~48 MiB on v7x (64 MiB VMEM), ~96 MiB on v5e/v6e (128 MiB VMEM)."""
    try:
        cap = int(getattr(pltpu.get_tpu_info(), "vmem_capacity_bytes", 0))
    except Exception:
        cap = 0
    if cap <= 0:
        cap = 64 * 1024 * 1024
    return int(min(100 * 1024 * 1024, max(32 * 1024 * 1024, (cap * 3) // 4)))


VMEM_LIMIT = _detect_vmem_limit()


def _cparams(dims):
    return pltpu.CompilerParams(dimension_semantics=dims,
                                vmem_limit_bytes=VMEM_LIMIT)


def _round_up(x, m):
    return (x + m - 1) // m * m


def _pick_tile(n, pref, align=8):
    """Return (n_padded, tile): n_padded % tile == 0, tile aligned to `align`."""
    if n >= pref:
        return _round_up(n, pref), pref
    npad = _round_up(max(n, align), align)
    return npad, npad


# ----------------------------------------------------------------------------
# Pallas kernels
# ----------------------------------------------------------------------------
def _conv_mm_kernel(x_ref, w_ref, scale_ref, shift_ref, o_ref, *, relu):
    """o = relu((x @ w) * scale + shift); lane-dense (rows, 128) output tiles."""
    acc = jnp.dot(x_ref[...], w_ref[...], preferred_element_type=jnp.float32)
    y = acc * scale_ref[...] + shift_ref[...]
    if relu:
        y = jnp.maximum(y, 0.0)
    o_ref[...] = y.astype(o_ref.dtype)


def conv_matmul_affine(patches, cp, *, relu=True):
    """patches (M, K) bf16 -> (M, Cout) bf16 via a lane-dense grouped matmul.

    r = 128 // Cout consecutive spatial rows are packed into one matmul row
    against a block-diagonal (r*K, 128) weight, so the output block is
    (TM/r, 128): fully lane-dense stores and MXU N = 128.
    """
    M, K = patches.shape
    r = cp["r"]
    w_bd = cp["w_bd"]                       # (r*K, 128) bf16
    rK, Nr = w_bd.shape
    Mp, TM = _pick_tile(M, 2048, align=8 * r)
    if Mp != M:
        patches = jnp.pad(patches, ((0, Mp - M), (0, 0)))
    pg = patches.reshape(Mp // r, rK)

    out = pl.pallas_call(
        functools.partial(_conv_mm_kernel, relu=relu),
        out_shape=jax.ShapeDtypeStruct((Mp // r, Nr), MXU_DTYPE),
        grid=(Mp // TM,),
        in_specs=[
            pl.BlockSpec((TM // r, rK), lambda i: (i, 0)),   # grouped patches
            pl.BlockSpec((rK, Nr), lambda i: (0, 0)),        # block-diag weight
            pl.BlockSpec((1, Nr), lambda i: (0, 0)),         # folded-BN scale
            pl.BlockSpec((1, Nr), lambda i: (0, 0)),         # folded-BN shift
        ],
        out_specs=pl.BlockSpec((TM // r, Nr), lambda i: (i, 0)),
        compiler_params=_cparams(("parallel",)),
    )(pg, w_bd, cp["scale_t"], cp["shift_t"])

    Cout = Nr // r
    return out.reshape(Mp, Cout)[:M]


def _max9_kernel(*refs):
    """Elementwise max over 9 lane-dense (TR, 128) tiles."""
    o_ref = refs[-1]
    m = refs[0][...]
    for r in refs[1:-1]:
        m = jnp.maximum(m, r[...])
    o_ref[...] = m


def _fc1_kernel(x_ref, w_ref, b_ref, o_ref, acc_ref):
    """h1 = relu(x @ w1 + b1); K is an 'arbitrary' reduction grid axis."""
    k = pl.program_id(1)

    @pl.when(k == 0)
    def _():
        acc_ref[...] = jnp.zeros_like(acc_ref)

    acc_ref[...] += jnp.dot(x_ref[...], w_ref[...],
                            preferred_element_type=jnp.float32)

    @pl.when(k == pl.num_programs(1) - 1)
    def _():
        o_ref[...] = jnp.maximum(acc_ref[...] + b_ref[...], 0.0).astype(o_ref.dtype)


def _fc_tail_kernel(h1_ref, w2_ref, b2_ref, w3_ref, b3_ref, w4_ref, b4_ref,
                    o_ref):
    """Fused fc2 -> ReLU -> fc3 -> ReLU -> fc4; all weights VMEM-resident."""
    h2 = jnp.dot(h1_ref[...], w2_ref[...],
                 preferred_element_type=jnp.float32) + b2_ref[...]
    h2 = jnp.maximum(h2, 0.0)
    h3 = jnp.dot(h2.astype(w3_ref.dtype), w3_ref[...],
                 preferred_element_type=jnp.float32) + b3_ref[...]
    h3 = jnp.maximum(h3, 0.0)
    # fc4 (256 -> 1): VPU multiply + cross-lane reduction, not an N=1 matmul.
    o_ref[...] = jnp.sum(h3 * w4_ref[...], axis=-1, keepdims=True) + b4_ref[...]


def fc_head(x_flat, fp):
    """x_flat: (B, fc_in) -> (B, 1) f32.  Dropout = eval-mode identity."""
    B, K = x_flat.shape
    Kp, TK, NT = fp["Kp"], fp["TK"], fp["NT"]
    Bp = _round_up(max(B, 16), 16)                 # fill packed bf16 vregs
    x = jnp.pad(x_flat.astype(MXU_DTYPE), ((0, Bp - B), (0, Kp - K)))

    # fc1: grid = (N tiles, K tiles).  The N axis is "parallel" so on megacore
    # parts (v7x) each TensorCore streams its own half of the big w1 weight.
    h1 = pl.pallas_call(
        _fc1_kernel,
        out_shape=jax.ShapeDtypeStruct((Bp, 1024), MXU_DTYPE),
        grid=(1024 // NT, Kp // TK),
        in_specs=[
            pl.BlockSpec((Bp, TK), lambda n, k: (0, k)),    # x (K-tiled)
            pl.BlockSpec((TK, NT), lambda n, k: (k, n)),    # w1 (K,N-tiled)
            pl.BlockSpec((1, NT), lambda n, k: (0, n)),     # b1 (N-tiled)
        ],
        out_specs=pl.BlockSpec((Bp, NT), lambda n, k: (0, n)),
        scratch_shapes=[pltpu.VMEM((Bp, NT), jnp.float32)],
        compiler_params=_cparams(("parallel", "arbitrary")),
    )(x, fp["w1"], fp["b1"])

    out = pl.pallas_call(
        _fc_tail_kernel,
        out_shape=jax.ShapeDtypeStruct((Bp, 1), jnp.float32),
        grid=(1,),
        in_specs=[
            pl.BlockSpec((Bp, 1024), lambda i: (0, 0)),
            pl.BlockSpec((1024, 512), lambda i: (0, 0)),
            pl.BlockSpec((1, 512), lambda i: (0, 0)),
            pl.BlockSpec((512, 256), lambda i: (0, 0)),
            pl.BlockSpec((1, 256), lambda i: (0, 0)),
            pl.BlockSpec((1, 256), lambda i: (0, 0)),
            pl.BlockSpec((1, 1), lambda i: (0, 0)),
        ],
        out_specs=pl.BlockSpec((Bp, 1), lambda i: (0, 0)),
        compiler_params=_cparams(("arbitrary",)),
    )(h1, fp["w2"], fp["b2"], fp["w3"], fp["b3"], fp["w4"], fp["b4"])
    return out[:B]


# ----------------------------------------------------------------------------
# Plain-JAX glue (layout + VPU shift-add for the fixed filter)
# ----------------------------------------------------------------------------
def _extract_windows(x_nhwc, k, stride, pad, pad_value):
    """Return list of k*k shifted/strided views, each (B, Ho, Wo, C)."""
    B, H, W, C = x_nhwc.shape
    Ho = (H - k + 2 * pad) // stride + 1
    Wo = (W - k + 2 * pad) // stride + 1
    xp = jnp.pad(x_nhwc, ((0, 0), (pad, pad), (pad, pad), (0, 0)),
                 constant_values=pad_value)
    cols = []
    for i in range(k):
        for j in range(k):
            cols.append(xp[:, i:i + stride * (Ho - 1) + 1:stride,
                            j:j + stride * (Wo - 1) + 1:stride, :])
    return cols, (B, Ho, Wo, C)


def fixed_vertical_edge_conv(x_nhwc):
    """Fixed 3x3 kernel [[1,0,-1]]x3, padding=1, no bias: 6-op shift-add."""
    B, H, W, _ = x_nhwc.shape
    xp = jnp.pad(x_nhwc, ((0, 0), (1, 1), (1, 1), (0, 0)))
    colsum = xp[:, 0:H] + xp[:, 1:H + 1] + xp[:, 2:H + 2]   # (B, H, W+2, C)
    return colsum[:, :, 0:W] - colsum[:, :, 2:W + 2]


def conv2d_bn_relu(x_nhwc, cp, *, k, relu=True):
    """PyTorch-style conv (stride 1, pad 1) fused with folded-BN affine + ReLU."""
    # TODO(synk): im2col still materializes k*k shifted views in HBM; an
    # in-kernel halo'd shift-accumulate would read the activation ~once.
    cols, (B, Ho, Wo, Cin) = _extract_windows(x_nhwc, k, 1, 1, 0.0)
    patches = jnp.stack(cols, axis=3).reshape(B * Ho * Wo, k * k * Cin)
    out = conv_matmul_affine(patches, cp, relu=relu)
    Cout = cp["w_bd"].shape[1] // cp["r"]
    return out.reshape(B, Ho, Wo, Cout)


def maxpool_3x3_s2_p1(x_nhwc):
    """MaxPool2d(kernel=3, stride=2, padding=1), lane-dense tiled max reduce."""
    cols, (B, Ho, Wo, C) = _extract_windows(x_nhwc, 3, 2, 1, float("-inf"))
    L = B * Ho * Wo * C
    rows = -(-L // LANES)
    Rp, TR = _pick_tile(rows, 2048, align=16)
    Lp = Rp * LANES
    flat = [jnp.pad(c.reshape(-1), (0, Lp - L)).reshape(Rp, LANES) for c in cols]
    spec = pl.BlockSpec((TR, LANES), lambda i: (i, 0))
    out = pl.pallas_call(
        _max9_kernel,
        out_shape=jax.ShapeDtypeStruct((Rp, LANES), x_nhwc.dtype),
        grid=(Rp // TR,),
        in_specs=[spec] * 9,
        out_specs=spec,
        compiler_params=_cparams(("parallel",)),
    )(*flat)
    return out.reshape(-1)[:L].reshape(B, Ho, Wo, C)


# ----------------------------------------------------------------------------
# Parameters (deterministic synthetic init; shapes match the nn.Module)
# ----------------------------------------------------------------------------
def _new_size(size, k, stride, pad):
    return (size - k + 2 * pad) // stride + 1


def init_params(key, N=24, dfs=2088):
    c0h, c0w = _new_size(N, 3, 1, 1), _new_size(dfs, 3, 1, 1)
    c1h, c1w = _new_size(c0h, 5, 1, 1), _new_size(c0w, 5, 1, 1)
    p1h, p1w = _new_size(c1h, 3, 2, 1), _new_size(c1w, 3, 2, 1)
    c2h, c2w = _new_size(p1h, 3, 1, 1), _new_size(p1w, 3, 1, 1)
    p2h, p2w = _new_size(c2h, 3, 2, 1), _new_size(c2w, 3, 2, 1)
    c3h, c3w = _new_size(p2h, 3, 1, 1), _new_size(p2w, 3, 1, 1)
    p3h, p3w = _new_size(c3h, 3, 2, 1), _new_size(c3w, 3, 2, 1)
    fc_in = 64 * p3h * p3w

    ks = jax.random.split(key, 16)

    def rn(k, shape, s=0.05):
        return (s * jax.random.normal(k, shape)).astype(jnp.float32)

    params = {
        # The fixed 3x3 vertical-edge filter is a constant (requires_grad=False)
        # and is hard-coded in fixed_vertical_edge_conv.
        "conv1_w": rn(ks[0], (16, 1, 5, 5)), "conv1_b": rn(ks[1], (16,)),
        "bn1_g": 1.0 + rn(ks[2], (16,)), "bn1_b": rn(ks[3], (16,)),
        "bn1_m": jnp.zeros((16,), jnp.float32), "bn1_v": jnp.ones((16,), jnp.float32),
        "conv2_w": rn(ks[4], (32, 16, 3, 3)), "conv2_b": rn(ks[5], (32,)),
        "bn2_g": 1.0 + rn(ks[6], (32,)), "bn2_b": rn(ks[7], (32,)),
        "bn2_m": jnp.zeros((32,), jnp.float32), "bn2_v": jnp.ones((32,), jnp.float32),
        "conv3_w": rn(ks[8], (64, 32, 3, 3)), "conv3_b": rn(ks[9], (64,)),
        "bn3_g": 1.0 + rn(ks[10], (64,)), "bn3_b": rn(ks[11], (64,)),
        "bn3_m": jnp.zeros((64,), jnp.float32), "bn3_v": jnp.ones((64,), jnp.float32),
        # torch.nn.Linear weights are (out_features, in_features)
        "fc1_w": rn(ks[12], (1024, fc_in), 0.02), "fc1_b": jnp.zeros((1024,), jnp.float32),
        "fc2_w": rn(ks[13], (512, 1024), 0.02), "fc2_b": jnp.zeros((512,), jnp.float32),
        "fc3_w": rn(ks[14], (256, 512), 0.02), "fc3_b": jnp.zeros((256,), jnp.float32),
        "fc4_w": rn(ks[15], (1, 256), 0.02), "fc4_b": jnp.zeros((1,), jnp.float32),
    }
    return params, fc_in


def _bn_fold(gamma, beta, mean, var, bias, eps=1e-5):
    scale = gamma / jnp.sqrt(var + eps)
    shift = beta + (bias - mean) * scale
    return (scale.reshape(1, -1).astype(jnp.float32),
            shift.reshape(1, -1).astype(jnp.float32))


def _conv_w2d(w_oihw):
    """(Cout,Cin,kh,kw) -> (kh*kw*Cin, Cout) f32, matching im2col ordering."""
    Cout, Cin, kh, kw = w_oihw.shape
    return jnp.transpose(w_oihw, (2, 3, 1, 0)).reshape(kh * kw * Cin, Cout)


def _blockdiag_weight(w2d, r):
    """(K, Cout) -> block-diagonal (r*K, r*Cout) bf16 for lane-dense conv."""
    K, Cout = w2d.shape
    eye = jnp.eye(r, dtype=jnp.float32)
    bd = jnp.einsum("st,kc->sktc", eye, w2d.astype(jnp.float32))
    return bd.reshape(r * K, r * Cout).astype(MXU_DTYPE)


def prepare_params(params, fc_in):
    """One-time weight prep: BN fold, transpose, block-diag pack, bf16, K pad."""
    prepped = {}
    for idx in (1, 2, 3):
        scale, shift = _bn_fold(params[f"bn{idx}_g"], params[f"bn{idx}_b"],
                                params[f"bn{idx}_m"], params[f"bn{idx}_v"],
                                params[f"conv{idx}_b"])
        w2d = _conv_w2d(params[f"conv{idx}_w"])        # (K, Cout)
        Cout = w2d.shape[1]
        r = max(1, LANES // Cout)                      # rows packed per lane tile
        prepped[f"conv{idx}"] = {
            "r": r,
            "w_bd": _blockdiag_weight(w2d, r),         # (r*K, 128) bf16
            "scale_t": jnp.tile(scale, (1, r)),        # (1, 128) f32
            "shift_t": jnp.tile(shift, (1, r)),        # (1, 128) f32
        }

    # fc1: large K tile (2048) so the ~K x 1024 weight streams in few grid steps.
    if fc_in >= 2048:
        TK = 2048
    else:
        TK = _round_up(fc_in, LANES)
    Kp = _round_up(fc_in, TK)
    w1 = jnp.pad(params["fc1_w"].T, ((0, Kp - fc_in), (0, 0))).astype(MXU_DTYPE)
    prepped["fc"] = {
        "Kp": Kp, "TK": TK, "NT": 512,
        "w1": w1,
        "b1": params["fc1_b"].reshape(1, -1).astype(jnp.float32),
        "w2": params["fc2_w"].T.astype(MXU_DTYPE),
        "b2": params["fc2_b"].reshape(1, -1).astype(jnp.float32),
        "w3": params["fc3_w"].T.astype(MXU_DTYPE),
        "b3": params["fc3_b"].reshape(1, -1).astype(jnp.float32),
        "w4": params["fc4_w"].reshape(1, -1).astype(jnp.float32),   # (1, 256)
        "b4": params["fc4_b"].reshape(1, 1).astype(jnp.float32),
    }
    return prepped


# ----------------------------------------------------------------------------
# Forward pass (== Classifier.forward, inference mode)
# ----------------------------------------------------------------------------
def classifier_forward(x_nchw, prepped, fc_in):
    x = jnp.transpose(x_nchw, (0, 2, 3, 1)).astype(jnp.float32)   # NCHW -> NHWC

    x = fixed_vertical_edge_conv(x)          # fixed conv: VPU shift-add, f32
    x = x.astype(MXU_DTYPE)                  # bf16 activations from here on

    x = conv2d_bn_relu(x, prepped["conv1"], k=5)
    x = maxpool_3x3_s2_p1(x)
    x = conv2d_bn_relu(x, prepped["conv2"], k=3)
    x = maxpool_3x3_s2_p1(x)
    x = conv2d_bn_relu(x, prepped["conv3"], k=3)
    x = maxpool_3x3_s2_p1(x)

    # torch.flatten(x, 1) on NCHW ordering
    B = x.shape[0]
    x = jnp.transpose(x, (0, 3, 1, 2)).reshape(B, -1)
    assert x.shape[1] == fc_in

    # Fully connected head.  Dropout = identity.
    # TODO(synk): training-mode Dropout RNG masking not implemented (eval semantics).
    return fc_head(x, prepped["fc"])


# ----------------------------------------------------------------------------
if __name__ == "__main__":
    # Small shapes consistent with the module: N (height) = 24,
    # distortionFeatureSize (width) = 64, single input channel, batch = 2.
    N_, DFS, B = 24, 64, 2
    key = jax.random.PRNGKey(0)
    kx, kp = jax.random.split(key)

    x = jax.random.normal(kx, (B, 1, N_, DFS), dtype=jnp.float32)  # NCHW
    params, fc_in = init_params(kp, N=N_, dfs=DFS)
    prepped = prepare_params(params, fc_in)   # one-time weight prep

    fwd = jax.jit(lambda inp: classifier_forward(inp, prepped, fc_in))
    out = jax.block_until_ready(fwd(x))

    assert out.shape == (B, 1), out.shape
    assert bool(jnp.all(jnp.isfinite(out)))
    print("KERNEL_OK")
</pallas_src>

<mosaic_0001>
module attributes {stable_mosaic.version = 11 : i64} {
  func.func @_conv_mm_kernel(%arg0: i32, %arg1: memref<256x200xbf16, #tpu.memory_space<vmem>>, %arg2: memref<200x128xbf16, #tpu.memory_space<vmem>>, %arg3: memref<1x128xf32, #tpu.memory_space<vmem>>, %arg4: memref<1x128xf32, #tpu.memory_space<vmem>>, %arg5: memref<256x128xbf16, #tpu.memory_space<vmem>>) attributes {dimension_semantics = [#tpu.dimension_semantics<parallel>], iteration_bounds = array<i64: 2>, scalar_prefetch = 0 : i64, scratch_operands = 0 : i64, tpu.core_type = #tpu.core_type<tc>, window_params = [{transform_indices = @transform_0, window_bounds = array<i64: 256, 200>}, {pipeline_mode = #tpu.pipeline_mode<synchronous>, transform_indices = @transform_1, window_bounds = array<i64: 200, 128>}, {pipeline_mode = #tpu.pipeline_mode<synchronous>, transform_indices = @transform_2, window_bounds = array<i64: 1, 128>}, {pipeline_mode = #tpu.pipeline_mode<synchronous>, transform_indices = @transform_3, window_bounds = array<i64: 1, 128>}, {transform_indices = @transform_4, window_bounds = array<i64: 256, 128>}]} {
    %c0 = arith.constant 0 : index
    %c0_0 = arith.constant 0 : index
    %0 = vector.load %arg1[%c0, %c0_0] : memref<256x200xbf16, #tpu.memory_space<vmem>>, vector<256x200xbf16>
    %c0_1 = arith.constant 0 : index
    %c0_2 = arith.constant 0 : index
    %1 = vector.load %arg2[%c0_1, %c0_2] : memref<200x128xbf16, #tpu.memory_space<vmem>>, vector<200x128xbf16>
    %cst = arith.constant dense<0.000000e+00> : vector<256x128xf32>
    %2 = tpu.matmul %0, %1, %cst {dimension_numbers = #tpu.dot_dimension_numbers<[1], [0], [0], [1], [0, 0, 1, 1], [], []>} : vector<256x200xbf16>, vector<200x128xbf16>, vector<256x128xf32> -> vector<256x128xf32>
    %c0_3 = arith.constant 0 : index
    %c0_4 = arith.constant 0 : index
    %3 = vector.load %arg3[%c0_3, %c0_4] : memref<1x128xf32, #tpu.memory_space<vmem>>, vector<1x128xf32>
    %4 = vector.broadcast %3 : vector<1x128xf32> to vector<256x128xf32>
    %5 = arith.mulf %2, %4 : vector<256x128xf32>
    %c0_5 = arith.constant 0 : index
    %c0_6 = arith.constant 0 : index
    %6 = vector.load %arg4[%c0_5, %c0_6] : memref<1x128xf32, #tpu.memory_space<vmem>>, vector<1x128xf32>
    %7 = vector.broadcast %6 : vector<1x128xf32> to vector<256x128xf32>
    %8 = arith.addf %5, %7 : vector<256x128xf32>
    %cst_7 = arith.constant 0.000000e+00 : f32
    %9 = vector.broadcast %cst_7 : f32 to vector<256x128xf32>
    %10 = arith.maximumf %8, %9 : vector<256x128xf32>
    %11 = arith.truncf %10 : vector<256x128xf32> to vector<256x128xbf16>
    %c0_8 = arith.constant 0 : index
    %c0_9 = arith.constant 0 : index
    %12 = vector.load %arg5[%c0_8, %c0_9] : memref<256x128xbf16, #tpu.memory_space<vmem>>, vector<256x128xbf16>
    tpu.vector_store %arg5[%c0_8, %c0_9], %11 {strides = array<i32>} : memref<256x128xbf16, #tpu.memory_space<vmem>>, vector<256x128xbf16>,
    return
  }
  func.func @transform_0(%arg0: i32) -> (i32, i32) {
    %c0_i32 = arith.constant 0 : i32
    %c0_i32_0 = arith.constant 0 : i32
    return %arg0, %c0_i32 : i32, i32
  }
  func.func @transform_1(%arg0: i32) -> (i32, i32) {
    %c0_i32 = arith.constant 0 : i32
    %c0_i32_0 = arith.constant 0 : i32
    %c0_i32_1 = arith.constant 0 : i32
    return %c0_i32, %c0_i32_0 : i32, i32
  }
  func.func @transform_2(%arg0: i32) -> (i32, i32) {
    %c0_i32 = arith.constant 0 : i32
    %c0_i32_0 = arith.constant 0 : i32
    %c0_i32_1 = arith.constant 0 : i32
    return %c0_i32, %c0_i32_0 : i32, i32
  }
  func.func @transform_3(%arg0: i32) -> (i32, i32) {
    %c0_i32 = arith.constant 0 : i32
    %c0_i32_0 = arith.constant 0 : i32
    %c0_i32_1 = arith.constant 0 : i32
    return %c0_i32, %c0_i32_0 : i32, i32
  }
  func.func @transform_4(%arg0: i32) -> (i32, i32) {
    %c0_i32 = arith.constant 0 : i32
    %c0_i32_0 = arith.constant 0 : i32
    return %arg0, %c0_i32 : i32, i32
  }
}

module attributes {stable_mosaic.version = 11 : i64} {
  func.func @_max9_kernel(%arg0: i32, %arg1: memref<96x128xbf16, #tpu.memory_space<vmem>>, %arg2: memref<96x128xbf16, #tpu.memory_space<vmem>>, %arg3: memref<96x128xbf16, #tpu.memory_space<vmem>>, %arg4: memref<96x128xbf16, #tpu.memory_space<vmem>>, %arg5: memref<96x128xbf16, #tpu.memory_space<vmem>>, %arg6: memref<96x128xbf16, #tpu.memory_space<vmem>>, %arg7: memref<96x128xbf16, #tpu.memory_space<vmem>>, %arg8: memref<96x128xbf16, #tpu.memory_space<vmem>>, %arg9: memref<96x128xbf16, #tpu.memory_space<vmem>>, %arg10: memref<96x128xbf16, #tpu.memory_space<vmem>>) attributes {dimension_semantics = [#tpu.dimension_semantics<parallel>], iteration_bounds = array<i64: 1>, scalar_prefetch = 0 : i64, scratch_operands = 0 : i64, tpu.core_type = #tpu.core_type<tc>, window_params = [{transform_indices = @transform_0, window_bounds = array<i64: 96, 128>}, {transform_indices = @transform_1, window_bounds = array<i64: 96, 128>}, {transform_indices = @transform_2, window_bounds = array<i64: 96, 128>}, {transform_indices = @transform_3, window_bounds = array<i64: 96, 128>}, {transform_indices = @transform_4, window_bounds = array<i64: 96, 128>}, {transform_indices = @transform_5, window_bounds = array<i64: 96, 128>}, {transform_indices = @transform_6, window_bounds = array<i64: 96, 128>}, {transform_indices = @transform_7, window_bounds = array<i64: 96, 128>}, {transform_indices = @transform_8, window_bounds = array<i64: 96, 128>}, {transform_indices = @transform_9, window_bounds = array<i64: 96, 128>}]} {
    %c0 = arith.constant 0 : index
    %c0_0 = arith.constant 0 : index
    %0 = vector.load %arg1[%c0, %c0_0] : memref<96x128xbf16, #tpu.memory_space<vmem>>, vector<96x128xbf16>
    %c0_1 = arith.constant 0 : index
    %c0_2 = arith.constant 0 : index
    %1 = vector.load %arg2[%c0_1, %c0_2] : memref<96x128xbf16, #tpu.memory_space<vmem>>, vector<96x128xbf16>
    %2 = arith.maximumf %0, %1 : vector<96x128xbf16>
    %c0_3 = arith.constant 0 : index
    %c0_4 = arith.constant 0 : index
    %3 = vector.load %arg3[%c0_3, %c0_4] : memref<96x128xbf16, #tpu.memory_space<vmem>>, vector<96x128xbf16>
    %4 = arith.maximumf %2, %3 : vector<96x128xbf16>
    %c0_5 = arith.constant 0 : index
    %c0_6 = arith.constant 0 : index
    %5 = vector.load %arg4[%c0_5, %c0_6] : memref<96x128xbf16, #tpu.memory_space<vmem>>, vector<96x128xbf16>
    %6 = arith.maximumf %4, %5 : vector<96x128xbf16>
    %c0_7 = arith.constant 0 : index
    %c0_8 = arith.constant 0 : index
    %7 = vector.load %arg5[%c0_7, %c0_8] : memref<96x128xbf16, #tpu.memory_space<vmem>>, vector<96x128xbf16>
    %8 = arith.maximumf %6, %7 : vector<96x128xbf16>
    %c0_9 = arith.constant 0 : index
    %c0_10 = arith.constant 0 : index
    %9 = vector.load %arg6[%c0_9, %c0_10] : memref<96x128xbf16, #tpu.memory_space<vmem>>, vector<96x128xbf16>
    %10 = arith.maximumf %8, %9 : vector<96x128xbf16>
    %c0_11 = arith.constant 0 : index
    %c0_12 = arith.constant 0 : index
    %11 = vector.load %arg7[%c0_11, %c0_12] : memref<96x128xbf16, #tpu.memory_space<vmem>>, vector<96x128xbf16>
    %12 = arith.maximumf %10, %11 : vector<96x128xbf16>
    %c0_13 = arith.constant 0 : index
    %c0_14 = arith.constant 0 : index
    %13 = vector.load %arg8[%c0_13, %c0_14] : memref<96x128xbf16, #tpu.memory_space<vmem>>, vector<96x128xbf16>
    %14 = arith.maximumf %12, %13 : vector<96x128xbf16>
    %c0_15 = arith.constant 0 : index
    %c0_16 = arith.constant 0 : index
    %15 = vector.load %arg9[%c0_15, %c0_16] : memref<96x128xbf16, #tpu.memory_space<vmem>>, vector<96x128xbf16>
    %16 = arith.maximumf %14, %15 : vector<96x128xbf16>
    %c0_17 = arith.constant 0 : index
    %c0_18 = arith.constant 0 : index
    %17 = vector.load %arg10[%c0_17, %c0_18] : memref<96x128xbf16, #tpu.memory_space<vmem>>, vector<96x128xbf16>
    tpu.vector_store %arg10[%c0_17, %c0_18], %16 {strides = array<i32>} : memref<96x128xbf16, #tpu.memory_space<vmem>>, vector<96x128xbf16>,
    return
  }
  func.func @transform_0(%arg0: i32) -> (i32, i32) {
    %c0_i32 = arith.constant 0 : i32
    %c0_i32_0 = arith.constant 0 : i32
    return %arg0, %c0_i32 : i32, i32
  }
  func.func @transform_1(%arg0: i32) -> (i32, i32) {
    %c0_i32 = arith.constant 0 : i32
    %c0_i32_0 = arith.constant 0 : i32
    return %arg0, %c0_i32 : i32, i32
  }
  func.func @transform_2(%arg0: i32) -> (i32, i32) {
    %c0_i32 = arith.constant 0 : i32
    %c0_i32_0 = arith.constant 0 : i32
    return %arg0, %c0_i32 : i32, i32
  }
  func.func @transform_3(%arg0: i32) -> (i32, i32) {
    %c0_i32 = arith.constant 0 : i32
    %c0_i32_0 = arith.constant 0 : i32
    return %arg0, %c0_i32 : i32, i32
  }
  func.func @transform_4(%arg0: i32) -> (i32, i32) {
    %c0_i32 = arith.constant 0 : i32
    %c0_i32_0 = arith.constant 0 : i32
    return %arg0, %c0_i32 : i32, i32
  }
  func.func @transform_5(%arg0: i32) -> (i32, i32) {
    %c0_i32 = arith.constant 0 : i32
    %c0_i32_0 = arith.constant 0 : i32
    return %arg0, %c0_i32 : i32, i32
  }
  func.func @transform_6(%arg0: i32) -> (i32, i32) {
    %c0_i32 = arith.constant 0 : i32
    %c0_i32_0 = arith.constant 0 : i32
    return %arg0, %c0_i32 : i32, i32
  }
  func.func @transform_7(%arg0: i32) -> (i32, i32) {
    %c0_i32 = arith.constant 0 : i32
    %c0_i32_0 = arith.constant 0 : i32
    return %arg0, %c0_i32 : i32, i32
  }
  func.func @transform_8(%arg0: i32) -> (i32, i32) {
    %c0_i32 = arith.constant 0 : i32
    %c0_i32_0 = arith.constant 0 : i32
    return %arg0, %c0_i32 : i32, i32
  }
  func.func @transform_9(%arg0: i32) -> (i32, i32) {
    %c0_i32 = arith.constant 0 : i32
    %c0_i32_0 = arith.constant 0 : i32
    return %arg0, %c0_i32 : i32, i32
  }
}

module attributes {stable_mosaic.version = 11 : i64} {
  func.func @_conv_mm_kernel(%arg0: i32, %arg1: memref<176x576xbf16, #tpu.memory_space<vmem>>, %arg2: memref<576x128xbf16, #tpu.memory_space<vmem>>, %arg3: memref<1x128xf32, #tpu.memory_space<vmem>>, %arg4: memref<1x128xf32, #tpu.memory_space<vmem>>, %arg5: memref<176x128xbf16, #tpu.memory_space<vmem>>) attributes {dimension_semantics = [#tpu.dimension_semantics<parallel>], iteration_bounds = array<i64: 1>, scalar_prefetch = 0 : i64, scratch_operands = 0 : i64, tpu.core_type = #tpu.core_type<tc>, window_params = [{transform_indices = @transform_0, window_bounds = array<i64: 176, 576>}, {pipeline_mode = #tpu.pipeline_mode<synchronous>, transform_indices = @transform_1, window_bounds = array<i64: 576, 128>}, {pipeline_mode = #tpu.pipeline_mode<synchronous>, transform_indices = @transform_2, window_bounds = array<i64: 1, 128>}, {pipeline_mode = #tpu.pipeline_mode<synchronous>, transform_indices = @transform_3, window_bounds = array<i64: 1, 128>}, {transform_indices = @transform_4, window_bounds = array<i64: 176, 128>}]} {
    %c0 = arith.constant 0 : index
    %c0_0 = arith.constant 0 : index
    %0 = vector.load %arg1[%c0, %c0_0] : memref<176x576xbf16, #tpu.memory_space<vmem>>, vector<176x576xbf16>
    %c0_1 = arith.constant 0 : index
    %c0_2 = arith.constant 0 : index
    %1 = vector.load %arg2[%c0_1, %c0_2] : memref<576x128xbf16, #tpu.memory_space<vmem>>, vector<576x128xbf16>
    %cst = arith.constant dense<0.000000e+00> : vector<176x128xf32>
    %2 = tpu.matmul %0, %1, %cst {dimension_numbers = #tpu.dot_dimension_numbers<[1], [0], [0], [1], [0, 0, 1, 1], [], []>} : vector<176x576xbf16>, vector<576x128xbf16>, vector<176x128xf32> -> vector<176x128xf32>
    %c0_3 = arith.constant 0 : index
    %c0_4 = arith.constant 0 : index
    %3 = vector.load %arg3[%c0_3, %c0_4] : memref<1x128xf32, #tpu.memory_space<vmem>>, vector<1x128xf32>
    %4 = vector.broadcast %3 : vector<1x128xf32> to vector<176x128xf32>
    %5 = arith.mulf %2, %4 : vector<176x128xf32>
    %c0_5 = arith.constant 0 : index
    %c0_6 = arith.constant 0 : index
    %6 = vector.load %arg4[%c0_5, %c0_6] : memref<1x128xf32, #tpu.memory_space<vmem>>, vector<1x128xf32>
    %7 = vector.broadcast %6 : vector<1x128xf32> to vector<176x128xf32>
    %8 = arith.addf %5, %7 : vector<176x128xf32>
    %cst_7 = arith.constant 0.000000e+00 : f32
    %9 = vector.broadcast %cst_7 : f32 to vector<176x128xf32>
    %10 = arith.maximumf %8, %9 : vector<176x128xf32>
    %11 = arith.truncf %10 : vector<176x128xf32> to vector<176x128xbf16>
    %c0_8 = arith.constant 0 : index
    %c0_9 = arith.constant 0 : index
    %12 = vector.load %arg5[%c0_8, %c0_9] : memref<176x128xbf16, #tpu.memory_space<vmem>>, vector<176x128xbf16>
    tpu.vector_store %arg5[%c0_8, %c0_9], %11 {strides = array<i32>} : memref<176x128xbf16, #tpu.memory_space<vmem>>, vector<176x128xbf16>,
    return
  }
  func.func @transform_0(%arg0: i32) -> (i32, i32) {
    %c0_i32 = arith.constant 0 : i32
    %c0_i32_0 = arith.constant 0 : i32
    return %arg0, %c0_i32 : i32, i32
  }
  func.func @transform_1(%arg0: i32) -> (i32, i32) {
    %c0_i32 = arith.constant 0 : i32
    %c0_i32_0 = arith.constant 0 : i32
    %c0_i32_1 = arith.constant 0 : i32
    return %c0_i32, %c0_i32_0 : i32, i32
  }
  func.func @transform_2(%arg0: i32) -> (i32, i32) {
    %c0_i32 = arith.constant 0 : i32
    %c0_i32_0 = arith.constant 0 : i32
    %c0_i32_1 = arith.constant 0 : i32
    return %c0_i32, %c0_i32_0 : i32, i32
  }
  func.func @transform_3(%arg0: i32) -> (i32, i32) {
    %c0_i32 = arith.constant 0 : i32
    %c0_i32_0 = arith.constant 0 : i32
    %c0_i32_1 = arith.constant 0 : i32
    return %c0_i32, %c0_i32_0 : i32, i32
  }
  func.func @transform_4(%arg0: i32) -> (i32, i32) {
    %c0_i32 = arith.constant 0 : i32
    %c0_i32_0 = arith.constant 0 : i32
    return %arg0, %c0_i32 : i32, i32
  }
}

module attributes {stable_mosaic.version = 11 : i64} {
  func.func @_max9_kernel(%arg0: i32, %arg1: memref<48x128xbf16, #tpu.memory_space<vmem>>, %arg2: memref<48x128xbf16, #tpu.memory_space<vmem>>, %arg3: memref<48x128xbf16, #tpu.memory_space<vmem>>, %arg4: memref<48x128xbf16, #tpu.memory_space<vmem>>, %arg5: memref<48x128xbf16, #tpu.memory_space<vmem>>, %arg6: memref<48x128xbf16, #tpu.memory_space<vmem>>, %arg7: memref<48x128xbf16, #tpu.memory_space<vmem>>, %arg8: memref<48x128xbf16, #tpu.memory_space<vmem>>, %arg9: memref<48x128xbf16, #tpu.memory_space<vmem>>, %arg10: memref<48x128xbf16, #tpu.memory_space<vmem>>) attributes {dimension_semantics = [#tpu.dimension_semantics<parallel>], iteration_bounds = array<i64: 1>, scalar_prefetch = 0 : i64, scratch_operands = 0 : i64, tpu.core_type = #tpu.core_type<tc>, window_params = [{transform_indices = @transform_0, window_bounds = array<i64: 48, 128>}, {transform_indices = @transform_1, window_bounds = array<i64: 48, 128>}, {transform_indices = @transform_2, window_bounds = array<i64: 48, 128>}, {transform_indices = @transform_3, window_bounds = array<i64: 48, 128>}, {transform_indices = @transform_4, window_bounds = array<i64: 48, 128>}, {transform_indices = @transform_5, window_bounds = array<i64: 48, 128>}, {transform_indices = @transform_6, window_bounds = array<i64: 48, 128>}, {transform_indices = @transform_7, window_bounds = array<i64: 48, 128>}, {transform_indices = @transform_8, window_bounds = array<i64: 48, 128>}, {transform_indices = @transform_9, window_bounds = array<i64: 48, 128>}]} {
    %c0 = arith.constant 0 : index
    %c0_0 = arith.constant 0 : index
    %0 = vector.load %arg1[%c0, %c0_0] : memref<48x128xbf16, #tpu.memory_space<vmem>>, vector<48x128xbf16>
    %c0_1 = arith.constant 0 : index
    %c0_2 = arith.constant 0 : index
    %1 = vector.load %arg2[%c0_1, %c0_2] : memref<48x128xbf16, #tpu.memory_space<vmem>>, vector<48x128xbf16>
    %2 = arith.maximumf %0, %1 : vector<48x128xbf16>
    %c0_3 = arith.constant 0 : index
    %c0_4 = arith.constant 0 : index
    %3 = vector.load %arg3[%c0_3, %c0_4] : memref<48x128xbf16, #tpu.memory_space<vmem>>, vector<48x128xbf16>
    %4 = arith.maximumf %2, %3 : vector<48x128xbf16>
    %c0_5 = arith.constant 0 : index
    %c0_6 = arith.constant 0 : index
    %5 = vector.load %arg4[%c0_5, %c0_6] : memref<48x128xbf16, #tpu.memory_space<vmem>>, vector<48x128xbf16>
    %6 = arith.maximumf %4, %5 : vector<48x128xbf16>
    %c0_7 = arith.constant 0 : index
    %c0_8 = arith.constant 0 : index
    %7 = vector.load %arg5[%c0_7, %c0_8] : memref<48x128xbf16, #tpu.memory_space<vmem>>, vector<48x128xbf16>
    %8 = arith.maximumf %6, %7 : vector<48x128xbf16>
    %c0_9 = arith.constant 0 : index
    %c0_10 = arith.constant 0 : index
    %9 = vector.load %arg6[%c0_9, %c0_10] : memref<48x128xbf16, #tpu.memory_space<vmem>>, vector<48x128xbf16>
    %10 = arith.maximumf %8, %9 : vector<48x128xbf16>
    %c0_11 = arith.constant 0 : index
    %c0_12 = arith.constant 0 : index
    %11 = vector.load %arg7[%c0_11, %c0_12] : memref<48x128xbf16, #tpu.memory_space<vmem>>, vector<48x128xbf16>
    %12 = arith.maximumf %10, %11 : vector<48x128xbf16>
    %c0_13 = arith.constant 0 : index
    %c0_14 = arith.constant 0 : index
    %13 = vector.load %arg8[%c0_13, %c0_14] : memref<48x128xbf16, #tpu.memory_space<vmem>>, vector<48x128xbf16>
    %14 = arith.maximumf %12, %13 : vector<48x128xbf16>
    %c0_15 = arith.constant 0 : index
    %c0_16 = arith.constant 0 : index
    %15 = vector.load %arg9[%c0_15, %c0_16] : memref<48x128xbf16, #tpu.memory_space<vmem>>, vector<48x128xbf16>
    %16 = arith.maximumf %14, %15 : vector<48x128xbf16>
    %c0_17 = arith.constant 0 : index
    %c0_18 = arith.constant 0 : index
    %17 = vector.load %arg10[%c0_17, %c0_18] : memref<48x128xbf16, #tpu.memory_space<vmem>>, vector<48x128xbf16>
    tpu.vector_store %arg10[%c0_17, %c0_18], %16 {strides = array<i32>} : memref<48x128xbf16, #tpu.memory_space<vmem>>, vector<48x128xbf16>,
    return
  }
  func.func @transform_0(%arg0: i32) -> (i32, i32) {
    %c0_i32 = arith.constant 0 : i32
    %c0_i32_0 = arith.constant 0 : i32
    return %arg0, %c0_i32 : i32, i32
  }
  func.func @transform_1(%arg0: i32) -> (i32, i32) {
    %c0_i32 = arith.constant 0 : i32
    %c0_i32_0 = arith.constant 0 : i32
    return %arg0, %c0_i32 : i32, i32
  }
  func.func @transform_2(%arg0: i32) -> (i32, i32) {
    %c0_i32 = arith.constant 0 : i32
    %c0_i32_0 = arith.constant 0 : i32
    return %arg0, %c0_i32 : i32, i32
  }
  func.func @transform_3(%arg0: i32) -> (i32, i32) {
    %c0_i32 = arith.constant 0 : i32
    %c0_i32_0 = arith.constant 0 : i32
    return %arg0, %c0_i32 : i32, i32
  }
  func.func @transform_4(%arg0: i32) -> (i32, i32) {
    %c0_i32 = arith.constant 0 : i32
    %c0_i32_0 = arith.constant 0 : i32
    return %arg0, %c0_i32 : i32, i32
  }
  func.func @transform_5(%arg0: i32) -> (i32, i32) {
    %c0_i32 = arith.constant 0 : i32
    %c0_i32_0 = arith.constant 0 : i32
    return %arg0, %c0_i32 : i32, i32
  }
  func.func @transform_6(%arg0: i32) -> (i32, i32) {
    %c0_i32 = arith.constant 0 : i32
    %c0_i32_0 = arith.constant 0 : i32
    return %arg0, %c0_i32 : i32, i32
  }
  func.func @transform_7(%arg0: i32) -> (i32, i32) {
    %c0_i32 = arith.constant 0 : i32
    %c0_i32_0 = arith.constant 0 : i32
    return %arg0, %c0_i32 : i32, i32
  }
  func.func @transform_8(%arg0: i32) -> (i32, i32) {
    %c0_i32 = arith.constant 0 : i32
    %c0_i32_0 = arith.constant 0 : i32
    return %arg0, %c0_i32 : i32, i32
  }
  func.func @transform_9(%arg0: i32) -> (i32, i32) {
    %c0_i32 = arith.constant 0 : i32
    %c0_i32_0 = arith.constant 0 : i32
    return %arg0, %c0_i32 : i32, i32
  }
}

module attributes {stable_mosaic.version = 11 : i64} {
  func.func @_conv_mm_kernel(%arg0: i32, %arg1: memref<96x576xbf16, #tpu.memory_space<vmem>>, %arg2: memref<576x128xbf16, #tpu.memory_space<vmem>>, %arg3: memref<1x128xf32, #tpu.memory_space<vmem>>, %arg4: memref<1x128xf32, #tpu.memory_space<vmem>>, %arg5: memref<96x128xbf16, #tpu.memory_space<vmem>>) attributes {dimension_semantics = [#tpu.dimension_semantics<parallel>], iteration_bounds = array<i64: 1>, scalar_prefetch = 0 : i64, scratch_operands = 0 : i64, tpu.core_type = #tpu.core_type<tc>, window_params = [{transform_indices = @transform_0, window_bounds = array<i64: 96, 576>}, {pipeline_mode = #tpu.pipeline_mode<synchronous>, transform_indices = @transform_1, window_bounds = array<i64: 576, 128>}, {pipeline_mode = #tpu.pipeline_mode<synchronous>, transform_indices = @transform_2, window_bounds = array<i64: 1, 128>}, {pipeline_mode = #tpu.pipeline_mode<synchronous>, transform_indices = @transform_3, window_bounds = array<i64: 1, 128>}, {transform_indices = @transform_4, window_bounds = array<i64: 96, 128>}]} {
    %c0 = arith.constant 0 : index
    %c0_0 = arith.constant 0 : index
    %0 = vector.load %arg1[%c0, %c0_0] : memref<96x576xbf16, #tpu.memory_space<vmem>>, vector<96x576xbf16>
    %c0_1 = arith.constant 0 : index
    %c0_2 = arith.constant 0 : index
    %1 = vector.load %arg2[%c0_1, %c0_2] : memref<576x128xbf16, #tpu.memory_space<vmem>>, vector<576x128xbf16>
    %cst = arith.constant dense<0.000000e+00> : vector<96x128xf32>
    %2 = tpu.matmul %0, %1, %cst {dimension_numbers = #tpu.dot_dimension_numbers<[1], [0], [0], [1], [0, 0, 1, 1], [], []>} : vector<96x576xbf16>, vector<576x128xbf16>, vector<96x128xf32> -> vector<96x128xf32>
    %c0_3 = arith.constant 0 : index
    %c0_4 = arith.constant 0 : index
    %3 = vector.load %arg3[%c0_3, %c0_4] : memref<1x128xf32, #tpu.memory_space<vmem>>, vector<1x128xf32>
    %4 = vector.broadcast %3 : vector<1x128xf32> to vector<96x128xf32>
    %5 = arith.mulf %2, %4 : vector<96x128xf32>
    %c0_5 = arith.constant 0 : index
    %c0_6 = arith.constant 0 : index
    %6 = vector.load %arg4[%c0_5, %c0_6] : memref<1x128xf32, #tpu.memory_space<vmem>>, vector<1x128xf32>
    %7 = vector.broadcast %6 : vector<1x128xf32> to vector<96x128xf32>
    %8 = arith.addf %5, %7 : vector<96x128xf32>
    %cst_7 = arith.constant 0.000000e+00 : f32
    %9 = vector.broadcast %cst_7 : f32 to vector<96x128xf32>
    %10 = arith.maximumf %8, %9 : vector<96x128xf32>
    %11 = arith.truncf %10 : vector<96x128xf32> to vector<96x128xbf16>
    %c0_8 = arith.constant 0 : index
    %c0_9 = arith.constant 0 : index
    %12 = vector.load %arg5[%c0_8, %c0_9] : memref<96x128xbf16, #tpu.memory_space<vmem>>, vector<96x128xbf16>
    tpu.vector_store %arg5[%c0_8, %c0_9], %11 {strides = array<i32>} : memref<96x128xbf16, #tpu.memory_space<vmem>>, vector<96x128xbf16>,
    return
  }
  func.func @transform_0(%arg0: i32) -> (i32, i32) {
    %c0_i32 = arith.constant 0 : i32
    %c0_i32_0 = arith.constant 0 : i32
    return %arg0, %c0_i32 : i32, i32
  }
  func.func @transform_1(%arg0: i32) -> (i32, i32) {
    %c0_i32 = arith.constant 0 : i32
    %c0_i32_0 = arith.constant 0 : i32
    %c0_i32_1 = arith.constant 0 : i32
    return %c0_i32, %c0_i32_0 : i32, i32
  }
  func.func @transform_2(%arg0: i32) -> (i32, i32) {
    %c0_i32 = arith.constant 0 : i32
    %c0_i32_0 = arith.constant 0 : i32
    %c0_i32_1 = arith.constant 0 : i32
    return %c0_i32, %c0_i32_0 : i32, i32
  }
  func.func @transform_3(%arg0: i32) -> (i32, i32) {
    %c0_i32 = arith.constant 0 : i32
    %c0_i32_0 = arith.constant 0 : i32
    %c0_i32_1 = arith.constant 0 : i32
    return %c0_i32, %c0_i32_0 : i32, i32
  }
  func.func @transform_4(%arg0: i32) -> (i32, i32) {
    %c0_i32 = arith.constant 0 : i32
    %c0_i32_0 = arith.constant 0 : i32
    return %arg0, %c0_i32 : i32, i32
  }
}

module attributes {stable_mosaic.version = 11 : i64} {
  func.func @_max9_kernel(%arg0: i32, %arg1: memref<32x128xbf16, #tpu.memory_space<vmem>>, %arg2: memref<32x128xbf16, #tpu.memory_space<vmem>>, %arg3: memref<32x128xbf16, #tpu.memory_space<vmem>>, %arg4: memref<32x128xbf16, #tpu.memory_space<vmem>>, %arg5: memref<32x128xbf16, #tpu.memory_space<vmem>>, %arg6: memref<32x128xbf16, #tpu.memory_space<vmem>>, %arg7: memref<32x128xbf16, #tpu.memory_space<vmem>>, %arg8: memref<32x128xbf16, #tpu.memory_space<vmem>>, %arg9: memref<32x128xbf16, #tpu.memory_space<vmem>>, %arg10: memref<32x128xbf16, #tpu.memory_space<vmem>>) attributes {dimension_semantics = [#tpu.dimension_semantics<parallel>], iteration_bounds = array<i64: 1>, scalar_prefetch = 0 : i64, scratch_operands = 0 : i64, tpu.core_type = #tpu.core_type<tc>, window_params = [{transform_indices = @transform_0, window_bounds = array<i64: 32, 128>}, {transform_indices = @transform_1, window_bounds = array<i64: 32, 128>}, {transform_indices = @transform_2, window_bounds = array<i64: 32, 128>}, {transform_indices = @transform_3, window_bounds = array<i64: 32, 128>}, {transform_indices = @transform_4, window_bounds = array<i64: 32, 128>}, {transform_indices = @transform_5, window_bounds = array<i64: 32, 128>}, {transform_indices = @transform_6, window_bounds = array<i64: 32, 128>}, {transform_indices = @transform_7, window_bounds = array<i64: 32, 128>}, {transform_indices = @transform_8, window_bounds = array<i64: 32, 128>}, {transform_indices = @transform_9, window_bounds = array<i64: 32, 128>}]} {
    %c0 = arith.constant 0 : index
    %c0_0 = arith.constant 0 : index
    %0 = vector.load %arg1[%c0, %c0_0] : memref<32x128xbf16, #tpu.memory_space<vmem>>, vector<32x128xbf16>
    %c0_1 = arith.constant 0 : index
    %c0_2 = arith.constant 0 : index
    %1 = vector.load %arg2[%c0_1, %c0_2] : memref<32x128xbf16, #tpu.memory_space<vmem>>, vector<32x128xbf16>
    %2 = arith.maximumf %0, %1 : vector<32x128xbf16>
    %c0_3 = arith.constant 0 : index
    %c0_4 = arith.constant 0 : index
    %3 = vector.load %arg3[%c0_3, %c0_4] : memref<32x128xbf16, #tpu.memory_space<vmem>>, vector<32x128xbf16>
    %4 = arith.maximumf %2, %3 : vector<32x128xbf16>
    %c0_5 = arith.constant 0 : index
    %c0_6 = arith.constant 0 : index
    %5 = vector.load %arg4[%c0_5, %c0_6] : memref<32x128xbf16, #tpu.memory_space<vmem>>, vector<32x128xbf16>
    %6 = arith.maximumf %4, %5 : vector<32x128xbf16>
    %c0_7 = arith.constant 0 : index
    %c0_8 = arith.constant 0 : index
    %7 = vector.load %arg5[%c0_7, %c0_8] : memref<32x128xbf16, #tpu.memory_space<vmem>>, vector<32x128xbf16>
    %8 = arith.maximumf %6, %7 : vector<32x128xbf16>
    %c0_9 = arith.constant 0 : index
    %c0_10 = arith.constant 0 : index
    %9 = vector.load %arg6[%c0_9, %c0_10] : memref<32x128xbf16, #tpu.memory_space<vmem>>, vector<32x128xbf16>
    %10 = arith.maximumf %8, %9 : vector<32x128xbf16>
    %c0_11 = arith.constant 0 : index
    %c0_12 = arith.constant 0 : index
    %11 = vector.load %arg7[%c0_11, %c0_12] : memref<32x128xbf16, #tpu.memory_space<vmem>>, vector<32x128xbf16>
    %12 = arith.maximumf %10, %11 : vector<32x128xbf16>
    %c0_13 = arith.constant 0 : index
    %c0_14 = arith.constant 0 : index
    %13 = vector.load %arg8[%c0_13, %c0_14] : memref<32x128xbf16, #tpu.memory_space<vmem>>, vector<32x128xbf16>
    %14 = arith.maximumf %12, %13 : vector<32x128xbf16>
    %c0_15 = arith.constant 0 : index
    %c0_16 = arith.constant 0 : index
    %15 = vector.load %arg9[%c0_15, %c0_16] : memref<32x128xbf16, #tpu.memory_space<vmem>>, vector<32x128xbf16>
    %16 = arith.maximumf %14, %15 : vector<32x128xbf16>
    %c0_17 = arith.constant 0 : index
    %c0_18 = arith.constant 0 : index
    %17 = vector.load %arg10[%c0_17, %c0_18] : memref<32x128xbf16, #tpu.memory_space<vmem>>, vector<32x128xbf16>
    tpu.vector_store %arg10[%c0_17, %c0_18], %16 {strides = array<i32>} : memref<32x128xbf16, #tpu.memory_space<vmem>>, vector<32x128xbf16>,
    return
  }
  func.func @transform_0(%arg0: i32) -> (i32, i32) {
    %c0_i32 = arith.constant 0 : i32
    %c0_i32_0 = arith.constant 0 : i32
    return %arg0, %c0_i32 : i32, i32
  }
  func.func @transform_1(%arg0: i32) -> (i32, i32) {
    %c0_i32 = arith.constant 0 : i32
    %c0_i32_0 = arith.constant 0 : i32
    return %arg0, %c0_i32 : i32, i32
  }
  func.func @transform_2(%arg0: i32) -> (i32, i32) {
    %c0_i32 = arith.constant 0 : i32
    %c0_i32_0 = arith.constant 0 : i32
    return %arg0, %c0_i32 : i32, i32
  }
  func.func @transform_3(%arg0: i32) -> (i32, i32) {
    %c0_i32 = arith.constant 0 : i32
    %c0_i32_0 = arith.constant 0 : i32
    return %arg0, %c0_i32 : i32, i32
  }
  func.func @transform_4(%arg0: i32) -> (i32, i32) {
    %c0_i32 = arith.constant 0 : i32
    %c0_i32_0 = arith.constant 0 : i32
    return %arg0, %c0_i32 : i32, i32
  }
  func.func @transform_5(%arg0: i32) -> (i32, i32) {
    %c0_i32 = arith.constant 0 : i32
    %c0_i32_0 = arith.constant 0 : i32
    return %arg0, %c0_i32 : i32, i32
  }
  func.func @transform_6(%arg0: i32) -> (i32, i32) {
    %c0_i32 = arith.constant 0 : i32
    %c0_i32_0 = arith.constant 0 : i32
    return %arg0, %c0_i32 : i32, i32
  }
  func.func @transform_7(%arg0: i32) -> (i32, i32) {
    %c0_i32 = arith.constant 0 : i32
    %c0_i32_0 = arith.constant 0 : i32
    return %arg0, %c0_i32 : i32, i32
  }
  func.func @transform_8(%arg0: i32) -> (i32, i32) {
    %c0_i32 = arith.constant 0 : i32
    %c0_i32_0 = arith.constant 0 : i32
    return %arg0, %c0_i32 : i32, i32
  }
  func.func @transform_9(%arg0: i32) -> (i32, i32) {
    %c0_i32 = arith.constant 0 : i32
    %c0_i32_0 = arith.constant 0 : i32
    return %arg0, %c0_i32 : i32, i32
  }
}

module attributes {stable_mosaic.version = 11 : i64} {
  func.func @_fc1_kernel(%arg0: i32, %arg1: i32, %arg2: memref<16x1536xbf16, #tpu.memory_space<vmem>>, %arg3: memref<1536x512xbf16, #tpu.memory_space<vmem>>, %arg4: memref<1x512xf32, #tpu.memory_space<vmem>>, %arg5: memref<16x512xbf16, #tpu.memory_space<vmem>>, %arg6: memref<16x512xf32, #tpu.memory_space<vmem>>) attributes {dimension_semantics = [#tpu.dimension_semantics<parallel>, #tpu.dimension_semantics<arbitrary>], iteration_bounds = array<i64: 2, 1>, scalar_prefetch = 0 : i64, scratch_operands = 1 : i64, tpu.core_type = #tpu.core_type<tc>, window_params = [{transform_indices = @transform_0, window_bounds = array<i64: 16, 1536>}, {transform_indices = @transform_1, window_bounds = array<i64: 1536, 512>}, {transform_indices = @transform_2, window_bounds = array<i64: 1, 512>}, {transform_indices = @transform_3, window_bounds = array<i64: 16, 512>}]} {
    %c0_i32 = arith.constant 0 : i32
    %0 = arith.cmpi eq, %arg1, %c0_i32 : i32
    %1 = arith.extui %0 : i1 to i32
    %c0_i32_0 = arith.constant 0 : i32
    %2 = arith.cmpi ne, %1, %c0_i32_0 : i32
    scf.if %2 {
      %cst_10 = arith.constant 0.000000e+00 : f32
      %12 = vector.broadcast %cst_10 : f32 to vector<16x512xf32>
      %c0_11 = arith.constant 0 : index
      %c0_12 = arith.constant 0 : index
      %13 = vector.load %arg6[%c0_11, %c0_12] : memref<16x512xf32, #tpu.memory_space<vmem>>, vector<16x512xf32>
      tpu.vector_store %arg6[%c0_11, %c0_12], %12 {strides = array<i32>} : memref<16x512xf32, #tpu.memory_space<vmem>>, vector<16x512xf32>,
    } else {
    }
    %c0 = arith.constant 0 : index
    %c0_1 = arith.constant 0 : index
    %3 = vector.load %arg6[%c0, %c0_1] : memref<16x512xf32, #tpu.memory_space<vmem>>, vector<16x512xf32>
    %c0_2 = arith.constant 0 : index
    %c0_3 = arith.constant 0 : index
    %4 = vector.load %arg2[%c0_2, %c0_3] : memref<16x1536xbf16, #tpu.memory_space<vmem>>, vector<16x1536xbf16>
    %c0_4 = arith.constant 0 : index
    %c0_5 = arith.constant 0 : index
    %5 = vector.load %arg3[%c0_4, %c0_5] : memref<1536x512xbf16, #tpu.memory_space<vmem>>, vector<1536x512xbf16>
    %cst = arith.constant dense<0.000000e+00> : vector<16x512xf32>
    %6 = tpu.matmul %4, %5, %cst {dimension_numbers = #tpu.dot_dimension_numbers<[1], [0], [0], [1], [0, 0, 1, 1], [], []>} : vector<16x1536xbf16>, vector<1536x512xbf16>, vector<16x512xf32> -> vector<16x512xf32>
    %7 = arith.addf %3, %6 : vector<16x512xf32>
    %c0_6 = arith.constant 0 : index
    %c0_7 = arith.constant 0 : index
    %8 = vector.load %arg6[%c0_6, %c0_7] : memref<16x512xf32, #tpu.memory_space<vmem>>, vector<16x512xf32>
    tpu.vector_store %arg6[%c0_6, %c0_7], %7 {strides = array<i32>} : memref<16x512xf32, #tpu.memory_space<vmem>>, vector<16x512xf32>,
    %c0_i32_8 = arith.constant 0 : i32
    %9 = arith.cmpi eq, %arg1, %c0_i32_8 : i32
    %10 = arith.extui %9 : i1 to i32
    %c0_i32_9 = arith.constant 0 : i32
    %11 = arith.cmpi ne, %10, %c0_i32_9 : i32
    scf.if %11 {
      %c0_10 = arith.constant 0 : index
      %c0_11 = arith.constant 0 : index
      %12 = vector.load %arg6[%c0_10, %c0_11] : memref<16x512xf32, #tpu.memory_space<vmem>>, vector<16x512xf32>
      %c0_12 = arith.constant 0 : index
      %c0_13 = arith.constant 0 : index
      %13 = vector.load %arg4[%c0_12, %c0_13] : memref<1x512xf32, #tpu.memory_space<vmem>>, vector<1x512xf32>
      %14 = vector.broadcast %13 : vector<1x512xf32> to vector<16x512xf32>
      %15 = arith.addf %12, %14 : vector<16x512xf32>
      %cst_14 = arith.constant 0.000000e+00 : f32
      %16 = vector.broadcast %cst_14 : f32 to vector<16x512xf32>
      %17 = arith.maximumf %15, %16 : vector<16x512xf32>
      %18 = arith.truncf %17 : vector<16x512xf32> to vector<16x512xbf16>
      %c0_15 = arith.constant 0 : index
      %c0_16 = arith.constant 0 : index
      %19 = vector.load %arg5[%c0_15, %c0_16] : memref<16x512xbf16, #tpu.memory_space<vmem>>, vector<16x512xbf16>
      tpu.vector_store %arg5[%c0_15, %c0_16], %18 {strides = array<i32>} : memref<16x512xbf16, #tpu.memory_space<vmem>>, vector<16x512xbf16>,
    } else {
    }
    return
  }
  func.func @transform_0(%arg0: i32, %arg1: i32) -> (i32, i32) {
    %c0_i32 = arith.constant 0 : i32
    %c0_i32_0 = arith.constant 0 : i32
    return %c0_i32, %arg1 : i32, i32
  }
  func.func @transform_1(%arg0: i32, %arg1: i32) -> (i32, i32) {
    %c0_i32 = arith.constant 0 : i32
    return %arg1, %arg0 : i32, i32
  }
  func.func @transform_2(%arg0: i32, %arg1: i32) -> (i32, i32) {
    %c0_i32 = arith.constant 0 : i32
    %c0_i32_0 = arith.constant 0 : i32
    return %c0_i32, %arg0 : i32, i32
  }
  func.func @transform_3(%arg0: i32, %arg1: i32) -> (i32, i32) {
    %c0_i32 = arith.constant 0 : i32
    %c0_i32_0 = arith.constant 0 : i32
    return %c0_i32, %arg0 : i32, i32
  }
}

module attributes {stable_mosaic.version = 11 : i64} {
  func.func @_fc_tail_kernel(%arg0: i32, %arg1: memref<16x1024xbf16, #tpu.memory_space<vmem>>, %arg2: memref<1024x512xbf16, #tpu.memory_space<vmem>>, %arg3: memref<1x512xf32, #tpu.memory_space<vmem>>, %arg4: memref<512x256xbf16, #tpu.memory_space<vmem>>, %arg5: memref<1x256xf32, #tpu.memory_space<vmem>>, %arg6: memref<1x256xf32, #tpu.memory_space<vmem>>, %arg7: memref<1x1xf32, #tpu.memory_space<vmem>>, %arg8: memref<16x1xf32, #tpu.memory_space<vmem>>) attributes {dimension_semantics = [#tpu.dimension_semantics<arbitrary>], iteration_bounds = array<i64: 1>, scalar_prefetch = 0 : i64, scratch_operands = 0 : i64, tpu.core_type = #tpu.core_type<tc>, window_params = [{pipeline_mode = #tpu.pipeline_mode<synchronous>, transform_indices = @transform_0, window_bounds = array<i64: 16, 1024>}, {pipeline_mode = #tpu.pipeline_mode<synchronous>, transform_indices = @transform_1, window_bounds = array<i64: 1024, 512>}, {pipeline_mode = #tpu.pipeline_mode<synchronous>, transform_indices = @transform_2, window_bounds = array<i64: 1, 512>}, {pipeline_mode = #tpu.pipeline_mode<synchronous>, transform_indices = @transform_3, window_bounds = array<i64: 512, 256>}, {pipeline_mode = #tpu.pipeline_mode<synchronous>, transform_indices = @transform_4, window_bounds = array<i64: 1, 256>}, {pipeline_mode = #tpu.pipeline_mode<synchronous>, transform_indices = @transform_5, window_bounds = array<i64: 1, 256>}, {pipeline_mode = #tpu.pipeline_mode<synchronous>, transform_indices = @transform_6, window_bounds = array<i64: 1, 1>}, {pipeline_mode = #tpu.pipeline_mode<synchronous>, transform_indices = @transform_7, window_bounds = array<i64: 16, 1>}]} {
    %c0 = arith.constant 0 : index
    %c0_0 = arith.constant 0 : index
    %0 = vector.load %arg1[%c0, %c0_0] : memref<16x1024xbf16, #tpu.memory_space<vmem>>, vector<16x1024xbf16>
    %c0_1 = arith.constant 0 : index
    %c0_2 = arith.constant 0 : index
    %1 = vector.load %arg2[%c0_1, %c0_2] : memref<1024x512xbf16, #tpu.memory_space<vmem>>, vector<1024x512xbf16>
    %cst = arith.constant dense<0.000000e+00> : vector<16x512xf32>
    %2 = tpu.matmul %0, %1, %cst {dimension_numbers = #tpu.dot_dimension_numbers<[1], [0], [0], [1], [0, 0, 1, 1], [], []>} : vector<16x1024xbf16>, vector<1024x512xbf16>, vector<16x512xf32> -> vector<16x512xf32>
    %c0_3 = arith.constant 0 : index
    %c0_4 = arith.constant 0 : index
    %3 = vector.load %arg3[%c0_3, %c0_4] : memref<1x512xf32, #tpu.memory_space<vmem>>, vector<1x512xf32>
    %4 = vector.broadcast %3 : vector<1x512xf32> to vector<16x512xf32>
    %5 = arith.addf %2, %4 : vector<16x512xf32>
    %cst_5 = arith.constant 0.000000e+00 : f32
    %6 = vector.broadcast %cst_5 : f32 to vector<16x512xf32>
    %7 = arith.maximumf %5, %6 : vector<16x512xf32>
    %8 = arith.truncf %7 : vector<16x512xf32> to vector<16x512xbf16>
    %c0_6 = arith.constant 0 : index
    %c0_7 = arith.constant 0 : index
    %9 = vector.load %arg4[%c0_6, %c0_7] : memref<512x256xbf16, #tpu.memory_space<vmem>>, vector<512x256xbf16>
    %cst_8 = arith.constant dense<0.000000e+00> : vector<16x256xf32>
    %10 = tpu.matmul %8, %9, %cst_8 {dimension_numbers = #tpu.dot_dimension_numbers<[1], [0], [0], [1], [0, 0, 1, 1], [], []>} : vector<16x512xbf16>, vector<512x256xbf16>, vector<16x256xf32> -> vector<16x256xf32>
    %c0_9 = arith.constant 0 : index
    %c0_10 = arith.constant 0 : index
    %11 = vector.load %arg5[%c0_9, %c0_10] : memref<1x256xf32, #tpu.memory_space<vmem>>, vector<1x256xf32>
    %12 = vector.broadcast %11 : vector<1x256xf32> to vector<16x256xf32>
    %13 = arith.addf %10, %12 : vector<16x256xf32>
    %cst_11 = arith.constant 0.000000e+00 : f32
    %14 = vector.broadcast %cst_11 : f32 to vector<16x256xf32>
    %15 = arith.maximumf %13, %14 : vector<16x256xf32>
    %c0_12 = arith.constant 0 : index
    %c0_13 = arith.constant 0 : index
    %16 = vector.load %arg6[%c0_12, %c0_13] : memref<1x256xf32, #tpu.memory_space<vmem>>, vector<1x256xf32>
    %17 = vector.broadcast %16 : vector<1x256xf32> to vector<16x256xf32>
    %18 = arith.mulf %15, %17 : vector<16x256xf32>
    %cst_14 = arith.constant dense<0.000000e+00> : vector<16xf32>
    %19 = vector.multi_reduction <add>, %18, %cst_14 [1] : vector<16x256xf32> to vector<16xf32>
    %20 = vector.shape_cast %19 : vector<16xf32> to vector<16x1xf32>
    %c0_15 = arith.constant 0 : index
    %c0_16 = arith.constant 0 : index
    %21 = vector.load %arg7[%c0_15, %c0_16] : memref<1x1xf32, #tpu.memory_space<vmem>>, vector<1x1xf32>
    %22 = vector.broadcast %21 : vector<1x1xf32> to vector<16x1xf32>
    %23 = arith.addf %20, %22 : vector<16x1xf32>
    %c0_17 = arith.constant 0 : index
    %c0_18 = arith.constant 0 : index
    %24 = vector.load %arg8[%c0_17, %c0_18] : memref<16x1xf32, #tpu.memory_space<vmem>>, vector<16x1xf32>
    tpu.vector_store %arg8[%c0_17, %c0_18], %23 {strides = array<i32>} : memref<16x1xf32, #tpu.memory_space<vmem>>, vector<16x1xf32>,
    return
  }
  func.func @transform_0(%arg0: i32) -> (i32, i32) {
    %c0_i32 = arith.constant 0 : i32
    %c0_i32_0 = arith.constant 0 : i32
    %c0_i32_1 = arith.constant 0 : i32
    return %c0_i32, %c0_i32_0 : i32, i32
  }
  func.func @transform_1(%arg0: i32) -> (i32, i32) {
    %c0_i32 = arith.constant 0 : i32
    %c0_i32_0 = arith.constant 0 : i32
    %c0_i32_1 = arith.constant 0 : i32
    return %c0_i32, %c0_i32_0 : i32, i32
  }
  func.func @transform_2(%arg0: i32) -> (i32, i32) {
    %c0_i32 = arith.constant 0 : i32
    %c0_i32_0 = arith.constant 0 : i32
    %c0_i32_1 = arith.constant 0 : i32
    return %c0_i32, %c0_i32_0 : i32, i32
  }
  func.func @transform_3(%arg0: i32) -> (i32, i32) {
    %c0_i32 = arith.constant 0 : i32
    %c0_i32_0 = arith.constant 0 : i32
    %c0_i32_1 = arith.constant 0 : i32
    return %c0_i32, %c0_i32_0 : i32, i32
  }
  func.func @transform_4(%arg0: i32) -> (i32, i32) {
    %c0_i32 = arith.constant 0 : i32
    %c0_i32_0 = arith.constant 0 : i32
    %c0_i32_1 = arith.constant 0 : i32
    return %c0_i32, %c0_i32_0 : i32, i32
  }
  func.func @transform_5(%arg0: i32) -> (i32, i32) {
    %c0_i32 = arith.constant 0 : i32
    %c0_i32_0 = arith.constant 0 : i32
    %c0_i32_1 = arith.constant 0 : i32
    return %c0_i32, %c0_i32_0 : i32, i32
  }
  func.func @transform_6(%arg0: i32) -> (i32, i32) {
    %c0_i32 = arith.constant 0 : i32
    %c0_i32_0 = arith.constant 0 : i32
    %c0_i32_1 = arith.constant 0 : i32
    return %c0_i32, %c0_i32_0 : i32, i32
  }
  func.func @transform_7(%arg0: i32) -> (i32, i32) {
    %c0_i32 = arith.constant 0 : i32
    %c0_i32_0 = arith.constant 0 : i32
    %c0_i32_1 = arith.constant 0 : i32
    return %c0_i32, %c0_i32_0 : i32, i32
  }
}

</mosaic_0001>

<llo_original>
// kernel: _lambda_.8
$region0: #{_lambda_.8}
  #allocation0 [shape = 'u32[]', space=smem, size = 0x4, offset = 0x4, fixed_abs, tag = 'smem constant byte address 0x4 - core index']
  #allocation1 [shape = 'u32[144,128]{1,0:T(1,128)}', space=vmem, size = 0x12000, scoped, tag = 'internal scratch']
  %s0 = inlined_call_operand.vmem [shape: bf16[512,200], index: 0, kind: input, shape index: {}]
  %s1 = inlined_call_operand.vmem [shape: bf16[200,128], index: 1, kind: input, shape index: {}]
  %s2 = inlined_call_operand.vmem [shape: f32[1,128], index: 2, kind: input, shape index: {}]
  %s3 = inlined_call_operand.vmem [shape: f32[1,128], index: 3, kind: input, shape index: {}]
  %s4 = inlined_call_operand.vmem [shape: bf16[512,128], index: 4, kind: output, shape index: {}]
  %s5 = sld [smem:[#allocation0]]
  $region49: #{_lambda_.8} parent=0
    _
  %s7 = ssub.s32 1, %s5
  %s8 = scalar_select 0, %s7, %s5
  loop: start=0, step=1, limit=4
  $region2: #{_lambda_.8} parent=0 // loop_pre_header
    _
  $region3: #{_lambda_.8} parent=0 // loop_header
    %s10 = sphi 0, %s14
    %p11 = scmp.ge.s32.totalorder %s10, 4
    %s20 = sphi 0, %s22
    %s23 = sphi 0, %s20
    %s24 = sphi 0, %s23
    %s40 = sphi 0, %s24
    %s44 = sphi 0, %s44
    %s46 = sphi 0, %s44
    %s47 = sphi 0, %s46
    %s61 = sphi 0, %s47
    %s65 = sphi 0, %s65
    %s67 = sphi 0, %s65
    %s68 = sphi 0, %s67
    %s82 = sphi 0, %s68
    %s86 = sphi 0, %s86
    %s88 = sphi 0, %s86
    %s89 = sphi 0, %s88
    %s103 = sphi 0, %s89
    %s109 = sphi 0, %s111
    %s112 = sphi 0, %s109
    %s113 = sphi 0, %s112
    %s129 = sphi 0, %s113
  $region4: #{_lambda_.8} parent=0 // loop_header_branch
    %13 = sbr.rel (%p11) target = $region8
  $region5: #{_lambda_.8} parent=0 // loop_body
    %s15 = ssub.s32 %s10, 1
    %s16 = ssub.s32 %s10, 2
    %s17 = sadd.s32 %s10, 1
    %s18 = ssub.s32 %s10, %s17
    %p19 = scmp.eq.s32.totalorder %s18, 0
    %s21 = sadd.s32 %s20, 1
    %s22 = scalar_select %p19, %s20, %s21
    %p25 = pneg %p19
    %p26 = scmp.eq.s32.totalorder %s10, 1
    %p27 = por %p25, %p26
    %p28 = scmp.ne.s32.totalorder %s20, %s23
    %p29 = scmp.eq.s32.totalorder %s10, 0
    %p30 = por %p28, %p29
    %p31 = scmp.ne.s32.totalorder %s20, %s23
    %p32 = scmp.eq.s32.totalorder %s15, 1
    %p33 = por %p31, %p32
    %p34 = scmp.ne.s32.totalorder %s23, %s24
    %p35 = scmp.eq.s32.totalorder %s15, 0
    %p36 = por %p34, %p35
    %p37 = scmp.ne.s32.totalorder %s23, %s24
    %p38 = scmp.eq.s32.totalorder %s16, 1
    %p39 = por %p37, %p38
    %p41 = scmp.ne.s32.totalorder %s24, %s40
    %p42 = scmp.eq.s32.totalorder %s16, 0
    %p43 = por %p41, %p42
    %s45 = sadd.s32 %s44, 1
    %p48 = scmp.eq.s32.totalorder %s10, 1
    %p49 = scmp.ne.s32.totalorder %s44, %s46
    %p50 = scmp.eq.s32.totalorder %s10, 0
    %p51 = por %p49, %p50
    %p52 = scmp.ne.s32.totalorder %s44, %s46
    %p53 = scmp.eq.s32.totalorder %s15, 1
    %p54 = por %p52, %p53
    %p55 = scmp.ne.s32.totalorder %s46, %s47
    %p56 = scmp.eq.s32.totalorder %s15, 0
    %p57 = por %p55, %p56
    %p58 = scmp.ne.s32.totalorder %s46, %s47
    %p59 = scmp.eq.s32.totalorder %s16, 1
    %p60 = por %p58, %p59
    %p62 = scmp.ne.s32.totalorder %s47, %s61
    %p63 = scmp.eq.s32.totalorder %s16, 0
    %p64 = por %p62, %p63
    %s66 = sadd.s32 %s65, 1
    %p69 = scmp.eq.s32.totalorder %s10, 1
    %p70 = scmp.ne.s32.totalorder %s65, %s67
    %p71 = scmp.eq.s32.totalorder %s10, 0
    %p72 = por %p70, %p71
    %p73 = scmp.ne.s32.totalorder %s65, %s67
    %p74 = scmp.eq.s32.totalorder %s15, 1
    %p75 = por %p73, %p74
    %p76 = scmp.ne.s32.totalorder %s67, %s68
    %p77 = scmp.eq.s32.totalorder %s15, 0
    %p78 = por %p76, %p77
    %p79 = scmp.ne.s32.totalorder %s67, %s68
    %p80 = scmp.eq.s32.totalorder %s16, 1
    %p81 = por %p79, %p80
    %p83 = scmp.ne.s32.totalorder %s68, %s82
    %p84 = scmp.eq.s32.totalorder %s16, 0
    %p85 = por %p83, %p84
    %s87 = sadd.s32 %s86, 1
    %p90 = scmp.eq.s32.totalorder %s10, 1
    %p91 = scmp.ne.s32.totalorder %s86, %s88
    %p92 = scmp.eq.s32.totalorder %s10, 0
    %p93 = por %p91, %p92
    %p94 = scmp.ne.s32.totalorder %s86, %s88
    %p95 = scmp.eq.s32.totalorder %s15, 1
    %p96 = por %p94, %p95
    %p97 = scmp.ne.s32.totalorder %s88, %s89
    %p98 = scmp.eq.s32.totalorder %s15, 0
    %p99 = por %p97, %p98
    %p100 = scmp.ne.s32.totalorder %s88, %s89
    %p101 = scmp.eq.s32.totalorder %s16, 1
    %p102 = por %p100, %p101
    %p104 = scmp.ne.s32.totalorder %s89, %s103
    %p105 = scmp.eq.s32.totalorder %s16, 0
    %p106 = por %p104, %p105
    %s107 = ssub.s32 %s10, %s17
    %p108 = scmp.eq.s32.totalorder %s107, 0
    %s110 = sadd.s32 %s109, 1
    %s111 = scalar_select %p108, %s109, %s110
    %p114 = pneg %p108
    %p115 = scmp.eq.s32.totalorder %s10, 1
    %p116 = por %p114, %p115
    %p117 = scmp.ne.s32.totalorder %s109, %s112
    %p118 = scmp.eq.s32.totalorder %s10, 0
    %p119 = por %p117, %p118
    %p120 = scmp.ne.s32.totalorder %s109, %s112
    %p121 = scmp.eq.s32.totalorder %s15, 1
    %p122 = por %p120, %p121
    %p123 = scmp.ne.s32.totalorder %s112, %s113
    %p124 = scmp.eq.s32.totalorder %s15, 0
    %p125 = por %p123, %p124
    %p126 = scmp.ne.s32.totalorder %s112, %s113
    %p127 = scmp.eq.s32.totalorder %s16, 1
    %p128 = por %p126, %p127
    %p130 = scmp.ne.s32.totalorder %s113, %s129
    %p131 = scmp.eq.s32.totalorder %s16, 0
    %p132 = por %p130, %p131
    %p133 = scmp.le.s32.totalorder 1, %s10
    %p134 = scmp.lt.s32.totalorder %s10, 3
    %p135 = pnand %p133, %p134
    %p136 = pneg %p135
    // Predicated region
    $region9: #{_lambda_.8} parent=5 // pred_check
      _
    $region10: #{_lambda_.8} parent=5 // pred_check_branch
      %138 = sbr.rel (%p135) target = $region12
    $region11: #{_lambda_.8} parent=5 // pred_region
      %s139 = ssub.s32 %s10, 1
      // Predicated region
      $region13: #{_lambda_.8} parent=11 // pred_check
        %p140 = pneg %p57
      $region14: #{_lambda_.8} parent=11 // pred_check_branch
        %142 = sbr.rel (%p140) target = $region16
      $region15: #{_lambda_.8} parent=11 // pred_region
        _
      $region16: #{_lambda_.8} parent=11 // pred_fallthru
        _
      // Predicated region
      $region17: #{_lambda_.8} parent=11 // pred_check
        %p143 = pneg %p78
      $region18: #{_lambda_.8} parent=11 // pred_check_branch
        %145 = sbr.rel (%p143) target = $region20
      $region19: #{_lambda_.8} parent=11 // pred_region
        _
      $region20: #{_lambda_.8} parent=11 // pred_fallthru
        _
      // Predicated region
      $region21: #{_lambda_.8} parent=11 // pred_check
        %p146 = pneg %p99
      $region22: #{_lambda_.8} parent=11 // pred_check_branch
        %148 = sbr.rel (%p146) target = $region24
      $region23: #{_lambda_.8} parent=11 // pred_region
        _
      $region24: #{_lambda_.8} parent=11 // pred_fallthru
        _
    $region12: #{_lambda_.8} parent=5 // pred_fallthru
      _
    %p149 = scmp.lt.s32.totalorder %s10, 2
    // Predicated region
    $region25: #{_lambda_.8} parent=5 // pred_check
      %p150 = pneg %p149
    $region26: #{_lambda_.8} parent=5 // pred_check_branch
      %152 = sbr.rel (%p150) target = $region28
    $region27: #{_lambda_.8} parent=5 // pred_region
      // Predicated region
      $region29: #{_lambda_.8} parent=27 // pred_check
        %p153 = pneg %p30
      $region30: #{_lambda_.8} parent=27 // pred_check_branch
        %155 = sbr.rel (%p153) target = $region32
      $region31: #{_lambda_.8} parent=27 // pred_region
        %s156 = smul.u32 32, %s10
        %p157 = scmp.lt.s32.totalorder %s156, 63
        %s158 = scalar_select %p157, %s156, 63
        %s159 = smul.addr %s158, 2
        %s160 = smul.addr %s159, 4
        %s161 = scalar_lea.vmem %s0, %s160
        %s162 = smul.u32 32, %s10
      $region32: #{_lambda_.8} parent=27 // pred_fallthru
        _
    $region28: #{_lambda_.8} parent=5 // pred_fallthru
      _
    %p163 = scmp.le.s32.totalorder 1, %s10
    %p164 = scmp.lt.s32.totalorder %s10, 3
    %p165 = pnand %p163, %p164
    %p166 = pneg %p165
    // Predicated region
    $region33: #{_lambda_.8} parent=5 // pred_check
      _
    $region34: #{_lambda_.8} parent=5 // pred_check_branch
      %168 = sbr.rel (%p165) target = $region36
    $region35: #{_lambda_.8} parent=5 // pred_region
      %s169 = ssub.s32 %s10, 1
      %s170 = smul.u32 32, %s15
      %p171 = scmp.lt.s32.totalorder %s170, 63
      %s172 = scalar_select %p171, %s170, 63
      %s173 = smul.addr %s172, 2
      %s174 = smul.addr %s173, 4
      %s175 = scalar_lea.vmem %s0, %s174
      %p176 = pneg %p36
      %p177 = pneg %p33
      %p178 = pneg %p57
      %p179 = pneg %p54
      %p180 = pneg %p78
      %p181 = pneg %p75
      %p182 = pneg %p99
      %p183 = pneg %p96
      %p184 = pneg %p125
      %p185 = pneg %p122
      %s186 = smul.u32 32, %s15
      %p187 = scmp.lt.s32.totalorder %s186, 63
      %s188 = scalar_select %p187, %s186, 63
      %s189 = smul.addr %s188, 4
      %s190 = scalar_lea.vmem %s4, %s189
      %s191 = smul.u32 32, %s15
      %p192 = scmp.lt.s32.totalorder %s191, 63
      %s193 = scalar_select %p192, %s191, 63
      %s194 = smul.addr %s193, 2
      %s195 = smul.addr %s194, 4
      %s196 = scalar_lea.vmem %s0, %s195
      %s197 = smul.u32 32, %s15
      %s198 = smul.u32 32, %s15
      %p199 = scmp.lt.s32.totalorder %s198, 63
      %s200 = scalar_select %p199, %s198, 63
      %s201 = smul.addr %s200, 4
      %s202 = scalar_lea.vmem %s4, %s201
      %s203 = smul.u32 32, %s15
      %v205 = vld [vmem:[%s196] sm:$0xff]
      %v206 = vld [vmem:[%s196 + $0x8] sm:$0xff]
      %v207 = vld [vmem:[%s196 + $0x10] sm:$0xff]
      %v208 = vld [vmem:[%s196 + $0x18] sm:$0xff]
      %v209 = vld [vmem:[%s196 + $0x20] sm:$0xff]
      %v210 = vld [vmem:[%s196 + $0x28] sm:$0xff]
      %v211 = vld [vmem:[%s196 + $0x30] sm:$0xff]
      %v212 = vld [vmem:[%s196 + $0x38] sm:$0xff]
      %v213 = vld [vmem:[%s196 + $0x40] sm:$0xff]
      %v214 = vld [vmem:[%s196 + $0x48] sm:$0xff]
      %v215 = vld [vmem:[%s196 + $0x50] sm:$0xff]
      %v216 = vld [vmem:[%s196 + $0x58] sm:$0xff]
      %v217 = vld [vmem:[%s196 + $0x60] sm:$0xff]
      %v218 = vld [vmem:[%s196 + $0x68] sm:$0xff]
      %v219 = vld [vmem:[%s196 + $0x70] sm:$0xff]
      %v220 = vld [vmem:[%s196 + $0x78] sm:$0xff]
      %v221 = vld [vmem:[%s196 + $0x80] sm:$0xff]
      %v222 = vld [vmem:[%s196 + $0x88] sm:$0xff]
      %v223 = vld [vmem:[%s196 + $0x90] sm:$0xff]
      %v224 = vld [vmem:[%s196 + $0x98] sm:$0xff]
      %v225 = vld [vmem:[%s196 + $0xa0] sm:$0xff]
      %v226 = vld [vmem:[%s196 + $0xa8] sm:$0xff]
      %v227 = vld [vmem:[%s196 + $0xb0] sm:$0xff]
      %v228 = vld [vmem:[%s196 + $0xb8] sm:$0xff]
      %v229 = vld [vmem:[%s196 + $0xc0] sm:$0xff]
      %v230 = vld [vmem:[%s196 + $0xc8] sm:$0xff]
      %v231 = vld [vmem:[%s196 + $0xd0] sm:$0xff]
      %v232 = vld [vmem:[%s196 + $0xd8] sm:$0xff]
      %v233 = vld [vmem:[%s196 + $0xe0] sm:$0xff]
      %v234 = vld [vmem:[%s196 + $0xe8] sm:$0xff]
      %v235 = vld [vmem:[%s196 + $0xf0] sm:$0xff]
      %v236 = vld [vmem:[%s196 + $0xf8] sm:$0xff]
      %v237 = vld [vmem:[%s1] sm:$0xf]
      %v238 = vld [vmem:[%s1 + $0x4] sm:$0xf]
      %v239 = vld [vmem:[%s1 + $0x8] sm:$0xf]
      %v240 = vld [vmem:[%s1 + $0xc] sm:$0xf]
      %v241 = vld [vmem:[%s1 + $0x10] sm:$0xf]
      %v242 = vld [vmem:[%s1 + $0x14] sm:$0xf]
      %v243 = vld [vmem:[%s1 + $0x18] sm:$0xf]
      %v244 = vld [vmem:[%s1 + $0x1c] sm:$0xf]
      %v245 = vld [vmem:[%s1 + $0x20] sm:$0xf]
      %v246 = vld [vmem:[%s1 + $0x24] sm:$0xf]
      %v247 = vld [vmem:[%s1 + $0x28] sm:$0xf]
      %v248 = vld [vmem:[%s1 + $0x2c] sm:$0xf]
      %v249 = vld [vmem:[%s1 + $0x30] sm:$0xf]
      %v250 = vld [vmem:[%s1 + $0x34] sm:$0xf]
      %v251 = vld [vmem:[%s1 + $0x38] sm:$0xf]
      %v252 = vld [vmem:[%s1 + $0x3c] sm:$0xf]
      %v253 = vld [vmem:[%s1 + $0x40] sm:$0xf]
      %v254 = vld [vmem:[%s1 + $0x44] sm:$0xf]
      %v255 = vld [vmem:[%s1 + $0x48] sm:$0xf]
      %v256 = vld [vmem:[%s1 + $0x4c] sm:$0xf]
      %v257 = vld [vmem:[%s1 + $0x50] sm:$0xf]
      %v258 = vld [vmem:[%s1 + $0x54] sm:$0xf]
      %v259 = vld [vmem:[%s1 + $0x58] sm:$0xf]
      %v260 = vld [vmem:[%s1 + $0x5c] sm:$0xf]
      %v261 = vld [vmem:[%s1 + $0x60] sm:$0xf]
      %v294 = vunpack.c.l.b16 %v205
      %v295 = vunpack.c.h.b16 %v205
      %v296 = vunpack.c.l.b16 %v206
      %v297 = vunpack.c.h.b16 %v206
      %v298 = vunpack.c.l.b16 %v207
      %v299 = vunpack.c.h.b16 %v207
      %v300 = vunpack.c.l.b16 %v208
      %v301 = vunpack.c.h.b16 %v208
      %v302 = vunpack.c.l.b16 %v209
      %v303 = vunpack.c.h.b16 %v209
      %v304 = vunpack.c.l.b16 %v210
      %v305 = vunpack.c.h.b16 %v210
      %v306 = vunpack.c.l.b16 %v211
      %v307 = vunpack.c.h.b16 %v211
      %v308 = vunpack.c.l.b16 %v212
      %v309 = vunpack.c.h.b16 %v212
      %v310 = vunpack.c.l.b16 %v213
      %v311 = vunpack.c.h.b16 %v213
      %v312 = vunpack.c.l.b16 %v214
      %v313 = vunpack.c.h.b16 %v214
      %v314 = vunpack.c.l.b16 %v215
      %v315 = vunpack.c.h.b16 %v215
      %v316 = vunpack.c.l.b16 %v216
      %v317 = vunpack.c.h.b16 %v216
      %v318 = vunpack.c.l.b16 %v217
      %v319 = vunpack.c.h.b16 %v217
      %v320 = vunpack.c.l.b16 %v218
      %v321 = vunpack.c.h.b16 %v218
      %v322 = vunpack.c.l.b16 %v219
      %v323 = vunpack.c.h.b16 %v219
      %v324 = vunpack.c.l.b16 %v220
      %v325 = vunpack.c.h.b16 %v220
      %v326 = vunpack.c.l.b16 %v221
      %v327 = vunpack.c.h.b16 %v221
      %v328 = vunpack.c.l.b16 %v222
      %v329 = vunpack.c.h.b16 %v222
      %v330 = vunpack.c.l.b16 %v223
      %v331 = vunpack.c.h.b16 %v223
      %v332 = vunpack.c.l.b16 %v224
      %v333 = vunpack.c.h.b16 %v224
      %v334 = vunpack.c.l.b16 %v225
      %v335 = vunpack.c.h.b16 %v225
      %v336 = vunpack.c.l.b16 %v226
      %v337 = vunpack.c.h.b16 %v226
      %v338 = vunpack.c.l.b16 %v227
      %v339 = vunpack.c.h.b16 %v227
      %v340 = vunpack.c.l.b16 %v228
      %v341 = vunpack.c.h.b16 %v228
      %v342 = vunpack.c.l.b16 %v229
      %v343 = vunpack.c.h.b16 %v229
      %v344 = vunpack.c.l.b16 %v230
      %v345 = vunpack.c.h.b16 %v230
      %v346 = vunpack.c.l.b16 %v231
      %v347 = vunpack.c.h.b16 %v231
      %v348 = vunpack.c.l.b16 %v232
      %v349 = vunpack.c.h.b16 %v232
      %v350 = vunpack.c.l.b16 %v233
      %v351 = vunpack.c.h.b16 %v233
      %v352 = vunpack.c.l.b16 %v234
      %v353 = vunpack.c.h.b16 %v234
      %v354 = vunpack.c.l.b16 %v235
      %v355 = vunpack.c.h.b16 %v235
      %v356 = vunpack.c.l.b16 %v236
      %v357 = vunpack.c.h.b16 %v236
      %v358 = vpack.c.b16 %v296, %v294
      %v359 = vpack.c.b16 %v297, %v295
      %v360 = vpack.c.b16 %v300, %v298
      %v361 = vpack.c.b16 %v301, %v299
      %v362 = vpack.c.b16 %v304, %v302
      %v363 = vpack.c.b16 %v305, %v303
      %v364 = vpack.c.b16 %v308, %v306
      %v365 = vpack.c.b16 %v309, %v307
      %v366 = vpack.c.b16 %v312, %v310
      %v367 = vpack.c.b16 %v313, %v311
      %v368 = vpack.c.b16 %v316, %v314
      %v369 = vpack.c.b16 %v317, %v315
      %v370 = vpack.c.b16 %v320, %v318
      %v371 = vpack.c.b16 %v321, %v319
      %v372 = vpack.c.b16 %v324, %v322
      %v373 = vpack.c.b16 %v325, %v323
      %v374 = vpack.c.b16 %v328, %v326
      %v375 = vpack.c.b16 %v329, %v327
      %v376 = vpack.c.b16 %v332, %v330
      %v377 = vpack.c.b16 %v333, %v331
      %v378 = vpack.c.b16 %v336, %v334
      %v379 = vpack.c.b16 %v337, %v335
      %v380 = vpack.c.b16 %v340, %v338
      %v381 = vpack.c.b16 %v341, %v339
      %v382 = vpack.c.b16 %v344, %v342
      %v383 = vpack.c.b16 %v345, %v343
      %v384 = vpack.c.b16 %v348, %v346
      %v385 = vpack.c.b16 %v349, %v347
      %v386 = vpack.c.b16 %v352, %v350
      %v387 = vpack.c.b16 %v353, %v351
      %v388 = vpack.c.b16 %v356, %v354
      %v389 = vpack.c.b16 %v357, %v355
      %v431 = vunpack.c.l.b16 %v237
      %v432 = vunpack.c.l.b16 %v238
      %v433 = vunpack.c.l.b16 %v239
      %v434 = vunpack.c.l.b16 %v240
      %v435 = vunpack.c.l.b16 %v241
      %v436 = vunpack.c.l.b16 %v242
      %v437 = vunpack.c.l.b16 %v243
      %v438 = vunpack.c.l.b16 %v244
      %v439 = vunpack.c.l.b16 %v245
      %v440 = vunpack.c.l.b16 %v246
      %v441 = vunpack.c.l.b16 %v247
      %v442 = vunpack.c.l.b16 %v248
      %v443 = vunpack.c.l.b16 %v249
      %v444 = vunpack.c.l.b16 %v250
      %v445 = vunpack.c.l.b16 %v251
      %v446 = vunpack.c.l.b16 %v252
      %v447 = vunpack.c.l.b16 %v253
      %v448 = vunpack.c.l.b16 %v254
      %v449 = vunpack.c.l.b16 %v255
      %v450 = vunpack.c.l.b16 %v256
      %v451 = vunpack.c.l.b16 %v257
      %v452 = vunpack.c.l.b16 %v258
      %v453 = vunpack.c.l.b16 %v259
      %v454 = vunpack.c.l.b16 %v260
      %v455 = vunpack.c.l.b16 %v261
      %v456 = vpack.c.b16 %v432, %v431
      %v457 = vpack.c.b16 %v434, %v433
      %v458 = vpack.c.b16 %v436, %v435
      %v459 = vpack.c.b16 %v438, %v437
      %v460 = vpack.c.b16 %v440, %v439
      %v461 = vpack.c.b16 %v442, %v441
      %v462 = vpack.c.b16 %v444, %v443
      %v463 = vpack.c.b16 %v446, %v445
      %v464 = vpack.c.b16 %v448, %v447
      %v465 = vpack.c.b16 %v450, %v449
      %v466 = vpack.c.b16 %v452, %v451
      %v467 = vpack.c.b16 %v454, %v453
      %v468 = vpack.c.b16 %v455, %v455
      %vm481 = vcmask 588800
      %v483 = vsel %vm481, %v359, 0
      %v486 = vsel %vm481, %v361, 0
      %v489 = vsel %vm481, %v363, 0
      %v492 = vsel %vm481, %v365, 0
      %v495 = vsel %vm481, %v367, 0
      %v498 = vsel %vm481, %v369, 0
      %v501 = vsel %vm481, %v371, 0
      %v504 = vsel %vm481, %v373, 0
      %v507 = vsel %vm481, %v375, 0
      %v510 = vsel %vm481, %v377, 0
      %v513 = vsel %vm481, %v379, 0
      %v516 = vsel %vm481, %v381, 0
      %v519 = vsel %vm481, %v383, 0
      %v522 = vsel %vm481, %v385, 0
      %v525 = vsel %vm481, %v387, 0
      %v528 = vsel %vm481, %v389, 0
      %vm530 = vcmask 1043456
      %v532 = vsel %vm530, %v468, 0
      %534 = vmatprep.subr.bf16.mxu0 0
      %535 = vmatpush1.bf16.msra.mxu0 %v456
      %536 = vmatprep.subr.bf16.mxu0 0
      %537 = vmatpush1.bf16.msra.mxu0 %v457
      %538 = vmatprep.subr.bf16.mxu0 0
      %539 = vmatpush1.bf16.msra.mxu0 %v458
      %540 = vmatprep.subr.bf16.mxu0 0
      %541 = vmatpush1.bf16.msra.mxu0 %v459
      %542 = vmatprep.subr.bf16.mxu0 0
      %543 = vmatpush1.bf16.msra.mxu0 %v460
      %544 = vmatprep.subr.bf16.mxu0 0
      %545 = vmatpush1.bf16.msra.mxu0 %v461
      %546 = vmatprep.subr.bf16.mxu0 0
      %547 = vmatpush1.bf16.msra.mxu0 %v462
      %548 = vmatprep.subr.bf16.mxu0 0
      %549 = vmatpush1.bf16.msra.mxu0 %v463
      %550 = vmatprep.subr.bf16.mxu0 0
      %551 = vmatpush1.bf16.msra.mxu0 %v464
      %552 = vmatprep.subr.bf16.mxu0 0
      %553 = vmatpush1.bf16.msra.mxu0 %v465
      %554 = vmatprep.subr.bf16.mxu0 0
      %555 = vmatpush1.bf16.msra.mxu0 %v466
      %556 = vmatprep.subr.bf16.mxu0 0
      %557 = vmatpush1.bf16.msra.mxu0 %v467
      %558 = vmatprep.subr.bf16.mxu0 0
      %559 = vmatpush1.bf16.msra.mxu0 %v532
      %560 = vmatprep.subr.bf16.mxu0 0
      %561 = vmatpush1.bf16.msra.mxu0 0
      %562 = vmatprep.subr.bf16.mxu0 0
      %563 = vmatpush1.bf16.msra.mxu0 0
      %564 = vmatprep.subr.bf16.mxu0 0
      %565 = vmatpush1.bf16.msra.mxu0 0
      %566 = vmatprep.mubr.bf16.mxu0 %v483
      %567 = vmatmul.mubr.bf16.gmra.mrb[0].mxu0 %v358
      %v568 = vpop.f32.mrb[0].mxu0
      %v569 = vadd.f32 0.0, %v568
      %v570 = vpop.f32.mrb[0].mxu0
      %v571 = vpop.f32.mrb[0].mxu0
      %v572 = vadd.f32 0.0, %v571
      %v573 = vpop.f32.mrb[0].mxu0
      %574 = vmatprep.mubr.bf16.mxu0 %v486
      %575 = vmatmul.mubr.bf16.gmra.mrb[0].mxu0 %v360
      %v576 = vpop.f32.mrb[0].mxu0
      %v577 = vadd.f32 0.0, %v576
      %v578 = vpop.f32.mrb[0].mxu0
      %v579 = vpop.f32.mrb[0].mxu0
      %v580 = vadd.f32 0.0, %v579
      %v581 = vpop.f32.mrb[0].mxu0
      %582 = vmatprep.mubr.bf16.mxu0 %v489
      %583 = vmatmul.mubr.bf16.gmra.mrb[0].mxu0 %v362
      %v584 = vpop.f32.mrb[0].mxu0
      %v585 = vadd.f32 0.0, %v584
      %v586 = vpop.f32.mrb[0].mxu0
      %v587 = vpop.f32.mrb[0].mxu0
      %v588 = vadd.f32 0.0, %v587
      %v589 = vpop.f32.mrb[0].mxu0
      %590 = vmatprep.mubr.bf16.mxu0 %v492
      %591 = vmatmul.mubr.bf16.gmra.mrb[0].mxu0 %v364
      %v592 = vpop.f32.mrb[0].mxu0
      %v593 = vadd.f32 0.0, %v592
      %v594 = vpop.f32.mrb[0].mxu0
      %v595 = vpop.f32.mrb[0].mxu0
      %v596 = vadd.f32 0.0, %v595
      %v597 = vpop.f32.mrb[0].mxu0
      %598 = vmatprep.mubr.bf16.mxu0 %v495
      %599 = vmatmul.mubr.bf16.gmra.mrb[0].mxu0 %v366
      %v600 = vpop.f32.mrb[0].mxu0
      %v601 = vadd.f32 0.0, %v600
      %v602 = vpop.f32.mrb[0].mxu0
      %v603 = vpop.f32.mrb[0].mxu0
      %v604 = vadd.f32 0.0, %v603
      %v605 = vpop.f32.mrb[0].mxu0
      %606 = vmatprep.mubr.bf16.mxu0 %v498
      %607 = vmatmul.mubr.bf16.gmra.mrb[0].mxu0 %v368
      %v608 = vpop.f32.mrb[0].mxu0
      %v609 = vadd.f32 0.0, %v608
      %v610 = vpop.f32.mrb[0].mxu0
      %v611 = vpop.f32.mrb[0].mxu0
      %v612 = vadd.f32 0.0, %v611
      %v613 = vpop.f32.mrb[0].mxu0
      %614 = vmatprep.mubr.bf16.mxu0 %v501
      %615 = vmatmul.mubr.bf16.gmra.mrb[0].mxu0 %v370
      %v616 = vpop.f32.mrb[0].mxu0
      %v617 = vadd.f32 0.0, %v616
      %v618 = vpop.f32.mrb[0].mxu0
      %v619 = vpop.f32.mrb[0].mxu0
      %v620 = vadd.f32 0.0, %v619
      %v621 = vpop.f32.mrb[0].mxu0
      %622 = vmatprep.mubr.bf16.mxu0 %v504
      %623 = vmatmul.mubr.bf16.gmra.mrb[0].mxu0 %v372
      %v624 = vpop.f32.mrb[0].mxu0
      %v625 = vadd.f32 0.0, %v624
      %v626 = vpop.f32.mrb[0].mxu0
      %v627 = vpop.f32.mrb[0].mxu0
      %v628 = vadd.f32 0.0, %v627
      %v629 = vpop.f32.mrb[0].mxu0
      %630 = vmatprep.mubr.bf16.mxu0 %v507
      %631 = vmatmul.mubr.bf16.gmra.mrb[0].mxu0 %v374
      %v632 = vpop.f32.mrb[0].mxu0
      %v633 = vadd.f32 0.0, %v632
      %v634 = vpop.f32.mrb[0].mxu0
      %v635 = vpop.f32.mrb[0].mxu0
      %v636 = vadd.f32 0.0, %v635
      %v637 = vpop.f32.mrb[0].mxu0
      %638 = vmatprep.mubr.bf16.mxu0 %v510
      %639 = vmatmul.mubr.bf16.gmra.mrb[0].mxu0 %v376
      %v640 = vpop.f32.mrb[0].mxu0
      %v641 = vadd.f32 0.0, %v640
      %v642 = vpop.f32.mrb[0].mxu0
      %v643 = vpop.f32.mrb[0].mxu0
      %v644 = vadd.f32 0.0, %v643
      %v645 = vpop.f32.mrb[0].mxu0
      %646 = vmatprep.mubr.bf16.mxu0 %v513
      %647 = vmatmul.mubr.bf16.gmra.mrb[0].mxu0 %v378
      %v648 = vpop.f32.mrb[0].mxu0
      %v649 = vadd.f32 0.0, %v648
      %v650 = vpop.f32.mrb[0].mxu0
      %v651 = vpop.f32.mrb[0].mxu0
      %v652 = vadd.f32 0.0, %v651
      %v653 = vpop.f32.mrb[0].mxu0
      %654 = vmatprep.mubr.bf16.mxu0 %v516
      %655 = vmatmul.mubr.bf16.gmra.mrb[0].mxu0 %v380
      %v656 = vpop.f32.mrb[0].mxu0
      %v657 = vadd.f32 0.0, %v656
      %v658 = vpop.f32.mrb[0].mxu0
      %v659 = vpop.f32.mrb[0].mxu0
      %v660 = vadd.f32 0.0, %v659
      %v661 = vpop.f32.mrb[0].mxu0
      %662 = vmatprep.mubr.bf16.mxu0 %v519
      %663 = vmatmul.mubr.bf16.gmra.mrb[0].mxu0 %v382
      %v664 = vpop.f32.mrb[0].mxu0
      %v665 = vadd.f32 0.0, %v664
      %v666 = vpop.f32.mrb[0].mxu0
      %v667 = vpop.f32.mrb[0].mxu0
      %v668 = vadd.f32 0.0, %v667
      %v669 = vpop.f32.mrb[0].mxu0
      %670 = vmatprep.mubr.bf16.mxu0 %v522
      %671 = vmatmul.mubr.bf16.gmra.mrb[0].mxu0 %v384
      %v672 = vpop.f32.mrb[0].mxu0
      %v673 = vadd.f32 0.0, %v672
      %v674 = vpop.f32.mrb[0].mxu0
      %v675 = vpop.f32.mrb[0].mxu0
      %v676 = vadd.f32 0.0, %v675
      %v677 = vpop.f32.mrb[0].mxu0
      %678 = vmatprep.mubr.bf16.mxu0 %v525
      %679 = vmatmul.mubr.bf16.gmra.mrb[0].mxu0 %v386
      %v680 = vpop.f32.mrb[0].mxu0
      %v681 = vadd.f32 0.0, %v680
      %v682 = vpop.f32.mrb[0].mxu0
      %v683 = vpop.f32.mrb[0].mxu0
      %v684 = vadd.f32 0.0, %v683
      %v685 = vpop.f32.mrb[0].mxu0
      %686 = vmatprep.mubr.bf16.mxu0 %v528
      %687 = vmatmul.mubr.bf16.gmra.mrb[0].mxu0 %v388
      %v688 = vpop.f32.mrb[0].mxu0
      %v689 = vadd.f32 0.0, %v688
      %v690 = vpop.f32.mrb[0].mxu0
      %v691 = vpop.f32.mrb[0].mxu0
      %v692 = vadd.f32 0.0, %v691
      %v693 = vpop.f32.mrb[0].mxu0
      %694 = vdwg.mxu0
      %v695 = vld [vmem:[%s2] sm:$0x1]
      %v697 = vlaneseq
      %v698 = vshrl.u32 %v697, 7
      %v699 = vsub.s32 0, %v698
      %v700 = vrot.slane %v695, %v699
      %v702 = vmul.f32 %v569, %v700
      %v703 = vmul.f32 %v572, %v700
      %v704 = vmul.f32 %v577, %v700
      %v705 = vmul.f32 %v580, %v700
      %v706 = vmul.f32 %v585, %v700
      %v707 = vmul.f32 %v588, %v700
      %v708 = vmul.f32 %v593, %v700
      %v709 = vmul.f32 %v596, %v700
      %v710 = vmul.f32 %v601, %v700
      %v711 = vmul.f32 %v604, %v700
      %v712 = vmul.f32 %v609, %v700
      %v713 = vmul.f32 %v612, %v700
      %v714 = vmul.f32 %v617, %v700
      %v715 = vmul.f32 %v620, %v700
      %v716 = vmul.f32 %v625, %v700
      %v717 = vmul.f32 %v628, %v700
      %v718 = vmul.f32 %v633, %v700
      %v719 = vmul.f32 %v636, %v700
      %v720 = vmul.f32 %v641, %v700
      %v721 = vmul.f32 %v644, %v700
      %v722 = vmul.f32 %v649, %v700
      %v723 = vmul.f32 %v652, %v700
      %v724 = vmul.f32 %v657, %v700
      %v725 = vmul.f32 %v660, %v700
      %v726 = vmul.f32 %v665, %v700
      %v727 = vmul.f32 %v668, %v700
      %v728 = vmul.f32 %v673, %v700
      %v729 = vmul.f32 %v676, %v700
      %v730 = vmul.f32 %v681, %v700
      %v731 = vmul.f32 %v684, %v700
      %v732 = vmul.f32 %v689, %v700
      %v733 = vmul.f32 %v692, %v700
      %v734 = vld [vmem:[%s3] sm:$0x1]
      %v736 = vlaneseq
      %v737 = vshrl.u32 %v736, 7
      %v738 = vsub.s32 0, %v737
      %v739 = vrot.slane %v734, %v738
      %v741 = vadd.f32 %v702, %v739
      %v742 = vadd.f32 %v703, %v739
      %v743 = vadd.f32 %v704, %v739
      %v744 = vadd.f32 %v705, %v739
      %v745 = vadd.f32 %v706, %v739
      %v746 = vadd.f32 %v707, %v739
      %v747 = vadd.f32 %v708, %v739
      %v748 = vadd.f32 %v709, %v739
      %v749 = vadd.f32 %v710, %v739
      %v750 = vadd.f32 %v711, %v739
      %v751 = vadd.f32 %v712, %v739
      %v752 = vadd.f32 %v713, %v739
      %v753 = vadd.f32 %v714, %v739
      %v754 = vadd.f32 %v715, %v739
      %v755 = vadd.f32 %v716, %v739
      %v756 = vadd.f32 %v717, %v739
      %v757 = vadd.f32 %v718, %v739
      %v758 = vadd.f32 %v719, %v739
      %v759 = vadd.f32 %v720, %v739
      %v760 = vadd.f32 %v721, %v739
      %v761 = vadd.f32 %v722, %v739
      %v762 = vadd.f32 %v723, %v739
      %v763 = vadd.f32 %v724, %v739
      %v764 = vadd.f32 %v725, %v739
      %v765 = vadd.f32 %v726, %v739
      %v766 = vadd.f32 %v727, %v739
      %v767 = vadd.f32 %v728, %v739
      %v768 = vadd.f32 %v729, %v739
      %v769 = vadd.f32 %v730, %v739
      %v770 = vadd.f32 %v731, %v739
      %v771 = vadd.f32 %v732, %v739
      %v772 = vadd.f32 %v733, %v739
      %v773 = vmax.f32 %v741, 0.0
      %v774 = vmax.f32 %v742, 0.0
      %v775 = vmax.f32 %v743, 0.0
      %v776 = vmax.f32 %v744, 0.0
      %v777 = vmax.f32 %v745, 0.0
      %v778 = vmax.f32 %v746, 0.0
      %v779 = vmax.f32 %v747, 0.0
      %v780 = vmax.f32 %v748, 0.0
      %v781 = vmax.f32 %v749, 0.0
      %v782 = vmax.f32 %v750, 0.0
      %v783 = vmax.f32 %v751, 0.0
      %v784 = vmax.f32 %v752, 0.0
      %v785 = vmax.f32 %v753, 0.0
      %v786 = vmax.f32 %v754, 0.0
      %v787 = vmax.f32 %v755, 0.0
      %v788 = vmax.f32 %v756, 0.0
      %v789 = vmax.f32 %v757, 0.0
      %v790 = vmax.f32 %v758, 0.0
      %v791 = vmax.f32 %v759, 0.0
      %v792 = vmax.f32 %v760, 0.0
      %v793 = vmax.f32 %v761, 0.0
      %v794 = vmax.f32 %v762, 0.0
      %v795 = vmax.f32 %v763, 0.0
      %v796 = vmax.f32 %v764, 0.0
      %v797 = vmax.f32 %v765, 0.0
      %v798 = vmax.f32 %v766, 0.0
      %v799 = vmax.f32 %v767, 0.0
      %v800 = vmax.f32 %v768, 0.0
      %v801 = vmax.f32 %v769, 0.0
      %v802 = vmax.f32 %v770, 0.0
      %v803 = vmax.f32 %v771, 0.0
      %v804 = vmax.f32 %v772, 0.0
      %v805 = vpack.c.bf16 %v774, %v773
      %v806 = vpack.c.bf16 %v776, %v775
      %v807 = vpack.c.bf16 %v778, %v777
      %v808 = vpack.c.bf16 %v780, %v779
      %v809 = vpack.c.bf16 %v782, %v781
      %v810 = vpack.c.bf16 %v784, %v783
      %v811 = vpack.c.bf16 %v786, %v785
      %v812 = vpack.c.bf16 %v788, %v787
      %v813 = vpack.c.bf16 %v790, %v789
      %v814 = vpack.c.bf16 %v792, %v791
      %v815 = vpack.c.bf16 %v794, %v793
      %v816 = vpack.c.bf16 %v796, %v795
      %v817 = vpack.c.bf16 %v798, %v797
      %v818 = vpack.c.bf16 %v800, %v799
      %v819 = vpack.c.bf16 %v802, %v801
      %v820 = vpack.c.bf16 %v804, %v803
      %v837 = vunpack.c.l.b16 %v805
      %v838 = vunpack.c.h.b16 %v805
      %v839 = vunpack.c.l.b16 %v806
      %v840 = vunpack.c.h.b16 %v806
      %v841 = vunpack.c.l.b16 %v807
      %v842 = vunpack.c.h.b16 %v807
      %v843 = vunpack.c.l.b16 %v808
      %v844 = vunpack.c.h.b16 %v808
      %v845 = vunpack.c.l.b16 %v809
      %v846 = vunpack.c.h.b16 %v809
      %v847 = vunpack.c.l.b16 %v810
      %v848 = vunpack.c.h.b16 %v810
      %v849 = vunpack.c.l.b16 %v811
      %v850 = vunpack.c.h.b16 %v811
      %v851 = vunpack.c.l.b16 %v812
      %v852 = vunpack.c.h.b16 %v812
      %v853 = vunpack.c.l.b16 %v813
      %v854 = vunpack.c.h.b16 %v813
      %v855 = vunpack.c.l.b16 %v814
      %v856 = vunpack.c.h.b16 %v814
      %v857 = vunpack.c.l.b16 %v815
      %v858 = vunpack.c.h.b16 %v815
      %v859 = vunpack.c.l.b16 %v816
      %v860 = vunpack.c.h.b16 %v816
      %v861 = vunpack.c.l.b16 %v817
      %v862 = vunpack.c.h.b16 %v817
      %v863 = vunpack.c.l.b16 %v818
      %v864 = vunpack.c.h.b16 %v818
      %v865 = vunpack.c.l.b16 %v819
      %v866 = vunpack.c.h.b16 %v819
      %v867 = vunpack.c.l.b16 %v820
      %v868 = vunpack.c.h.b16 %v820
      %v869 = vpack.c.b16 %v837, %v837
      %v870 = vpack.c.b16 %v838, %v838
      %v871 = vpack.c.b16 %v839, %v839
      %v872 = vpack.c.b16 %v840, %v840
      %v873 = vpack.c.b16 %v841, %v841
      %v874 = vpack.c.b16 %v842, %v842
      %v875 = vpack.c.b16 %v843, %v843
      %v876 = vpack.c.b16 %v844, %v844
      %v877 = vpack.c.b16 %v845, %v845
      %v878 = vpack.c.b16 %v846, %v846
      %v879 = vpack.c.b16 %v847, %v847
      %v880 = vpack.c.b16 %v848, %v848
      %v881 = vpack.c.b16 %v849, %v849
      %v882 = vpack.c.b16 %v850, %v850
      %v883 = vpack.c.b16 %v851, %v851
      %v884 = vpack.c.b16 %v852, %v852
      %v885 = vpack.c.b16 %v853, %v853
      %v886 = vpack.c.b16 %v854, %v854
      %v887 = vpack.c.b16 %v855, %v855
      %v888 = vpack.c.b16 %v856, %v856
      %v889 = vpack.c.b16 %v857, %v857
      %v890 = vpack.c.b16 %v858, %v858
      %v891 = vpack.c.b16 %v859, %v859
      %v892 = vpack.c.b16 %v860, %v860
      %v893 = vpack.c.b16 %v861, %v861
      %v894 = vpack.c.b16 %v862, %v862
      %v895 = vpack.c.b16 %v863, %v863
      %v896 = vpack.c.b16 %v864, %v864
      %v897 = vpack.c.b16 %v865, %v865
      %v898 = vpack.c.b16 %v866, %v866
      %v899 = vpack.c.b16 %v867, %v867
      %v900 = vpack.c.b16 %v868, %v868
      %933 = vst [vmem:[%s202] sm:$0xf] %v869
      %934 = vst [vmem:[%s202 + $0x4] sm:$0xf] %v870
      %935 = vst [vmem:[%s202 + $0x8] sm:$0xf] %v871
      %936 = vst [vmem:[%s202 + $0xc] sm:$0xf] %v872
      %937 = vst [vmem:[%s202 + $0x10] sm:$0xf] %v873
      %938 = vst [vmem:[%s202 + $0x14] sm:$0xf] %v874
      %939 = vst [vmem:[%s202 + $0x18] sm:$0xf] %v875
      %940 = vst [vmem:[%s202 + $0x1c] sm:$0xf] %v876
      %941 = vst [vmem:[%s202 + $0x20] sm:$0xf] %v877
      %942 = vst [vmem:[%s202 + $0x24] sm:$0xf] %v878
      %943 = vst [vmem:[%s202 + $0x28] sm:$0xf] %v879
      %944 = vst [vmem:[%s202 + $0x2c] sm:$0xf] %v880
      %945 = vst [vmem:[%s202 + $0x30] sm:$0xf] %v881
      %946 = vst [vmem:[%s202 + $0x34] sm:$0xf] %v882
      %947 = vst [vmem:[%s202 + $0x38] sm:$0xf] %v883
      %948 = vst [vmem:[%s202 + $0x3c] sm:$0xf] %v884
      %949 = vst [vmem:[%s202 + $0x40] sm:$0xf] %v885
      %950 = vst [vmem:[%s202 + $0x44] sm:$0xf] %v886
      %951 = vst [vmem:[%s202 + $0x48] sm:$0xf] %v887
      %952 = vst [vmem:[%s202 + $0x4c] sm:$0xf] %v888
      %953 = vst [vmem:[%s202 + $0x50] sm:$0xf] %v889
      %954 = vst [vmem:[%s202 + $0x54] sm:$0xf] %v890
      %955 = vst [vmem:[%s202 + $0x58] sm:$0xf] %v891
      %956 = vst [vmem:[%s202 + $0x5c] sm:$0xf] %v892
      %957 = vst [vmem:[%s202 + $0x60] sm:$0xf] %v893
      %958 = vst [vmem:[%s202 + $0x64] sm:$0xf] %v894
      %959 = vst [vmem:[%s202 + $0x68] sm:$0xf] %v895
      %960 = vst [vmem:[%s202 + $0x6c] sm:$0xf] %v896
      %961 = vst [vmem:[%s202 + $0x70] sm:$0xf] %v897
      %962 = vst [vmem:[%s202 + $0x74] sm:$0xf] %v898
      %963 = vst [vmem:[%s202 + $0x78] sm:$0xf] %v899
      %964 = vst [vmem:[%s202 + $0x7c] sm:$0xf] %v900
      %s965 = smul.u32 32, %s15
      %p966 = scmp.lt.s32.totalorder %s965, 63
      %s967 = scalar_select %p966, %s965, 63
      %s968 = smul.addr %s967, 4
      %s969 = scalar_lea.vmem %s4, %s968
      // Predicated region
      $region37: #{_lambda_.8} parent=35 // pred_check
        %p970 = pneg %p122
      $region38: #{_lambda_.8} parent=35 // pred_check_branch
        %972 = sbr.rel (%p970) target = $region40
      $region39: #{_lambda_.8} parent=35 // pred_region
        %s973 = smul.u32 32, %s15
      $region40: #{_lambda_.8} parent=35 // pred_fallthru
        _
    $region36: #{_lambda_.8} parent=5 // pred_fallthru
      _
    %p974 = scmp.le.s32.totalorder 2, %s10
    // Predicated region
    $region41: #{_lambda_.8} parent=5 // pred_check
      %p975 = pneg %p974
    $region42: #{_lambda_.8} parent=5 // pred_check_branch
      %977 = sbr.rel (%p975) target = $region44
    $region43: #{_lambda_.8} parent=5 // pred_region
      %s978 = ssub.s32 %s10, 2
      // Predicated region
      $region45: #{_lambda_.8} parent=43 // pred_check
        %p979 = pneg %p128
      $region46: #{_lambda_.8} parent=43 // pred_check_branch
        %981 = sbr.rel (%p979) target = $region48
      $region47: #{_lambda_.8} parent=43 // pred_region
        %s982 = smul.u32 32, %s16
        %p983 = scmp.lt.s32.totalorder %s982, 63
        %s984 = scalar_select %p983, %s982, 63
        %s985 = smul.addr %s984, 4
        %s986 = scalar_lea.vmem %s4, %s985
      $region48: #{_lambda_.8} parent=43 // pred_fallthru
        _
    $region44: #{_lambda_.8} parent=5 // pred_fallthru
      _
  $region6: #{_lambda_.8} parent=0 // loop_footer
    %s14 = sadd.s32 1, %s10
  $region7: #{_lambda_.8} parent=0 // loop_footer_branch
    %9 = sbr.rel target = $region3
  $region8: #{_lambda_.8} parent=0 // loop_exit
    _

// kernel: _lambda_.9
$region0: #{_lambda_.9}
  #allocation0 [shape = 'u32[]', space=smem, size = 0x4, offset = 0x4, fixed_abs, tag = 'smem constant byte address 0x4 - core index']
  #allocation1 [shape = 'u32[144,128]{1,0:T(1,128)}', space=vmem, size = 0x12000, scoped, tag = 'internal scratch']
  %s0 = inlined_call_operand.vmem [shape: bf16[96,128], index: 0, kind: input, shape index: {}]
  %s1 = inlined_call_operand.vmem [shape: bf16[96,128], index: 1, kind: input, shape index: {}]
  %s2 = inlined_call_operand.vmem [shape: bf16[96,128], index: 2, kind: input, shape index: {}]
  %s3 = inlined_call_operand.vmem [shape: bf16[96,128], index: 3, kind: input, shape index: {}]
  %s4 = inlined_call_operand.vmem [shape: bf16[96,128], index: 4, kind: input, shape index: {}]
  %s5 = inlined_call_operand.vmem [shape: bf16[96,128], index: 5, kind: input, shape index: {}]
  %s6 = inlined_call_operand.vmem [shape: bf16[96,128], index: 6, kind: input, shape index: {}]
  %s7 = inlined_call_operand.vmem [shape: bf16[96,128], index: 7, kind: input, shape index: {}]
  %s8 = inlined_call_operand.vmem [shape: bf16[96,128], index: 8, kind: input, shape index: {}]
  %s9 = inlined_call_operand.vmem [shape: bf16[96,128], index: 9, kind: output, shape index: {}]
  %s10 = sld [smem:[#allocation0]]
  $region46: #{_lambda_.9} parent=0
    _
  %s12 = ssub.s32 1, %s10
  %s13 = scalar_select 0, %s12, %s10
  // Predicated region
  $region2: #{_lambda_.9} parent=0 // pred_check
    _
  $region3: #{_lambda_.9} parent=0 // pred_check_branch
    %15 = sbr.rel (0) target = $region5
  $region4: #{_lambda_.9} parent=0 // pred_region
    _
  $region5: #{_lambda_.9} parent=0 // pred_fallthru
    _
  // Predicated region
  $region6: #{_lambda_.9} parent=0 // pred_check
    _
  $region7: #{_lambda_.9} parent=0 // pred_check_branch
    %17 = sbr.rel (0) target = $region9
  $region8: #{_lambda_.9} parent=0 // pred_region
    _
  $region9: #{_lambda_.9} parent=0 // pred_fallthru
    _
  // Predicated region
  $region10: #{_lambda_.9} parent=0 // pred_check
    _
  $region11: #{_lambda_.9} parent=0 // pred_check_branch
    %19 = sbr.rel (0) target = $region13
  $region12: #{_lambda_.9} parent=0 // pred_region
    _
  $region13: #{_lambda_.9} parent=0 // pred_fallthru
    _
  // Predicated region
  $region14: #{_lambda_.9} parent=0 // pred_check
    _
  $region15: #{_lambda_.9} parent=0 // pred_check_branch
    %21 = sbr.rel (0) target = $region17
  $region16: #{_lambda_.9} parent=0 // pred_region
    _
  $region17: #{_lambda_.9} parent=0 // pred_fallthru
    _
  // Predicated region
  $region18: #{_lambda_.9} parent=0 // pred_check
    _
  $region19: #{_lambda_.9} parent=0 // pred_check_branch
    %23 = sbr.rel (0) target = $region21
  $region20: #{_lambda_.9} parent=0 // pred_region
    _
  $region21: #{_lambda_.9} parent=0 // pred_fallthru
    _
  // Predicated region
  $region22: #{_lambda_.9} parent=0 // pred_check
    _
  $region23: #{_lambda_.9} parent=0 // pred_check_branch
    %25 = sbr.rel (0) target = $region25
  $region24: #{_lambda_.9} parent=0 // pred_region
    _
  $region25: #{_lambda_.9} parent=0 // pred_fallthru
    _
  // Predicated region
  $region26: #{_lambda_.9} parent=0 // pred_check
    _
  $region27: #{_lambda_.9} parent=0 // pred_check_branch
    %27 = sbr.rel (0) target = $region29
  $region28: #{_lambda_.9} parent=0 // pred_region
    _
  $region29: #{_lambda_.9} parent=0 // pred_fallthru
    _
  // Predicated region
  $region30: #{_lambda_.9} parent=0 // pred_check
    _
  $region31: #{_lambda_.9} parent=0 // pred_check_branch
    %29 = sbr.rel (0) target = $region33
  $region32: #{_lambda_.9} parent=0 // pred_region
    _
  $region33: #{_lambda_.9} parent=0 // pred_fallthru
    _
  // Predicated region
  $region34: #{_lambda_.9} parent=0 // pred_check
    _
  $region35: #{_lambda_.9} parent=0 // pred_check_branch
    %31 = sbr.rel (0) target = $region37
  $region36: #{_lambda_.9} parent=0 // pred_region
    _
  $region37: #{_lambda_.9} parent=0 // pred_fallthru
    _
  %v32 = vld [vmem:[%s0] sm:$0xf]
  %v33 = vld [vmem:[%s0 + $0x4] sm:$0xf]
  %v34 = vld [vmem:[%s0 + $0x8] sm:$0xf]
  %v35 = vld [vmem:[%s0 + $0xc] sm:$0xf]
  %v36 = vld [vmem:[%s0 + $0x10] sm:$0xf]
  %v37 = vld [vmem:[%s0 + $0x14] sm:$0xf]
  %v38 = vld [vmem:[%s0 + $0x18] sm:$0xf]
  %v39 = vld [vmem:[%s0 + $0x1c] sm:$0xf]
  %v40 = vld [vmem:[%s0 + $0x20] sm:$0xf]
  %v41 = vld [vmem:[%s0 + $0x24] sm:$0xf]
  %v42 = vld [vmem:[%s0 + $0x28] sm:$0xf]
  %v43 = vld [vmem:[%s0 + $0x2c] sm:$0xf]
  %v44 = vld [vmem:[%s1] sm:$0xf]
  %v45 = vld [vmem:[%s1 + $0x4] sm:$0xf]
  %v46 = vld [vmem:[%s1 + $0x8] sm:$0xf]
  %v47 = vld [vmem:[%s1 + $0xc] sm:$0xf]
  %v48 = vld [vmem:[%s1 + $0x10] sm:$0xf]
  %v49 = vld [vmem:[%s1 + $0x14] sm:$0xf]
  %v50 = vld [vmem:[%s1 + $0x18] sm:$0xf]
  %v51 = vld [vmem:[%s1 + $0x1c] sm:$0xf]
  %v52 = vld [vmem:[%s1 + $0x20] sm:$0xf]
  %v53 = vld [vmem:[%s1 + $0x24] sm:$0xf]
  %v54 = vld [vmem:[%s1 + $0x28] sm:$0xf]
  %v55 = vld [vmem:[%s1 + $0x2c] sm:$0xf]
  %v56 = vmax.bf16 %v32, %v44
  %v57 = vmax.bf16 %v33, %v45
  %v58 = vmax.bf16 %v34, %v46
  %v59 = vmax.bf16 %v35, %v47
  %v60 = vmax.bf16 %v36, %v48
  %v61 = vmax.bf16 %v37, %v49
  %v62 = vmax.bf16 %v38, %v50
  %v63 = vmax.bf16 %v39, %v51
  %v64 = vmax.bf16 %v40, %v52
  %v65 = vmax.bf16 %v41, %v53
  %v66 = vmax.bf16 %v42, %v54
  %v67 = vmax.bf16 %v43, %v55
  %v68 = vld [vmem:[%s2] sm:$0xf]
  %v69 = vld [vmem:[%s2 + $0x4] sm:$0xf]
  %v70 = vld [vmem:[%s2 + $0x8] sm:$0xf]
  %v71 = vld [vmem:[%s2 + $0xc] sm:$0xf]
  %v72 = vld [vmem:[%s2 + $0x10] sm:$0xf]
  %v73 = vld [vmem:[%s2 + $0x14] sm:$0xf]
  %v74 = vld [vmem:[%s2 + $0x18] sm:$0xf]
  %v75 = vld [vmem:[%s2 + $0x1c] sm:$0xf]
  %v76 = vld [vmem:[%s2 + $0x20] sm:$0xf]
  %v77 = vld [vmem:[%s2 + $0x24] sm:$0xf]
  %v78 = vld [vmem:[%s2 + $0x28] sm:$0xf]
  %v79 = vld [vmem:[%s2 + $0x2c] sm:$0xf]
  %v80 = vmax.bf16 %v56, %v68
  %v81 = vmax.bf16 %v57, %v69
  %v82 = vmax.bf16 %v58, %v70
  %v83 = vmax.bf16 %v59, %v71
  %v84 = vmax.bf16 %v60, %v72
  %v85 = vmax.bf16 %v61, %v73
  %v86 = vmax.bf16 %v62, %v74
  %v87 = vmax.bf16 %v63, %v75
  %v88 = vmax.bf16 %v64, %v76
  %v89 = vmax.bf16 %v65, %v77
  %v90 = vmax.bf16 %v66, %v78
  %v91 = vmax.bf16 %v67, %v79
  %v92 = vld [vmem:[%s3] sm:$0xf]
  %v93 = vld [vmem:[%s3 + $0x4] sm:$0xf]
  %v94 = vld [vmem:[%s3 + $0x8] sm:$0xf]
  %v95 = vld [vmem:[%s3 + $0xc] sm:$0xf]
  %v96 = vld [vmem:[%s3 + $0x10] sm:$0xf]
  %v97 = vld [vmem:[%s3 + $0x14] sm:$0xf]
  %v98 = vld [vmem:[%s3 + $0x18] sm:$0xf]
  %v99 = vld [vmem:[%s3 + $0x1c] sm:$0xf]
  %v100 = vld [vmem:[%s3 + $0x20] sm:$0xf]
  %v101 = vld [vmem:[%s3 + $0x24] sm:$0xf]
  %v102 = vld [vmem:[%s3 + $0x28] sm:$0xf]
  %v103 = vld [vmem:[%s3 + $0x2c] sm:$0xf]
  %v104 = vmax.bf16 %v80, %v92
  %v105 = vmax.bf16 %v81, %v93
  %v106 = vmax.bf16 %v82, %v94
  %v107 = vmax.bf16 %v83, %v95
  %v108 = vmax.bf16 %v84, %v96
  %v109 = vmax.bf16 %v85, %v97
  %v110 = vmax.bf16 %v86, %v98
  %v111 = vmax.bf16 %v87, %v99
  %v112 = vmax.bf16 %v88, %v100
  %v113 = vmax.bf16 %v89, %v101
  %v114 = vmax.bf16 %v90, %v102
  %v115 = vmax.bf16 %v91, %v103
  %v116 = vld [vmem:[%s4] sm:$0xf]
  %v117 = vld [vmem:[%s4 + $0x4] sm:$0xf]
  %v118 = vld [vmem:[%s4 + $0x8] sm:$0xf]
  %v119 = vld [vmem:[%s4 + $0xc] sm:$0xf]
  %v120 = vld [vmem:[%s4 + $0x10] sm:$0xf]
  %v121 = vld [vmem:[%s4 + $0x14] sm:$0xf]
  %v122 = vld [vmem:[%s4 + $0x18] sm:$0xf]
  %v123 = vld [vmem:[%s4 + $0x1c] sm:$0xf]
  %v124 = vld [vmem:[%s4 + $0x20] sm:$0xf]
  %v125 = vld [vmem:[%s4 + $0x24] sm:$0xf]
  %v126 = vld [vmem:[%s4 + $0x28] sm:$0xf]
  %v127 = vld [vmem:[%s4 + $0x2c] sm:$0xf]
  %v128 = vmax.bf16 %v104, %v116
  %v129 = vmax.bf16 %v105, %v117
  %v130 = vmax.bf16 %v106, %v118
  %v131 = vmax.bf16 %v107, %v119
  %v132 = vmax.bf16 %v108, %v120
  %v133 = vmax.bf16 %v109, %v121
  %v134 = vmax.bf16 %v110, %v122
  %v135 = vmax.bf16 %v111, %v123
  %v136 = vmax.bf16 %v112, %v124
  %v137 = vmax.bf16 %v113, %v125
  %v138 = vmax.bf16 %v114, %v126
  %v139 = vmax.bf16 %v115, %v127
  %v140 = vld [vmem:[%s5] sm:$0xf]
  %v141 = vld [vmem:[%s5 + $0x4] sm:$0xf]
  %v142 = vld [vmem:[%s5 + $0x8] sm:$0xf]
  %v143 = vld [vmem:[%s5 + $0xc] sm:$0xf]
  %v144 = vld [vmem:[%s5 + $0x10] sm:$0xf]
  %v145 = vld [vmem:[%s5 + $0x14] sm:$0xf]
  %v146 = vld [vmem:[%s5 + $0x18] sm:$0xf]
  %v147 = vld [vmem:[%s5 + $0x1c] sm:$0xf]
  %v148 = vld [vmem:[%s5 + $0x20] sm:$0xf]
  %v149 = vld [vmem:[%s5 + $0x24] sm:$0xf]
  %v150 = vld [vmem:[%s5 + $0x28] sm:$0xf]
  %v151 = vld [vmem:[%s5 + $0x2c] sm:$0xf]
  %v152 = vmax.bf16 %v128, %v140
  %v153 = vmax.bf16 %v129, %v141
  %v154 = vmax.bf16 %v130, %v142
  %v155 = vmax.bf16 %v131, %v143
  %v156 = vmax.bf16 %v132, %v144
  %v157 = vmax.bf16 %v133, %v145
  %v158 = vmax.bf16 %v134, %v146
  %v159 = vmax.bf16 %v135, %v147
  %v160 = vmax.bf16 %v136, %v148
  %v161 = vmax.bf16 %v137, %v149
  %v162 = vmax.bf16 %v138, %v150
  %v163 = vmax.bf16 %v139, %v151
  %v164 = vld [vmem:[%s6] sm:$0xf]
  %v165 = vld [vmem:[%s6 + $0x4] sm:$0xf]
  %v166 = vld [vmem:[%s6 + $0x8] sm:$0xf]
  %v167 = vld [vmem:[%s6 + $0xc] sm:$0xf]
  %v168 = vld [vmem:[%s6 + $0x10] sm:$0xf]
  %v169 = vld [vmem:[%s6 + $0x14] sm:$0xf]
  %v170 = vld [vmem:[%s6 + $0x18] sm:$0xf]
  %v171 = vld [vmem:[%s6 + $0x1c] sm:$0xf]
  %v172 = vld [vmem:[%s6 + $0x20] sm:$0xf]
  %v173 = vld [vmem:[%s6 + $0x24] sm:$0xf]
  %v174 = vld [vmem:[%s6 + $0x28] sm:$0xf]
  %v175 = vld [vmem:[%s6 + $0x2c] sm:$0xf]
  %v176 = vmax.bf16 %v152, %v164
  %v177 = vmax.bf16 %v153, %v165
  %v178 = vmax.bf16 %v154, %v166
  %v179 = vmax.bf16 %v155, %v167
  %v180 = vmax.bf16 %v156, %v168
  %v181 = vmax.bf16 %v157, %v169
  %v182 = vmax.bf16 %v158, %v170
  %v183 = vmax.bf16 %v159, %v171
  %v184 = vmax.bf16 %v160, %v172
  %v185 = vmax.bf16 %v161, %v173
  %v186 = vmax.bf16 %v162, %v174
  %v187 = vmax.bf16 %v163, %v175
  %v188 = vld [vmem:[%s7] sm:$0xf]
  %v189 = vld [vmem:[%s7 + $0x4] sm:$0xf]
  %v190 = vld [vmem:[%s7 + $0x8] sm:$0xf]
  %v191 = vld [vmem:[%s7 + $0xc] sm:$0xf]
  %v192 = vld [vmem:[%s7 + $0x10] sm:$0xf]
  %v193 = vld [vmem:[%s7 + $0x14] sm:$0xf]
  %v194 = vld [vmem:[%s7 + $0x18] sm:$0xf]
  %v195 = vld [vmem:[%s7 + $0x1c] sm:$0xf]
  %v196 = vld [vmem:[%s7 + $0x20] sm:$0xf]
  %v197 = vld [vmem:[%s7 + $0x24] sm:$0xf]
  %v198 = vld [vmem:[%s7 + $0x28] sm:$0xf]
  %v199 = vld [vmem:[%s7 + $0x2c] sm:$0xf]
  %v200 = vmax.bf16 %v176, %v188
  %v201 = vmax.bf16 %v177, %v189
  %v202 = vmax.bf16 %v178, %v190
  %v203 = vmax.bf16 %v179, %v191
  %v204 = vmax.bf16 %v180, %v192
  %v205 = vmax.bf16 %v181, %v193
  %v206 = vmax.bf16 %v182, %v194
  %v207 = vmax.bf16 %v183, %v195
  %v208 = vmax.bf16 %v184, %v196
  %v209 = vmax.bf16 %v185, %v197
  %v210 = vmax.bf16 %v186, %v198
  %v211 = vmax.bf16 %v187, %v199
  %v212 = vld [vmem:[%s8] sm:$0xf]
  %v213 = vld [vmem:[%s8 + $0x4] sm:$0xf]
  %v214 = vld [vmem:[%s8 + $0x8] sm:$0xf]
  %v215 = vld [vmem:[%s8 + $0xc] sm:$0xf]
  %v216 = vld [vmem:[%s8 + $0x10] sm:$0xf]
  %v217 = vld [vmem:[%s8 + $0x14] sm:$0xf]
  %v218 = vld [vmem:[%s8 + $0x18] sm:$0xf]
  %v219 = vld [vmem:[%s8 + $0x1c] sm:$0xf]
  %v220 = vld [vmem:[%s8 + $0x20] sm:$0xf]
  %v221 = vld [vmem:[%s8 + $0x24] sm:$0xf]
  %v222 = vld [vmem:[%s8 + $0x28] sm:$0xf]
  %v223 = vld [vmem:[%s8 + $0x2c] sm:$0xf]
  %v224 = vmax.bf16 %v200, %v212
  %v225 = vmax.bf16 %v201, %v213
  %v226 = vmax.bf16 %v202, %v214
  %v227 = vmax.bf16 %v203, %v215
  %v228 = vmax.bf16 %v204, %v216
  %v229 = vmax.bf16 %v205, %v217
  %v230 = vmax.bf16 %v206, %v218
  %v231 = vmax.bf16 %v207, %v219
  %v232 = vmax.bf16 %v208, %v220
  %v233 = vmax.bf16 %v209, %v221
  %v234 = vmax.bf16 %v210, %v222
  %v235 = vmax.bf16 %v211, %v223
  %236 = vst [vmem:[%s9] sm:$0xf] %v224
  %237 = vst [vmem:[%s9 + $0x4] sm:$0xf] %v225
  %238 = vst [vmem:[%s9 + $0x8] sm:$0xf] %v226
  %239 = vst [vmem:[%s9 + $0xc] sm:$0xf] %v227
  %240 = vst [vmem:[%s9 + $0x10] sm:$0xf] %v228
  %241 = vst [vmem:[%s9 + $0x14] sm:$0xf] %v229
  %242 = vst [vmem:[%s9 + $0x18] sm:$0xf] %v230
  %243 = vst [vmem:[%s9 + $0x1c] sm:$0xf] %v231
  %244 = vst [vmem:[%s9 + $0x20] sm:$0xf] %v232
  %245 = vst [vmem:[%s9 + $0x24] sm:$0xf] %v233
  %246 = vst [vmem:[%s9 + $0x28] sm:$0xf] %v234
  %247 = vst [vmem:[%s9 + $0x2c] sm:$0xf] %v235
  // Predicated region
  $region38: #{_lambda_.9} parent=0 // pred_check
    _
  $region39: #{_lambda_.9} parent=0 // pred_check_branch
    %249 = sbr.rel (0) target = $region41
  $region40: #{_lambda_.9} parent=0 // pred_region
    _
  $region41: #{_lambda_.9} parent=0 // pred_fallthru
    _
  // Predicated region
  $region42: #{_lambda_.9} parent=0 // pred_check
    _
  $region43: #{_lambda_.9} parent=0 // pred_check_branch
    %251 = sbr.rel (0) target = $region45
  $region44: #{_lambda_.9} parent=0 // pred_region
    _
  $region45: #{_lambda_.9} parent=0 // pred_fallthru
    _

// kernel: _lambda_.10
$region0: #{_lambda_.10}
  #allocation0 [shape = 'u32[]', space=smem, size = 0x4, offset = 0x4, fixed_abs, tag = 'smem constant byte address 0x4 - core index']
  #allocation1 [shape = 'u32[144,128]{1,0:T(1,128)}', space=vmem, size = 0x12000, scoped, tag = 'internal scratch']
  %s0 = inlined_call_operand.vmem [shape: bf16[176,576], index: 0, kind: input, shape index: {}]
  %s1 = inlined_call_operand.vmem [shape: bf16[576,128], index: 1, kind: input, shape index: {}]
  %s2 = inlined_call_operand.vmem [shape: f32[1,128], index: 2, kind: input, shape index: {}]
  %s3 = inlined_call_operand.vmem [shape: f32[1,128], index: 3, kind: input, shape index: {}]
  %s4 = inlined_call_operand.vmem [shape: bf16[176,128], index: 4, kind: output, shape index: {}]
  %s5 = sld [smem:[#allocation0]]
  $region26: #{_lambda_.10} parent=0
    _
  %s7 = ssub.s32 1, %s5
  %s8 = scalar_select 0, %s7, %s5
  // Predicated region
  $region2: #{_lambda_.10} parent=0 // pred_check
    _
  $region3: #{_lambda_.10} parent=0 // pred_check_branch
    %10 = sbr.rel (0) target = $region5
  $region4: #{_lambda_.10} parent=0 // pred_region
    _
  $region5: #{_lambda_.10} parent=0 // pred_fallthru
    _
  // Predicated region
  $region6: #{_lambda_.10} parent=0 // pred_check
    _
  $region7: #{_lambda_.10} parent=0 // pred_check_branch
    %12 = sbr.rel (0) target = $region9
  $region8: #{_lambda_.10} parent=0 // pred_region
    _
  $region9: #{_lambda_.10} parent=0 // pred_fallthru
    _
  // Predicated region
  $region10: #{_lambda_.10} parent=0 // pred_check
    _
  $region11: #{_lambda_.10} parent=0 // pred_check_branch
    %14 = sbr.rel (0) target = $region13
  $region12: #{_lambda_.10} parent=0 // pred_region
    _
  $region13: #{_lambda_.10} parent=0 // pred_fallthru
    _
  // Predicated region
  $region14: #{_lambda_.10} parent=0 // pred_check
    _
  $region15: #{_lambda_.10} parent=0 // pred_check_branch
    %16 = sbr.rel (0) target = $region17
  $region16: #{_lambda_.10} parent=0 // pred_region
    _
  $region17: #{_lambda_.10} parent=0 // pred_fallthru
    _
  %v18 = vld [vmem:[%s0] sm:$0xff]
  %v19 = vld [vmem:[%s0 + $0x8] sm:$0xff]
  %v20 = vld [vmem:[%s0 + $0x10] sm:$0xf]
  %v21 = vld [vmem:[%s0 + $0x14] sm:$0xff]
  %v22 = vld [vmem:[%s0 + $0x1c] sm:$0xff]
  %v23 = vld [vmem:[%s0 + $0x24] sm:$0xf]
  %v24 = vld [vmem:[%s0 + $0x28] sm:$0xff]
  %v25 = vld [vmem:[%s0 + $0x30] sm:$0xff]
  %v26 = vld [vmem:[%s0 + $0x38] sm:$0xf]
  %v27 = vld [vmem:[%s0 + $0x3c] sm:$0xff]
  %v28 = vld [vmem:[%s0 + $0x44] sm:$0xff]
  %v29 = vld [vmem:[%s0 + $0x4c] sm:$0xf]
  %v30 = vld [vmem:[%s0 + $0x50] sm:$0xff]
  %v31 = vld [vmem:[%s0 + $0x58] sm:$0xff]
  %v32 = vld [vmem:[%s0 + $0x60] sm:$0xf]
  %v33 = vld [vmem:[%s0 + $0x64] sm:$0xff]
  %v34 = vld [vmem:[%s0 + $0x6c] sm:$0xff]
  %v35 = vld [vmem:[%s0 + $0x74] sm:$0xf]
  %v36 = vld [vmem:[%s0 + $0x78] sm:$0xff]
  %v37 = vld [vmem:[%s0 + $0x80] sm:$0xff]
  %v38 = vld [vmem:[%s0 + $0x88] sm:$0xf]
  %v39 = vld [vmem:[%s0 + $0x8c] sm:$0xff]
  %v40 = vld [vmem:[%s0 + $0x94] sm:$0xff]
  %v41 = vld [vmem:[%s0 + $0x9c] sm:$0xf]
  %v42 = vld [vmem:[%s0 + $0xa0] sm:$0xff]
  %v43 = vld [vmem:[%s0 + $0xa8] sm:$0xff]
  %v44 = vld [vmem:[%s0 + $0xb0] sm:$0xf]
  %v45 = vld [vmem:[%s0 + $0xb4] sm:$0xff]
  %v46 = vld [vmem:[%s0 + $0xbc] sm:$0xff]
  %v47 = vld [vmem:[%s0 + $0xc4] sm:$0xf]
  %v48 = vld [vmem:[%s0 + $0xc8] sm:$0xff]
  %v49 = vld [vmem:[%s0 + $0xd0] sm:$0xff]
  %v50 = vld [vmem:[%s0 + $0xd8] sm:$0xf]
  %v51 = vld [vmem:[%s0 + $0xdc] sm:$0xff]
  %v52 = vld [vmem:[%s0 + $0xe4] sm:$0xff]
  %v53 = vld [vmem:[%s0 + $0xec] sm:$0xf]
  %v54 = vld [vmem:[%s0 + $0xf0] sm:$0xff]
  %v55 = vld [vmem:[%s0 + $0xf8] sm:$0xff]
  %v56 = vld [vmem:[%s0 + $0x100] sm:$0xf]
  %v57 = vld [vmem:[%s0 + $0x104] sm:$0xff]
  %v58 = vld [vmem:[%s0 + $0x10c] sm:$0xff]
  %v59 = vld [vmem:[%s0 + $0x114] sm:$0xf]
  %v60 = vld [vmem:[%s0 + $0x118] sm:$0xff]
  %v61 = vld [vmem:[%s0 + $0x120] sm:$0xff]
  %v62 = vld [vmem:[%s0 + $0x128] sm:$0xf]
  %v63 = vld [vmem:[%s0 + $0x12c] sm:$0xff]
  %v64 = vld [vmem:[%s0 + $0x134] sm:$0xff]
  %v65 = vld [vmem:[%s0 + $0x13c] sm:$0xf]
  %v66 = vld [vmem:[%s0 + $0x140] sm:$0xff]
  %v67 = vld [vmem:[%s0 + $0x148] sm:$0xff]
  %v68 = vld [vmem:[%s0 + $0x150] sm:$0xf]
  %v69 = vld [vmem:[%s0 + $0x154] sm:$0xff]
  %v70 = vld [vmem:[%s0 + $0x15c] sm:$0xff]
  %v71 = vld [vmem:[%s0 + $0x164] sm:$0xf]
  %v72 = vld [vmem:[%s0 + $0x168] sm:$0xff]
  %v73 = vld [vmem:[%s0 + $0x170] sm:$0xff]
  %v74 = vld [vmem:[%s0 + $0x178] sm:$0xf]
  %v75 = vld [vmem:[%s0 + $0x17c] sm:$0xff]
  %v76 = vld [vmem:[%s0 + $0x184] sm:$0xff]
  %v77 = vld [vmem:[%s0 + $0x18c] sm:$0xf]
  %v78 = vld [vmem:[%s0 + $0x190] sm:$0xff]
  %v79 = vld [vmem:[%s0 + $0x198] sm:$0xff]
  %v80 = vld [vmem:[%s0 + $0x1a0] sm:$0xf]
  %v81 = vld [vmem:[%s0 + $0x1a4] sm:$0xff]
  %v82 = vld [vmem:[%s0 + $0x1ac] sm:$0xff]
  %v83 = vld [vmem:[%s0 + $0x1b4] sm:$0xf]
  %v84 = vld [vmem:[%s1] sm:$0xf]
  %v85 = vld [vmem:[%s1 + $0x4] sm:$0xf]
  %v86 = vld [vmem:[%s1 + $0x8] sm:$0xf]
  %v87 = vld [vmem:[%s1 + $0xc] sm:$0xf]
  %v88 = vld [vmem:[%s1 + $0x10] sm:$0xf]
  %v89 = vld [vmem:[%s1 + $0x14] sm:$0xf]
  %v90 = vld [vmem:[%s1 + $0x18] sm:$0xf]
  %v91 = vld [vmem:[%s1 + $0x1c] sm:$0xf]
  %v92 = vld [vmem:[%s1 + $0x20] sm:$0xf]
  %v93 = vld [vmem:[%s1 + $0x24] sm:$0xf]
  %v94 = vld [vmem:[%s1 + $0x28] sm:$0xf]
  %v95 = vld [vmem:[%s1 + $0x2c] sm:$0xf]
  %v96 = vld [vmem:[%s1 + $0x30] sm:$0xf]
  %v97 = vld [vmem:[%s1 + $0x34] sm:$0xf]
  %v98 = vld [vmem:[%s1 + $0x38] sm:$0xf]
  %v99 = vld [vmem:[%s1 + $0x3c] sm:$0xf]
  %v100 = vld [vmem:[%s1 + $0x40] sm:$0xf]
  %v101 = vld [vmem:[%s1 + $0x44] sm:$0xf]
  %v102 = vld [vmem:[%s1 + $0x48] sm:$0xf]
  %v103 = vld [vmem:[%s1 + $0x4c] sm:$0xf]
  %v104 = vld [vmem:[%s1 + $0x50] sm:$0xf]
  %v105 = vld [vmem:[%s1 + $0x54] sm:$0xf]
  %v106 = vld [vmem:[%s1 + $0x58] sm:$0xf]
  %v107 = vld [vmem:[%s1 + $0x5c] sm:$0xf]
  %v108 = vld [vmem:[%s1 + $0x60] sm:$0xf]
  %v109 = vld [vmem:[%s1 + $0x64] sm:$0xf]
  %v110 = vld [vmem:[%s1 + $0x68] sm:$0xf]
  %v111 = vld [vmem:[%s1 + $0x6c] sm:$0xf]
  %v112 = vld [vmem:[%s1 + $0x70] sm:$0xf]
  %v113 = vld [vmem:[%s1 + $0x74] sm:$0xf]
  %v114 = vld [vmem:[%s1 + $0x78] sm:$0xf]
  %v115 = vld [vmem:[%s1 + $0x7c] sm:$0xf]
  %v116 = vld [vmem:[%s1 + $0x80] sm:$0xf]
  %v117 = vld [vmem:[%s1 + $0x84] sm:$0xf]
  %v118 = vld [vmem:[%s1 + $0x88] sm:$0xf]
  %v119 = vld [vmem:[%s1 + $0x8c] sm:$0xf]
  %v120 = vld [vmem:[%s1 + $0x90] sm:$0xf]
  %v121 = vld [vmem:[%s1 + $0x94] sm:$0xf]
  %v122 = vld [vmem:[%s1 + $0x98] sm:$0xf]
  %v123 = vld [vmem:[%s1 + $0x9c] sm:$0xf]
  %v124 = vld [vmem:[%s1 + $0xa0] sm:$0xf]
  %v125 = vld [vmem:[%s1 + $0xa4] sm:$0xf]
  %v126 = vld [vmem:[%s1 + $0xa8] sm:$0xf]
  %v127 = vld [vmem:[%s1 + $0xac] sm:$0xf]
  %v128 = vld [vmem:[%s1 + $0xb0] sm:$0xf]
  %v129 = vld [vmem:[%s1 + $0xb4] sm:$0xf]
  %v130 = vld [vmem:[%s1 + $0xb8] sm:$0xf]
  %v131 = vld [vmem:[%s1 + $0xbc] sm:$0xf]
  %v132 = vld [vmem:[%s1 + $0xc0] sm:$0xf]
  %v133 = vld [vmem:[%s1 + $0xc4] sm:$0xf]
  %v134 = vld [vmem:[%s1 + $0xc8] sm:$0xf]
  %v135 = vld [vmem:[%s1 + $0xcc] sm:$0xf]
  %v136 = vld [vmem:[%s1 + $0xd0] sm:$0xf]
  %v137 = vld [vmem:[%s1 + $0xd4] sm:$0xf]
  %v138 = vld [vmem:[%s1 + $0xd8] sm:$0xf]
  %v139 = vld [vmem:[%s1 + $0xdc] sm:$0xf]
  %v140 = vld [vmem:[%s1 + $0xe0] sm:$0xf]
  %v141 = vld [vmem:[%s1 + $0xe4] sm:$0xf]
  %v142 = vld [vmem:[%s1 + $0xe8] sm:$0xf]
  %v143 = vld [vmem:[%s1 + $0xec] sm:$0xf]
  %v144 = vld [vmem:[%s1 + $0xf0] sm:$0xf]
  %v145 = vld [vmem:[%s1 + $0xf4] sm:$0xf]
  %v146 = vld [vmem:[%s1 + $0xf8] sm:$0xf]
  %v147 = vld [vmem:[%s1 + $0xfc] sm:$0xf]
  %v148 = vld [vmem:[%s1 + $0x100] sm:$0xf]
  %v149 = vld [vmem:[%s1 + $0x104] sm:$0xf]
  %v150 = vld [vmem:[%s1 + $0x108] sm:$0xf]
  %v151 = vld [vmem:[%s1 + $0x10c] sm:$0xf]
  %v152 = vld [vmem:[%s1 + $0x110] sm:$0xf]
  %v153 = vld [vmem:[%s1 + $0x114] sm:$0xf]
  %v154 = vld [vmem:[%s1 + $0x118] sm:$0xf]
  %v155 = vld [vmem:[%s1 + $0x11c] sm:$0xf]
  %v222 = vunpack.c.l.b16 %v18
  %v223 = vunpack.c.h.b16 %v18
  %v224 = vunpack.c.l.b16 %v19
  %v225 = vunpack.c.h.b16 %v19
  %v226 = vunpack.c.l.b16 %v20
  %v227 = vunpack.c.l.b16 %v21
  %v228 = vunpack.c.h.b16 %v21
  %v229 = vunpack.c.l.b16 %v22
  %v230 = vunpack.c.h.b16 %v22
  %v231 = vunpack.c.l.b16 %v23
  %v232 = vunpack.c.l.b16 %v24
  %v233 = vunpack.c.h.b16 %v24
  %v234 = vunpack.c.l.b16 %v25
  %v235 = vunpack.c.h.b16 %v25
  %v236 = vunpack.c.l.b16 %v26
  %v237 = vunpack.c.l.b16 %v27
  %v238 = vunpack.c.h.b16 %v27
  %v239 = vunpack.c.l.b16 %v28
  %v240 = vunpack.c.h.b16 %v28
  %v241 = vunpack.c.l.b16 %v29
  %v242 = vunpack.c.l.b16 %v30
  %v243 = vunpack.c.h.b16 %v30
  %v244 = vunpack.c.l.b16 %v31
  %v245 = vunpack.c.h.b16 %v31
  %v246 = vunpack.c.l.b16 %v32
  %v247 = vunpack.c.l.b16 %v33
  %v248 = vunpack.c.h.b16 %v33
  %v249 = vunpack.c.l.b16 %v34
  %v250 = vunpack.c.h.b16 %v34
  %v251 = vunpack.c.l.b16 %v35
  %v252 = vunpack.c.l.b16 %v36
  %v253 = vunpack.c.h.b16 %v36
  %v254 = vunpack.c.l.b16 %v37
  %v255 = vunpack.c.h.b16 %v37
  %v256 = vunpack.c.l.b16 %v38
  %v257 = vunpack.c.l.b16 %v39
  %v258 = vunpack.c.h.b16 %v39
  %v259 = vunpack.c.l.b16 %v40
  %v260 = vunpack.c.h.b16 %v40
  %v261 = vunpack.c.l.b16 %v41
  %v262 = vunpack.c.l.b16 %v42
  %v263 = vunpack.c.h.b16 %v42
  %v264 = vunpack.c.l.b16 %v43
  %v265 = vunpack.c.h.b16 %v43
  %v266 = vunpack.c.l.b16 %v44
  %v267 = vunpack.c.l.b16 %v45
  %v268 = vunpack.c.h.b16 %v45
  %v269 = vunpack.c.l.b16 %v46
  %v270 = vunpack.c.h.b16 %v46
  %v271 = vunpack.c.l.b16 %v47
  %v272 = vunpack.c.l.b16 %v48
  %v273 = vunpack.c.h.b16 %v48
  %v274 = vunpack.c.l.b16 %v49
  %v275 = vunpack.c.h.b16 %v49
  %v276 = vunpack.c.l.b16 %v50
  %v277 = vunpack.c.l.b16 %v51
  %v278 = vunpack.c.h.b16 %v51
  %v279 = vunpack.c.l.b16 %v52
  %v280 = vunpack.c.h.b16 %v52
  %v281 = vunpack.c.l.b16 %v53
  %v282 = vunpack.c.l.b16 %v54
  %v283 = vunpack.c.h.b16 %v54
  %v284 = vunpack.c.l.b16 %v55
  %v285 = vunpack.c.h.b16 %v55
  %v286 = vunpack.c.l.b16 %v56
  %v287 = vunpack.c.l.b16 %v57
  %v288 = vunpack.c.h.b16 %v57
  %v289 = vunpack.c.l.b16 %v58
  %v290 = vunpack.c.h.b16 %v58
  %v291 = vunpack.c.l.b16 %v59
  %v292 = vunpack.c.l.b16 %v60
  %v293 = vunpack.c.h.b16 %v60
  %v294 = vunpack.c.l.b16 %v61
  %v295 = vunpack.c.h.b16 %v61
  %v296 = vunpack.c.l.b16 %v62
  %v297 = vunpack.c.l.b16 %v63
  %v298 = vunpack.c.h.b16 %v63
  %v299 = vunpack.c.l.b16 %v64
  %v300 = vunpack.c.h.b16 %v64
  %v301 = vunpack.c.l.b16 %v65
  %v302 = vunpack.c.l.b16 %v66
  %v303 = vunpack.c.h.b16 %v66
  %v304 = vunpack.c.l.b16 %v67
  %v305 = vunpack.c.h.b16 %v67
  %v306 = vunpack.c.l.b16 %v68
  %v307 = vunpack.c.l.b16 %v69
  %v308 = vunpack.c.h.b16 %v69
  %v309 = vunpack.c.l.b16 %v70
  %v310 = vunpack.c.h.b16 %v70
  %v311 = vunpack.c.l.b16 %v71
  %v312 = vunpack.c.l.b16 %v72
  %v313 = vunpack.c.h.b16 %v72
  %v314 = vunpack.c.l.b16 %v73
  %v315 = vunpack.c.h.b16 %v73
  %v316 = vunpack.c.l.b16 %v74
  %v317 = vunpack.c.l.b16 %v75
  %v318 = vunpack.c.h.b16 %v75
  %v319 = vunpack.c.l.b16 %v76
  %v320 = vunpack.c.h.b16 %v76
  %v321 = vunpack.c.l.b16 %v77
  %v322 = vunpack.c.l.b16 %v78
  %v323 = vunpack.c.h.b16 %v78
  %v324 = vunpack.c.l.b16 %v79
  %v325 = vunpack.c.h.b16 %v79
  %v326 = vunpack.c.l.b16 %v80
  %v327 = vunpack.c.l.b16 %v81
  %v328 = vunpack.c.h.b16 %v81
  %v329 = vunpack.c.l.b16 %v82
  %v330 = vunpack.c.h.b16 %v82
  %v331 = vunpack.c.l.b16 %v83
  %v332 = vpack.c.b16 %v227, %v222
  %v333 = vpack.c.b16 %v228, %v223
  %v334 = vpack.c.b16 %v229, %v224
  %v335 = vpack.c.b16 %v230, %v225
  %v336 = vpack.c.b16 %v231, %v226
  %v337 = vpack.c.b16 %v237, %v232
  %v338 = vpack.c.b16 %v238, %v233
  %v339 = vpack.c.b16 %v239, %v234
  %v340 = vpack.c.b16 %v240, %v235
  %v341 = vpack.c.b16 %v241, %v236
  %v342 = vpack.c.b16 %v247, %v242
  %v343 = vpack.c.b16 %v248, %v243
  %v344 = vpack.c.b16 %v249, %v244
  %v345 = vpack.c.b16 %v250, %v245
  %v346 = vpack.c.b16 %v251, %v246
  %v347 = vpack.c.b16 %v257, %v252
  %v348 = vpack.c.b16 %v258, %v253
  %v349 = vpack.c.b16 %v259, %v254
  %v350 = vpack.c.b16 %v260, %v255
  %v351 = vpack.c.b16 %v261, %v256
  %v352 = vpack.c.b16 %v267, %v262
  %v353 = vpack.c.b16 %v268, %v263
  %v354 = vpack.c.b16 %v269, %v264
  %v355 = vpack.c.b16 %v270, %v265
  %v356 = vpack.c.b16 %v271, %v266
  %v357 = vpack.c.b16 %v277, %v272
  %v358 = vpack.c.b16 %v278, %v273
  %v359 = vpack.c.b16 %v279, %v274
  %v360 = vpack.c.b16 %v280, %v275
  %v361 = vpack.c.b16 %v281, %v276
  %v362 = vpack.c.b16 %v287, %v282
  %v363 = vpack.c.b16 %v288, %v283
  %v364 = vpack.c.b16 %v289, %v284
  %v365 = vpack.c.b16 %v290, %v285
  %v366 = vpack.c.b16 %v291, %v286
  %v367 = vpack.c.b16 %v297, %v292
  %v368 = vpack.c.b16 %v298, %v293
  %v369 = vpack.c.b16 %v299, %v294
  %v370 = vpack.c.b16 %v300, %v295
  %v371 = vpack.c.b16 %v301, %v296
  %v372 = vpack.c.b16 %v307, %v302
  %v373 = vpack.c.b16 %v308, %v303
  %v374 = vpack.c.b16 %v309, %v304
  %v375 = vpack.c.b16 %v310, %v305
  %v376 = vpack.c.b16 %v311, %v306
  %v377 = vpack.c.b16 %v317, %v312
  %v378 = vpack.c.b16 %v318, %v313
  %v379 = vpack.c.b16 %v319, %v314
  %v380 = vpack.c.b16 %v320, %v315
  %v381 = vpack.c.b16 %v321, %v316
  %v382 = vpack.c.b16 %v327, %v322
  %v383 = vpack.c.b16 %v328, %v323
  %v384 = vpack.c.b16 %v329, %v324
  %v385 = vpack.c.b16 %v330, %v325
  %v386 = vpack.c.b16 %v331, %v326
  %v503 = vunpack.c.l.b16 %v84
  %v504 = vunpack.c.l.b16 %v85
  %v505 = vunpack.c.l.b16 %v86
  %v506 = vunpack.c.l.b16 %v87
  %v507 = vunpack.c.l.b16 %v88
  %v508 = vunpack.c.l.b16 %v89
  %v509 = vunpack.c.l.b16 %v90
  %v510 = vunpack.c.l.b16 %v91
  %v511 = vunpack.c.l.b16 %v92
  %v512 = vunpack.c.l.b16 %v93
  %v513 = vunpack.c.l.b16 %v94
  %v514 = vunpack.c.l.b16 %v95
  %v515 = vunpack.c.l.b16 %v96
  %v516 = vunpack.c.l.b16 %v97
  %v517 = vunpack.c.l.b16 %v98
  %v518 = vunpack.c.l.b16 %v99
  %v519 = vunpack.c.l.b16 %v100
  %v520 = vunpack.c.l.b16 %v101
  %v521 = vunpack.c.l.b16 %v102
  %v522 = vunpack.c.l.b16 %v103
  %v523 = vunpack.c.l.b16 %v104
  %v524 = vunpack.c.l.b16 %v105
  %v525 = vunpack.c.l.b16 %v106
  %v526 = vunpack.c.l.b16 %v107
  %v527 = vunpack.c.l.b16 %v108
  %v528 = vunpack.c.l.b16 %v109
  %v529 = vunpack.c.l.b16 %v110
  %v530 = vunpack.c.l.b16 %v111
  %v531 = vunpack.c.l.b16 %v112
  %v532 = vunpack.c.l.b16 %v113
  %v533 = vunpack.c.l.b16 %v114
  %v534 = vunpack.c.l.b16 %v115
  %v535 = vunpack.c.l.b16 %v116
  %v536 = vunpack.c.l.b16 %v117
  %v537 = vunpack.c.l.b16 %v118
  %v538 = vunpack.c.l.b16 %v119
  %v539 = vunpack.c.l.b16 %v120
  %v540 = vunpack.c.l.b16 %v121
  %v541 = vunpack.c.l.b16 %v122
  %v542 = vunpack.c.l.b16 %v123
  %v543 = vunpack.c.l.b16 %v124
  %v544 = vunpack.c.l.b16 %v125
  %v545 = vunpack.c.l.b16 %v126
  %v546 = vunpack.c.l.b16 %v127
  %v547 = vunpack.c.l.b16 %v128
  %v548 = vunpack.c.l.b16 %v129
  %v549 = vunpack.c.l.b16 %v130
  %v550 = vunpack.c.l.b16 %v131
  %v551 = vunpack.c.l.b16 %v132
  %v552 = vunpack.c.l.b16 %v133
  %v553 = vunpack.c.l.b16 %v134
  %v554 = vunpack.c.l.b16 %v135
  %v555 = vunpack.c.l.b16 %v136
  %v556 = vunpack.c.l.b16 %v137
  %v557 = vunpack.c.l.b16 %v138
  %v558 = vunpack.c.l.b16 %v139
  %v559 = vunpack.c.l.b16 %v140
  %v560 = vunpack.c.l.b16 %v141
  %v561 = vunpack.c.l.b16 %v142
  %v562 = vunpack.c.l.b16 %v143
  %v563 = vunpack.c.l.b16 %v144
  %v564 = vunpack.c.l.b16 %v145
  %v565 = vunpack.c.l.b16 %v146
  %v566 = vunpack.c.l.b16 %v147
  %v567 = vunpack.c.l.b16 %v148
  %v568 = vunpack.c.l.b16 %v149
  %v569 = vunpack.c.l.b16 %v150
  %v570 = vunpack.c.l.b16 %v151
  %v571 = vunpack.c.l.b16 %v152
  %v572 = vunpack.c.l.b16 %v153
  %v573 = vunpack.c.l.b16 %v154
  %v574 = vunpack.c.l.b16 %v155
  %v575 = vpack.c.b16 %v504, %v503
  %v576 = vpack.c.b16 %v506, %v505
  %v577 = vpack.c.b16 %v508, %v507
  %v578 = vpack.c.b16 %v510, %v509
  %v579 = vpack.c.b16 %v512, %v511
  %v580 = vpack.c.b16 %v514, %v513
  %v581 = vpack.c.b16 %v516, %v515
  %v582 = vpack.c.b16 %v518, %v517
  %v583 = vpack.c.b16 %v520, %v519
  %v584 = vpack.c.b16 %v522, %v521
  %v585 = vpack.c.b16 %v524, %v523
  %v586 = vpack.c.b16 %v526, %v525
  %v587 = vpack.c.b16 %v528, %v527
  %v588 = vpack.c.b16 %v530, %v529
  %v589 = vpack.c.b16 %v532, %v531
  %v590 = vpack.c.b16 %v534, %v533
  %v591 = vpack.c.b16 %v536, %v535
  %v592 = vpack.c.b16 %v538, %v537
  %v593 = vpack.c.b16 %v540, %v539
  %v594 = vpack.c.b16 %v542, %v541
  %v595 = vpack.c.b16 %v544, %v543
  %v596 = vpack.c.b16 %v546, %v545
  %v597 = vpack.c.b16 %v548, %v547
  %v598 = vpack.c.b16 %v550, %v549
  %v599 = vpack.c.b16 %v552, %v551
  %v600 = vpack.c.b16 %v554, %v553
  %v601 = vpack.c.b16 %v556, %v555
  %v602 = vpack.c.b16 %v558, %v557
  %v603 = vpack.c.b16 %v560, %v559
  %v604 = vpack.c.b16 %v562, %v561
  %v605 = vpack.c.b16 %v564, %v563
  %v606 = vpack.c.b16 %v566, %v565
  %v607 = vpack.c.b16 %v568, %v567
  %v608 = vpack.c.b16 %v570, %v569
  %v609 = vpack.c.b16 %v572, %v571
  %v610 = vpack.c.b16 %v574, %v573
  %vm647 = vcmask 523264
  %v649 = vsel %vm647, %v336, 0
  %v652 = vsel %vm647, %v341, 0
  %v655 = vsel %vm647, %v346, 0
  %v658 = vsel %vm647, %v351, 0
  %v661 = vsel %vm647, %v356, 0
  %v664 = vsel %vm647, %v361, 0
  %v667 = vsel %vm647, %v366, 0
  %v670 = vsel %vm647, %v371, 0
  %v673 = vsel %vm647, %v376, 0
  %v676 = vsel %vm647, %v381, 0
  %v679 = vsel %vm647, %v386, 0
  %681 = vmatprep.subr.bf16.mxu0 0
  %682 = vmatpush1.bf16.msra.mxu0 %v575
  %683 = vmatprep.subr.bf16.mxu0 0
  %684 = vmatpush1.bf16.msra.mxu0 %v576
  %685 = vmatprep.subr.bf16.mxu0 0
  %686 = vmatpush1.bf16.msra.mxu0 %v577
  %687 = vmatprep.subr.bf16.mxu0 0
  %688 = vmatpush1.bf16.msra.mxu0 %v578
  %689 = vmatprep.subr.bf16.mxu0 0
  %690 = vmatpush1.bf16.msra.mxu0 %v579
  %691 = vmatprep.subr.bf16.mxu0 0
  %692 = vmatpush1.bf16.msra.mxu0 %v580
  %693 = vmatprep.subr.bf16.mxu0 0
  %694 = vmatpush1.bf16.msra.mxu0 %v581
  %695 = vmatprep.subr.bf16.mxu0 0
  %696 = vmatpush1.bf16.msra.mxu0 %v582
  %697 = vmatprep.subr.bf16.mxu0 0
  %698 = vmatpush1.bf16.msra.mxu0 %v583
  %699 = vmatprep.subr.bf16.mxu0 0
  %700 = vmatpush1.bf16.msra.mxu0 %v584
  %701 = vmatprep.subr.bf16.mxu0 0
  %702 = vmatpush1.bf16.msra.mxu0 %v585
  %703 = vmatprep.subr.bf16.mxu0 0
  %704 = vmatpush1.bf16.msra.mxu0 %v586
  %705 = vmatprep.subr.bf16.mxu0 0
  %706 = vmatpush1.bf16.msra.mxu0 %v587
  %707 = vmatprep.subr.bf16.mxu0 0
  %708 = vmatpush1.bf16.msra.mxu0 %v588
  %709 = vmatprep.subr.bf16.mxu0 0
  %710 = vmatpush1.bf16.msra.mxu0 %v589
  %711 = vmatprep.subr.bf16.mxu0 0
  %712 = vmatpush1.bf16.msra.mxu0 %v590
  %713 = vmatprep.mubr.bf16.mxu0 %v333
  %714 = vmatmul.mubr.bf16.gmra.mrb[0].mxu0 %v332
  %v715 = vpop.f32.mrb[0].mxu0
  %v716 = vadd.f32 0.0, %v715
  %v717 = vpop.f32.mrb[0].mxu0
  %v718 = vpop.f32.mrb[0].mxu0
  %v719 = vadd.f32 0.0, %v718
  %v720 = vpop.f32.mrb[0].mxu0
  %721 = vmatprep.mubr.bf16.mxu0 %v338
  %722 = vmatmul.mubr.bf16.gmra.mrb[0].mxu0 %v337
  %v723 = vpop.f32.mrb[0].mxu0
  %v724 = vadd.f32 0.0, %v723
  %v725 = vpop.f32.mrb[0].mxu0
  %v726 = vpop.f32.mrb[0].mxu0
  %v727 = vadd.f32 0.0, %v726
  %v728 = vpop.f32.mrb[0].mxu0
  %729 = vmatprep.mubr.bf16.mxu0 %v343
  %730 = vmatmul.mubr.bf16.gmra.mrb[0].mxu0 %v342
  %v731 = vpop.f32.mrb[0].mxu0
  %v732 = vadd.f32 0.0, %v731
  %v733 = vpop.f32.mrb[0].mxu0
  %v734 = vpop.f32.mrb[0].mxu0
  %v735 = vadd.f32 0.0, %v734
  %v736 = vpop.f32.mrb[0].mxu0
  %737 = vmatprep.mubr.bf16.mxu0 %v348
  %738 = vmatmul.mubr.bf16.gmra.mrb[0].mxu0 %v347
  %v739 = vpop.f32.mrb[0].mxu0
  %v740 = vadd.f32 0.0, %v739
  %v741 = vpop.f32.mrb[0].mxu0
  %v742 = vpop.f32.mrb[0].mxu0
  %v743 = vadd.f32 0.0, %v742
  %v744 = vpop.f32.mrb[0].mxu0
  %745 = vmatprep.mubr.bf16.mxu0 %v353
  %746 = vmatmul.mubr.bf16.gmra.mrb[0].mxu0 %v352
  %v747 = vpop.f32.mrb[0].mxu0
  %v748 = vadd.f32 0.0, %v747
  %v749 = vpop.f32.mrb[0].mxu0
  %v750 = vpop.f32.mrb[0].mxu0
  %v751 = vadd.f32 0.0, %v750
  %v752 = vpop.f32.mrb[0].mxu0
  %753 = vmatprep.mubr.bf16.mxu0 %v358
  %754 = vmatmul.mubr.bf16.gmra.mrb[0].mxu0 %v357
  %v755 = vpop.f32.mrb[0].mxu0
  %v756 = vadd.f32 0.0, %v755
  %v757 = vpop.f32.mrb[0].mxu0
  %v758 = vpop.f32.mrb[0].mxu0
  %v759 = vadd.f32 0.0, %v758
  %v760 = vpop.f32.mrb[0].mxu0
  %761 = vmatprep.mubr.bf16.mxu0 %v363
  %762 = vmatmul.mubr.bf16.gmra.mrb[0].mxu0 %v362
  %v763 = vpop.f32.mrb[0].mxu0
  %v764 = vadd.f32 0.0, %v763
  %v765 = vpop.f32.mrb[0].mxu0
  %v766 = vpop.f32.mrb[0].mxu0
  %v767 = vadd.f32 0.0, %v766
  %v768 = vpop.f32.mrb[0].mxu0
  %769 = vmatprep.mubr.bf16.mxu0 %v368
  %770 = vmatmul.mubr.bf16.gmra.mrb[0].mxu0 %v367
  %v771 = vpop.f32.mrb[0].mxu0
  %v772 = vadd.f32 0.0, %v771
  %v773 = vpop.f32.mrb[0].mxu0
  %v774 = vpop.f32.mrb[0].mxu0
  %v775 = vadd.f32 0.0, %v774
  %v776 = vpop.f32.mrb[0].mxu0
  %777 = vmatprep.mubr.bf16.mxu0 %v373
  %778 = vmatmul.mubr.bf16.gmra.mrb[0].mxu0 %v372
  %v779 = vpop.f32.mrb[0].mxu0
  %v780 = vadd.f32 0.0, %v779
  %v781 = vpop.f32.mrb[0].mxu0
  %v782 = vpop.f32.mrb[0].mxu0
  %v783 = vadd.f32 0.0, %v782
  %v784 = vpop.f32.mrb[0].mxu0
  %785 = vmatprep.mubr.bf16.mxu0 %v378
  %786 = vmatmul.mubr.bf16.gmra.mrb[0].mxu0 %v377
  %v787 = vpop.f32.mrb[0].mxu0
  %v788 = vadd.f32 0.0, %v787
  %v789 = vpop.f32.mrb[0].mxu0
  %v790 = vpop.f32.mrb[0].mxu0
  %v791 = vadd.f32 0.0, %v790
  %v792 = vpop.f32.mrb[0].mxu0
  %793 = vmatprep.mubr.bf16.mxu0 %v383
  %794 = vmatmul.mubr.bf16.gmra.mrb[0].mxu0 %v382
  %v795 = vpop.f32.mrb[0].mxu0
  %v796 = vadd.f32 0.0, %v795
  %v797 = vpop.f32.mrb[0].mxu0
  %v798 = vpop.f32.mrb[0].mxu0
  %v799 = vadd.f32 0.0, %v798
  %v800 = vpop.f32.mrb[0].mxu0
  %801 = vdwg.mxu0
  %802 = vmatprep.subr.bf16.mxu0 0
  %803 = vmatpush1.bf16.msra.mxu0 %v591
  %804 = vmatprep.subr.bf16.mxu0 0
  %805 = vmatpush1.bf16.msra.mxu0 %v592
  %806 = vmatprep.subr.bf16.mxu0 0
  %807 = vmatpush1.bf16.msra.mxu0 %v593
  %808 = vmatprep.subr.bf16.mxu0 0
  %809 = vmatpush1.bf16.msra.mxu0 %v594
  %810 = vmatprep.subr.bf16.mxu0 0
  %811 = vmatpush1.bf16.msra.mxu0 %v595
  %812 = vmatprep.subr.bf16.mxu0 0
  %813 = vmatpush1.bf16.msra.mxu0 %v596
  %814 = vmatprep.subr.bf16.mxu0 0
  %815 = vmatpush1.bf16.msra.mxu0 %v597
  %816 = vmatprep.subr.bf16.mxu0 0
  %817 = vmatpush1.bf16.msra.mxu0 %v598
  %818 = vmatprep.subr.bf16.mxu0 0
  %819 = vmatpush1.bf16.msra.mxu0 %v599
  %820 = vmatprep.subr.bf16.mxu0 0
  %821 = vmatpush1.bf16.msra.mxu0 %v600
  %822 = vmatprep.subr.bf16.mxu0 0
  %823 = vmatpush1.bf16.msra.mxu0 %v601
  %824 = vmatprep.subr.bf16.mxu0 0
  %825 = vmatpush1.bf16.msra.mxu0 %v602
  %826 = vmatprep.subr.bf16.mxu0 0
  %827 = vmatpush1.bf16.msra.mxu0 %v603
  %828 = vmatprep.subr.bf16.mxu0 0
  %829 = vmatpush1.bf16.msra.mxu0 %v604
  %830 = vmatprep.subr.bf16.mxu0 0
  %831 = vmatpush1.bf16.msra.mxu0 %v605
  %832 = vmatprep.subr.bf16.mxu0 0
  %833 = vmatpush1.bf16.msra.mxu0 %v606
  %834 = vmatprep.mubr.bf16.mxu0 %v335
  %835 = vmatmul.mubr.bf16.gmra.mrb[0].mxu0 %v334
  %v836 = vpop.f32.mrb[0].mxu0
  %v837 = vadd.f32 %v716, %v836
  %v838 = vpop.f32.mrb[0].mxu0
  %v839 = vpop.f32.mrb[0].mxu0
  %v840 = vadd.f32 %v719, %v839
  %v841 = vpop.f32.mrb[0].mxu0
  %842 = vmatprep.mubr.bf16.mxu0 %v340
  %843 = vmatmul.mubr.bf16.gmra.mrb[0].mxu0 %v339
  %v844 = vpop.f32.mrb[0].mxu0
  %v845 = vadd.f32 %v724, %v844
  %v846 = vpop.f32.mrb[0].mxu0
  %v847 = vpop.f32.mrb[0].mxu0
  %v848 = vadd.f32 %v727, %v847
  %v849 = vpop.f32.mrb[0].mxu0
  %850 = vmatprep.mubr.bf16.mxu0 %v345
  %851 = vmatmul.mubr.bf16.gmra.mrb[0].mxu0 %v344
  %v852 = vpop.f32.mrb[0].mxu0
  %v853 = vadd.f32 %v732, %v852
  %v854 = vpop.f32.mrb[0].mxu0
  %v855 = vpop.f32.mrb[0].mxu0
  %v856 = vadd.f32 %v735, %v855
  %v857 = vpop.f32.mrb[0].mxu0
  %858 = vmatprep.mubr.bf16.mxu0 %v350
  %859 = vmatmul.mubr.bf16.gmra.mrb[0].mxu0 %v349
  %v860 = vpop.f32.mrb[0].mxu0
  %v861 = vadd.f32 %v740, %v860
  %v862 = vpop.f32.mrb[0].mxu0
  %v863 = vpop.f32.mrb[0].mxu0
  %v864 = vadd.f32 %v743, %v863
  %v865 = vpop.f32.mrb[0].mxu0
  %866 = vmatprep.mubr.bf16.mxu0 %v355
  %867 = vmatmul.mubr.bf16.gmra.mrb[0].mxu0 %v354
  %v868 = vpop.f32.mrb[0].mxu0
  %v869 = vadd.f32 %v748, %v868
  %v870 = vpop.f32.mrb[0].mxu0
  %v871 = vpop.f32.mrb[0].mxu0
  %v872 = vadd.f32 %v751, %v871
  %v873 = vpop.f32.mrb[0].mxu0
  %874 = vmatprep.mubr.bf16.mxu0 %v360
  %875 = vmatmul.mubr.bf16.gmra.mrb[0].mxu0 %v359
  %v876 = vpop.f32.mrb[0].mxu0
  %v877 = vadd.f32 %v756, %v876
  %v878 = vpop.f32.mrb[0].mxu0
  %v879 = vpop.f32.mrb[0].mxu0
  %v880 = vadd.f32 %v759, %v879
  %v881 = vpop.f32.mrb[0].mxu0
  %882 = vmatprep.mubr.bf16.mxu0 %v365
  %883 = vmatmul.mubr.bf16.gmra.mrb[0].mxu0 %v364
  %v884 = vpop.f32.mrb[0].mxu0
  %v885 = vadd.f32 %v764, %v884
  %v886 = vpop.f32.mrb[0].mxu0
  %v887 = vpop.f32.mrb[0].mxu0
  %v888 = vadd.f32 %v767, %v887
  %v889 = vpop.f32.mrb[0].mxu0
  %890 = vmatprep.mubr.bf16.mxu0 %v370
  %891 = vmatmul.mubr.bf16.gmra.mrb[0].mxu0 %v369
  %v892 = vpop.f32.mrb[0].mxu0
  %v893 = vadd.f32 %v772, %v892
  %v894 = vpop.f32.mrb[0].mxu0
  %v895 = vpop.f32.mrb[0].mxu0
  %v896 = vadd.f32 %v775, %v895
  %v897 = vpop.f32.mrb[0].mxu0
  %898 = vmatprep.mubr.bf16.mxu0 %v375
  %899 = vmatmul.mubr.bf16.gmra.mrb[0].mxu0 %v374
  %v900 = vpop.f32.mrb[0].mxu0
  %v901 = vadd.f32 %v780, %v900
  %v902 = vpop.f32.mrb[0].mxu0
  %v903 = vpop.f32.mrb[0].mxu0
  %v904 = vadd.f32 %v783, %v903
  %v905 = vpop.f32.mrb[0].mxu0
  %906 = vmatprep.mubr.bf16.mxu0 %v380
  %907 = vmatmul.mubr.bf16.gmra.mrb[0].mxu0 %v379
  %v908 = vpop.f32.mrb[0].mxu0
  %v909 = vadd.f32 %v788, %v908
  %v910 = vpop.f32.mrb[0].mxu0
  %v911 = vpop.f32.mrb[0].mxu0
  %v912 = vadd.f32 %v791, %v911
  %v913 = vpop.f32.mrb[0].mxu0
  %914 = vmatprep.mubr.bf16.mxu0 %v385
  %915 = vmatmul.mubr.bf16.gmra.mrb[0].mxu0 %v384
  %v916 = vpop.f32.mrb[0].mxu0
  %v917 = vadd.f32 %v796, %v916
  %v918 = vpop.f32.mrb[0].mxu0
  %v919 = vpop.f32.mrb[0].mxu0
  %v920 = vadd.f32 %v799, %v919
  %v921 = vpop.f32.mrb[0].mxu0
  %922 = vdwg.mxu0
  %923 = vmatprep.subr.bf16.mxu0 0
  %924 = vmatpush1.bf16.msra.mxu0 %v607
  %925 = vmatprep.subr.bf16.mxu0 0
  %926 = vmatpush1.bf16.msra.mxu0 %v608
  %927 = vmatprep.subr.bf16.mxu0 0
  %928 = vmatpush1.bf16.msra.mxu0 %v609
  %929 = vmatprep.subr.bf16.mxu0 0
  %930 = vmatpush1.bf16.msra.mxu0 %v610
  %931 = vmatprep.subr.bf16.mxu0 0
  %932 = vmatpush1.bf16.msra.mxu0 0
  %933 = vmatprep.subr.bf16.mxu0 0
  %934 = vmatpush1.bf16.msra.mxu0 0
  %935 = vmatprep.subr.bf16.mxu0 0
  %936 = vmatpush1.bf16.msra.mxu0 0
  %937 = vmatprep.subr.bf16.mxu0 0
  %938 = vmatpush1.bf16.msra.mxu0 0
  %939 = vmatprep.subr.bf16.mxu0 0
  %940 = vmatpush1.bf16.msra.mxu0 0
  %941 = vmatprep.subr.bf16.mxu0 0
  %942 = vmatpush1.bf16.msra.mxu0 0
  %943 = vmatprep.subr.bf16.mxu0 0
  %944 = vmatpush1.bf16.msra.mxu0 0
  %945 = vmatprep.subr.bf16.mxu0 0
  %946 = vmatpush1.bf16.msra.mxu0 0
  %947 = vmatprep.subr.bf16.mxu0 0
  %948 = vmatpush1.bf16.msra.mxu0 0
  %949 = vmatprep.subr.bf16.mxu0 0
  %950 = vmatpush1.bf16.msra.mxu0 0
  %951 = vmatprep.subr.bf16.mxu0 0
  %952 = vmatpush1.bf16.msra.mxu0 0
  %953 = vmatprep.subr.bf16.mxu0 0
  %954 = vmatpush1.bf16.msra.mxu0 0
  %955 = vmatprep.mubr.bf16.mxu0 0
  %956 = vmatmul.mubr.bf16.gmra.mrb[0].mxu0 %v649
  %v957 = vpop.f32.mrb[0].mxu0
  %v958 = vadd.f32 %v837, %v957
  %v959 = vpop.f32.mrb[0].mxu0
  %v960 = vpop.f32.mrb[0].mxu0
  %v961 = vadd.f32 %v840, %v960
  %v962 = vpop.f32.mrb[0].mxu0
  %963 = vmatprep.mubr.bf16.mxu0 0
  %964 = vmatmul.mubr.bf16.gmra.mrb[0].mxu0 %v652
  %v965 = vpop.f32.mrb[0].mxu0
  %v966 = vadd.f32 %v845, %v965
  %v967 = vpop.f32.mrb[0].mxu0
  %v968 = vpop.f32.mrb[0].mxu0
  %v969 = vadd.f32 %v848, %v968
  %v970 = vpop.f32.mrb[0].mxu0
  %971 = vmatprep.mubr.bf16.mxu0 0
  %972 = vmatmul.mubr.bf16.gmra.mrb[0].mxu0 %v655
  %v973 = vpop.f32.mrb[0].mxu0
  %v974 = vadd.f32 %v853, %v973
  %v975 = vpop.f32.mrb[0].mxu0
  %v976 = vpop.f32.mrb[0].mxu0
  %v977 = vadd.f32 %v856, %v976
  %v978 = vpop.f32.mrb[0].mxu0
  %979 = vmatprep.mubr.bf16.mxu0 0
  %980 = vmatmul.mubr.bf16.gmra.mrb[0].mxu0 %v658
  %v981 = vpop.f32.mrb[0].mxu0
  %v982 = vadd.f32 %v861, %v981
  %v983 = vpop.f32.mrb[0].mxu0
  %v984 = vpop.f32.mrb[0].mxu0
  %v985 = vadd.f32 %v864, %v984
  %v986 = vpop.f32.mrb[0].mxu0
  %987 = vmatprep.mubr.bf16.mxu0 0
  %988 = vmatmul.mubr.bf16.gmra.mrb[0].mxu0 %v661
  %v989 = vpop.f32.mrb[0].mxu0
  %v990 = vadd.f32 %v869, %v989
  %v991 = vpop.f32.mrb[0].mxu0
  %v992 = vpop.f32.mrb[0].mxu0
  %v993 = vadd.f32 %v872, %v992
  %v994 = vpop.f32.mrb[0].mxu0
  %995 = vmatprep.mubr.bf16.mxu0 0
  %996 = vmatmul.mubr.bf16.gmra.mrb[0].mxu0 %v664
  %v997 = vpop.f32.mrb[0].mxu0
  %v998 = vadd.f32 %v877, %v997
  %v999 = vpop.f32.mrb[0].mxu0
  %v1000 = vpop.f32.mrb[0].mxu0
  %v1001 = vadd.f32 %v880, %v1000
  %v1002 = vpop.f32.mrb[0].mxu0
  %1003 = vmatprep.mubr.bf16.mxu0 0
  %1004 = vmatmul.mubr.bf16.gmra.mrb[0].mxu0 %v667
  %v1005 = vpop.f32.mrb[0].mxu0
  %v1006 = vadd.f32 %v885, %v1005
  %v1007 = vpop.f32.mrb[0].mxu0
  %v1008 = vpop.f32.mrb[0].mxu0
  %v1009 = vadd.f32 %v888, %v1008
  %v1010 = vpop.f32.mrb[0].mxu0
  %1011 = vmatprep.mubr.bf16.mxu0 0
  %1012 = vmatmul.mubr.bf16.gmra.mrb[0].mxu0 %v670
  %v1013 = vpop.f32.mrb[0].mxu0
  %v1014 = vadd.f32 %v893, %v1013
  %v1015 = vpop.f32.mrb[0].mxu0
  %v1016 = vpop.f32.mrb[0].mxu0
  %v1017 = vadd.f32 %v896, %v1016
  %v1018 = vpop.f32.mrb[0].mxu0
  %1019 = vmatprep.mubr.bf16.mxu0 0
  %1020 = vmatmul.mubr.bf16.gmra.mrb[0].mxu0 %v673
  %v1021 = vpop.f32.mrb[0].mxu0
  %v1022 = vadd.f32 %v901, %v1021
  %v1023 = vpop.f32.mrb[0].mxu0
  %v1024 = vpop.f32.mrb[0].mxu0
  %v1025 = vadd.f32 %v904, %v1024
  %v1026 = vpop.f32.mrb[0].mxu0
  %1027 = vmatprep.mubr.bf16.mxu0 0
  %1028 = vmatmul.mubr.bf16.gmra.mrb[0].mxu0 %v676
  %v1029 = vpop.f32.mrb[0].mxu0
  %v1030 = vadd.f32 %v909, %v1029
  %v1031 = vpop.f32.mrb[0].mxu0
  %v1032 = vpop.f32.mrb[0].mxu0
  %v1033 = vadd.f32 %v912, %v1032
  %v1034 = vpop.f32.mrb[0].mxu0
  %1035 = vmatprep.mubr.bf16.mxu0 0
  %1036 = vmatmul.mubr.bf16.gmra.mrb[0].mxu0 %v679
  %v1037 = vpop.f32.mrb[0].mxu0
  %v1038 = vadd.f32 %v917, %v1037
  %v1039 = vpop.f32.mrb[0].mxu0
  %v1040 = vpop.f32.mrb[0].mxu0
  %v1041 = vadd.f32 %v920, %v1040
  %v1042 = vpop.f32.mrb[0].mxu0
  %1043 = vdwg.mxu0
  %v1044 = vld [vmem:[%s2] sm:$0x1]
  %v1046 = vlaneseq
  %v1047 = vshrl.u32 %v1046, 7
  %v1048 = vsub.s32 0, %v1047
  %v1049 = vrot.slane %v1044, %v1048
  %v1051 = vmul.f32 %v958, %v1049
  %v1052 = vmul.f32 %v961, %v1049
  %v1053 = vmul.f32 %v966, %v1049
  %v1054 = vmul.f32 %v969, %v1049
  %v1055 = vmul.f32 %v974, %v1049
  %v1056 = vmul.f32 %v977, %v1049
  %v1057 = vmul.f32 %v982, %v1049
  %v1058 = vmul.f32 %v985, %v1049
  %v1059 = vmul.f32 %v990, %v1049
  %v1060 = vmul.f32 %v993, %v1049
  %v1061 = vmul.f32 %v998, %v1049
  %v1062 = vmul.f32 %v1001, %v1049
  %v1063 = vmul.f32 %v1006, %v1049
  %v1064 = vmul.f32 %v1009, %v1049
  %v1065 = vmul.f32 %v1014, %v1049
  %v1066 = vmul.f32 %v1017, %v1049
  %v1067 = vmul.f32 %v1022, %v1049
  %v1068 = vmul.f32 %v1025, %v1049
  %v1069 = vmul.f32 %v1030, %v1049
  %v1070 = vmul.f32 %v1033, %v1049
  %v1071 = vmul.f32 %v1038, %v1049
  %v1072 = vmul.f32 %v1041, %v1049
  %v1073 = vld [vmem:[%s3] sm:$0x1]
  %v1075 = vlaneseq
  %v1076 = vshrl.u32 %v1075, 7
  %v1077 = vsub.s32 0, %v1076
  %v1078 = vrot.slane %v1073, %v1077
  %v1080 = vadd.f32 %v1051, %v1078
  %v1081 = vadd.f32 %v1052, %v1078
  %v1082 = vadd.f32 %v1053, %v1078
  %v1083 = vadd.f32 %v1054, %v1078
  %v1084 = vadd.f32 %v1055, %v1078
  %v1085 = vadd.f32 %v1056, %v1078
  %v1086 = vadd.f32 %v1057, %v1078
  %v1087 = vadd.f32 %v1058, %v1078
  %v1088 = vadd.f32 %v1059, %v1078
  %v1089 = vadd.f32 %v1060, %v1078
  %v1090 = vadd.f32 %v1061, %v1078
  %v1091 = vadd.f32 %v1062, %v1078
  %v1092 = vadd.f32 %v1063, %v1078
  %v1093 = vadd.f32 %v1064, %v1078
  %v1094 = vadd.f32 %v1065, %v1078
  %v1095 = vadd.f32 %v1066, %v1078
  %v1096 = vadd.f32 %v1067, %v1078
  %v1097 = vadd.f32 %v1068, %v1078
  %v1098 = vadd.f32 %v1069, %v1078
  %v1099 = vadd.f32 %v1070, %v1078
  %v1100 = vadd.f32 %v1071, %v1078
  %v1101 = vadd.f32 %v1072, %v1078
  %v1102 = vmax.f32 %v1080, 0.0
  %v1103 = vmax.f32 %v1081, 0.0
  %v1104 = vmax.f32 %v1082, 0.0
  %v1105 = vmax.f32 %v1083, 0.0
  %v1106 = vmax.f32 %v1084, 0.0
  %v1107 = vmax.f32 %v1085, 0.0
  %v1108 = vmax.f32 %v1086, 0.0
  %v1109 = vmax.f32 %v1087, 0.0
  %v1110 = vmax.f32 %v1088, 0.0
  %v1111 = vmax.f32 %v1089, 0.0
  %v1112 = vmax.f32 %v1090, 0.0
  %v1113 = vmax.f32 %v1091, 0.0
  %v1114 = vmax.f32 %v1092, 0.0
  %v1115 = vmax.f32 %v1093, 0.0
  %v1116 = vmax.f32 %v1094, 0.0
  %v1117 = vmax.f32 %v1095, 0.0
  %v1118 = vmax.f32 %v1096, 0.0
  %v1119 = vmax.f32 %v1097, 0.0
  %v1120 = vmax.f32 %v1098, 0.0
  %v1121 = vmax.f32 %v1099, 0.0
  %v1122 = vmax.f32 %v1100, 0.0
  %v1123 = vmax.f32 %v1101, 0.0
  %v1124 = vpack.c.bf16 %v1103, %v1102
  %v1125 = vpack.c.bf16 %v1105, %v1104
  %v1126 = vpack.c.bf16 %v1107, %v1106
  %v1127 = vpack.c.bf16 %v1109, %v1108
  %v1128 = vpack.c.bf16 %v1111, %v1110
  %v1129 = vpack.c.bf16 %v1113, %v1112
  %v1130 = vpack.c.bf16 %v1115, %v1114
  %v1131 = vpack.c.bf16 %v1117, %v1116
  %v1132 = vpack.c.bf16 %v1119, %v1118
  %v1133 = vpack.c.bf16 %v1121, %v1120
  %v1134 = vpack.c.bf16 %v1123, %v1122
  %v1146 = vunpack.c.l.b16 %v1124
  %v1147 = vunpack.c.h.b16 %v1124
  %v1148 = vunpack.c.l.b16 %v1125
  %v1149 = vunpack.c.h.b16 %v1125
  %v1150 = vunpack.c.l.b16 %v1126
  %v1151 = vunpack.c.h.b16 %v1126
  %v1152 = vunpack.c.l.b16 %v1127
  %v1153 = vunpack.c.h.b16 %v1127
  %v1154 = vunpack.c.l.b16 %v1128
  %v1155 = vunpack.c.h.b16 %v1128
  %v1156 = vunpack.c.l.b16 %v1129
  %v1157 = vunpack.c.h.b16 %v1129
  %v1158 = vunpack.c.l.b16 %v1130
  %v1159 = vunpack.c.h.b16 %v1130
  %v1160 = vunpack.c.l.b16 %v1131
  %v1161 = vunpack.c.h.b16 %v1131
  %v1162 = vunpack.c.l.b16 %v1132
  %v1163 = vunpack.c.h.b16 %v1132
  %v1164 = vunpack.c.l.b16 %v1133
  %v1165 = vunpack.c.h.b16 %v1133
  %v1166 = vunpack.c.l.b16 %v1134
  %v1167 = vunpack.c.h.b16 %v1134
  %v1168 = vpack.c.b16 %v1146, %v1146
  %v1169 = vpack.c.b16 %v1147, %v1147
  %v1170 = vpack.c.b16 %v1148, %v1148
  %v1171 = vpack.c.b16 %v1149, %v1149
  %v1172 = vpack.c.b16 %v1150, %v1150
  %v1173 = vpack.c.b16 %v1151, %v1151
  %v1174 = vpack.c.b16 %v1152, %v1152
  %v1175 = vpack.c.b16 %v1153, %v1153
  %v1176 = vpack.c.b16 %v1154, %v1154
  %v1177 = vpack.c.b16 %v1155, %v1155
  %v1178 = vpack.c.b16 %v1156, %v1156
  %v1179 = vpack.c.b16 %v1157, %v1157
  %v1180 = vpack.c.b16 %v1158, %v1158
  %v1181 = vpack.c.b16 %v1159, %v1159
  %v1182 = vpack.c.b16 %v1160, %v1160
  %v1183 = vpack.c.b16 %v1161, %v1161
  %v1184 = vpack.c.b16 %v1162, %v1162
  %v1185 = vpack.c.b16 %v1163, %v1163
  %v1186 = vpack.c.b16 %v1164, %v1164
  %v1187 = vpack.c.b16 %v1165, %v1165
  %v1188 = vpack.c.b16 %v1166, %v1166
  %v1189 = vpack.c.b16 %v1167, %v1167
  %1212 = vst [vmem:[%s4] sm:$0xf] %v1168
  %1213 = vst [vmem:[%s4 + $0x4] sm:$0xf] %v1169
  %1214 = vst [vmem:[%s4 + $0x8] sm:$0xf] %v1170
  %1215 = vst [vmem:[%s4 + $0xc] sm:$0xf] %v1171
  %1216 = vst [vmem:[%s4 + $0x10] sm:$0xf] %v1172
  %1217 = vst [vmem:[%s4 + $0x14] sm:$0xf] %v1173
  %1218 = vst [vmem:[%s4 + $0x18] sm:$0xf] %v1174
  %1219 = vst [vmem:[%s4 + $0x1c] sm:$0xf] %v1175
  %1220 = vst [vmem:[%s4 + $0x20] sm:$0xf] %v1176
  %1221 = vst [vmem:[%s4 + $0x24] sm:$0xf] %v1177
  %1222 = vst [vmem:[%s4 + $0x28] sm:$0xf] %v1178
  %1223 = vst [vmem:[%s4 + $0x2c] sm:$0xf] %v1179
  %1224 = vst [vmem:[%s4 + $0x30] sm:$0xf] %v1180
  %1225 = vst [vmem:[%s4 + $0x34] sm:$0xf] %v1181
  %1226 = vst [vmem:[%s4 + $0x38] sm:$0xf] %v1182
  %1227 = vst [vmem:[%s4 + $0x3c] sm:$0xf] %v1183
  %1228 = vst [vmem:[%s4 + $0x40] sm:$0xf] %v1184
  %1229 = vst [vmem:[%s4 + $0x44] sm:$0xf] %v1185
  %1230 = vst [vmem:[%s4 + $0x48] sm:$0xf] %v1186
  %1231 = vst [vmem:[%s4 + $0x4c] sm:$0xf] %v1187
  %1232 = vst [vmem:[%s4 + $0x50] sm:$0xf] %v1188
  %1233 = vst [vmem:[%s4 + $0x54] sm:$0xf] %v1189
  // Predicated region
  $region18: #{_lambda_.10} parent=0 // pred_check
    _
  $region19: #{_lambda_.10} parent=0 // pred_check_branch
    %1235 = sbr.rel (0) target = $region21
  $region20: #{_lambda_.10} parent=0 // pred_region
    _
  $region21: #{_lambda_.10} parent=0 // pred_fallthru
    _
  // Predicated region
  $region22: #{_lambda_.10} parent=0 // pred_check
    _
  $region23: #{_lambda_.10} parent=0 // pred_check_branch
    %1237 = sbr.rel (0) target = $region25
  $region24: #{_lambda_.10} parent=0 // pred_region
    _
  $region25: #{_lambda_.10} parent=0 // pred_fallthru
    _

// kernel: _lambda_.11
$region0: #{_lambda_.11}
  #allocation0 [shape = 'u32[]', space=smem, size = 0x4, offset = 0x4, fixed_abs, tag = 'smem constant byte address 0x4 - core index']
  #allocation1 [shape = 'u32[144,128]{1,0:T(1,128)}', space=vmem, size = 0x12000, scoped, tag = 'internal scratch']
  %s0 = inlined_call_operand.vmem [shape: bf16[48,128], index: 0, kind: input, shape index: {}]
  %s1 = inlined_call_operand.vmem [shape: bf16[48,128], index: 1, kind: input, shape index: {}]
  %s2 = inlined_call_operand.vmem [shape: bf16[48,128], index: 2, kind: input, shape index: {}]
  %s3 = inlined_call_operand.vmem [shape: bf16[48,128], index: 3, kind: input, shape index: {}]
  %s4 = inlined_call_operand.vmem [shape: bf16[48,128], index: 4, kind: input, shape index: {}]
  %s5 = inlined_call_operand.vmem [shape: bf16[48,128], index: 5, kind: input, shape index: {}]
  %s6 = inlined_call_operand.vmem [shape: bf16[48,128], index: 6, kind: input, shape index: {}]
  %s7 = inlined_call_operand.vmem [shape: bf16[48,128], index: 7, kind: input, shape index: {}]
  %s8 = inlined_call_operand.vmem [shape: bf16[48,128], index: 8, kind: input, shape index: {}]
  %s9 = inlined_call_operand.vmem [shape: bf16[48,128], index: 9, kind: output, shape index: {}]
  %s10 = sld [smem:[#allocation0]]
  $region46: #{_lambda_.11} parent=0
    _
  %s12 = ssub.s32 1, %s10
  %s13 = scalar_select 0, %s12, %s10
  // Predicated region
  $region2: #{_lambda_.11} parent=0 // pred_check
    _
  $region3: #{_lambda_.11} parent=0 // pred_check_branch
    %15 = sbr.rel (0) target = $region5
  $region4: #{_lambda_.11} parent=0 // pred_region
    _
  $region5: #{_lambda_.11} parent=0 // pred_fallthru
    _
  // Predicated region
  $region6: #{_lambda_.11} parent=0 // pred_check
    _
  $region7: #{_lambda_.11} parent=0 // pred_check_branch
    %17 = sbr.rel (0) target = $region9
  $region8: #{_lambda_.11} parent=0 // pred_region
    _
  $region9: #{_lambda_.11} parent=0 // pred_fallthru
    _
  // Predicated region
  $region10: #{_lambda_.11} parent=0 // pred_check
    _
  $region11: #{_lambda_.11} parent=0 // pred_check_branch
    %19 = sbr.rel (0) target = $region13
  $region12: #{_lambda_.11} parent=0 // pred_region
    _
  $region13: #{_lambda_.11} parent=0 // pred_fallthru
    _
  // Predicated region
  $region14: #{_lambda_.11} parent=0 // pred_check
    _
  $region15: #{_lambda_.11} parent=0 // pred_check_branch
    %21 = sbr.rel (0) target = $region17
  $region16: #{_lambda_.11} parent=0 // pred_region
    _
  $region17: #{_lambda_.11} parent=0 // pred_fallthru
    _
  // Predicated region
  $region18: #{_lambda_.11} parent=0 // pred_check
    _
  $region19: #{_lambda_.11} parent=0 // pred_check_branch
    %23 = sbr.rel (0) target = $region21
  $region20: #{_lambda_.11} parent=0 // pred_region
    _
  $region21: #{_lambda_.11} parent=0 // pred_fallthru
    _
  // Predicated region
  $region22: #{_lambda_.11} parent=0 // pred_check
    _
  $region23: #{_lambda_.11} parent=0 // pred_check_branch
    %25 = sbr.rel (0) target = $region25
  $region24: #{_lambda_.11} parent=0 // pred_region
    _
  $region25: #{_lambda_.11} parent=0 // pred_fallthru
    _
  // Predicated region
  $region26: #{_lambda_.11} parent=0 // pred_check
    _
  $region27: #{_lambda_.11} parent=0 // pred_check_branch
    %27 = sbr.rel (0) target = $region29
  $region28: #{_lambda_.11} parent=0 // pred_region
    _
  $region29: #{_lambda_.11} parent=0 // pred_fallthru
    _
  // Predicated region
  $region30: #{_lambda_.11} parent=0 // pred_check
    _
  $region31: #{_lambda_.11} parent=0 // pred_check_branch
    %29 = sbr.rel (0) target = $region33
  $region32: #{_lambda_.11} parent=0 // pred_region
    _
  $region33: #{_lambda_.11} parent=0 // pred_fallthru
    _
  // Predicated region
  $region34: #{_lambda_.11} parent=0 // pred_check
    _
  $region35: #{_lambda_.11} parent=0 // pred_check_branch
    %31 = sbr.rel (0) target = $region37
  $region36: #{_lambda_.11} parent=0 // pred_region
    _
  $region37: #{_lambda_.11} parent=0 // pred_fallthru
    _
  %v32 = vld [vmem:[%s0] sm:$0xf]
  %v33 = vld [vmem:[%s0 + $0x4] sm:$0xf]
  %v34 = vld [vmem:[%s0 + $0x8] sm:$0xf]
  %v35 = vld [vmem:[%s0 + $0xc] sm:$0xf]
  %v36 = vld [vmem:[%s0 + $0x10] sm:$0xf]
  %v37 = vld [vmem:[%s0 + $0x14] sm:$0xf]
  %v38 = vld [vmem:[%s1] sm:$0xf]
  %v39 = vld [vmem:[%s1 + $0x4] sm:$0xf]
  %v40 = vld [vmem:[%s1 + $0x8] sm:$0xf]
  %v41 = vld [vmem:[%s1 + $0xc] sm:$0xf]
  %v42 = vld [vmem:[%s1 + $0x10] sm:$0xf]
  %v43 = vld [vmem:[%s1 + $0x14] sm:$0xf]
  %v44 = vmax.bf16 %v32, %v38
  %v45 = vmax.bf16 %v33, %v39
  %v46 = vmax.bf16 %v34, %v40
  %v47 = vmax.bf16 %v35, %v41
  %v48 = vmax.bf16 %v36, %v42
  %v49 = vmax.bf16 %v37, %v43
  %v50 = vld [vmem:[%s2] sm:$0xf]
  %v51 = vld [vmem:[%s2 + $0x4] sm:$0xf]
  %v52 = vld [vmem:[%s2 + $0x8] sm:$0xf]
  %v53 = vld [vmem:[%s2 + $0xc] sm:$0xf]
  %v54 = vld [vmem:[%s2 + $0x10] sm:$0xf]
  %v55 = vld [vmem:[%s2 + $0x14] sm:$0xf]
  %v56 = vmax.bf16 %v44, %v50
  %v57 = vmax.bf16 %v45, %v51
  %v58 = vmax.bf16 %v46, %v52
  %v59 = vmax.bf16 %v47, %v53
  %v60 = vmax.bf16 %v48, %v54
  %v61 = vmax.bf16 %v49, %v55
  %v62 = vld [vmem:[%s3] sm:$0xf]
  %v63 = vld [vmem:[%s3 + $0x4] sm:$0xf]
  %v64 = vld [vmem:[%s3 + $0x8] sm:$0xf]
  %v65 = vld [vmem:[%s3 + $0xc] sm:$0xf]
  %v66 = vld [vmem:[%s3 + $0x10] sm:$0xf]
  %v67 = vld [vmem:[%s3 + $0x14] sm:$0xf]
  %v68 = vmax.bf16 %v56, %v62
  %v69 = vmax.bf16 %v57, %v63
  %v70 = vmax.bf16 %v58, %v64
  %v71 = vmax.bf16 %v59, %v65
  %v72 = vmax.bf16 %v60, %v66
  %v73 = vmax.bf16 %v61, %v67
  %v74 = vld [vmem:[%s4] sm:$0xf]
  %v75 = vld [vmem:[%s4 + $0x4] sm:$0xf]
  %v76 = vld [vmem:[%s4 + $0x8] sm:$0xf]
  %v77 = vld [vmem:[%s4 + $0xc] sm:$0xf]
  %v78 = vld [vmem:[%s4 + $0x10] sm:$0xf]
  %v79 = vld [vmem:[%s4 + $0x14] sm:$0xf]
  %v80 = vmax.bf16 %v68, %v74
  %v81 = vmax.bf16 %v69, %v75
  %v82 = vmax.bf16 %v70, %v76
  %v83 = vmax.bf16 %v71, %v77
  %v84 = vmax.bf16 %v72, %v78
  %v85 = vmax.bf16 %v73, %v79
  %v86 = vld [vmem:[%s5] sm:$0xf]
  %v87 = vld [vmem:[%s5 + $0x4] sm:$0xf]
  %v88 = vld [vmem:[%s5 + $0x8] sm:$0xf]
  %v89 = vld [vmem:[%s5 + $0xc] sm:$0xf]
  %v90 = vld [vmem:[%s5 + $0x10] sm:$0xf]
  %v91 = vld [vmem:[%s5 + $0x14] sm:$0xf]
  %v92 = vmax.bf16 %v80, %v86
  %v93 = vmax.bf16 %v81, %v87
  %v94 = vmax.bf16 %v82, %v88
  %v95 = vmax.bf16 %v83, %v89
  %v96 = vmax.bf16 %v84, %v90
  %v97 = vmax.bf16 %v85, %v91
  %v98 = vld [vmem:[%s6] sm:$0xf]
  %v99 = vld [vmem:[%s6 + $0x4] sm:$0xf]
  %v100 = vld [vmem:[%s6 + $0x8] sm:$0xf]
  %v101 = vld [vmem:[%s6 + $0xc] sm:$0xf]
  %v102 = vld [vmem:[%s6 + $0x10] sm:$0xf]
  %v103 = vld [vmem:[%s6 + $0x14] sm:$0xf]
  %v104 = vmax.bf16 %v92, %v98
  %v105 = vmax.bf16 %v93, %v99
  %v106 = vmax.bf16 %v94, %v100
  %v107 = vmax.bf16 %v95, %v101
  %v108 = vmax.bf16 %v96, %v102
  %v109 = vmax.bf16 %v97, %v103
  %v110 = vld [vmem:[%s7] sm:$0xf]
  %v111 = vld [vmem:[%s7 + $0x4] sm:$0xf]
  %v112 = vld [vmem:[%s7 + $0x8] sm:$0xf]
  %v113 = vld [vmem:[%s7 + $0xc] sm:$0xf]
  %v114 = vld [vmem:[%s7 + $0x10] sm:$0xf]
  %v115 = vld [vmem:[%s7 + $0x14] sm:$0xf]
  %v116 = vmax.bf16 %v104, %v110
  %v117 = vmax.bf16 %v105, %v111
  %v118 = vmax.bf16 %v106, %v112
  %v119 = vmax.bf16 %v107, %v113
  %v120 = vmax.bf16 %v108, %v114
  %v121 = vmax.bf16 %v109, %v115
  %v122 = vld [vmem:[%s8] sm:$0xf]
  %v123 = vld [vmem:[%s8 + $0x4] sm:$0xf]
  %v124 = vld [vmem:[%s8 + $0x8] sm:$0xf]
  %v125 = vld [vmem:[%s8 + $0xc] sm:$0xf]
  %v126 = vld [vmem:[%s8 + $0x10] sm:$0xf]
  %v127 = vld [vmem:[%s8 + $0x14] sm:$0xf]
  %v128 = vmax.bf16 %v116, %v122
  %v129 = vmax.bf16 %v117, %v123
  %v130 = vmax.bf16 %v118, %v124
  %v131 = vmax.bf16 %v119, %v125
  %v132 = vmax.bf16 %v120, %v126
  %v133 = vmax.bf16 %v121, %v127
  %134 = vst [vmem:[%s9] sm:$0xf] %v128
  %135 = vst [vmem:[%s9 + $0x4] sm:$0xf] %v129
  %136 = vst [vmem:[%s9 + $0x8] sm:$0xf] %v130
  %137 = vst [vmem:[%s9 + $0xc] sm:$0xf] %v131
  %138 = vst [vmem:[%s9 + $0x10] sm:$0xf] %v132
  %139 = vst [vmem:[%s9 + $0x14] sm:$0xf] %v133
  // Predicated region
  $region38: #{_lambda_.11} parent=0 // pred_check
    _
  $region39: #{_lambda_.11} parent=0 // pred_check_branch
    %141 = sbr.rel (0) target = $region41
  $region40: #{_lambda_.11} parent=0 // pred_region
    _
  $region41: #{_lambda_.11} parent=0 // pred_fallthru
    _
  // Predicated region
  $region42: #{_lambda_.11} parent=0 // pred_check
    _
  $region43: #{_lambda_.11} parent=0 // pred_check_branch
    %143 = sbr.rel (0) target = $region45
  $region44: #{_lambda_.11} parent=0 // pred_region
    _
  $region45: #{_lambda_.11} parent=0 // pred_fallthru
    _

// kernel: _lambda_.12
$region0: #{_lambda_.12}
  #allocation0 [shape = 'u32[]', space=smem, size = 0x4, offset = 0x4, fixed_abs, tag = 'smem constant byte address 0x4 - core index']
  #allocation1 [shape = 'u32[144,128]{1,0:T(1,128)}', space=vmem, size = 0x12000, scoped, tag = 'internal scratch']
  %s0 = inlined_call_operand.vmem [shape: bf16[96,576], index: 0, kind: input, shape index: {}]
  %s1 = inlined_call_operand.vmem [shape: bf16[576,128], index: 1, kind: input, shape index: {}]
  %s2 = inlined_call_operand.vmem [shape: f32[1,128], index: 2, kind: input, shape index: {}]
  %s3 = inlined_call_operand.vmem [shape: f32[1,128], index: 3, kind: input, shape index: {}]
  %s4 = inlined_call_operand.vmem [shape: bf16[96,128], index: 4, kind: output, shape index: {}]
  %s5 = sld [smem:[#allocation0]]
  $region26: #{_lambda_.12} parent=0
    _
  %s7 = ssub.s32 1, %s5
  %s8 = scalar_select 0, %s7, %s5
  // Predicated region
  $region2: #{_lambda_.12} parent=0 // pred_check
    _
  $region3: #{_lambda_.12} parent=0 // pred_check_branch
    %10 = sbr.rel (0) target = $region5
  $region4: #{_lambda_.12} parent=0 // pred_region
    _
  $region5: #{_lambda_.12} parent=0 // pred_fallthru
    _
  // Predicated region
  $region6: #{_lambda_.12} parent=0 // pred_check
    _
  $region7: #{_lambda_.12} parent=0 // pred_check_branch
    %12 = sbr.rel (0) target = $region9
  $region8: #{_lambda_.12} parent=0 // pred_region
    _
  $region9: #{_lambda_.12} parent=0 // pred_fallthru
    _
  // Predicated region
  $region10: #{_lambda_.12} parent=0 // pred_check
    _
  $region11: #{_lambda_.12} parent=0 // pred_check_branch
    %14 = sbr.rel (0) target = $region13
  $region12: #{_lambda_.12} parent=0 // pred_region
    _
  $region13: #{_lambda_.12} parent=0 // pred_fallthru
    _
  // Predicated region
  $region14: #{_lambda_.12} parent=0 // pred_check
    _
  $region15: #{_lambda_.12} parent=0 // pred_check_branch
    %16 = sbr.rel (0) target = $region17
  $region16: #{_lambda_.12} parent=0 // pred_region
    _
  $region17: #{_lambda_.12} parent=0 // pred_fallthru
    _
  %v18 = vld [vmem:[%s0] sm:$0xff]
  %v19 = vld [vmem:[%s0 + $0x8] sm:$0xff]
  %v20 = vld [vmem:[%s0 + $0x10] sm:$0xf]
  %v21 = vld [vmem:[%s0 + $0x14] sm:$0xff]
  %v22 = vld [vmem:[%s0 + $0x1c] sm:$0xff]
  %v23 = vld [vmem:[%s0 + $0x24] sm:$0xf]
  %v24 = vld [vmem:[%s0 + $0x28] sm:$0xff]
  %v25 = vld [vmem:[%s0 + $0x30] sm:$0xff]
  %v26 = vld [vmem:[%s0 + $0x38] sm:$0xf]
  %v27 = vld [vmem:[%s0 + $0x3c] sm:$0xff]
  %v28 = vld [vmem:[%s0 + $0x44] sm:$0xff]
  %v29 = vld [vmem:[%s0 + $0x4c] sm:$0xf]
  %v30 = vld [vmem:[%s0 + $0x50] sm:$0xff]
  %v31 = vld [vmem:[%s0 + $0x58] sm:$0xff]
  %v32 = vld [vmem:[%s0 + $0x60] sm:$0xf]
  %v33 = vld [vmem:[%s0 + $0x64] sm:$0xff]
  %v34 = vld [vmem:[%s0 + $0x6c] sm:$0xff]
  %v35 = vld [vmem:[%s0 + $0x74] sm:$0xf]
  %v36 = vld [vmem:[%s0 + $0x78] sm:$0xff]
  %v37 = vld [vmem:[%s0 + $0x80] sm:$0xff]
  %v38 = vld [vmem:[%s0 + $0x88] sm:$0xf]
  %v39 = vld [vmem:[%s0 + $0x8c] sm:$0xff]
  %v40 = vld [vmem:[%s0 + $0x94] sm:$0xff]
  %v41 = vld [vmem:[%s0 + $0x9c] sm:$0xf]
  %v42 = vld [vmem:[%s0 + $0xa0] sm:$0xff]
  %v43 = vld [vmem:[%s0 + $0xa8] sm:$0xff]
  %v44 = vld [vmem:[%s0 + $0xb0] sm:$0xf]
  %v45 = vld [vmem:[%s0 + $0xb4] sm:$0xff]
  %v46 = vld [vmem:[%s0 + $0xbc] sm:$0xff]
  %v47 = vld [vmem:[%s0 + $0xc4] sm:$0xf]
  %v48 = vld [vmem:[%s0 + $0xc8] sm:$0xff]
  %v49 = vld [vmem:[%s0 + $0xd0] sm:$0xff]
  %v50 = vld [vmem:[%s0 + $0xd8] sm:$0xf]
  %v51 = vld [vmem:[%s0 + $0xdc] sm:$0xff]
  %v52 = vld [vmem:[%s0 + $0xe4] sm:$0xff]
  %v53 = vld [vmem:[%s0 + $0xec] sm:$0xf]
  %v54 = vld [vmem:[%s1] sm:$0xf]
  %v55 = vld [vmem:[%s1 + $0x4] sm:$0xf]
  %v56 = vld [vmem:[%s1 + $0x8] sm:$0xf]
  %v57 = vld [vmem:[%s1 + $0xc] sm:$0xf]
  %v58 = vld [vmem:[%s1 + $0x10] sm:$0xf]
  %v59 = vld [vmem:[%s1 + $0x14] sm:$0xf]
  %v60 = vld [vmem:[%s1 + $0x18] sm:$0xf]
  %v61 = vld [vmem:[%s1 + $0x1c] sm:$0xf]
  %v62 = vld [vmem:[%s1 + $0x20] sm:$0xf]
  %v63 = vld [vmem:[%s1 + $0x24] sm:$0xf]
  %v64 = vld [vmem:[%s1 + $0x28] sm:$0xf]
  %v65 = vld [vmem:[%s1 + $0x2c] sm:$0xf]
  %v66 = vld [vmem:[%s1 + $0x30] sm:$0xf]
  %v67 = vld [vmem:[%s1 + $0x34] sm:$0xf]
  %v68 = vld [vmem:[%s1 + $0x38] sm:$0xf]
  %v69 = vld [vmem:[%s1 + $0x3c] sm:$0xf]
  %v70 = vld [vmem:[%s1 + $0x40] sm:$0xf]
  %v71 = vld [vmem:[%s1 + $0x44] sm:$0xf]
  %v72 = vld [vmem:[%s1 + $0x48] sm:$0xf]
  %v73 = vld [vmem:[%s1 + $0x4c] sm:$0xf]
  %v74 = vld [vmem:[%s1 + $0x50] sm:$0xf]
  %v75 = vld [vmem:[%s1 + $0x54] sm:$0xf]
  %v76 = vld [vmem:[%s1 + $0x58] sm:$0xf]
  %v77 = vld [vmem:[%s1 + $0x5c] sm:$0xf]
  %v78 = vld [vmem:[%s1 + $0x60] sm:$0xf]
  %v79 = vld [vmem:[%s1 + $0x64] sm:$0xf]
  %v80 = vld [vmem:[%s1 + $0x68] sm:$0xf]
  %v81 = vld [vmem:[%s1 + $0x6c] sm:$0xf]
  %v82 = vld [vmem:[%s1 + $0x70] sm:$0xf]
  %v83 = vld [vmem:[%s1 + $0x74] sm:$0xf]
  %v84 = vld [vmem:[%s1 + $0x78] sm:$0xf]
  %v85 = vld [vmem:[%s1 + $0x7c] sm:$0xf]
  %v86 = vld [vmem:[%s1 + $0x80] sm:$0xf]
  %v87 = vld [vmem:[%s1 + $0x84] sm:$0xf]
  %v88 = vld [vmem:[%s1 + $0x88] sm:$0xf]
  %v89 = vld [vmem:[%s1 + $0x8c] sm:$0xf]
  %v90 = vld [vmem:[%s1 + $0x90] sm:$0xf]
  %v91 = vld [vmem:[%s1 + $0x94] sm:$0xf]
  %v92 = vld [vmem:[%s1 + $0x98] sm:$0xf]
  %v93 = vld [vmem:[%s1 + $0x9c] sm:$0xf]
  %v94 = vld [vmem:[%s1 + $0xa0] sm:$0xf]
  %v95 = vld [vmem:[%s1 + $0xa4] sm:$0xf]
  %v96 = vld [vmem:[%s1 + $0xa8] sm:$0xf]
  %v97 = vld [vmem:[%s1 + $0xac] sm:$0xf]
  %v98 = vld [vmem:[%s1 + $0xb0] sm:$0xf]
  %v99 = vld [vmem:[%s1 + $0xb4] sm:$0xf]
  %v100 = vld [vmem:[%s1 + $0xb8] sm:$0xf]
  %v101 = vld [vmem:[%s1 + $0xbc] sm:$0xf]
  %v102 = vld [vmem:[%s1 + $0xc0] sm:$0xf]
  %v103 = vld [vmem:[%s1 + $0xc4] sm:$0xf]
  %v104 = vld [vmem:[%s1 + $0xc8] sm:$0xf]
  %v105 = vld [vmem:[%s1 + $0xcc] sm:$0xf]
  %v106 = vld [vmem:[%s1 + $0xd0] sm:$0xf]
  %v107 = vld [vmem:[%s1 + $0xd4] sm:$0xf]
  %v108 = vld [vmem:[%s1 + $0xd8] sm:$0xf]
  %v109 = vld [vmem:[%s1 + $0xdc] sm:$0xf]
  %v110 = vld [vmem:[%s1 + $0xe0] sm:$0xf]
  %v111 = vld [vmem:[%s1 + $0xe4] sm:$0xf]
  %v112 = vld [vmem:[%s1 + $0xe8] sm:$0xf]
  %v113 = vld [vmem:[%s1 + $0xec] sm:$0xf]
  %v114 = vld [vmem:[%s1 + $0xf0] sm:$0xf]
  %v115 = vld [vmem:[%s1 + $0xf4] sm:$0xf]
  %v116 = vld [vmem:[%s1 + $0xf8] sm:$0xf]
  %v117 = vld [vmem:[%s1 + $0xfc] sm:$0xf]
  %v118 = vld [vmem:[%s1 + $0x100] sm:$0xf]
  %v119 = vld [vmem:[%s1 + $0x104] sm:$0xf]
  %v120 = vld [vmem:[%s1 + $0x108] sm:$0xf]
  %v121 = vld [vmem:[%s1 + $0x10c] sm:$0xf]
  %v122 = vld [vmem:[%s1 + $0x110] sm:$0xf]
  %v123 = vld [vmem:[%s1 + $0x114] sm:$0xf]
  %v124 = vld [vmem:[%s1 + $0x118] sm:$0xf]
  %v125 = vld [vmem:[%s1 + $0x11c] sm:$0xf]
  %v162 = vunpack.c.l.b16 %v18
  %v163 = vunpack.c.h.b16 %v18
  %v164 = vunpack.c.l.b16 %v19
  %v165 = vunpack.c.h.b16 %v19
  %v166 = vunpack.c.l.b16 %v20
  %v167 = vunpack.c.l.b16 %v21
  %v168 = vunpack.c.h.b16 %v21
  %v169 = vunpack.c.l.b16 %v22
  %v170 = vunpack.c.h.b16 %v22
  %v171 = vunpack.c.l.b16 %v23
  %v172 = vunpack.c.l.b16 %v24
  %v173 = vunpack.c.h.b16 %v24
  %v174 = vunpack.c.l.b16 %v25
  %v175 = vunpack.c.h.b16 %v25
  %v176 = vunpack.c.l.b16 %v26
  %v177 = vunpack.c.l.b16 %v27
  %v178 = vunpack.c.h.b16 %v27
  %v179 = vunpack.c.l.b16 %v28
  %v180 = vunpack.c.h.b16 %v28
  %v181 = vunpack.c.l.b16 %v29
  %v182 = vunpack.c.l.b16 %v30
  %v183 = vunpack.c.h.b16 %v30
  %v184 = vunpack.c.l.b16 %v31
  %v185 = vunpack.c.h.b16 %v31
  %v186 = vunpack.c.l.b16 %v32
  %v187 = vunpack.c.l.b16 %v33
  %v188 = vunpack.c.h.b16 %v33
  %v189 = vunpack.c.l.b16 %v34
  %v190 = vunpack.c.h.b16 %v34
  %v191 = vunpack.c.l.b16 %v35
  %v192 = vunpack.c.l.b16 %v36
  %v193 = vunpack.c.h.b16 %v36
  %v194 = vunpack.c.l.b16 %v37
  %v195 = vunpack.c.h.b16 %v37
  %v196 = vunpack.c.l.b16 %v38
  %v197 = vunpack.c.l.b16 %v39
  %v198 = vunpack.c.h.b16 %v39
  %v199 = vunpack.c.l.b16 %v40
  %v200 = vunpack.c.h.b16 %v40
  %v201 = vunpack.c.l.b16 %v41
  %v202 = vunpack.c.l.b16 %v42
  %v203 = vunpack.c.h.b16 %v42
  %v204 = vunpack.c.l.b16 %v43
  %v205 = vunpack.c.h.b16 %v43
  %v206 = vunpack.c.l.b16 %v44
  %v207 = vunpack.c.l.b16 %v45
  %v208 = vunpack.c.h.b16 %v45
  %v209 = vunpack.c.l.b16 %v46
  %v210 = vunpack.c.h.b16 %v46
  %v211 = vunpack.c.l.b16 %v47
  %v212 = vunpack.c.l.b16 %v48
  %v213 = vunpack.c.h.b16 %v48
  %v214 = vunpack.c.l.b16 %v49
  %v215 = vunpack.c.h.b16 %v49
  %v216 = vunpack.c.l.b16 %v50
  %v217 = vunpack.c.l.b16 %v51
  %v218 = vunpack.c.h.b16 %v51
  %v219 = vunpack.c.l.b16 %v52
  %v220 = vunpack.c.h.b16 %v52
  %v221 = vunpack.c.l.b16 %v53
  %v222 = vpack.c.b16 %v167, %v162
  %v223 = vpack.c.b16 %v168, %v163
  %v224 = vpack.c.b16 %v169, %v164
  %v225 = vpack.c.b16 %v170, %v165
  %v226 = vpack.c.b16 %v171, %v166
  %v227 = vpack.c.b16 %v177, %v172
  %v228 = vpack.c.b16 %v178, %v173
  %v229 = vpack.c.b16 %v179, %v174
  %v230 = vpack.c.b16 %v180, %v175
  %v231 = vpack.c.b16 %v181, %v176
  %v232 = vpack.c.b16 %v187, %v182
  %v233 = vpack.c.b16 %v188, %v183
  %v234 = vpack.c.b16 %v189, %v184
  %v235 = vpack.c.b16 %v190, %v185
  %v236 = vpack.c.b16 %v191, %v186
  %v237 = vpack.c.b16 %v197, %v192
  %v238 = vpack.c.b16 %v198, %v193
  %v239 = vpack.c.b16 %v199, %v194
  %v240 = vpack.c.b16 %v200, %v195
  %v241 = vpack.c.b16 %v201, %v196
  %v242 = vpack.c.b16 %v207, %v202
  %v243 = vpack.c.b16 %v208, %v203
  %v244 = vpack.c.b16 %v209, %v204
  %v245 = vpack.c.b16 %v210, %v205
  %v246 = vpack.c.b16 %v211, %v206
  %v247 = vpack.c.b16 %v217, %v212
  %v248 = vpack.c.b16 %v218, %v213
  %v249 = vpack.c.b16 %v219, %v214
  %v250 = vpack.c.b16 %v220, %v215
  %v251 = vpack.c.b16 %v221, %v216
  %v348 = vunpack.c.l.b16 %v54
  %v349 = vunpack.c.l.b16 %v55
  %v350 = vunpack.c.l.b16 %v56
  %v351 = vunpack.c.l.b16 %v57
  %v352 = vunpack.c.l.b16 %v58
  %v353 = vunpack.c.l.b16 %v59
  %v354 = vunpack.c.l.b16 %v60
  %v355 = vunpack.c.l.b16 %v61
  %v356 = vunpack.c.l.b16 %v62
  %v357 = vunpack.c.l.b16 %v63
  %v358 = vunpack.c.l.b16 %v64
  %v359 = vunpack.c.l.b16 %v65
  %v360 = vunpack.c.l.b16 %v66
  %v361 = vunpack.c.l.b16 %v67
  %v362 = vunpack.c.l.b16 %v68
  %v363 = vunpack.c.l.b16 %v69
  %v364 = vunpack.c.l.b16 %v70
  %v365 = vunpack.c.l.b16 %v71
  %v366 = vunpack.c.l.b16 %v72
  %v367 = vunpack.c.l.b16 %v73
  %v368 = vunpack.c.l.b16 %v74
  %v369 = vunpack.c.l.b16 %v75
  %v370 = vunpack.c.l.b16 %v76
  %v371 = vunpack.c.l.b16 %v77
  %v372 = vunpack.c.l.b16 %v78
  %v373 = vunpack.c.l.b16 %v79
  %v374 = vunpack.c.l.b16 %v80
  %v375 = vunpack.c.l.b16 %v81
  %v376 = vunpack.c.l.b16 %v82
  %v377 = vunpack.c.l.b16 %v83
  %v378 = vunpack.c.l.b16 %v84
  %v379 = vunpack.c.l.b16 %v85
  %v380 = vunpack.c.l.b16 %v86
  %v381 = vunpack.c.l.b16 %v87
  %v382 = vunpack.c.l.b16 %v88
  %v383 = vunpack.c.l.b16 %v89
  %v384 = vunpack.c.l.b16 %v90
  %v385 = vunpack.c.l.b16 %v91
  %v386 = vunpack.c.l.b16 %v92
  %v387 = vunpack.c.l.b16 %v93
  %v388 = vunpack.c.l.b16 %v94
  %v389 = vunpack.c.l.b16 %v95
  %v390 = vunpack.c.l.b16 %v96
  %v391 = vunpack.c.l.b16 %v97
  %v392 = vunpack.c.l.b16 %v98
  %v393 = vunpack.c.l.b16 %v99
  %v394 = vunpack.c.l.b16 %v100
  %v395 = vunpack.c.l.b16 %v101
  %v396 = vunpack.c.l.b16 %v102
  %v397 = vunpack.c.l.b16 %v103
  %v398 = vunpack.c.l.b16 %v104
  %v399 = vunpack.c.l.b16 %v105
  %v400 = vunpack.c.l.b16 %v106
  %v401 = vunpack.c.l.b16 %v107
  %v402 = vunpack.c.l.b16 %v108
  %v403 = vunpack.c.l.b16 %v109
  %v404 = vunpack.c.l.b16 %v110
  %v405 = vunpack.c.l.b16 %v111
  %v406 = vunpack.c.l.b16 %v112
  %v407 = vunpack.c.l.b16 %v113
  %v408 = vunpack.c.l.b16 %v114
  %v409 = vunpack.c.l.b16 %v115
  %v410 = vunpack.c.l.b16 %v116
  %v411 = vunpack.c.l.b16 %v117
  %v412 = vunpack.c.l.b16 %v118
  %v413 = vunpack.c.l.b16 %v119
  %v414 = vunpack.c.l.b16 %v120
  %v415 = vunpack.c.l.b16 %v121
  %v416 = vunpack.c.l.b16 %v122
  %v417 = vunpack.c.l.b16 %v123
  %v418 = vunpack.c.l.b16 %v124
  %v419 = vunpack.c.l.b16 %v125
  %v420 = vpack.c.b16 %v349, %v348
  %v421 = vpack.c.b16 %v351, %v350
  %v422 = vpack.c.b16 %v353, %v352
  %v423 = vpack.c.b16 %v355, %v354
  %v424 = vpack.c.b16 %v357, %v356
  %v425 = vpack.c.b16 %v359, %v358
  %v426 = vpack.c.b16 %v361, %v360
  %v427 = vpack.c.b16 %v363, %v362
  %v428 = vpack.c.b16 %v365, %v364
  %v429 = vpack.c.b16 %v367, %v366
  %v430 = vpack.c.b16 %v369, %v368
  %v431 = vpack.c.b16 %v371, %v370
  %v432 = vpack.c.b16 %v373, %v372
  %v433 = vpack.c.b16 %v375, %v374
  %v434 = vpack.c.b16 %v377, %v376
  %v435 = vpack.c.b16 %v379, %v378
  %v436 = vpack.c.b16 %v381, %v380
  %v437 = vpack.c.b16 %v383, %v382
  %v438 = vpack.c.b16 %v385, %v384
  %v439 = vpack.c.b16 %v387, %v386
  %v440 = vpack.c.b16 %v389, %v388
  %v441 = vpack.c.b16 %v391, %v390
  %v442 = vpack.c.b16 %v393, %v392
  %v443 = vpack.c.b16 %v395, %v394
  %v444 = vpack.c.b16 %v397, %v396
  %v445 = vpack.c.b16 %v399, %v398
  %v446 = vpack.c.b16 %v401, %v400
  %v447 = vpack.c.b16 %v403, %v402
  %v448 = vpack.c.b16 %v405, %v404
  %v449 = vpack.c.b16 %v407, %v406
  %v450 = vpack.c.b16 %v409, %v408
  %v451 = vpack.c.b16 %v411, %v410
  %v452 = vpack.c.b16 %v413, %v412
  %v453 = vpack.c.b16 %v415, %v414
  %v454 = vpack.c.b16 %v417, %v416
  %v455 = vpack.c.b16 %v419, %v418
  %vm492 = vcmask 523264
  %v494 = vsel %vm492, %v226, 0
  %v497 = vsel %vm492, %v231, 0
  %v500 = vsel %vm492, %v236, 0
  %v503 = vsel %vm492, %v241, 0
  %v506 = vsel %vm492, %v246, 0
  %v509 = vsel %vm492, %v251, 0
  %511 = vmatprep.subr.bf16.mxu0 0
  %512 = vmatpush1.bf16.msra.mxu0 %v420
  %513 = vmatprep.subr.bf16.mxu0 0
  %514 = vmatpush1.bf16.msra.mxu0 %v421
  %515 = vmatprep.subr.bf16.mxu0 0
  %516 = vmatpush1.bf16.msra.mxu0 %v422
  %517 = vmatprep.subr.bf16.mxu0 0
  %518 = vmatpush1.bf16.msra.mxu0 %v423
  %519 = vmatprep.subr.bf16.mxu0 0
  %520 = vmatpush1.bf16.msra.mxu0 %v424
  %521 = vmatprep.subr.bf16.mxu0 0
  %522 = vmatpush1.bf16.msra.mxu0 %v425
  %523 = vmatprep.subr.bf16.mxu0 0
  %524 = vmatpush1.bf16.msra.mxu0 %v426
  %525 = vmatprep.subr.bf16.mxu0 0
  %526 = vmatpush1.bf16.msra.mxu0 %v427
  %527 = vmatprep.subr.bf16.mxu0 0
  %528 = vmatpush1.bf16.msra.mxu0 %v428
  %529 = vmatprep.subr.bf16.mxu0 0
  %530 = vmatpush1.bf16.msra.mxu0 %v429
  %531 = vmatprep.subr.bf16.mxu0 0
  %532 = vmatpush1.bf16.msra.mxu0 %v430
  %533 = vmatprep.subr.bf16.mxu0 0
  %534 = vmatpush1.bf16.msra.mxu0 %v431
  %535 = vmatprep.subr.bf16.mxu0 0
  %536 = vmatpush1.bf16.msra.mxu0 %v432
  %537 = vmatprep.subr.bf16.mxu0 0
  %538 = vmatpush1.bf16.msra.mxu0 %v433
  %539 = vmatprep.subr.bf16.mxu0 0
  %540 = vmatpush1.bf16.msra.mxu0 %v434
  %541 = vmatprep.subr.bf16.mxu0 0
  %542 = vmatpush1.bf16.msra.mxu0 %v435
  %543 = vmatprep.mubr.bf16.mxu0 %v223
  %544 = vmatmul.mubr.bf16.gmra.mrb[0].mxu0 %v222
  %v545 = vpop.f32.mrb[0].mxu0
  %v546 = vadd.f32 0.0, %v545
  %v547 = vpop.f32.mrb[0].mxu0
  %v548 = vpop.f32.mrb[0].mxu0
  %v549 = vadd.f32 0.0, %v548
  %v550 = vpop.f32.mrb[0].mxu0
  %551 = vmatprep.mubr.bf16.mxu0 %v228
  %552 = vmatmul.mubr.bf16.gmra.mrb[0].mxu0 %v227
  %v553 = vpop.f32.mrb[0].mxu0
  %v554 = vadd.f32 0.0, %v553
  %v555 = vpop.f32.mrb[0].mxu0
  %v556 = vpop.f32.mrb[0].mxu0
  %v557 = vadd.f32 0.0, %v556
  %v558 = vpop.f32.mrb[0].mxu0
  %559 = vmatprep.mubr.bf16.mxu0 %v233
  %560 = vmatmul.mubr.bf16.gmra.mrb[0].mxu0 %v232
  %v561 = vpop.f32.mrb[0].mxu0
  %v562 = vadd.f32 0.0, %v561
  %v563 = vpop.f32.mrb[0].mxu0
  %v564 = vpop.f32.mrb[0].mxu0
  %v565 = vadd.f32 0.0, %v564
  %v566 = vpop.f32.mrb[0].mxu0
  %567 = vmatprep.mubr.bf16.mxu0 %v238
  %568 = vmatmul.mubr.bf16.gmra.mrb[0].mxu0 %v237
  %v569 = vpop.f32.mrb[0].mxu0
  %v570 = vadd.f32 0.0, %v569
  %v571 = vpop.f32.mrb[0].mxu0
  %v572 = vpop.f32.mrb[0].mxu0
  %v573 = vadd.f32 0.0, %v572
  %v574 = vpop.f32.mrb[0].mxu0
  %575 = vmatprep.mubr.bf16.mxu0 %v243
  %576 = vmatmul.mubr.bf16.gmra.mrb[0].mxu0 %v242
  %v577 = vpop.f32.mrb[0].mxu0
  %v578 = vadd.f32 0.0, %v577
  %v579 = vpop.f32.mrb[0].mxu0
  %v580 = vpop.f32.mrb[0].mxu0
  %v581 = vadd.f32 0.0, %v580
  %v582 = vpop.f32.mrb[0].mxu0
  %583 = vmatprep.mubr.bf16.mxu0 %v248
  %584 = vmatmul.mubr.bf16.gmra.mrb[0].mxu0 %v247
  %v585 = vpop.f32.mrb[0].mxu0
  %v586 = vadd.f32 0.0, %v585
  %v587 = vpop.f32.mrb[0].mxu0
  %v588 = vpop.f32.mrb[0].mxu0
  %v589 = vadd.f32 0.0, %v588
  %v590 = vpop.f32.mrb[0].mxu0
  %591 = vdwg.mxu0
  %592 = vmatprep.subr.bf16.mxu0 0
  %593 = vmatpush1.bf16.msra.mxu0 %v436
  %594 = vmatprep.subr.bf16.mxu0 0
  %595 = vmatpush1.bf16.msra.mxu0 %v437
  %596 = vmatprep.subr.bf16.mxu0 0
  %597 = vmatpush1.bf16.msra.mxu0 %v438
  %598 = vmatprep.subr.bf16.mxu0 0
  %599 = vmatpush1.bf16.msra.mxu0 %v439
  %600 = vmatprep.subr.bf16.mxu0 0
  %601 = vmatpush1.bf16.msra.mxu0 %v440
  %602 = vmatprep.subr.bf16.mxu0 0
  %603 = vmatpush1.bf16.msra.mxu0 %v441
  %604 = vmatprep.subr.bf16.mxu0 0
  %605 = vmatpush1.bf16.msra.mxu0 %v442
  %606 = vmatprep.subr.bf16.mxu0 0
  %607 = vmatpush1.bf16.msra.mxu0 %v443
  %608 = vmatprep.subr.bf16.mxu0 0
  %609 = vmatpush1.bf16.msra.mxu0 %v444
  %610 = vmatprep.subr.bf16.mxu0 0
  %611 = vmatpush1.bf16.msra.mxu0 %v445
  %612 = vmatprep.subr.bf16.mxu0 0
  %613 = vmatpush1.bf16.msra.mxu0 %v446
  %614 = vmatprep.subr.bf16.mxu0 0
  %615 = vmatpush1.bf16.msra.mxu0 %v447
  %616 = vmatprep.subr.bf16.mxu0 0
  %617 = vmatpush1.bf16.msra.mxu0 %v448
  %618 = vmatprep.subr.bf16.mxu0 0
  %619 = vmatpush1.bf16.msra.mxu0 %v449
  %620 = vmatprep.subr.bf16.mxu0 0
  %621 = vmatpush1.bf16.msra.mxu0 %v450
  %622 = vmatprep.subr.bf16.mxu0 0
  %623 = vmatpush1.bf16.msra.mxu0 %v451
  %624 = vmatprep.mubr.bf16.mxu0 %v225
  %625 = vmatmul.mubr.bf16.gmra.mrb[0].mxu0 %v224
  %v626 = vpop.f32.mrb[0].mxu0
  %v627 = vadd.f32 %v546, %v626
  %v628 = vpop.f32.mrb[0].mxu0
  %v629 = vpop.f32.mrb[0].mxu0
  %v630 = vadd.f32 %v549, %v629
  %v631 = vpop.f32.mrb[0].mxu0
  %632 = vmatprep.mubr.bf16.mxu0 %v230
  %633 = vmatmul.mubr.bf16.gmra.mrb[0].mxu0 %v229
  %v634 = vpop.f32.mrb[0].mxu0
  %v635 = vadd.f32 %v554, %v634
  %v636 = vpop.f32.mrb[0].mxu0
  %v637 = vpop.f32.mrb[0].mxu0
  %v638 = vadd.f32 %v557, %v637
  %v639 = vpop.f32.mrb[0].mxu0
  %640 = vmatprep.mubr.bf16.mxu0 %v235
  %641 = vmatmul.mubr.bf16.gmra.mrb[0].mxu0 %v234
  %v642 = vpop.f32.mrb[0].mxu0
  %v643 = vadd.f32 %v562, %v642
  %v644 = vpop.f32.mrb[0].mxu0
  %v645 = vpop.f32.mrb[0].mxu0
  %v646 = vadd.f32 %v565, %v645
  %v647 = vpop.f32.mrb[0].mxu0
  %648 = vmatprep.mubr.bf16.mxu0 %v240
  %649 = vmatmul.mubr.bf16.gmra.mrb[0].mxu0 %v239
  %v650 = vpop.f32.mrb[0].mxu0
  %v651 = vadd.f32 %v570, %v650
  %v652 = vpop.f32.mrb[0].mxu0
  %v653 = vpop.f32.mrb[0].mxu0
  %v654 = vadd.f32 %v573, %v653
  %v655 = vpop.f32.mrb[0].mxu0
  %656 = vmatprep.mubr.bf16.mxu0 %v245
  %657 = vmatmul.mubr.bf16.gmra.mrb[0].mxu0 %v244
  %v658 = vpop.f32.mrb[0].mxu0
  %v659 = vadd.f32 %v578, %v658
  %v660 = vpop.f32.mrb[0].mxu0
  %v661 = vpop.f32.mrb[0].mxu0
  %v662 = vadd.f32 %v581, %v661
  %v663 = vpop.f32.mrb[0].mxu0
  %664 = vmatprep.mubr.bf16.mxu0 %v250
  %665 = vmatmul.mubr.bf16.gmra.mrb[0].mxu0 %v249
  %v666 = vpop.f32.mrb[0].mxu0
  %v667 = vadd.f32 %v586, %v666
  %v668 = vpop.f32.mrb[0].mxu0
  %v669 = vpop.f32.mrb[0].mxu0
  %v670 = vadd.f32 %v589, %v669
  %v671 = vpop.f32.mrb[0].mxu0
  %672 = vdwg.mxu0
  %673 = vmatprep.subr.bf16.mxu0 0
  %674 = vmatpush1.bf16.msra.mxu0 %v452
  %675 = vmatprep.subr.bf16.mxu0 0
  %676 = vmatpush1.bf16.msra.mxu0 %v453
  %677 = vmatprep.subr.bf16.mxu0 0
  %678 = vmatpush1.bf16.msra.mxu0 %v454
  %679 = vmatprep.subr.bf16.mxu0 0
  %680 = vmatpush1.bf16.msra.mxu0 %v455
  %681 = vmatprep.subr.bf16.mxu0 0
  %682 = vmatpush1.bf16.msra.mxu0 0
  %683 = vmatprep.subr.bf16.mxu0 0
  %684 = vmatpush1.bf16.msra.mxu0 0
  %685 = vmatprep.subr.bf16.mxu0 0
  %686 = vmatpush1.bf16.msra.mxu0 0
  %687 = vmatprep.subr.bf16.mxu0 0
  %688 = vmatpush1.bf16.msra.mxu0 0
  %689 = vmatprep.subr.bf16.mxu0 0
  %690 = vmatpush1.bf16.msra.mxu0 0
  %691 = vmatprep.subr.bf16.mxu0 0
  %692 = vmatpush1.bf16.msra.mxu0 0
  %693 = vmatprep.subr.bf16.mxu0 0
  %694 = vmatpush1.bf16.msra.mxu0 0
  %695 = vmatprep.subr.bf16.mxu0 0
  %696 = vmatpush1.bf16.msra.mxu0 0
  %697 = vmatprep.subr.bf16.mxu0 0
  %698 = vmatpush1.bf16.msra.mxu0 0
  %699 = vmatprep.subr.bf16.mxu0 0
  %700 = vmatpush1.bf16.msra.mxu0 0
  %701 = vmatprep.subr.bf16.mxu0 0
  %702 = vmatpush1.bf16.msra.mxu0 0
  %703 = vmatprep.subr.bf16.mxu0 0
  %704 = vmatpush1.bf16.msra.mxu0 0
  %705 = vmatprep.mubr.bf16.mxu0 0
  %706 = vmatmul.mubr.bf16.gmra.mrb[0].mxu0 %v494
  %v707 = vpop.f32.mrb[0].mxu0
  %v708 = vadd.f32 %v627, %v707
  %v709 = vpop.f32.mrb[0].mxu0
  %v710 = vpop.f32.mrb[0].mxu0
  %v711 = vadd.f32 %v630, %v710
  %v712 = vpop.f32.mrb[0].mxu0
  %713 = vmatprep.mubr.bf16.mxu0 0
  %714 = vmatmul.mubr.bf16.gmra.mrb[0].mxu0 %v497
  %v715 = vpop.f32.mrb[0].mxu0
  %v716 = vadd.f32 %v635, %v715
  %v717 = vpop.f32.mrb[0].mxu0
  %v718 = vpop.f32.mrb[0].mxu0
  %v719 = vadd.f32 %v638, %v718
  %v720 = vpop.f32.mrb[0].mxu0
  %721 = vmatprep.mubr.bf16.mxu0 0
  %722 = vmatmul.mubr.bf16.gmra.mrb[0].mxu0 %v500
  %v723 = vpop.f32.mrb[0].mxu0
  %v724 = vadd.f32 %v643, %v723
  %v725 = vpop.f32.mrb[0].mxu0
  %v726 = vpop.f32.mrb[0].mxu0
  %v727 = vadd.f32 %v646, %v726
  %v728 = vpop.f32.mrb[0].mxu0
  %729 = vmatprep.mubr.bf16.mxu0 0
  %730 = vmatmul.mubr.bf16.gmra.mrb[0].mxu0 %v503
  %v731 = vpop.f32.mrb[0].mxu0
  %v732 = vadd.f32 %v651, %v731
  %v733 = vpop.f32.mrb[0].mxu0
  %v734 = vpop.f32.mrb[0].mxu0
  %v735 = vadd.f32 %v654, %v734
  %v736 = vpop.f32.mrb[0].mxu0
  %737 = vmatprep.mubr.bf16.mxu0 0
  %738 = vmatmul.mubr.bf16.gmra.mrb[0].mxu0 %v506
  %v739 = vpop.f32.mrb[0].mxu0
  %v740 = vadd.f32 %v659, %v739
  %v741 = vpop.f32.mrb[0].mxu0
  %v742 = vpop.f32.mrb[0].mxu0
  %v743 = vadd.f32 %v662, %v742
  %v744 = vpop.f32.mrb[0].mxu0
  %745 = vmatprep.mubr.bf16.mxu0 0
  %746 = vmatmul.mubr.bf16.gmra.mrb[0].mxu0 %v509
  %v747 = vpop.f32.mrb[0].mxu0
  %v748 = vadd.f32 %v667, %v747
  %v749 = vpop.f32.mrb[0].mxu0
  %v750 = vpop.f32.mrb[0].mxu0
  %v751 = vadd.f32 %v670, %v750
  %v752 = vpop.f32.mrb[0].mxu0
  %753 = vdwg.mxu0
  %v754 = vld [vmem:[%s2] sm:$0x1]
  %v756 = vlaneseq
  %v757 = vshrl.u32 %v756, 7
  %v758 = vsub.s32 0, %v757
  %v759 = vrot.slane %v754, %v758
  %v761 = vmul.f32 %v708, %v759
  %v762 = vmul.f32 %v711, %v759
  %v763 = vmul.f32 %v716, %v759
  %v764 = vmul.f32 %v719, %v759
  %v765 = vmul.f32 %v724, %v759
  %v766 = vmul.f32 %v727, %v759
  %v767 = vmul.f32 %v732, %v759
  %v768 = vmul.f32 %v735, %v759
  %v769 = vmul.f32 %v740, %v759
  %v770 = vmul.f32 %v743, %v759
  %v771 = vmul.f32 %v748, %v759
  %v772 = vmul.f32 %v751, %v759
  %v773 = vld [vmem:[%s3] sm:$0x1]
  %v775 = vlaneseq
  %v776 = vshrl.u32 %v775, 7
  %v777 = vsub.s32 0, %v776
  %v778 = vrot.slane %v773, %v777
  %v780 = vadd.f32 %v761, %v778
  %v781 = vadd.f32 %v762, %v778
  %v782 = vadd.f32 %v763, %v778
  %v783 = vadd.f32 %v764, %v778
  %v784 = vadd.f32 %v765, %v778
  %v785 = vadd.f32 %v766, %v778
  %v786 = vadd.f32 %v767, %v778
  %v787 = vadd.f32 %v768, %v778
  %v788 = vadd.f32 %v769, %v778
  %v789 = vadd.f32 %v770, %v778
  %v790 = vadd.f32 %v771, %v778
  %v791 = vadd.f32 %v772, %v778
  %v792 = vmax.f32 %v780, 0.0
  %v793 = vmax.f32 %v781, 0.0
  %v794 = vmax.f32 %v782, 0.0
  %v795 = vmax.f32 %v783, 0.0
  %v796 = vmax.f32 %v784, 0.0
  %v797 = vmax.f32 %v785, 0.0
  %v798 = vmax.f32 %v786, 0.0
  %v799 = vmax.f32 %v787, 0.0
  %v800 = vmax.f32 %v788, 0.0
  %v801 = vmax.f32 %v789, 0.0
  %v802 = vmax.f32 %v790, 0.0
  %v803 = vmax.f32 %v791, 0.0
  %v804 = vpack.c.bf16 %v793, %v792
  %v805 = vpack.c.bf16 %v795, %v794
  %v806 = vpack.c.bf16 %v797, %v796
  %v807 = vpack.c.bf16 %v799, %v798
  %v808 = vpack.c.bf16 %v801, %v800
  %v809 = vpack.c.bf16 %v803, %v802
  %v816 = vunpack.c.l.b16 %v804
  %v817 = vunpack.c.h.b16 %v804
  %v818 = vunpack.c.l.b16 %v805
  %v819 = vunpack.c.h.b16 %v805
  %v820 = vunpack.c.l.b16 %v806
  %v821 = vunpack.c.h.b16 %v806
  %v822 = vunpack.c.l.b16 %v807
  %v823 = vunpack.c.h.b16 %v807
  %v824 = vunpack.c.l.b16 %v808
  %v825 = vunpack.c.h.b16 %v808
  %v826 = vunpack.c.l.b16 %v809
  %v827 = vunpack.c.h.b16 %v809
  %v828 = vpack.c.b16 %v816, %v816
  %v829 = vpack.c.b16 %v817, %v817
  %v830 = vpack.c.b16 %v818, %v818
  %v831 = vpack.c.b16 %v819, %v819
  %v832 = vpack.c.b16 %v820, %v820
  %v833 = vpack.c.b16 %v821, %v821
  %v834 = vpack.c.b16 %v822, %v822
  %v835 = vpack.c.b16 %v823, %v823
  %v836 = vpack.c.b16 %v824, %v824
  %v837 = vpack.c.b16 %v825, %v825
  %v838 = vpack.c.b16 %v826, %v826
  %v839 = vpack.c.b16 %v827, %v827
  %852 = vst [vmem:[%s4] sm:$0xf] %v828
  %853 = vst [vmem:[%s4 + $0x4] sm:$0xf] %v829
  %854 = vst [vmem:[%s4 + $0x8] sm:$0xf] %v830
  %855 = vst [vmem:[%s4 + $0xc] sm:$0xf] %v831
  %856 = vst [vmem:[%s4 + $0x10] sm:$0xf] %v832
  %857 = vst [vmem:[%s4 + $0x14] sm:$0xf] %v833
  %858 = vst [vmem:[%s4 + $0x18] sm:$0xf] %v834
  %859 = vst [vmem:[%s4 + $0x1c] sm:$0xf] %v835
  %860 = vst [vmem:[%s4 + $0x20] sm:$0xf] %v836
  %861 = vst [vmem:[%s4 + $0x24] sm:$0xf] %v837
  %862 = vst [vmem:[%s4 + $0x28] sm:$0xf] %v838
  %863 = vst [vmem:[%s4 + $0x2c] sm:$0xf] %v839
  // Predicated region
  $region18: #{_lambda_.12} parent=0 // pred_check
    _
  $region19: #{_lambda_.12} parent=0 // pred_check_branch
    %865 = sbr.rel (0) target = $region21
  $region20: #{_lambda_.12} parent=0 // pred_region
    _
  $region21: #{_lambda_.12} parent=0 // pred_fallthru
    _
  // Predicated region
  $region22: #{_lambda_.12} parent=0 // pred_check
    _
  $region23: #{_lambda_.12} parent=0 // pred_check_branch
    %867 = sbr.rel (0) target = $region25
  $region24: #{_lambda_.12} parent=0 // pred_region
    _
  $region25: #{_lambda_.12} parent=0 // pred_fallthru
    _

// kernel: _lambda_.13
$region0: #{_lambda_.13}
  #allocation0 [shape = 'u32[]', space=smem, size = 0x4, offset = 0x4, fixed_abs, tag = 'smem constant byte address 0x4 - core index']
  #allocation1 [shape = 'u32[144,128]{1,0:T(1,128)}', space=vmem, size = 0x12000, scoped, tag = 'internal scratch']
  %s0 = inlined_call_operand.vmem [shape: bf16[32,128], index: 0, kind: input, shape index: {}]
  %s1 = inlined_call_operand.vmem [shape: bf16[32,128], index: 1, kind: input, shape index: {}]
  %s2 = inlined_call_operand.vmem [shape: bf16[32,128], index: 2, kind: input, shape index: {}]
  %s3 = inlined_call_operand.vmem [shape: bf16[32,128], index: 3, kind: input, shape index: {}]
  %s4 = inlined_call_operand.vmem [shape: bf16[32,128], index: 4, kind: input, shape index: {}]
  %s5 = inlined_call_operand.vmem [shape: bf16[32,128], index: 5, kind: input, shape index: {}]
  %s6 = inlined_call_operand.vmem [shape: bf16[32,128], index: 6, kind: input, shape index: {}]
  %s7 = inlined_call_operand.vmem [shape: bf16[32,128], index: 7, kind: input, shape index: {}]
  %s8 = inlined_call_operand.vmem [shape: bf16[32,128], index: 8, kind: input, shape index: {}]
  %s9 = inlined_call_operand.vmem [shape: bf16[32,128], index: 9, kind: output, shape index: {}]
  %s10 = sld [smem:[#allocation0]]
  $region46: #{_lambda_.13} parent=0
    _
  %s12 = ssub.s32 1, %s10
  %s13 = scalar_select 0, %s12, %s10
  // Predicated region
  $region2: #{_lambda_.13} parent=0 // pred_check
    _
  $region3: #{_lambda_.13} parent=0 // pred_check_branch
    %15 = sbr.rel (0) target = $region5
  $region4: #{_lambda_.13} parent=0 // pred_region
    _
  $region5: #{_lambda_.13} parent=0 // pred_fallthru
    _
  // Predicated region
  $region6: #{_lambda_.13} parent=0 // pred_check
    _
  $region7: #{_lambda_.13} parent=0 // pred_check_branch
    %17 = sbr.rel (0) target = $region9
  $region8: #{_lambda_.13} parent=0 // pred_region
    _
  $region9: #{_lambda_.13} parent=0 // pred_fallthru
    _
  // Predicated region
  $region10: #{_lambda_.13} parent=0 // pred_check
    _
  $region11: #{_lambda_.13} parent=0 // pred_check_branch
    %19 = sbr.rel (0) target = $region13
  $region12: #{_lambda_.13} parent=0 // pred_region
    _
  $region13: #{_lambda_.13} parent=0 // pred_fallthru
    _
  // Predicated region
  $region14: #{_lambda_.13} parent=0 // pred_check
    _
  $region15: #{_lambda_.13} parent=0 // pred_check_branch
    %21 = sbr.rel (0) target = $region17
  $region16: #{_lambda_.13} parent=0 // pred_region
    _
  $region17: #{_lambda_.13} parent=0 // pred_fallthru
    _
  // Predicated region
  $region18: #{_lambda_.13} parent=0 // pred_check
    _
  $region19: #{_lambda_.13} parent=0 // pred_check_branch
    %23 = sbr.rel (0) target = $region21
  $region20: #{_lambda_.13} parent=0 // pred_region
    _
  $region21: #{_lambda_.13} parent=0 // pred_fallthru
    _
  // Predicated region
  $region22: #{_lambda_.13} parent=0 // pred_check
    _
  $region23: #{_lambda_.13} parent=0 // pred_check_branch
    %25 = sbr.rel (0) target = $region25
  $region24: #{_lambda_.13} parent=0 // pred_region
    _
  $region25: #{_lambda_.13} parent=0 // pred_fallthru
    _
  // Predicated region
  $region26: #{_lambda_.13} parent=0 // pred_check
    _
  $region27: #{_lambda_.13} parent=0 // pred_check_branch
    %27 = sbr.rel (0) target = $region29
  $region28: #{_lambda_.13} parent=0 // pred_region
    _
  $region29: #{_lambda_.13} parent=0 // pred_fallthru
    _
  // Predicated region
  $region30: #{_lambda_.13} parent=0 // pred_check
    _
  $region31: #{_lambda_.13} parent=0 // pred_check_branch
    %29 = sbr.rel (0) target = $region33
  $region32: #{_lambda_.13} parent=0 // pred_region
    _
  $region33: #{_lambda_.13} parent=0 // pred_fallthru
    _
  // Predicated region
  $region34: #{_lambda_.13} parent=0 // pred_check
    _
  $region35: #{_lambda_.13} parent=0 // pred_check_branch
    %31 = sbr.rel (0) target = $region37
  $region36: #{_lambda_.13} parent=0 // pred_region
    _
  $region37: #{_lambda_.13} parent=0 // pred_fallthru
    _
  %v32 = vld [vmem:[%s0] sm:$0xf]
  %v33 = vld [vmem:[%s0 + $0x4] sm:$0xf]
  %v34 = vld [vmem:[%s0 + $0x8] sm:$0xf]
  %v35 = vld [vmem:[%s0 + $0xc] sm:$0xf]
  %v36 = vld [vmem:[%s1] sm:$0xf]
  %v37 = vld [vmem:[%s1 + $0x4] sm:$0xf]
  %v38 = vld [vmem:[%s1 + $0x8] sm:$0xf]
  %v39 = vld [vmem:[%s1 + $0xc] sm:$0xf]
  %v40 = vmax.bf16 %v32, %v36
  %v41 = vmax.bf16 %v33, %v37
  %v42 = vmax.bf16 %v34, %v38
  %v43 = vmax.bf16 %v35, %v39
  %v44 = vld [vmem:[%s2] sm:$0xf]
  %v45 = vld [vmem:[%s2 + $0x4] sm:$0xf]
  %v46 = vld [vmem:[%s2 + $0x8] sm:$0xf]
  %v47 = vld [vmem:[%s2 + $0xc] sm:$0xf]
  %v48 = vmax.bf16 %v40, %v44
  %v49 = vmax.bf16 %v41, %v45
  %v50 = vmax.bf16 %v42, %v46
  %v51 = vmax.bf16 %v43, %v47
  %v52 = vld [vmem:[%s3] sm:$0xf]
  %v53 = vld [vmem:[%s3 + $0x4] sm:$0xf]
  %v54 = vld [vmem:[%s3 + $0x8] sm:$0xf]
  %v55 = vld [vmem:[%s3 + $0xc] sm:$0xf]
  %v56 = vmax.bf16 %v48, %v52
  %v57 = vmax.bf16 %v49, %v53
  %v58 = vmax.bf16 %v50, %v54
  %v59 = vmax.bf16 %v51, %v55
  %v60 = vld [vmem:[%s4] sm:$0xf]
  %v61 = vld [vmem:[%s4 + $0x4] sm:$0xf]
  %v62 = vld [vmem:[%s4 + $0x8] sm:$0xf]
  %v63 = vld [vmem:[%s4 + $0xc] sm:$0xf]
  %v64 = vmax.bf16 %v56, %v60
  %v65 = vmax.bf16 %v57, %v61
  %v66 = vmax.bf16 %v58, %v62
  %v67 = vmax.bf16 %v59, %v63
  %v68 = vld [vmem:[%s5] sm:$0xf]
  %v69 = vld [vmem:[%s5 + $0x4] sm:$0xf]
  %v70 = vld [vmem:[%s5 + $0x8] sm:$0xf]
  %v71 = vld [vmem:[%s5 + $0xc] sm:$0xf]
  %v72 = vmax.bf16 %v64, %v68
  %v73 = vmax.bf16 %v65, %v69
  %v74 = vmax.bf16 %v66, %v70
  %v75 = vmax.bf16 %v67, %v71
  %v76 = vld [vmem:[%s6] sm:$0xf]
  %v77 = vld [vmem:[%s6 + $0x4] sm:$0xf]
  %v78 = vld [vmem:[%s6 + $0x8] sm:$0xf]
  %v79 = vld [vmem:[%s6 + $0xc] sm:$0xf]
  %v80 = vmax.bf16 %v72, %v76
  %v81 = vmax.bf16 %v73, %v77
  %v82 = vmax.bf16 %v74, %v78
  %v83 = vmax.bf16 %v75, %v79
  %v84 = vld [vmem:[%s7] sm:$0xf]
  %v85 = vld [vmem:[%s7 + $0x4] sm:$0xf]
  %v86 = vld [vmem:[%s7 + $0x8] sm:$0xf]
  %v87 = vld [vmem:[%s7 + $0xc] sm:$0xf]
  %v88 = vmax.bf16 %v80, %v84
  %v89 = vmax.bf16 %v81, %v85
  %v90 = vmax.bf16 %v82, %v86
  %v91 = vmax.bf16 %v83, %v87
  %v92 = vld [vmem:[%s8] sm:$0xf]
  %v93 = vld [vmem:[%s8 + $0x4] sm:$0xf]
  %v94 = vld [vmem:[%s8 + $0x8] sm:$0xf]
  %v95 = vld [vmem:[%s8 + $0xc] sm:$0xf]
  %v96 = vmax.bf16 %v88, %v92
  %v97 = vmax.bf16 %v89, %v93
  %v98 = vmax.bf16 %v90, %v94
  %v99 = vmax.bf16 %v91, %v95
  %100 = vst [vmem:[%s9] sm:$0xf] %v96
  %101 = vst [vmem:[%s9 + $0x4] sm:$0xf] %v97
  %102 = vst [vmem:[%s9 + $0x8] sm:$0xf] %v98
  %103 = vst [vmem:[%s9 + $0xc] sm:$0xf] %v99
  // Predicated region
  $region38: #{_lambda_.13} parent=0 // pred_check
    _
  $region39: #{_lambda_.13} parent=0 // pred_check_branch
    %105 = sbr.rel (0) target = $region41
  $region40: #{_lambda_.13} parent=0 // pred_region
    _
  $region41: #{_lambda_.13} parent=0 // pred_fallthru
    _
  // Predicated region
  $region42: #{_lambda_.13} parent=0 // pred_check
    _
  $region43: #{_lambda_.13} parent=0 // pred_check_branch
    %107 = sbr.rel (0) target = $region45
  $region44: #{_lambda_.13} parent=0 // pred_region
    _
  $region45: #{_lambda_.13} parent=0 // pred_fallthru
    _

// kernel: _lambda_.14
$region0: #{_lambda_.14}
  #allocation0 [shape = 'u32[]', space=smem, size = 0x4, offset = 0x4, fixed_abs, tag = 'smem constant byte address 0x4 - core index']
  #allocation1 [shape = 'u32[144,128]{1,0:T(1,128)}', space=vmem, size = 0x12000, scoped, tag = 'internal scratch']
  #allocation2 [shape = 'f32[16,512]{1,0:T(8,128)}', space=vmem, size = 0x8000, scoped, tag = 'scratch operand']
  %s0 = inlined_call_operand.vmem [shape: bf16[16,1536], index: 0, kind: input, shape index: {}]
  %s1 = inlined_call_operand.vmem [shape: bf16[1536,1024], index: 1, kind: input, shape index: {}]
  %s2 = inlined_call_operand.vmem [shape: f32[1,1024], index: 2, kind: input, shape index: {}]
  %s3 = inlined_call_operand.vmem [shape: bf16[16,1024], index: 3, kind: output, shape index: {}]
  %s4 = sld [smem:[#allocation0]]
  $region95: #{_lambda_.14} parent=0
    _
  %s6 = ssub.s32 1, %s4
  %s7 = scalar_select 0, %s6, %s4
  $region1: #{_lambda_.14} parent=0
    #allocation3 [shape = 'u8[3145728]{0}', space=vmem, size = 0x300000, scoped, tag = 'input window, operand 1']
    #allocation4 [shape = 'u8[32768]{0}', space=vmem, size = 0x8000, scoped, tag = 'output window, operand 0']
    loop: start=0, step=1, limit=4
    $region2: #{_lambda_.14} parent=1 // loop_pre_header
      _
    $region3: #{_lambda_.14} parent=1 // loop_header
      %s9 = sphi 0, %s13
      %p10 = scmp.ge.s32.totalorder %s9, 4
      %s16 = sphi 0, %s28
      %s17 = sphi 0, %s24
      %s18 = sphi 0, %s16
      %s19 = sphi 0, %s17
      %s20 = sphi 0, %s18
      %s21 = sphi 0, %s19
      %s31 = sphi 0, %s33
      %s34 = sphi 0, %s31
      %s35 = sphi 0, %s34
      %s51 = sphi 0, %s35
      %s59 = sphi 0, %s61
      %s62 = sphi 0, %s59
      %s63 = sphi 0, %s62
      %s79 = sphi 0, %s63
      %s85 = sphi 0, %s87
      %s88 = sphi 0, %s85
      %s89 = sphi 0, %s88
      %s105 = sphi 0, %s89
      %s111 = sphi 0, %s113
      %s114 = sphi 0, %s111
      %s115 = sphi 0, %s114
      %s131 = sphi 0, %s115
    $region4: #{_lambda_.14} parent=1 // loop_header_branch
      %12 = sbr.rel (%p10) target = $region8
    $region5: #{_lambda_.14} parent=1 // loop_body
      %s14 = ssub.s32 %s9, 1
      %s15 = ssub.s32 %s9, 2
      %s22 = sadd.s32 1, %s17
      %p23 = scmp.ge.s32.totalorder %s22, 1
      %s24 = scalar_select %p23, 0, %s22
      %s25 = sadd.s32 1, %s16
      %s26 = scalar_select %p23, %s25, %s16
      %p27 = scmp.ge.s32.totalorder %s26, 2
      %s28 = scalar_select %p27, 0, %s26
      %s29 = ssub.s32 %s17, %s24
      %p30 = scmp.eq.s32.totalorder %s29, 0
      %s32 = sadd.s32 %s31, 1
      %s33 = scalar_select %p30, %s31, %s32
      %p36 = pneg %p30
      %p37 = scmp.eq.s32.totalorder %s9, 1
      %p38 = por %p36, %p37
      %p39 = scmp.ne.s32.totalorder %s31, %s34
      %p40 = scmp.eq.s32.totalorder %s9, 0
      %p41 = por %p39, %p40
      %p42 = scmp.ne.s32.totalorder %s31, %s34
      %p43 = scmp.eq.s32.totalorder %s14, 1
      %p44 = por %p42, %p43
      %p45 = scmp.ne.s32.totalorder %s34, %s35
      %p46 = scmp.eq.s32.totalorder %s14, 0
      %p47 = por %p45, %p46
      %p48 = scmp.ne.s32.totalorder %s34, %s35
      %p49 = scmp.eq.s32.totalorder %s15, 1
      %p50 = por %p48, %p49
      %p52 = scmp.ne.s32.totalorder %s35, %s51
      %p53 = scmp.eq.s32.totalorder %s15, 0
      %p54 = por %p52, %p53
      %s55 = ssub.s32 %s17, %s24
      %s56 = ssub.s32 %s16, %s28
      %s57 = sor.u32 %s55, %s56
      %p58 = scmp.eq.s32.totalorder %s57, 0
      %s60 = sadd.s32 %s59, 1
      %s61 = scalar_select %p58, %s59, %s60
      %p64 = pneg %p58
      %p65 = scmp.eq.s32.totalorder %s9, 1
      %p66 = por %p64, %p65
      %p67 = scmp.ne.s32.totalorder %s59, %s62
      %p68 = scmp.eq.s32.totalorder %s9, 0
      %p69 = por %p67, %p68
      %p70 = scmp.ne.s32.totalorder %s59, %s62
      %p71 = scmp.eq.s32.totalorder %s14, 1
      %p72 = por %p70, %p71
      %p73 = scmp.ne.s32.totalorder %s62, %s63
      %p74 = scmp.eq.s32.totalorder %s14, 0
      %p75 = por %p73, %p74
      %p76 = scmp.ne.s32.totalorder %s62, %s63
      %p77 = scmp.eq.s32.totalorder %s15, 1
      %p78 = por %p76, %p77
      %p80 = scmp.ne.s32.totalorder %s63, %s79
      %p81 = scmp.eq.s32.totalorder %s15, 0
      %p82 = por %p80, %p81
      %s83 = ssub.s32 %s16, %s28
      %p84 = scmp.eq.s32.totalorder %s83, 0
      %s86 = sadd.s32 %s85, 1
      %s87 = scalar_select %p84, %s85, %s86
      %p90 = pneg %p84
      %p91 = scmp.eq.s32.totalorder %s9, 1
      %p92 = por %p90, %p91
      %p93 = scmp.ne.s32.totalorder %s85, %s88
      %p94 = scmp.eq.s32.totalorder %s9, 0
      %p95 = por %p93, %p94
      %p96 = scmp.ne.s32.totalorder %s85, %s88
      %p97 = scmp.eq.s32.totalorder %s14, 1
      %p98 = por %p96, %p97
      %p99 = scmp.ne.s32.totalorder %s88, %s89
      %p100 = scmp.eq.s32.totalorder %s14, 0
      %p101 = por %p99, %p100
      %p102 = scmp.ne.s32.totalorder %s88, %s89
      %p103 = scmp.eq.s32.totalorder %s15, 1
      %p104 = por %p102, %p103
      %p106 = scmp.ne.s32.totalorder %s89, %s105
      %p107 = scmp.eq.s32.totalorder %s15, 0
      %p108 = por %p106, %p107
      %s109 = ssub.s32 %s16, %s28
      %p110 = scmp.eq.s32.totalorder %s109, 0
      %s112 = sadd.s32 %s111, 1
      %s113 = scalar_select %p110, %s111, %s112
      %p116 = pneg %p110
      %p117 = scmp.eq.s32.totalorder %s9, 1
      %p118 = por %p116, %p117
      %p119 = scmp.ne.s32.totalorder %s111, %s114
      %p120 = scmp.eq.s32.totalorder %s9, 0
      %p121 = por %p119, %p120
      %p122 = scmp.ne.s32.totalorder %s111, %s114
      %p123 = scmp.eq.s32.totalorder %s14, 1
      %p124 = por %p122, %p123
      %p125 = scmp.ne.s32.totalorder %s114, %s115
      %p126 = scmp.eq.s32.totalorder %s14, 0
      %p127 = por %p125, %p126
      %p128 = scmp.ne.s32.totalorder %s114, %s115
      %p129 = scmp.eq.s32.totalorder %s15, 1
      %p130 = por %p128, %p129
      %p132 = scmp.ne.s32.totalorder %s115, %s131
      %p133 = scmp.eq.s32.totalorder %s15, 0
      %p134 = por %p132, %p133
      %p135 = scmp.le.s32.totalorder 1, %s9
      %p136 = scmp.lt.s32.totalorder %s9, 3
      %p137 = pnand %p135, %p136
      %p138 = pneg %p137
      // Predicated region
      $region9: #{_lambda_.14} parent=5 // pred_check
        _
      $region10: #{_lambda_.14} parent=5 // pred_check_branch
        %140 = sbr.rel (%p137) target = $region12
      $region11: #{_lambda_.14} parent=5 // pred_region
        %s141 = ssub.s32 %s9, 1
        // Predicated region
        $region13: #{_lambda_.14} parent=11 // pred_check
          %p142 = pneg %p47
        $region14: #{_lambda_.14} parent=11 // pred_check_branch
          %144 = sbr.rel (%p142) target = $region16
        $region15: #{_lambda_.14} parent=11 // pred_region
          %s145 = smul.u32 12, %s19
          %p146 = scmp.lt.s32.totalorder %s145, 11
          %s147 = scalar_select %p146, %s145, 11
          %s148 = smul.addr %s147, 4
          %s149 = scalar_lea.vmem %s0, %s148
          %s150 = smul.u32 12, %s19
        $region16: #{_lambda_.14} parent=11 // pred_fallthru
          _
      $region12: #{_lambda_.14} parent=5 // pred_fallthru
        _
      %p151 = scmp.lt.s32.totalorder %s9, 2
      // Predicated region
      $region17: #{_lambda_.14} parent=5 // pred_check
        %p152 = pneg %p151
      $region18: #{_lambda_.14} parent=5 // pred_check_branch
        %154 = sbr.rel (%p152) target = $region20
      $region19: #{_lambda_.14} parent=5 // pred_region
        // Predicated region
        $region21: #{_lambda_.14} parent=19 // pred_check
          %p155 = pneg %p69
        $region22: #{_lambda_.14} parent=19 // pred_check_branch
          %157 = sbr.rel (%p155) target = $region24
        $region23: #{_lambda_.14} parent=19 // pred_region
          %s158 = sand.u32 %s59, 1
          %s159 = sand.u32 %s59, 1
          %s160 = smul.addr %s159, 3072
          %s161 = scalar_lea.vmem [#allocation3], %s160
          %s162 = smul.u32 192, %s17
          %s163 = smul.u32 4, %s16
          %s164 = smul.addr %s162, 8
          %s165 = sadd.s32 %s163, %s164
          %s166 = smul.addr %s165, 4
          %s167 = scalar_lea.vmem %s1, %s166
          // Predicated region
          $region25: #{_lambda_.14} parent=23 // pred_check
            _
          $region26: #{_lambda_.14} parent=23 // pred_check_branch
            %169 = sbr.rel (0) target = $region28
          $region27: #{_lambda_.14} parent=23 // pred_region
            // Predicated region
            $region29: #{_lambda_.14} parent=27 // pred_check
              _
            $region30: #{_lambda_.14} parent=27 // pred_check_branch
              %171 = sbr.rel (0) target = $region32
            $region31: #{_lambda_.14} parent=27 // pred_region
              loop: start=0, step=1, limit=1
              $region33: #{_lambda_.14} parent=31 // loop_pre_header
                _
              $region34: #{_lambda_.14} parent=31 // loop_header
                %s173 = sphi 0, %s177
                %p174 = scmp.ge.s32.totalorder %s173, 1
                %s178 = sphi %s167, %s167
                %s179 = sphi %s161, %s161
              $region35: #{_lambda_.14} parent=31 // loop_header_branch
                %176 = sbr.rel (%p174) target = $region39
              $region36: #{_lambda_.14} parent=31 // loop_body
                %v180 = vld [vmem:[%s178] sm:$0xff]
                %181 = vst [vmem:[%s179] sm:$0xff] %v180
                %v182 = vld [vmem:[%s178 + $0x8] sm:$0xff]
                %183 = vst [vmem:[%s179 + $0x8] sm:$0xff] %v182
                %v184 = vld [vmem:[%s178 + $0x20] sm:$0xff]
                %185 = vst [vmem:[%s179 + $0x10] sm:$0xff] %v184
                %v186 = vld [vmem:[%s178 + $0x28] sm:$0xff]
                %187 = vst [vmem:[%s179 + $0x18] sm:$0xff] %v186
                %v188 = vld [vmem:[%s178 + $0x40] sm:$0xff]
                %189 = vst [vmem:[%s179 + $0x20] sm:$0xff] %v188
                %v190 = vld [vmem:[%s178 + $0x48] sm:$0xff]
                %191 = vst [vmem:[%s179 + $0x28] sm:$0xff] %v190
                %v192 = vld [vmem:[%s178 + $0x60] sm:$0xff]
                %193 = vst [vmem:[%s179 + $0x30] sm:$0xff] %v192
                %v194 = vld [vmem:[%s178 + $0x68] sm:$0xff]
                %195 = vst [vmem:[%s179 + $0x38] sm:$0xff] %v194
                %v196 = vld [vmem:[%s178 + $0x80] sm:$0xff]
                %197 = vst [vmem:[%s179 + $0x40] sm:$0xff] %v196
                %v198 = vld [vmem:[%s178 + $0x88] sm:$0xff]
                %199 = vst [vmem:[%s179 + $0x48] sm:$0xff] %v198
                %v200 = vld [vmem:[%s178 + $0xa0] sm:$0xff]
                %201 = vst [vmem:[%s179 + $0x50] sm:$0xff] %v200
                %v202 = vld [vmem:[%s178 + $0xa8] sm:$0xff]
                %203 = vst [vmem:[%s179 + $0x58] sm:$0xff] %v202
                %v204 = vld [vmem:[%s178 + $0xc0] sm:$0xff]
                %205 = vst [vmem:[%s179 + $0x60] sm:$0xff] %v204
                %v206 = vld [vmem:[%s178 + $0xc8] sm:$0xff]
                %207 = vst [vmem:[%s179 + $0x68] sm:$0xff] %v206
                %v208 = vld [vmem:[%s178 + $0xe0] sm:$0xff]
                %209 = vst [vmem:[%s179 + $0x70] sm:$0xff] %v208
                %v210 = vld [vmem:[%s178 + $0xe8] sm:$0xff]
                %211 = vst [vmem:[%s179 + $0x78] sm:$0xff] %v210
                %v212 = vld [vmem:[%s178 + $0x100] sm:$0xff]
                %213 = vst [vmem:[%s179 + $0x80] sm:$0xff] %v212
                %v214 = vld [vmem:[%s178 + $0x108] sm:$0xff]
                %215 = vst [vmem:[%s179 + $0x88] sm:$0xff] %v214
                %v216 = vld [vmem:[%s178 + $0x120] sm:$0xff]
                %217 = vst [vmem:[%s179 + $0x90] sm:$0xff] %v216
                %v218 = vld [vmem:[%s178 + $0x128] sm:$0xff]
                %219 = vst [vmem:[%s179 + $0x98] sm:$0xff] %v218
                %v220 = vld [vmem:[%s178 + $0x140] sm:$0xff]
                %221 = vst [vmem:[%s179 + $0xa0] sm:$0xff] %v220
                %v222 = vld [vmem:[%s178 + $0x148] sm:$0xff]
                %223 = vst [vmem:[%s179 + $0xa8] sm:$0xff] %v222
                %v224 = vld [vmem:[%s178 + $0x160] sm:$0xff]
                %225 = vst [vmem:[%s179 + $0xb0] sm:$0xff] %v224
                %v226 = vld [vmem:[%s178 + $0x168] sm:$0xff]
                %227 = vst [vmem:[%s179 + $0xb8] sm:$0xff] %v226
                %v228 = vld [vmem:[%s178 + $0x180] sm:$0xff]
                %229 = vst [vmem:[%s179 + $0xc0] sm:$0xff] %v228
                %v230 = vld [vmem:[%s178 + $0x188] sm:$0xff]
                %231 = vst [vmem:[%s179 + $0xc8] sm:$0xff] %v230
                %v232 = vld [vmem:[%s178 + $0x1a0] sm:$0xff]
                %233 = vst [vmem:[%s179 + $0xd0] sm:$0xff] %v232
                %v234 = vld [vmem:[%s178 + $0x1a8] sm:$0xff]
                %235 = vst [vmem:[%s179 + $0xd8] sm:$0xff] %v234
                %v236 = vld [vmem:[%s178 + $0x1c0] sm:$0xff]
                %237 = vst [vmem:[%s179 + $0xe0] sm:$0xff] %v236
                %v238 = vld [vmem:[%s178 + $0x1c8] sm:$0xff]
                %239 = vst [vmem:[%s179 + $0xe8] sm:$0xff] %v238
                %v240 = vld [vmem:[%s178 + $0x1e0] sm:$0xff]
                %241 = vst [vmem:[%s179 + $0xf0] sm:$0xff] %v240
                %v242 = vld [vmem:[%s178 + $0x1e8] sm:$0xff]
                %243 = vst [vmem:[%s179 + $0xf8] sm:$0xff] %v242
                %v244 = vld [vmem:[%s178 + $0x200] sm:$0xff]
                %245 = vst [vmem:[%s179 + $0x100] sm:$0xff] %v244
                %v246 = vld [vmem:[%s178 + $0x208] sm:$0xff]
                %247 = vst [vmem:[%s179 + $0x108] sm:$0xff] %v246
                %v248 = vld [vmem:[%s178 + $0x220] sm:$0xff]
                %249 = vst [vmem:[%s179 + $0x110] sm:$0xff] %v248
                %v250 = vld [vmem:[%s178 + $0x228] sm:$0xff]
                %251 = vst [vmem:[%s179 + $0x118] sm:$0xff] %v250
                %v252 = vld [vmem:[%s178 + $0x240] sm:$0xff]
                %253 = vst [vmem:[%s179 + $0x120] sm:$0xff] %v252
                %v254 = vld [vmem:[%s178 + $0x248] sm:$0xff]
                %255 = vst [vmem:[%s179 + $0x128] sm:$0xff] %v254
                %v256 = vld [vmem:[%s178 + $0x260] sm:$0xff]
                %257 = vst [vmem:[%s179 + $0x130] sm:$0xff] %v256
                %v258 = vld [vmem:[%s178 + $0x268] sm:$0xff]
                %259 = vst [vmem:[%s179 + $0x138] sm:$0xff] %v258
                %v260 = vld [vmem:[%s178 + $0x280] sm:$0xff]
                %261 = vst [vmem:[%s179 + $0x140] sm:$0xff] %v260
                %v262 = vld [vmem:[%s178 + $0x288] sm:$0xff]
                %263 = vst [vmem:[%s179 + $0x148] sm:$0xff] %v262
                %v264 = vld [vmem:[%s178 + $0x2a0] sm:$0xff]
                %265 = vst [vmem:[%s179 + $0x150] sm:$0xff] %v264
                %v266 = vld [vmem:[%s178 + $0x2a8] sm:$0xff]
                %267 = vst [vmem:[%s179 + $0x158] sm:$0xff] %v266
                %v268 = vld [vmem:[%s178 + $0x2c0] sm:$0xff]
                %269 = vst [vmem:[%s179 + $0x160] sm:$0xff] %v268
                %v270 = vld [vmem:[%s178 + $0x2c8] sm:$0xff]
                %271 = vst [vmem:[%s179 + $0x168] sm:$0xff] %v270
                %v272 = vld [vmem:[%s178 + $0x2e0] sm:$0xff]
                %273 = vst [vmem:[%s179 + $0x170] sm:$0xff] %v272
                %v274 = vld [vmem:[%s178 + $0x2e8] sm:$0xff]
                %275 = vst [vmem:[%s179 + $0x178] sm:$0xff] %v274
                %v276 = vld [vmem:[%s178 + $0x300] sm:$0xff]
                %277 = vst [vmem:[%s179 + $0x180] sm:$0xff] %v276
                %v278 = vld [vmem:[%s178 + $0x308] sm:$0xff]
                %279 = vst [vmem:[%s179 + $0x188] sm:$0xff] %v278
                %v280 = vld [vmem:[%s178 + $0x320] sm:$0xff]
                %281 = vst [vmem:[%s179 + $0x190] sm:$0xff] %v280
                %v282 = vld [vmem:[%s178 + $0x328] sm:$0xff]
                %283 = vst [vmem:[%s179 + $0x198] sm:$0xff] %v282
                %v284 = vld [vmem:[%s178 + $0x340] sm:$0xff]
                %285 = vst [vmem:[%s179 + $0x1a0] sm:$0xff] %v284
                %v286 = vld [vmem:[%s178 + $0x348] sm:$0xff]
                %287 = vst [vmem:[%s179 + $0x1a8] sm:$0xff] %v286
                %v288 = vld [vmem:[%s178 + $0x360] sm:$0xff]
                %289 = vst [vmem:[%s179 + $0x1b0] sm:$0xff] %v288
                %v290 = vld [vmem:[%s178 + $0x368] sm:$0xff]
                %291 = vst [vmem:[%s179 + $0x1b8] sm:$0xff] %v290
                %v292 = vld [vmem:[%s178 + $0x380] sm:$0xff]
                %293 = vst [vmem:[%s179 + $0x1c0] sm:$0xff] %v292
                %v294 = vld [vmem:[%s178 + $0x388] sm:$0xff]
                %295 = vst [vmem:[%s179 + $0x1c8] sm:$0xff] %v294
                %v296 = vld [vmem:[%s178 + $0x3a0] sm:$0xff]
                %297 = vst [vmem:[%s179 + $0x1d0] sm:$0xff] %v296
                %v298 = vld [vmem:[%s178 + $0x3a8] sm:$0xff]
                %299 = vst [vmem:[%s179 + $0x1d8] sm:$0xff] %v298
                %v300 = vld [vmem:[%s178 + $0x3c0] sm:$0xff]
                %301 = vst [vmem:[%s179 + $0x1e0] sm:$0xff] %v300
                %v302 = vld [vmem:[%s178 + $0x3c8] sm:$0xff]
                %303 = vst [vmem:[%s179 + $0x1e8] sm:$0xff] %v302
                %v304 = vld [vmem:[%s178 + $0x3e0] sm:$0xff]
                %305 = vst [vmem:[%s179 + $0x1f0] sm:$0xff] %v304
                %v306 = vld [vmem:[%s178 + $0x3e8] sm:$0xff]
                %307 = vst [vmem:[%s179 + $0x1f8] sm:$0xff] %v306
                %v308 = vld [vmem:[%s178 + $0x400] sm:$0xff]
                %309 = vst [vmem:[%s179 + $0x200] sm:$0xff] %v308
                %v310 = vld [vmem:[%s178 + $0x408] sm:$0xff]
                %311 = vst [vmem:[%s179 + $0x208] sm:$0xff] %v310
                %v312 = vld [vmem:[%s178 + $0x420] sm:$0xff]
                %313 = vst [vmem:[%s179 + $0x210] sm:$0xff] %v312
                %v314 = vld [vmem:[%s178 + $0x428] sm:$0xff]
                %315 = vst [vmem:[%s179 + $0x218] sm:$0xff] %v314
                %v316 = vld [vmem:[%s178 + $0x440] sm:$0xff]
                %317 = vst [vmem:[%s179 + $0x220] sm:$0xff] %v316
                %v318 = vld [vmem:[%s178 + $0x448] sm:$0xff]
                %319 = vst [vmem:[%s179 + $0x228] sm:$0xff] %v318
                %v320 = vld [vmem:[%s178 + $0x460] sm:$0xff]
                %321 = vst [vmem:[%s179 + $0x230] sm:$0xff] %v320
                %v322 = vld [vmem:[%s178 + $0x468] sm:$0xff]
                %323 = vst [vmem:[%s179 + $0x238] sm:$0xff] %v322
                %v324 = vld [vmem:[%s178 + $0x480] sm:$0xff]
                %325 = vst [vmem:[%s179 + $0x240] sm:$0xff] %v324
                %v326 = vld [vmem:[%s178 + $0x488] sm:$0xff]
                %327 = vst [vmem:[%s179 + $0x248] sm:$0xff] %v326
                %v328 = vld [vmem:[%s178 + $0x4a0] sm:$0xff]
                %329 = vst [vmem:[%s179 + $0x250] sm:$0xff] %v328
                %v330 = vld [vmem:[%s178 + $0x4a8] sm:$0xff]
                %331 = vst [vmem:[%s179 + $0x258] sm:$0xff] %v330
                %v332 = vld [vmem:[%s178 + $0x4c0] sm:$0xff]
                %333 = vst [vmem:[%s179 + $0x260] sm:$0xff] %v332
                %v334 = vld [vmem:[%s178 + $0x4c8] sm:$0xff]
                %335 = vst [vmem:[%s179 + $0x268] sm:$0xff] %v334
                %v336 = vld [vmem:[%s178 + $0x4e0] sm:$0xff]
                %337 = vst [vmem:[%s179 + $0x270] sm:$0xff] %v336
                %v338 = vld [vmem:[%s178 + $0x4e8] sm:$0xff]
                %339 = vst [vmem:[%s179 + $0x278] sm:$0xff] %v338
                %v340 = vld [vmem:[%s178 + $0x500] sm:$0xff]
                %341 = vst [vmem:[%s179 + $0x280] sm:$0xff] %v340
                %v342 = vld [vmem:[%s178 + $0x508] sm:$0xff]
                %343 = vst [vmem:[%s179 + $0x288] sm:$0xff] %v342
                %v344 = vld [vmem:[%s178 + $0x520] sm:$0xff]
                %345 = vst [vmem:[%s179 + $0x290] sm:$0xff] %v344
                %v346 = vld [vmem:[%s178 + $0x528] sm:$0xff]
                %347 = vst [vmem:[%s179 + $0x298] sm:$0xff] %v346
                %v348 = vld [vmem:[%s178 + $0x540] sm:$0xff]
                %349 = vst [vmem:[%s179 + $0x2a0] sm:$0xff] %v348
                %v350 = vld [vmem:[%s178 + $0x548] sm:$0xff]
                %351 = vst [vmem:[%s179 + $0x2a8] sm:$0xff] %v350
                %v352 = vld [vmem:[%s178 + $0x560] sm:$0xff]
                %353 = vst [vmem:[%s179 + $0x2b0] sm:$0xff] %v352
                %v354 = vld [vmem:[%s178 + $0x568] sm:$0xff]
                %355 = vst [vmem:[%s179 + $0x2b8] sm:$0xff] %v354
                %v356 = vld [vmem:[%s178 + $0x580] sm:$0xff]
                %357 = vst [vmem:[%s179 + $0x2c0] sm:$0xff] %v356
                %v358 = vld [vmem:[%s178 + $0x588] sm:$0xff]
                %359 = vst [vmem:[%s179 + $0x2c8] sm:$0xff] %v358
                %v360 = vld [vmem:[%s178 + $0x5a0] sm:$0xff]
                %361 = vst [vmem:[%s179 + $0x2d0] sm:$0xff] %v360
                %v362 = vld [vmem:[%s178 + $0x5a8] sm:$0xff]
                %363 = vst [vmem:[%s179 + $0x2d8] sm:$0xff] %v362
                %v364 = vld [vmem:[%s178 + $0x5c0] sm:$0xff]
                %365 = vst [vmem:[%s179 + $0x2e0] sm:$0xff] %v364
                %v366 = vld [vmem:[%s178 + $0x5c8] sm:$0xff]
                %367 = vst [vmem:[%s179 + $0x2e8] sm:$0xff] %v366
                %v368 = vld [vmem:[%s178 + $0x5e0] sm:$0xff]
                %369 = vst [vmem:[%s179 + $0x2f0] sm:$0xff] %v368
                %v370 = vld [vmem:[%s178 + $0x5e8] sm:$0xff]
                %371 = vst [vmem:[%s179 + $0x2f8] sm:$0xff] %v370
                %v372 = vld [vmem:[%s178 + $0x600] sm:$0xff]
                %373 = vst [vmem:[%s179 + $0x300] sm:$0xff] %v372
                %v374 = vld [vmem:[%s178 + $0x608] sm:$0xff]
                %375 = vst [vmem:[%s179 + $0x308] sm:$0xff] %v374
                %v376 = vld [vmem:[%s178 + $0x620] sm:$0xff]
                %377 = vst [vmem:[%s179 + $0x310] sm:$0xff] %v376
                %v378 = vld [vmem:[%s178 + $0x628] sm:$0xff]
                %379 = vst [vmem:[%s179 + $0x318] sm:$0xff] %v378
                %v380 = vld [vmem:[%s178 + $0x640] sm:$0xff]
                %381 = vst [vmem:[%s179 + $0x320] sm:$0xff] %v380
                %v382 = vld [vmem:[%s178 + $0x648] sm:$0xff]
                %383 = vst [vmem:[%s179 + $0x328] sm:$0xff] %v382
                %v384 = vld [vmem:[%s178 + $0x660] sm:$0xff]
                %385 = vst [vmem:[%s179 + $0x330] sm:$0xff] %v384
                %v386 = vld [vmem:[%s178 + $0x668] sm:$0xff]
                %387 = vst [vmem:[%s179 + $0x338] sm:$0xff] %v386
                %v388 = vld [vmem:[%s178 + $0x680] sm:$0xff]
                %389 = vst [vmem:[%s179 + $0x340] sm:$0xff] %v388
                %v390 = vld [vmem:[%s178 + $0x688] sm:$0xff]
                %391 = vst [vmem:[%s179 + $0x348] sm:$0xff] %v390
                %v392 = vld [vmem:[%s178 + $0x6a0] sm:$0xff]
                %393 = vst [vmem:[%s179 + $0x350] sm:$0xff] %v392
                %v394 = vld [vmem:[%s178 + $0x6a8] sm:$0xff]
                %395 = vst [vmem:[%s179 + $0x358] sm:$0xff] %v394
                %v396 = vld [vmem:[%s178 + $0x6c0] sm:$0xff]
                %397 = vst [vmem:[%s179 + $0x360] sm:$0xff] %v396
                %v398 = vld [vmem:[%s178 + $0x6c8] sm:$0xff]
                %399 = vst [vmem:[%s179 + $0x368] sm:$0xff] %v398
                %v400 = vld [vmem:[%s178 + $0x6e0] sm:$0xff]
                %401 = vst [vmem:[%s179 + $0x370] sm:$0xff] %v400
                %v402 = vld [vmem:[%s178 + $0x6e8] sm:$0xff]
                %403 = vst [vmem:[%s179 + $0x378] sm:$0xff] %v402
                %v404 = vld [vmem:[%s178 + $0x700] sm:$0xff]
                %405 = vst [vmem:[%s179 + $0x380] sm:$0xff] %v404
                %v406 = vld [vmem:[%s178 + $0x708] sm:$0xff]
                %407 = vst [vmem:[%s179 + $0x388] sm:$0xff] %v406
                %v408 = vld [vmem:[%s178 + $0x720] sm:$0xff]
                %409 = vst [vmem:[%s179 + $0x390] sm:$0xff] %v408
                %v410 = vld [vmem:[%s178 + $0x728] sm:$0xff]
                %411 = vst [vmem:[%s179 + $0x398] sm:$0xff] %v410
                %v412 = vld [vmem:[%s178 + $0x740] sm:$0xff]
                %413 = vst [vmem:[%s179 + $0x3a0] sm:$0xff] %v412
                %v414 = vld [vmem:[%s178 + $0x748] sm:$0xff]
                %415 = vst [vmem:[%s179 + $0x3a8] sm:$0xff] %v414
                %v416 = vld [vmem:[%s178 + $0x760] sm:$0xff]
                %417 = vst [vmem:[%s179 + $0x3b0] sm:$0xff] %v416
                %v418 = vld [vmem:[%s178 + $0x768] sm:$0xff]
                %419 = vst [vmem:[%s179 + $0x3b8] sm:$0xff] %v418
                %v420 = vld [vmem:[%s178 + $0x780] sm:$0xff]
                %421 = vst [vmem:[%s179 + $0x3c0] sm:$0xff] %v420
                %v422 = vld [vmem:[%s178 + $0x788] sm:$0xff]
                %423 = vst [vmem:[%s179 + $0x3c8] sm:$0xff] %v422
                %v424 = vld [vmem:[%s178 + $0x7a0] sm:$0xff]
                %425 = vst [vmem:[%s179 + $0x3d0] sm:$0xff] %v424
                %v426 = vld [vmem:[%s178 + $0x7a8] sm:$0xff]
                %427 = vst [vmem:[%s179 + $0x3d8] sm:$0xff] %v426
                %v428 = vld [vmem:[%s178 + $0x7c0] sm:$0xff]
                %429 = vst [vmem:[%s179 + $0x3e0] sm:$0xff] %v428
                %v430 = vld [vmem:[%s178 + $0x7c8] sm:$0xff]
                %431 = vst [vmem:[%s179 + $0x3e8] sm:$0xff] %v430
                %v432 = vld [vmem:[%s178 + $0x7e0] sm:$0xff]
                %433 = vst [vmem:[%s179 + $0x3f0] sm:$0xff] %v432
                %v434 = vld [vmem:[%s178 + $0x7e8] sm:$0xff]
                %435 = vst [vmem:[%s179 + $0x3f8] sm:$0xff] %v434
                %v436 = vld [vmem:[%s178 + $0x800] sm:$0xff]
                %437 = vst [vmem:[%s179 + $0x400] sm:$0xff] %v436
                %v438 = vld [vmem:[%s178 + $0x808] sm:$0xff]
                %439 = vst [vmem:[%s179 + $0x408] sm:$0xff] %v438
                %v440 = vld [vmem:[%s178 + $0x820] sm:$0xff]
                %441 = vst [vmem:[%s179 + $0x410] sm:$0xff] %v440
                %v442 = vld [vmem:[%s178 + $0x828] sm:$0xff]
                %443 = vst [vmem:[%s179 + $0x418] sm:$0xff] %v442
                %v444 = vld [vmem:[%s178 + $0x840] sm:$0xff]
                %445 = vst [vmem:[%s179 + $0x420] sm:$0xff] %v444
                %v446 = vld [vmem:[%s178 + $0x848] sm:$0xff]
                %447 = vst [vmem:[%s179 + $0x428] sm:$0xff] %v446
                %v448 = vld [vmem:[%s178 + $0x860] sm:$0xff]
                %449 = vst [vmem:[%s179 + $0x430] sm:$0xff] %v448
                %v450 = vld [vmem:[%s178 + $0x868] sm:$0xff]
                %451 = vst [vmem:[%s179 + $0x438] sm:$0xff] %v450
                %v452 = vld [vmem:[%s178 + $0x880] sm:$0xff]
                %453 = vst [vmem:[%s179 + $0x440] sm:$0xff] %v452
                %v454 = vld [vmem:[%s178 + $0x888] sm:$0xff]
                %455 = vst [vmem:[%s179 + $0x448] sm:$0xff] %v454
                %v456 = vld [vmem:[%s178 + $0x8a0] sm:$0xff]
                %457 = vst [vmem:[%s179 + $0x450] sm:$0xff] %v456
                %v458 = vld [vmem:[%s178 + $0x8a8] sm:$0xff]
                %459 = vst [vmem:[%s179 + $0x458] sm:$0xff] %v458
                %v460 = vld [vmem:[%s178 + $0x8c0] sm:$0xff]
                %461 = vst [vmem:[%s179 + $0x460] sm:$0xff] %v460
                %v462 = vld [vmem:[%s178 + $0x8c8] sm:$0xff]
                %463 = vst [vmem:[%s179 + $0x468] sm:$0xff] %v462
                %v464 = vld [vmem:[%s178 + $0x8e0] sm:$0xff]
                %465 = vst [vmem:[%s179 + $0x470] sm:$0xff] %v464
                %v466 = vld [vmem:[%s178 + $0x8e8] sm:$0xff]
                %467 = vst [vmem:[%s179 + $0x478] sm:$0xff] %v466
                %v468 = vld [vmem:[%s178 + $0x900] sm:$0xff]
                %469 = vst [vmem:[%s179 + $0x480] sm:$0xff] %v468
                %v470 = vld [vmem:[%s178 + $0x908] sm:$0xff]
                %471 = vst [vmem:[%s179 + $0x488] sm:$0xff] %v470
                %v472 = vld [vmem:[%s178 + $0x920] sm:$0xff]
                %473 = vst [vmem:[%s179 + $0x490] sm:$0xff] %v472
                %v474 = vld [vmem:[%s178 + $0x928] sm:$0xff]
                %475 = vst [vmem:[%s179 + $0x498] sm:$0xff] %v474
                %v476 = vld [vmem:[%s178 + $0x940] sm:$0xff]
                %477 = vst [vmem:[%s179 + $0x4a0] sm:$0xff] %v476
                %v478 = vld [vmem:[%s178 + $0x948] sm:$0xff]
                %479 = vst [vmem:[%s179 + $0x4a8] sm:$0xff] %v478
                %v480 = vld [vmem:[%s178 + $0x960] sm:$0xff]
                %481 = vst [vmem:[%s179 + $0x4b0] sm:$0xff] %v480
                %v482 = vld [vmem:[%s178 + $0x968] sm:$0xff]
                %483 = vst [vmem:[%s179 + $0x4b8] sm:$0xff] %v482
                %v484 = vld [vmem:[%s178 + $0x980] sm:$0xff]
                %485 = vst [vmem:[%s179 + $0x4c0] sm:$0xff] %v484
                %v486 = vld [vmem:[%s178 + $0x988] sm:$0xff]
                %487 = vst [vmem:[%s179 + $0x4c8] sm:$0xff] %v486
                %v488 = vld [vmem:[%s178 + $0x9a0] sm:$0xff]
                %489 = vst [vmem:[%s179 + $0x4d0] sm:$0xff] %v488
                %v490 = vld [vmem:[%s178 + $0x9a8] sm:$0xff]
                %491 = vst [vmem:[%s179 + $0x4d8] sm:$0xff] %v490
                %v492 = vld [vmem:[%s178 + $0x9c0] sm:$0xff]
                %493 = vst [vmem:[%s179 + $0x4e0] sm:$0xff] %v492
                %v494 = vld [vmem:[%s178 + $0x9c8] sm:$0xff]
                %495 = vst [vmem:[%s179 + $0x4e8] sm:$0xff] %v494
                %v496 = vld [vmem:[%s178 + $0x9e0] sm:$0xff]
                %497 = vst [vmem:[%s179 + $0x4f0] sm:$0xff] %v496
                %v498 = vld [vmem:[%s178 + $0x9e8] sm:$0xff]
                %499 = vst [vmem:[%s179 + $0x4f8] sm:$0xff] %v498
                %v500 = vld [vmem:[%s178 + $0xa00] sm:$0xff]
                %501 = vst [vmem:[%s179 + $0x500] sm:$0xff] %v500
                %v502 = vld [vmem:[%s178 + $0xa08] sm:$0xff]
                %503 = vst [vmem:[%s179 + $0x508] sm:$0xff] %v502
                %v504 = vld [vmem:[%s178 + $0xa20] sm:$0xff]
                %505 = vst [vmem:[%s179 + $0x510] sm:$0xff] %v504
                %v506 = vld [vmem:[%s178 + $0xa28] sm:$0xff]
                %507 = vst [vmem:[%s179 + $0x518] sm:$0xff] %v506
                %v508 = vld [vmem:[%s178 + $0xa40] sm:$0xff]
                %509 = vst [vmem:[%s179 + $0x520] sm:$0xff] %v508
                %v510 = vld [vmem:[%s178 + $0xa48] sm:$0xff]
                %511 = vst [vmem:[%s179 + $0x528] sm:$0xff] %v510
                %v512 = vld [vmem:[%s178 + $0xa60] sm:$0xff]
                %513 = vst [vmem:[%s179 + $0x530] sm:$0xff] %v512
                %v514 = vld [vmem:[%s178 + $0xa68] sm:$0xff]
                %515 = vst [vmem:[%s179 + $0x538] sm:$0xff] %v514
                %v516 = vld [vmem:[%s178 + $0xa80] sm:$0xff]
                %517 = vst [vmem:[%s179 + $0x540] sm:$0xff] %v516
                %v518 = vld [vmem:[%s178 + $0xa88] sm:$0xff]
                %519 = vst [vmem:[%s179 + $0x548] sm:$0xff] %v518
                %v520 = vld [vmem:[%s178 + $0xaa0] sm:$0xff]
                %521 = vst [vmem:[%s179 + $0x550] sm:$0xff] %v520
                %v522 = vld [vmem:[%s178 + $0xaa8] sm:$0xff]
                %523 = vst [vmem:[%s179 + $0x558] sm:$0xff] %v522
                %v524 = vld [vmem:[%s178 + $0xac0] sm:$0xff]
                %525 = vst [vmem:[%s179 + $0x560] sm:$0xff] %v524
                %v526 = vld [vmem:[%s178 + $0xac8] sm:$0xff]
                %527 = vst [vmem:[%s179 + $0x568] sm:$0xff] %v526
                %v528 = vld [vmem:[%s178 + $0xae0] sm:$0xff]
                %529 = vst [vmem:[%s179 + $0x570] sm:$0xff] %v528
                %v530 = vld [vmem:[%s178 + $0xae8] sm:$0xff]
                %531 = vst [vmem:[%s179 + $0x578] sm:$0xff] %v530
                %v532 = vld [vmem:[%s178 + $0xb00] sm:$0xff]
                %533 = vst [vmem:[%s179 + $0x580] sm:$0xff] %v532
                %v534 = vld [vmem:[%s178 + $0xb08] sm:$0xff]
                %535 = vst [vmem:[%s179 + $0x588] sm:$0xff] %v534
                %v536 = vld [vmem:[%s178 + $0xb20] sm:$0xff]
                %537 = vst [vmem:[%s179 + $0x590] sm:$0xff] %v536
                %v538 = vld [vmem:[%s178 + $0xb28] sm:$0xff]
                %539 = vst [vmem:[%s179 + $0x598] sm:$0xff] %v538
                %v540 = vld [vmem:[%s178 + $0xb40] sm:$0xff]
                %541 = vst [vmem:[%s179 + $0x5a0] sm:$0xff] %v540
                %v542 = vld [vmem:[%s178 + $0xb48] sm:$0xff]
                %543 = vst [vmem:[%s179 + $0x5a8] sm:$0xff] %v542
                %v544 = vld [vmem:[%s178 + $0xb60] sm:$0xff]
                %545 = vst [vmem:[%s179 + $0x5b0] sm:$0xff] %v544
                %v546 = vld [vmem:[%s178 + $0xb68] sm:$0xff]
                %547 = vst [vmem:[%s179 + $0x5b8] sm:$0xff] %v546
                %v548 = vld [vmem:[%s178 + $0xb80] sm:$0xff]
                %549 = vst [vmem:[%s179 + $0x5c0] sm:$0xff] %v548
                %v550 = vld [vmem:[%s178 + $0xb88] sm:$0xff]
                %551 = vst [vmem:[%s179 + $0x5c8] sm:$0xff] %v550
                %v552 = vld [vmem:[%s178 + $0xba0] sm:$0xff]
                %553 = vst [vmem:[%s179 + $0x5d0] sm:$0xff] %v552
                %v554 = vld [vmem:[%s178 + $0xba8] sm:$0xff]
                %555 = vst [vmem:[%s179 + $0x5d8] sm:$0xff] %v554
                %v556 = vld [vmem:[%s178 + $0xbc0] sm:$0xff]
                %557 = vst [vmem:[%s179 + $0x5e0] sm:$0xff] %v556
                %v558 = vld [vmem:[%s178 + $0xbc8] sm:$0xff]
                %559 = vst [vmem:[%s179 + $0x5e8] sm:$0xff] %v558
                %v560 = vld [vmem:[%s178 + $0xbe0] sm:$0xff]
                %561 = vst [vmem:[%s179 + $0x5f0] sm:$0xff] %v560
                %v562 = vld [vmem:[%s178 + $0xbe8] sm:$0xff]
                %563 = vst [vmem:[%s179 + $0x5f8] sm:$0xff] %v562
                %v564 = vld [vmem:[%s178 + $0xc00] sm:$0xff]
                %565 = vst [vmem:[%s179 + $0x600] sm:$0xff] %v564
                %v566 = vld [vmem:[%s178 + $0xc08] sm:$0xff]
                %567 = vst [vmem:[%s179 + $0x608] sm:$0xff] %v566
                %v568 = vld [vmem:[%s178 + $0xc20] sm:$0xff]
                %569 = vst [vmem:[%s179 + $0x610] sm:$0xff] %v568
                %v570 = vld [vmem:[%s178 + $0xc28] sm:$0xff]
                %571 = vst [vmem:[%s179 + $0x618] sm:$0xff] %v570
                %v572 = vld [vmem:[%s178 + $0xc40] sm:$0xff]
                %573 = vst [vmem:[%s179 + $0x620] sm:$0xff] %v572
                %v574 = vld [vmem:[%s178 + $0xc48] sm:$0xff]
                %575 = vst [vmem:[%s179 + $0x628] sm:$0xff] %v574
                %v576 = vld [vmem:[%s178 + $0xc60] sm:$0xff]
                %577 = vst [vmem:[%s179 + $0x630] sm:$0xff] %v576
                %v578 = vld [vmem:[%s178 + $0xc68] sm:$0xff]
                %579 = vst [vmem:[%s179 + $0x638] sm:$0xff] %v578
                %v580 = vld [vmem:[%s178 + $0xc80] sm:$0xff]
                %581 = vst [vmem:[%s179 + $0x640] sm:$0xff] %v580
                %v582 = vld [vmem:[%s178 + $0xc88] sm:$0xff]
                %583 = vst [vmem:[%s179 + $0x648] sm:$0xff] %v582
                %v584 = vld [vmem:[%s178 + $0xca0] sm:$0xff]
                %585 = vst [vmem:[%s179 + $0x650] sm:$0xff] %v584
                %v586 = vld [vmem:[%s178 + $0xca8] sm:$0xff]
                %587 = vst [vmem:[%s179 + $0x658] sm:$0xff] %v586
                %v588 = vld [vmem:[%s178 + $0xcc0] sm:$0xff]
                %589 = vst [vmem:[%s179 + $0x660] sm:$0xff] %v588
                %v590 = vld [vmem:[%s178 + $0xcc8] sm:$0xff]
                %591 = vst [vmem:[%s179 + $0x668] sm:$0xff] %v590
                %v592 = vld [vmem:[%s178 + $0xce0] sm:$0xff]
                %593 = vst [vmem:[%s179 + $0x670] sm:$0xff] %v592
                %v594 = vld [vmem:[%s178 + $0xce8] sm:$0xff]
                %595 = vst [vmem:[%s179 + $0x678] sm:$0xff] %v594
                %v596 = vld [vmem:[%s178 + $0xd00] sm:$0xff]
                %597 = vst [vmem:[%s179 + $0x680] sm:$0xff] %v596
                %v598 = vld [vmem:[%s178 + $0xd08] sm:$0xff]
                %599 = vst [vmem:[%s179 + $0x688] sm:$0xff] %v598
                %v600 = vld [vmem:[%s178 + $0xd20] sm:$0xff]
                %601 = vst [vmem:[%s179 + $0x690] sm:$0xff] %v600
                %v602 = vld [vmem:[%s178 + $0xd28] sm:$0xff]
                %603 = vst [vmem:[%s179 + $0x698] sm:$0xff] %v602
                %v604 = vld [vmem:[%s178 + $0xd40] sm:$0xff]
                %605 = vst [vmem:[%s179 + $0x6a0] sm:$0xff] %v604
                %v606 = vld [vmem:[%s178 + $0xd48] sm:$0xff]
                %607 = vst [vmem:[%s179 + $0x6a8] sm:$0xff] %v606
                %v608 = vld [vmem:[%s178 + $0xd60] sm:$0xff]
                %609 = vst [vmem:[%s179 + $0x6b0] sm:$0xff] %v608
                %v610 = vld [vmem:[%s178 + $0xd68] sm:$0xff]
                %611 = vst [vmem:[%s179 + $0x6b8] sm:$0xff] %v610
                %v612 = vld [vmem:[%s178 + $0xd80] sm:$0xff]
                %613 = vst [vmem:[%s179 + $0x6c0] sm:$0xff] %v612
                %v614 = vld [vmem:[%s178 + $0xd88] sm:$0xff]
                %615 = vst [vmem:[%s179 + $0x6c8] sm:$0xff] %v614
                %v616 = vld [vmem:[%s178 + $0xda0] sm:$0xff]
                %617 = vst [vmem:[%s179 + $0x6d0] sm:$0xff] %v616
                %v618 = vld [vmem:[%s178 + $0xda8] sm:$0xff]
                %619 = vst [vmem:[%s179 + $0x6d8] sm:$0xff] %v618
                %v620 = vld [vmem:[%s178 + $0xdc0] sm:$0xff]
                %621 = vst [vmem:[%s179 + $0x6e0] sm:$0xff] %v620
                %v622 = vld [vmem:[%s178 + $0xdc8] sm:$0xff]
                %623 = vst [vmem:[%s179 + $0x6e8] sm:$0xff] %v622
                %v624 = vld [vmem:[%s178 + $0xde0] sm:$0xff]
                %625 = vst [vmem:[%s179 + $0x6f0] sm:$0xff] %v624
                %v626 = vld [vmem:[%s178 + $0xde8] sm:$0xff]
                %627 = vst [vmem:[%s179 + $0x6f8] sm:$0xff] %v626
                %v628 = vld [vmem:[%s178 + $0xe00] sm:$0xff]
                %629 = vst [vmem:[%s179 + $0x700] sm:$0xff] %v628
                %v630 = vld [vmem:[%s178 + $0xe08] sm:$0xff]
                %631 = vst [vmem:[%s179 + $0x708] sm:$0xff] %v630
                %v632 = vld [vmem:[%s178 + $0xe20] sm:$0xff]
                %633 = vst [vmem:[%s179 + $0x710] sm:$0xff] %v632
                %v634 = vld [vmem:[%s178 + $0xe28] sm:$0xff]
                %635 = vst [vmem:[%s179 + $0x718] sm:$0xff] %v634
                %v636 = vld [vmem:[%s178 + $0xe40] sm:$0xff]
                %637 = vst [vmem:[%s179 + $0x720] sm:$0xff] %v636
                %v638 = vld [vmem:[%s178 + $0xe48] sm:$0xff]
                %639 = vst [vmem:[%s179 + $0x728] sm:$0xff] %v638
                %v640 = vld [vmem:[%s178 + $0xe60] sm:$0xff]
                %641 = vst [vmem:[%s179 + $0x730] sm:$0xff] %v640
                %v642 = vld [vmem:[%s178 + $0xe68] sm:$0xff]
                %643 = vst [vmem:[%s179 + $0x738] sm:$0xff] %v642
                %v644 = vld [vmem:[%s178 + $0xe80] sm:$0xff]
                %645 = vst [vmem:[%s179 + $0x740] sm:$0xff] %v644
                %v646 = vld [vmem:[%s178 + $0xe88] sm:$0xff]
                %647 = vst [vmem:[%s179 + $0x748] sm:$0xff] %v646
                %v648 = vld [vmem:[%s178 + $0xea0] sm:$0xff]
                %649 = vst [vmem:[%s179 + $0x750] sm:$0xff] %v648
                %v650 = vld [vmem:[%s178 + $0xea8] sm:$0xff]
                %651 = vst [vmem:[%s179 + $0x758] sm:$0xff] %v650
                %v652 = vld [vmem:[%s178 + $0xec0] sm:$0xff]
                %653 = vst [vmem:[%s179 + $0x760] sm:$0xff] %v652
                %v654 = vld [vmem:[%s178 + $0xec8] sm:$0xff]
                %655 = vst [vmem:[%s179 + $0x768] sm:$0xff] %v654
                %v656 = vld [vmem:[%s178 + $0xee0] sm:$0xff]
                %657 = vst [vmem:[%s179 + $0x770] sm:$0xff] %v656
                %v658 = vld [vmem:[%s178 + $0xee8] sm:$0xff]
                %659 = vst [vmem:[%s179 + $0x778] sm:$0xff] %v658
                %v660 = vld [vmem:[%s178 + $0xf00] sm:$0xff]
                %661 = vst [vmem:[%s179 + $0x780] sm:$0xff] %v660
                %v662 = vld [vmem:[%s178 + $0xf08] sm:$0xff]
                %663 = vst [vmem:[%s179 + $0x788] sm:$0xff] %v662
                %v664 = vld [vmem:[%s178 + $0xf20] sm:$0xff]
                %665 = vst [vmem:[%s179 + $0x790] sm:$0xff] %v664
                %v666 = vld [vmem:[%s178 + $0xf28] sm:$0xff]
                %667 = vst [vmem:[%s179 + $0x798] sm:$0xff] %v666
                %v668 = vld [vmem:[%s178 + $0xf40] sm:$0xff]
                %669 = vst [vmem:[%s179 + $0x7a0] sm:$0xff] %v668
                %v670 = vld [vmem:[%s178 + $0xf48] sm:$0xff]
                %671 = vst [vmem:[%s179 + $0x7a8] sm:$0xff] %v670
                %v672 = vld [vmem:[%s178 + $0xf60] sm:$0xff]
                %673 = vst [vmem:[%s179 + $0x7b0] sm:$0xff] %v672
                %v674 = vld [vmem:[%s178 + $0xf68] sm:$0xff]
                %675 = vst [vmem:[%s179 + $0x7b8] sm:$0xff] %v674
                %v676 = vld [vmem:[%s178 + $0xf80] sm:$0xff]
                %677 = vst [vmem:[%s179 + $0x7c0] sm:$0xff] %v676
                %v678 = vld [vmem:[%s178 + $0xf88] sm:$0xff]
                %679 = vst [vmem:[%s179 + $0x7c8] sm:$0xff] %v678
                %v680 = vld [vmem:[%s178 + $0xfa0] sm:$0xff]
                %681 = vst [vmem:[%s179 + $0x7d0] sm:$0xff] %v680
                %v682 = vld [vmem:[%s178 + $0xfa8] sm:$0xff]
                %683 = vst [vmem:[%s179 + $0x7d8] sm:$0xff] %v682
                %v684 = vld [vmem:[%s178 + $0xfc0] sm:$0xff]
                %685 = vst [vmem:[%s179 + $0x7e0] sm:$0xff] %v684
                %v686 = vld [vmem:[%s178 + $0xfc8] sm:$0xff]
                %687 = vst [vmem:[%s179 + $0x7e8] sm:$0xff] %v686
                %v688 = vld [vmem:[%s178 + $0xfe0] sm:$0xff]
                %689 = vst [vmem:[%s179 + $0x7f0] sm:$0xff] %v688
                %v690 = vld [vmem:[%s178 + $0xfe8] sm:$0xff]
                %691 = vst [vmem:[%s179 + $0x7f8] sm:$0xff] %v690
                %v692 = vld [vmem:[%s178 + $0x1000] sm:$0xff]
                %693 = vst [vmem:[%s179 + $0x800] sm:$0xff] %v692
                %v694 = vld [vmem:[%s178 + $0x1008] sm:$0xff]
                %695 = vst [vmem:[%s179 + $0x808] sm:$0xff] %v694
                %v696 = vld [vmem:[%s178 + $0x1020] sm:$0xff]
                %697 = vst [vmem:[%s179 + $0x810] sm:$0xff] %v696
                %v698 = vld [vmem:[%s178 + $0x1028] sm:$0xff]
                %699 = vst [vmem:[%s179 + $0x818] sm:$0xff] %v698
                %v700 = vld [vmem:[%s178 + $0x1040] sm:$0xff]
                %701 = vst [vmem:[%s179 + $0x820] sm:$0xff] %v700
                %v702 = vld [vmem:[%s178 + $0x1048] sm:$0xff]
                %703 = vst [vmem:[%s179 + $0x828] sm:$0xff] %v702
                %v704 = vld [vmem:[%s178 + $0x1060] sm:$0xff]
                %705 = vst [vmem:[%s179 + $0x830] sm:$0xff] %v704
                %v706 = vld [vmem:[%s178 + $0x1068] sm:$0xff]
                %707 = vst [vmem:[%s179 + $0x838] sm:$0xff] %v706
                %v708 = vld [vmem:[%s178 + $0x1080] sm:$0xff]
                %709 = vst [vmem:[%s179 + $0x840] sm:$0xff] %v708
                %v710 = vld [vmem:[%s178 + $0x1088] sm:$0xff]
                %711 = vst [vmem:[%s179 + $0x848] sm:$0xff] %v710
                %v712 = vld [vmem:[%s178 + $0x10a0] sm:$0xff]
                %713 = vst [vmem:[%s179 + $0x850] sm:$0xff] %v712
                %v714 = vld [vmem:[%s178 + $0x10a8] sm:$0xff]
                %715 = vst [vmem:[%s179 + $0x858] sm:$0xff] %v714
                %v716 = vld [vmem:[%s178 + $0x10c0] sm:$0xff]
                %717 = vst [vmem:[%s179 + $0x860] sm:$0xff] %v716
                %v718 = vld [vmem:[%s178 + $0x10c8] sm:$0xff]
                %719 = vst [vmem:[%s179 + $0x868] sm:$0xff] %v718
                %v720 = vld [vmem:[%s178 + $0x10e0] sm:$0xff]
                %721 = vst [vmem:[%s179 + $0x870] sm:$0xff] %v720
                %v722 = vld [vmem:[%s178 + $0x10e8] sm:$0xff]
                %723 = vst [vmem:[%s179 + $0x878] sm:$0xff] %v722
                %v724 = vld [vmem:[%s178 + $0x1100] sm:$0xff]
                %725 = vst [vmem:[%s179 + $0x880] sm:$0xff] %v724
                %v726 = vld [vmem:[%s178 + $0x1108] sm:$0xff]
                %727 = vst [vmem:[%s179 + $0x888] sm:$0xff] %v726
                %v728 = vld [vmem:[%s178 + $0x1120] sm:$0xff]
                %729 = vst [vmem:[%s179 + $0x890] sm:$0xff] %v728
                %v730 = vld [vmem:[%s178 + $0x1128] sm:$0xff]
                %731 = vst [vmem:[%s179 + $0x898] sm:$0xff] %v730
                %v732 = vld [vmem:[%s178 + $0x1140] sm:$0xff]
                %733 = vst [vmem:[%s179 + $0x8a0] sm:$0xff] %v732
                %v734 = vld [vmem:[%s178 + $0x1148] sm:$0xff]
                %735 = vst [vmem:[%s179 + $0x8a8] sm:$0xff] %v734
                %v736 = vld [vmem:[%s178 + $0x1160] sm:$0xff]
                %737 = vst [vmem:[%s179 + $0x8b0] sm:$0xff] %v736
                %v738 = vld [vmem:[%s178 + $0x1168] sm:$0xff]
                %739 = vst [vmem:[%s179 + $0x8b8] sm:$0xff] %v738
                %v740 = vld [vmem:[%s178 + $0x1180] sm:$0xff]
                %741 = vst [vmem:[%s179 + $0x8c0] sm:$0xff] %v740
                %v742 = vld [vmem:[%s178 + $0x1188] sm:$0xff]
                %743 = vst [vmem:[%s179 + $0x8c8] sm:$0xff] %v742
                %v744 = vld [vmem:[%s178 + $0x11a0] sm:$0xff]
                %745 = vst [vmem:[%s179 + $0x8d0] sm:$0xff] %v744
                %v746 = vld [vmem:[%s178 + $0x11a8] sm:$0xff]
                %747 = vst [vmem:[%s179 + $0x8d8] sm:$0xff] %v746
                %v748 = vld [vmem:[%s178 + $0x11c0] sm:$0xff]
                %749 = vst [vmem:[%s179 + $0x8e0] sm:$0xff] %v748
                %v750 = vld [vmem:[%s178 + $0x11c8] sm:$0xff]
                %751 = vst [vmem:[%s179 + $0x8e8] sm:$0xff] %v750
                %v752 = vld [vmem:[%s178 + $0x11e0] sm:$0xff]
                %753 = vst [vmem:[%s179 + $0x8f0] sm:$0xff] %v752
                %v754 = vld [vmem:[%s178 + $0x11e8] sm:$0xff]
                %755 = vst [vmem:[%s179 + $0x8f8] sm:$0xff] %v754
                %v756 = vld [vmem:[%s178 + $0x1200] sm:$0xff]
                %757 = vst [vmem:[%s179 + $0x900] sm:$0xff] %v756
                %v758 = vld [vmem:[%s178 + $0x1208] sm:$0xff]
                %759 = vst [vmem:[%s179 + $0x908] sm:$0xff] %v758
                %v760 = vld [vmem:[%s178 + $0x1220] sm:$0xff]
                %761 = vst [vmem:[%s179 + $0x910] sm:$0xff] %v760
                %v762 = vld [vmem:[%s178 + $0x1228] sm:$0xff]
                %763 = vst [vmem:[%s179 + $0x918] sm:$0xff] %v762
                %v764 = vld [vmem:[%s178 + $0x1240] sm:$0xff]
                %765 = vst [vmem:[%s179 + $0x920] sm:$0xff] %v764
                %v766 = vld [vmem:[%s178 + $0x1248] sm:$0xff]
                %767 = vst [vmem:[%s179 + $0x928] sm:$0xff] %v766
                %v768 = vld [vmem:[%s178 + $0x1260] sm:$0xff]
                %769 = vst [vmem:[%s179 + $0x930] sm:$0xff] %v768
                %v770 = vld [vmem:[%s178 + $0x1268] sm:$0xff]
                %771 = vst [vmem:[%s179 + $0x938] sm:$0xff] %v770
                %v772 = vld [vmem:[%s178 + $0x1280] sm:$0xff]
                %773 = vst [vmem:[%s179 + $0x940] sm:$0xff] %v772
                %v774 = vld [vmem:[%s178 + $0x1288] sm:$0xff]
                %775 = vst [vmem:[%s179 + $0x948] sm:$0xff] %v774
                %v776 = vld [vmem:[%s178 + $0x12a0] sm:$0xff]
                %777 = vst [vmem:[%s179 + $0x950] sm:$0xff] %v776
                %v778 = vld [vmem:[%s178 + $0x12a8] sm:$0xff]
                %779 = vst [vmem:[%s179 + $0x958] sm:$0xff] %v778
                %v780 = vld [vmem:[%s178 + $0x12c0] sm:$0xff]
                %781 = vst [vmem:[%s179 + $0x960] sm:$0xff] %v780
                %v782 = vld [vmem:[%s178 + $0x12c8] sm:$0xff]
                %783 = vst [vmem:[%s179 + $0x968] sm:$0xff] %v782
                %v784 = vld [vmem:[%s178 + $0x12e0] sm:$0xff]
                %785 = vst [vmem:[%s179 + $0x970] sm:$0xff] %v784
                %v786 = vld [vmem:[%s178 + $0x12e8] sm:$0xff]
                %787 = vst [vmem:[%s179 + $0x978] sm:$0xff] %v786
                %v788 = vld [vmem:[%s178 + $0x1300] sm:$0xff]
                %789 = vst [vmem:[%s179 + $0x980] sm:$0xff] %v788
                %v790 = vld [vmem:[%s178 + $0x1308] sm:$0xff]
                %791 = vst [vmem:[%s179 + $0x988] sm:$0xff] %v790
                %v792 = vld [vmem:[%s178 + $0x1320] sm:$0xff]
                %793 = vst [vmem:[%s179 + $0x990] sm:$0xff] %v792
                %v794 = vld [vmem:[%s178 + $0x1328] sm:$0xff]
                %795 = vst [vmem:[%s179 + $0x998] sm:$0xff] %v794
                %v796 = vld [vmem:[%s178 + $0x1340] sm:$0xff]
                %797 = vst [vmem:[%s179 + $0x9a0] sm:$0xff] %v796
                %v798 = vld [vmem:[%s178 + $0x1348] sm:$0xff]
                %799 = vst [vmem:[%s179 + $0x9a8] sm:$0xff] %v798
                %v800 = vld [vmem:[%s178 + $0x1360] sm:$0xff]
                %801 = vst [vmem:[%s179 + $0x9b0] sm:$0xff] %v800
                %v802 = vld [vmem:[%s178 + $0x1368] sm:$0xff]
                %803 = vst [vmem:[%s179 + $0x9b8] sm:$0xff] %v802
                %v804 = vld [vmem:[%s178 + $0x1380] sm:$0xff]
                %805 = vst [vmem:[%s179 + $0x9c0] sm:$0xff] %v804
                %v806 = vld [vmem:[%s178 + $0x1388] sm:$0xff]
                %807 = vst [vmem:[%s179 + $0x9c8] sm:$0xff] %v806
                %v808 = vld [vmem:[%s178 + $0x13a0] sm:$0xff]
                %809 = vst [vmem:[%s179 + $0x9d0] sm:$0xff] %v808
                %v810 = vld [vmem:[%s178 + $0x13a8] sm:$0xff]
                %811 = vst [vmem:[%s179 + $0x9d8] sm:$0xff] %v810
                %v812 = vld [vmem:[%s178 + $0x13c0] sm:$0xff]
                %813 = vst [vmem:[%s179 + $0x9e0] sm:$0xff] %v812
                %v814 = vld [vmem:[%s178 + $0x13c8] sm:$0xff]
                %815 = vst [vmem:[%s179 + $0x9e8] sm:$0xff] %v814
                %v816 = vld [vmem:[%s178 + $0x13e0] sm:$0xff]
                %817 = vst [vmem:[%s179 + $0x9f0] sm:$0xff] %v816
                %v818 = vld [vmem:[%s178 + $0x13e8] sm:$0xff]
                %819 = vst [vmem:[%s179 + $0x9f8] sm:$0xff] %v818
                %v820 = vld [vmem:[%s178 + $0x1400] sm:$0xff]
                %821 = vst [vmem:[%s179 + $0xa00] sm:$0xff] %v820
                %v822 = vld [vmem:[%s178 + $0x1408] sm:$0xff]
                %823 = vst [vmem:[%s179 + $0xa08] sm:$0xff] %v822
                %v824 = vld [vmem:[%s178 + $0x1420] sm:$0xff]
                %825 = vst [vmem:[%s179 + $0xa10] sm:$0xff] %v824
                %v826 = vld [vmem:[%s178 + $0x1428] sm:$0xff]
                %827 = vst [vmem:[%s179 + $0xa18] sm:$0xff] %v826
                %v828 = vld [vmem:[%s178 + $0x1440] sm:$0xff]
                %829 = vst [vmem:[%s179 + $0xa20] sm:$0xff] %v828
                %v830 = vld [vmem:[%s178 + $0x1448] sm:$0xff]
                %831 = vst [vmem:[%s179 + $0xa28] sm:$0xff] %v830
                %v832 = vld [vmem:[%s178 + $0x1460] sm:$0xff]
                %833 = vst [vmem:[%s179 + $0xa30] sm:$0xff] %v832
                %v834 = vld [vmem:[%s178 + $0x1468] sm:$0xff]
                %835 = vst [vmem:[%s179 + $0xa38] sm:$0xff] %v834
                %v836 = vld [vmem:[%s178 + $0x1480] sm:$0xff]
                %837 = vst [vmem:[%s179 + $0xa40] sm:$0xff] %v836
                %v838 = vld [vmem:[%s178 + $0x1488] sm:$0xff]
                %839 = vst [vmem:[%s179 + $0xa48] sm:$0xff] %v838
                %v840 = vld [vmem:[%s178 + $0x14a0] sm:$0xff]
                %841 = vst [vmem:[%s179 + $0xa50] sm:$0xff] %v840
                %v842 = vld [vmem:[%s178 + $0x14a8] sm:$0xff]
                %843 = vst [vmem:[%s179 + $0xa58] sm:$0xff] %v842
                %v844 = vld [vmem:[%s178 + $0x14c0] sm:$0xff]
                %845 = vst [vmem:[%s179 + $0xa60] sm:$0xff] %v844
                %v846 = vld [vmem:[%s178 + $0x14c8] sm:$0xff]
                %847 = vst [vmem:[%s179 + $0xa68] sm:$0xff] %v846
                %v848 = vld [vmem:[%s178 + $0x14e0] sm:$0xff]
                %849 = vst [vmem:[%s179 + $0xa70] sm:$0xff] %v848
                %v850 = vld [vmem:[%s178 + $0x14e8] sm:$0xff]
                %851 = vst [vmem:[%s179 + $0xa78] sm:$0xff] %v850
                %v852 = vld [vmem:[%s178 + $0x1500] sm:$0xff]
                %853 = vst [vmem:[%s179 + $0xa80] sm:$0xff] %v852
                %v854 = vld [vmem:[%s178 + $0x1508] sm:$0xff]
                %855 = vst [vmem:[%s179 + $0xa88] sm:$0xff] %v854
                %v856 = vld [vmem:[%s178 + $0x1520] sm:$0xff]
                %857 = vst [vmem:[%s179 + $0xa90] sm:$0xff] %v856
                %v858 = vld [vmem:[%s178 + $0x1528] sm:$0xff]
                %859 = vst [vmem:[%s179 + $0xa98] sm:$0xff] %v858
                %v860 = vld [vmem:[%s178 + $0x1540] sm:$0xff]
                %861 = vst [vmem:[%s179 + $0xaa0] sm:$0xff] %v860
                %v862 = vld [vmem:[%s178 + $0x1548] sm:$0xff]
                %863 = vst [vmem:[%s179 + $0xaa8] sm:$0xff] %v862
                %v864 = vld [vmem:[%s178 + $0x1560] sm:$0xff]
                %865 = vst [vmem:[%s179 + $0xab0] sm:$0xff] %v864
                %v866 = vld [vmem:[%s178 + $0x1568] sm:$0xff]
                %867 = vst [vmem:[%s179 + $0xab8] sm:$0xff] %v866
                %v868 = vld [vmem:[%s178 + $0x1580] sm:$0xff]
                %869 = vst [vmem:[%s179 + $0xac0] sm:$0xff] %v868
                %v870 = vld [vmem:[%s178 + $0x1588] sm:$0xff]
                %871 = vst [vmem:[%s179 + $0xac8] sm:$0xff] %v870
                %v872 = vld [vmem:[%s178 + $0x15a0] sm:$0xff]
                %873 = vst [vmem:[%s179 + $0xad0] sm:$0xff] %v872
                %v874 = vld [vmem:[%s178 + $0x15a8] sm:$0xff]
                %875 = vst [vmem:[%s179 + $0xad8] sm:$0xff] %v874
                %v876 = vld [vmem:[%s178 + $0x15c0] sm:$0xff]
                %877 = vst [vmem:[%s179 + $0xae0] sm:$0xff] %v876
                %v878 = vld [vmem:[%s178 + $0x15c8] sm:$0xff]
                %879 = vst [vmem:[%s179 + $0xae8] sm:$0xff] %v878
                %v880 = vld [vmem:[%s178 + $0x15e0] sm:$0xff]
                %881 = vst [vmem:[%s179 + $0xaf0] sm:$0xff] %v880
                %v882 = vld [vmem:[%s178 + $0x15e8] sm:$0xff]
                %883 = vst [vmem:[%s179 + $0xaf8] sm:$0xff] %v882
                %v884 = vld [vmem:[%s178 + $0x1600] sm:$0xff]
                %885 = vst [vmem:[%s179 + $0xb00] sm:$0xff] %v884
                %v886 = vld [vmem:[%s178 + $0x1608] sm:$0xff]
                %887 = vst [vmem:[%s179 + $0xb08] sm:$0xff] %v886
                %v888 = vld [vmem:[%s178 + $0x1620] sm:$0xff]
                %889 = vst [vmem:[%s179 + $0xb10] sm:$0xff] %v888
                %v890 = vld [vmem:[%s178 + $0x1628] sm:$0xff]
                %891 = vst [vmem:[%s179 + $0xb18] sm:$0xff] %v890
                %v892 = vld [vmem:[%s178 + $0x1640] sm:$0xff]
                %893 = vst [vmem:[%s179 + $0xb20] sm:$0xff] %v892
                %v894 = vld [vmem:[%s178 + $0x1648] sm:$0xff]
                %895 = vst [vmem:[%s179 + $0xb28] sm:$0xff] %v894
                %v896 = vld [vmem:[%s178 + $0x1660] sm:$0xff]
                %897 = vst [vmem:[%s179 + $0xb30] sm:$0xff] %v896
                %v898 = vld [vmem:[%s178 + $0x1668] sm:$0xff]
                %899 = vst [vmem:[%s179 + $0xb38] sm:$0xff] %v898
                %v900 = vld [vmem:[%s178 + $0x1680] sm:$0xff]
                %901 = vst [vmem:[%s179 + $0xb40] sm:$0xff] %v900
                %v902 = vld [vmem:[%s178 + $0x1688] sm:$0xff]
                %903 = vst [vmem:[%s179 + $0xb48] sm:$0xff] %v902
                %v904 = vld [vmem:[%s178 + $0x16a0] sm:$0xff]
                %905 = vst [vmem:[%s179 + $0xb50] sm:$0xff] %v904
                %v906 = vld [vmem:[%s178 + $0x16a8] sm:$0xff]
                %907 = vst [vmem:[%s179 + $0xb58] sm:$0xff] %v906
                %v908 = vld [vmem:[%s178 + $0x16c0] sm:$0xff]
                %909 = vst [vmem:[%s179 + $0xb60] sm:$0xff] %v908
                %v910 = vld [vmem:[%s178 + $0x16c8] sm:$0xff]
                %911 = vst [vmem:[%s179 + $0xb68] sm:$0xff] %v910
                %v912 = vld [vmem:[%s178 + $0x16e0] sm:$0xff]
                %913 = vst [vmem:[%s179 + $0xb70] sm:$0xff] %v912
                %v914 = vld [vmem:[%s178 + $0x16e8] sm:$0xff]
                %915 = vst [vmem:[%s179 + $0xb78] sm:$0xff] %v914
                %v916 = vld [vmem:[%s178 + $0x1700] sm:$0xff]
                %917 = vst [vmem:[%s179 + $0xb80] sm:$0xff] %v916
                %v918 = vld [vmem:[%s178 + $0x1708] sm:$0xff]
                %919 = vst [vmem:[%s179 + $0xb88] sm:$0xff] %v918
                %v920 = vld [vmem:[%s178 + $0x1720] sm:$0xff]
                %921 = vst [vmem:[%s179 + $0xb90] sm:$0xff] %v920
                %v922 = vld [vmem:[%s178 + $0x1728] sm:$0xff]
                %923 = vst [vmem:[%s179 + $0xb98] sm:$0xff] %v922
                %v924 = vld [vmem:[%s178 + $0x1740] sm:$0xff]
                %925 = vst [vmem:[%s179 + $0xba0] sm:$0xff] %v924
                %v926 = vld [vmem:[%s178 + $0x1748] sm:$0xff]
                %927 = vst [vmem:[%s179 + $0xba8] sm:$0xff] %v926
                %v928 = vld [vmem:[%s178 + $0x1760] sm:$0xff]
                %929 = vst [vmem:[%s179 + $0xbb0] sm:$0xff] %v928
                %v930 = vld [vmem:[%s178 + $0x1768] sm:$0xff]
                %931 = vst [vmem:[%s179 + $0xbb8] sm:$0xff] %v930
                %v932 = vld [vmem:[%s178 + $0x1780] sm:$0xff]
                %933 = vst [vmem:[%s179 + $0xbc0] sm:$0xff] %v932
                %v934 = vld [vmem:[%s178 + $0x1788] sm:$0xff]
                %935 = vst [vmem:[%s179 + $0xbc8] sm:$0xff] %v934
                %v936 = vld [vmem:[%s178 + $0x17a0] sm:$0xff]
                %937 = vst [vmem:[%s179 + $0xbd0] sm:$0xff] %v936
                %v938 = vld [vmem:[%s178 + $0x17a8] sm:$0xff]
                %939 = vst [vmem:[%s179 + $0xbd8] sm:$0xff] %v938
                %v940 = vld [vmem:[%s178 + $0x17c0] sm:$0xff]
                %941 = vst [vmem:[%s179 + $0xbe0] sm:$0xff] %v940
                %v942 = vld [vmem:[%s178 + $0x17c8] sm:$0xff]
                %943 = vst [vmem:[%s179 + $0xbe8] sm:$0xff] %v942
                %v944 = vld [vmem:[%s178 + $0x17e0] sm:$0xff]
                %945 = vst [vmem:[%s179 + $0xbf0] sm:$0xff] %v944
                %v946 = vld [vmem:[%s178 + $0x17e8] sm:$0xff]
                %947 = vst [vmem:[%s179 + $0xbf8] sm:$0xff] %v946
              $region37: #{_lambda_.14} parent=31 // loop_footer
                %s177 = sadd.s32 1, %s173
              $region38: #{_lambda_.14} parent=31 // loop_footer_branch
                %172 = sbr.rel target = $region34
              $region39: #{_lambda_.14} parent=31 // loop_exit
                _
            $region32: #{_lambda_.14} parent=27 // pred_fallthru
              _
            // Predicated region
            $region40: #{_lambda_.14} parent=27 // pred_check
              _
            $region41: #{_lambda_.14} parent=27 // pred_check_branch
              %949 = sbr.rel target = $region43
            $region42: #{_lambda_.14} parent=27 // pred_region
              _
            $region43: #{_lambda_.14} parent=27 // pred_fallthru
              _
          $region28: #{_lambda_.14} parent=23 // pred_fallthru
            _
          %950 = vnop
        $region24: #{_lambda_.14} parent=19 // pred_fallthru
          _
        // Predicated region
        $region44: #{_lambda_.14} parent=19 // pred_check
          %p951 = pneg %p95
        $region45: #{_lambda_.14} parent=19 // pred_check_branch
          %953 = sbr.rel (%p951) target = $region47
        $region46: #{_lambda_.14} parent=19 // pred_region
          %s954 = smul.u32 4, %s16
          %p955 = scmp.lt.s32.totalorder %s954, 7
          %s956 = scalar_select %p955, %s954, 7
          %s957 = scalar_lea.vmem %s2, %s956
          %s958 = smul.u32 4, %s16
        $region47: #{_lambda_.14} parent=19 // pred_fallthru
          _
      $region20: #{_lambda_.14} parent=5 // pred_fallthru
        _
      %p959 = scmp.le.s32.totalorder 1, %s9
      %p960 = scmp.lt.s32.totalorder %s9, 3
      %p961 = pnand %p959, %p960
      %p962 = pneg %p961
      // Predicated region
      $region48: #{_lambda_.14} parent=5 // pred_check
        _
      $region49: #{_lambda_.14} parent=5 // pred_check_branch
        %964 = sbr.rel (%p961) target = $region51
      $region50: #{_lambda_.14} parent=5 // pred_region
        %s965 = ssub.s32 %s9, 1
        %s966 = sand.u32 %s62, 1
        %s967 = sand.u32 %s62, 1
        %s968 = smul.addr %s967, 3072
        %s969 = scalar_lea.vmem [#allocation3], %s968
        // Predicated region
        $region52: #{_lambda_.14} parent=50 // pred_check
          %p970 = pneg %p75
        $region53: #{_lambda_.14} parent=50 // pred_check_branch
          %972 = sbr.rel (%p970) target = $region55
        $region54: #{_lambda_.14} parent=50 // pred_region
          _
        $region55: #{_lambda_.14} parent=50 // pred_fallthru
          _
        %s973 = smul.u32 12, %s19
        %p974 = scmp.lt.s32.totalorder %s973, 11
        %s975 = scalar_select %p974, %s973, 11
        %s976 = smul.addr %s975, 4
        %s977 = scalar_lea.vmem %s0, %s976
        %p978 = pneg %p47
        %p979 = pneg %p44
        %s980 = sand.u32 %s62, 1
        %s981 = sand.u32 %s62, 1
        %s982 = smul.addr %s981, 3072
        %s983 = scalar_lea.vmem [#allocation3], %s982
        %p984 = pneg %p75
        %p985 = pneg %p72
        %s986 = smul.u32 4, %s18
        %p987 = scmp.lt.s32.totalorder %s986, 7
        %s988 = scalar_select %p987, %s986, 7
        %s989 = scalar_lea.vmem %s2, %s988
        %p990 = pneg %p101
        %p991 = pneg %p98
        %p992 = pneg %p127
        %p993 = pneg %p124
        %s994 = sand.u32 %s114, 1
        %s995 = sand.u32 %s114, 1
        %s996 = smul.addr %s995, 32
        %s997 = scalar_lea.vmem [#allocation4], %s996
        %s998 = smul.u32 12, %s19
        %p999 = scmp.lt.s32.totalorder %s998, 11
        %s1000 = scalar_select %p999, %s998, 11
        %s1001 = smul.addr %s1000, 4
        %s1002 = scalar_lea.vmem %s0, %s1001
        %s1003 = smul.u32 12, %s19
        %s1004 = smul.u32 192, %s19
        %s1005 = smul.u32 4, %s18
        %s1006 = smul.u32 4, %s18
        %p1007 = scmp.lt.s32.totalorder %s1006, 7
        %s1008 = scalar_select %p1007, %s1006, 7
        %s1009 = scalar_lea.vmem %s2, %s1008
        %s1010 = smul.u32 4, %s18
        %s1011 = smul.u32 4, %s18
        %p1012 = scmp.eq.s32.totalorder %s19, 0
        // Predicated region
        $region56: #{_lambda_.14} parent=50 // pred_check
          %p1013 = pneg %p1012
        $region57: #{_lambda_.14} parent=50 // pred_check_branch
          %1015 = sbr.rel (%p1013) target = $region59
        $region58: #{_lambda_.14} parent=50 // pred_region
          %1016 = vst [vmem:[#allocation2] sm:$0xff] 0.0
          %1017 = vst [vmem:[#allocation2 + $0x8] sm:$0xff] 0.0
          %1018 = vst [vmem:[#allocation2 + $0x10] sm:$0xff] 0.0
          %1019 = vst [vmem:[#allocation2 + $0x18] sm:$0xff] 0.0
          %1020 = vst [vmem:[#allocation2 + $0x20] sm:$0xff] 0.0
          %1021 = vst [vmem:[#allocation2 + $0x28] sm:$0xff] 0.0
          %1022 = vst [vmem:[#allocation2 + $0x30] sm:$0xff] 0.0
          %1023 = vst [vmem:[#allocation2 + $0x38] sm:$0xff] 0.0
        $region59: #{_lambda_.14} parent=50 // pred_fallthru
          _
        %v1024 = vld [vmem:[#allocation2] sm:$0xff]
        %v1025 = vld [vmem:[#allocation2 + $0x8] sm:$0xff]
        %v1026 = vld [vmem:[#allocation2 + $0x10] sm:$0xff]
        %v1027 = vld [vmem:[#allocation2 + $0x18] sm:$0xff]
        %v1028 = vld [vmem:[#allocation2 + $0x20] sm:$0xff]
        %v1029 = vld [vmem:[#allocation2 + $0x28] sm:$0xff]
        %v1030 = vld [vmem:[#allocation2 + $0x30] sm:$0xff]
        %v1031 = vld [vmem:[#allocation2 + $0x38] sm:$0xff]
        %v1032 = vld [vmem:[%s1002] sm:$0xff]
        %v1033 = vld [vmem:[%s1002 + $0x8] sm:$0xff]
        %v1034 = vld [vmem:[%s1002 + $0x10] sm:$0xff]
        %v1035 = vld [vmem:[%s1002 + $0x18] sm:$0xff]
        %v1036 = vld [vmem:[%s1002 + $0x20] sm:$0xff]
        %v1037 = vld [vmem:[%s1002 + $0x28] sm:$0xff]
        %v1038 = vld [vmem:[%s1002 + $0x30] sm:$0xff]
        %v1039 = vld [vmem:[%s1002 + $0x38] sm:$0xff]
        %v1040 = vld [vmem:[%s1002 + $0x40] sm:$0xff]
        %v1041 = vld [vmem:[%s1002 + $0x48] sm:$0xff]
        %v1042 = vld [vmem:[%s1002 + $0x50] sm:$0xff]
        %v1043 = vld [vmem:[%s1002 + $0x58] sm:$0xff]
        %v1044 = vld [vmem:[%s969] sm:$0xff]
        %v1045 = vld [vmem:[%s969 + $0x8] sm:$0xff]
        %v1046 = vld [vmem:[%s969 + $0x10] sm:$0xff]
        %v1047 = vld [vmem:[%s969 + $0x18] sm:$0xff]
        %v1048 = vld [vmem:[%s969 + $0x20] sm:$0xff]
        %v1049 = vld [vmem:[%s969 + $0x28] sm:$0xff]
        %v1050 = vld [vmem:[%s969 + $0x30] sm:$0xff]
        %v1051 = vld [vmem:[%s969 + $0x38] sm:$0xff]
        %v1052 = vld [vmem:[%s969 + $0x40] sm:$0xff]
        %v1053 = vld [vmem:[%s969 + $0x48] sm:$0xff]
        %v1054 = vld [vmem:[%s969 + $0x50] sm:$0xff]
        %v1055 = vld [vmem:[%s969 + $0x58] sm:$0xff]
        %v1056 = vld [vmem:[%s969 + $0x60] sm:$0xff]
        %v1057 = vld [vmem:[%s969 + $0x68] sm:$0xff]
        %v1058 = vld [vmem:[%s969 + $0x70] sm:$0xff]
        %v1059 = vld [vmem:[%s969 + $0x78] sm:$0xff]
        %v1060 = vld [vmem:[%s969 + $0x80] sm:$0xff]
        %v1061 = vld [vmem:[%s969 + $0x88] sm:$0xff]
        %v1062 = vld [vmem:[%s969 + $0x90] sm:$0xff]
        %v1063 = vld [vmem:[%s969 + $0x98] sm:$0xff]
        %v1064 = vld [vmem:[%s969 + $0xa0] sm:$0xff]
        %v1065 = vld [vmem:[%s969 + $0xa8] sm:$0xff]
        %v1066 = vld [vmem:[%s969 + $0xb0] sm:$0xff]
        %v1067 = vld [vmem:[%s969 + $0xb8] sm:$0xff]
        %v1068 = vld [vmem:[%s969 + $0xc0] sm:$0xff]
        %v1069 = vld [vmem:[%s969 + $0xc8] sm:$0xff]
        %v1070 = vld [vmem:[%s969 + $0xd0] sm:$0xff]
        %v1071 = vld [vmem:[%s969 + $0xd8] sm:$0xff]
        %v1072 = vld [vmem:[%s969 + $0xe0] sm:$0xff]
        %v1073 = vld [vmem:[%s969 + $0xe8] sm:$0xff]
        %v1074 = vld [vmem:[%s969 + $0xf0] sm:$0xff]
        %v1075 = vld [vmem:[%s969 + $0xf8] sm:$0xff]
        %v1076 = vld [vmem:[%s969 + $0x100] sm:$0xff]
        %v1077 = vld [vmem:[%s969 + $0x108] sm:$0xff]
        %v1078 = vld [vmem:[%s969 + $0x110] sm:$0xff]
        %v1079 = vld [vmem:[%s969 + $0x118] sm:$0xff]
        %v1080 = vld [vmem:[%s969 + $0x120] sm:$0xff]
        %v1081 = vld [vmem:[%s969 + $0x128] sm:$0xff]
        %v1082 = vld [vmem:[%s969 + $0x130] sm:$0xff]
        %v1083 = vld [vmem:[%s969 + $0x138] sm:$0xff]
        %v1084 = vld [vmem:[%s969 + $0x140] sm:$0xff]
        %v1085 = vld [vmem:[%s969 + $0x148] sm:$0xff]
        %v1086 = vld [vmem:[%s969 + $0x150] sm:$0xff]
        %v1087 = vld [vmem:[%s969 + $0x158] sm:$0xff]
        %v1088 = vld [vmem:[%s969 + $0x160] sm:$0xff]
        %v1089 = vld [vmem:[%s969 + $0x168] sm:$0xff]
        %v1090 = vld [vmem:[%s969 + $0x170] sm:$0xff]
        %v1091 = vld [vmem:[%s969 + $0x178] sm:$0xff]
        %v1092 = vld [vmem:[%s969 + $0x180] sm:$0xff]
        %v1093 = vld [vmem:[%s969 + $0x188] sm:$0xff]
        %v1094 = vld [vmem:[%s969 + $0x190] sm:$0xff]
        %v1095 = vld [vmem:[%s969 + $0x198] sm:$0xff]
        %v1096 = vld [vmem:[%s969 + $0x1a0] sm:$0xff]
        %v1097 = vld [vmem:[%s969 + $0x1a8] sm:$0xff]
        %v1098 = vld [vmem:[%s969 + $0x1b0] sm:$0xff]
        %v1099 = vld [vmem:[%s969 + $0x1b8] sm:$0xff]
        %v1100 = vld [vmem:[%s969 + $0x1c0] sm:$0xff]
        %v1101 = vld [vmem:[%s969 + $0x1c8] sm:$0xff]
        %v1102 = vld [vmem:[%s969 + $0x1d0] sm:$0xff]
        %v1103 = vld [vmem:[%s969 + $0x1d8] sm:$0xff]
        %v1104 = vld [vmem:[%s969 + $0x1e0] sm:$0xff]
        %v1105 = vld [vmem:[%s969 + $0x1e8] sm:$0xff]
        %v1106 = vld [vmem:[%s969 + $0x1f0] sm:$0xff]
        %v1107 = vld [vmem:[%s969 + $0x1f8] sm:$0xff]
        %v1108 = vld [vmem:[%s969 + $0x200] sm:$0xff]
        %v1109 = vld [vmem:[%s969 + $0x208] sm:$0xff]
        %v1110 = vld [vmem:[%s969 + $0x210] sm:$0xff]
        %v1111 = vld [vmem:[%s969 + $0x218] sm:$0xff]
        %v1112 = vld [vmem:[%s969 + $0x220] sm:$0xff]
        %v1113 = vld [vmem:[%s969 + $0x228] sm:$0xff]
        %v1114 = vld [vmem:[%s969 + $0x230] sm:$0xff]
        %v1115 = vld [vmem:[%s969 + $0x238] sm:$0xff]
        %v1116 = vld [vmem:[%s969 + $0x240] sm:$0xff]
        %v1117 = vld [vmem:[%s969 + $0x248] sm:$0xff]
        %v1118 = vld [vmem:[%s969 + $0x250] sm:$0xff]
        %v1119 = vld [vmem:[%s969 + $0x258] sm:$0xff]
        %v1120 = vld [vmem:[%s969 + $0x260] sm:$0xff]
        %v1121 = vld [vmem:[%s969 + $0x268] sm:$0xff]
        %v1122 = vld [vmem:[%s969 + $0x270] sm:$0xff]
        %v1123 = vld [vmem:[%s969 + $0x278] sm:$0xff]
        %v1124 = vld [vmem:[%s969 + $0x280] sm:$0xff]
        %v1125 = vld [vmem:[%s969 + $0x288] sm:$0xff]
        %v1126 = vld [vmem:[%s969 + $0x290] sm:$0xff]
        %v1127 = vld [vmem:[%s969 + $0x298] sm:$0xff]
        %v1128 = vld [vmem:[%s969 + $0x2a0] sm:$0xff]
        %v1129 = vld [vmem:[%s969 + $0x2a8] sm:$0xff]
        %v1130 = vld [vmem:[%s969 + $0x2b0] sm:$0xff]
        %v1131 = vld [vmem:[%s969 + $0x2b8] sm:$0xff]
        %v1132 = vld [vmem:[%s969 + $0x2c0] sm:$0xff]
        %v1133 = vld [vmem:[%s969 + $0x2c8] sm:$0xff]
        %v1134 = vld [vmem:[%s969 + $0x2d0] sm:$0xff]
        %v1135 = vld [vmem:[%s969 + $0x2d8] sm:$0xff]
        %v1136 = vld [vmem:[%s969 + $0x2e0] sm:$0xff]
        %v1137 = vld [vmem:[%s969 + $0x2e8] sm:$0xff]
        %v1138 = vld [vmem:[%s969 + $0x2f0] sm:$0xff]
        %v1139 = vld [vmem:[%s969 + $0x2f8] sm:$0xff]
        %v1140 = vld [vmem:[%s969 + $0x300] sm:$0xff]
        %v1141 = vld [vmem:[%s969 + $0x308] sm:$0xff]
        %v1142 = vld [vmem:[%s969 + $0x310] sm:$0xff]
        %v1143 = vld [vmem:[%s969 + $0x318] sm:$0xff]
        %v1144 = vld [vmem:[%s969 + $0x320] sm:$0xff]
        %v1145 = vld [vmem:[%s969 + $0x328] sm:$0xff]
        %v1146 = vld [vmem:[%s969 + $0x330] sm:$0xff]
        %v1147 = vld [vmem:[%s969 + $0x338] sm:$0xff]
        %v1148 = vld [vmem:[%s969 + $0x340] sm:$0xff]
        %v1149 = vld [vmem:[%s969 + $0x348] sm:$0xff]
        %v1150 = vld [vmem:[%s969 + $0x350] sm:$0xff]
        %v1151 = vld [vmem:[%s969 + $0x358] sm:$0xff]
        %v1152 = vld [vmem:[%s969 + $0x360] sm:$0xff]
        %v1153 = vld [vmem:[%s969 + $0x368] sm:$0xff]
        %v1154 = vld [vmem:[%s969 + $0x370] sm:$0xff]
        %v1155 = vld [vmem:[%s969 + $0x378] sm:$0xff]
        %v1156 = vld [vmem:[%s969 + $0x380] sm:$0xff]
        %v1157 = vld [vmem:[%s969 + $0x388] sm:$0xff]
        %v1158 = vld [vmem:[%s969 + $0x390] sm:$0xff]
        %v1159 = vld [vmem:[%s969 + $0x398] sm:$0xff]
        %v1160 = vld [vmem:[%s969 + $0x3a0] sm:$0xff]
        %v1161 = vld [vmem:[%s969 + $0x3a8] sm:$0xff]
        %v1162 = vld [vmem:[%s969 + $0x3b0] sm:$0xff]
        %v1163 = vld [vmem:[%s969 + $0x3b8] sm:$0xff]
        %v1164 = vld [vmem:[%s969 + $0x3c0] sm:$0xff]
        %v1165 = vld [vmem:[%s969 + $0x3c8] sm:$0xff]
        %v1166 = vld [vmem:[%s969 + $0x3d0] sm:$0xff]
        %v1167 = vld [vmem:[%s969 + $0x3d8] sm:$0xff]
        %v1168 = vld [vmem:[%s969 + $0x3e0] sm:$0xff]
        %v1169 = vld [vmem:[%s969 + $0x3e8] sm:$0xff]
        %v1170 = vld [vmem:[%s969 + $0x3f0] sm:$0xff]
        %v1171 = vld [vmem:[%s969 + $0x3f8] sm:$0xff]
        %v1172 = vld [vmem:[%s969 + $0x400] sm:$0xff]
        %v1173 = vld [vmem:[%s969 + $0x408] sm:$0xff]
        %v1174 = vld [vmem:[%s969 + $0x410] sm:$0xff]
        %v1175 = vld [vmem:[%s969 + $0x418] sm:$0xff]
        %v1176 = vld [vmem:[%s969 + $0x420] sm:$0xff]
        %v1177 = vld [vmem:[%s969 + $0x428] sm:$0xff]
        %v1178 = vld [vmem:[%s969 + $0x430] sm:$0xff]
        %v1179 = vld [vmem:[%s969 + $0x438] sm:$0xff]
        %v1180 = vld [vmem:[%s969 + $0x440] sm:$0xff]
        %v1181 = vld [vmem:[%s969 + $0x448] sm:$0xff]
        %v1182 = vld [vmem:[%s969 + $0x450] sm:$0xff]
        %v1183 = vld [vmem:[%s969 + $0x458] sm:$0xff]
        %v1184 = vld [vmem:[%s969 + $0x460] sm:$0xff]
        %v1185 = vld [vmem:[%s969 + $0x468] sm:$0xff]
        %v1186 = vld [vmem:[%s969 + $0x470] sm:$0xff]
        %v1187 = vld [vmem:[%s969 + $0x478] sm:$0xff]
        %v1188 = vld [vmem:[%s969 + $0x480] sm:$0xff]
        %v1189 = vld [vmem:[%s969 + $0x488] sm:$0xff]
        %v1190 = vld [vmem:[%s969 + $0x490] sm:$0xff]
        %v1191 = vld [vmem:[%s969 + $0x498] sm:$0xff]
        %v1192 = vld [vmem:[%s969 + $0x4a0] sm:$0xff]
        %v1193 = vld [vmem:[%s969 + $0x4a8] sm:$0xff]
        %v1194 = vld [vmem:[%s969 + $0x4b0] sm:$0xff]
        %v1195 = vld [vmem:[%s969 + $0x4b8] sm:$0xff]
        %v1196 = vld [vmem:[%s969 + $0x4c0] sm:$0xff]
        %v1197 = vld [vmem:[%s969 + $0x4c8] sm:$0xff]
        %v1198 = vld [vmem:[%s969 + $0x4d0] sm:$0xff]
        %v1199 = vld [vmem:[%s969 + $0x4d8] sm:$0xff]
        %v1200 = vld [vmem:[%s969 + $0x4e0] sm:$0xff]
        %v1201 = vld [vmem:[%s969 + $0x4e8] sm:$0xff]
        %v1202 = vld [vmem:[%s969 + $0x4f0] sm:$0xff]
        %v1203 = vld [vmem:[%s969 + $0x4f8] sm:$0xff]
        %v1204 = vld [vmem:[%s969 + $0x500] sm:$0xff]
        %v1205 = vld [vmem:[%s969 + $0x508] sm:$0xff]
        %v1206 = vld [vmem:[%s969 + $0x510] sm:$0xff]
        %v1207 = vld [vmem:[%s969 + $0x518] sm:$0xff]
        %v1208 = vld [vmem:[%s969 + $0x520] sm:$0xff]
        %v1209 = vld [vmem:[%s969 + $0x528] sm:$0xff]
        %v1210 = vld [vmem:[%s969 + $0x530] sm:$0xff]
        %v1211 = vld [vmem:[%s969 + $0x538] sm:$0xff]
        %v1212 = vld [vmem:[%s969 + $0x540] sm:$0xff]
        %v1213 = vld [vmem:[%s969 + $0x548] sm:$0xff]
        %v1214 = vld [vmem:[%s969 + $0x550] sm:$0xff]
        %v1215 = vld [vmem:[%s969 + $0x558] sm:$0xff]
        %v1216 = vld [vmem:[%s969 + $0x560] sm:$0xff]
        %v1217 = vld [vmem:[%s969 + $0x568] sm:$0xff]
        %v1218 = vld [vmem:[%s969 + $0x570] sm:$0xff]
        %v1219 = vld [vmem:[%s969 + $0x578] sm:$0xff]
        %v1220 = vld [vmem:[%s969 + $0x580] sm:$0xff]
        %v1221 = vld [vmem:[%s969 + $0x588] sm:$0xff]
        %v1222 = vld [vmem:[%s969 + $0x590] sm:$0xff]
        %v1223 = vld [vmem:[%s969 + $0x598] sm:$0xff]
        %v1224 = vld [vmem:[%s969 + $0x5a0] sm:$0xff]
        %v1225 = vld [vmem:[%s969 + $0x5a8] sm:$0xff]
        %v1226 = vld [vmem:[%s969 + $0x5b0] sm:$0xff]
        %v1227 = vld [vmem:[%s969 + $0x5b8] sm:$0xff]
        %v1228 = vld [vmem:[%s969 + $0x5c0] sm:$0xff]
        %v1229 = vld [vmem:[%s969 + $0x5c8] sm:$0xff]
        %v1230 = vld [vmem:[%s969 + $0x5d0] sm:$0xff]
        %v1231 = vld [vmem:[%s969 + $0x5d8] sm:$0xff]
        %v1232 = vld [vmem:[%s969 + $0x5e0] sm:$0xff]
        %v1233 = vld [vmem:[%s969 + $0x5e8] sm:$0xff]
        %v1234 = vld [vmem:[%s969 + $0x5f0] sm:$0xff]
        %v1235 = vld [vmem:[%s969 + $0x5f8] sm:$0xff]
        %v1236 = vld [vmem:[%s969 + $0x600] sm:$0xff]
        %v1237 = vld [vmem:[%s969 + $0x608] sm:$0xff]
        %v1238 = vld [vmem:[%s969 + $0x610] sm:$0xff]
        %v1239 = vld [vmem:[%s969 + $0x618] sm:$0xff]
        %v1240 = vld [vmem:[%s969 + $0x620] sm:$0xff]
        %v1241 = vld [vmem:[%s969 + $0x628] sm:$0xff]
        %v1242 = vld [vmem:[%s969 + $0x630] sm:$0xff]
        %v1243 = vld [vmem:[%s969 + $0x638] sm:$0xff]
        %v1244 = vld [vmem:[%s969 + $0x640] sm:$0xff]
        %v1245 = vld [vmem:[%s969 + $0x648] sm:$0xff]
        %v1246 = vld [vmem:[%s969 + $0x650] sm:$0xff]
        %v1247 = vld [vmem:[%s969 + $0x658] sm:$0xff]
        %v1248 = vld [vmem:[%s969 + $0x660] sm:$0xff]
        %v1249 = vld [vmem:[%s969 + $0x668] sm:$0xff]
        %v1250 = vld [vmem:[%s969 + $0x670] sm:$0xff]
        %v1251 = vld [vmem:[%s969 + $0x678] sm:$0xff]
        %v1252 = vld [vmem:[%s969 + $0x680] sm:$0xff]
        %v1253 = vld [vmem:[%s969 + $0x688] sm:$0xff]
        %v1254 = vld [vmem:[%s969 + $0x690] sm:$0xff]
        %v1255 = vld [vmem:[%s969 + $0x698] sm:$0xff]
        %v1256 = vld [vmem:[%s969 + $0x6a0] sm:$0xff]
        %v1257 = vld [vmem:[%s969 + $0x6a8] sm:$0xff]
        %v1258 = vld [vmem:[%s969 + $0x6b0] sm:$0xff]
        %v1259 = vld [vmem:[%s969 + $0x6b8] sm:$0xff]
        %v1260 = vld [vmem:[%s969 + $0x6c0] sm:$0xff]
        %v1261 = vld [vmem:[%s969 + $0x6c8] sm:$0xff]
        %v1262 = vld [vmem:[%s969 + $0x6d0] sm:$0xff]
        %v1263 = vld [vmem:[%s969 + $0x6d8] sm:$0xff]
        %v1264 = vld [vmem:[%s969 + $0x6e0] sm:$0xff]
        %v1265 = vld [vmem:[%s969 + $0x6e8] sm:$0xff]
        %v1266 = vld [vmem:[%s969 + $0x6f0] sm:$0xff]
        %v1267 = vld [vmem:[%s969 + $0x6f8] sm:$0xff]
        %v1268 = vld [vmem:[%s969 + $0x700] sm:$0xff]
        %v1269 = vld [vmem:[%s969 + $0x708] sm:$0xff]
        %v1270 = vld [vmem:[%s969 + $0x710] sm:$0xff]
        %v1271 = vld [vmem:[%s969 + $0x718] sm:$0xff]
        %v1272 = vld [vmem:[%s969 + $0x720] sm:$0xff]
        %v1273 = vld [vmem:[%s969 + $0x728] sm:$0xff]
        %v1274 = vld [vmem:[%s969 + $0x730] sm:$0xff]
        %v1275 = vld [vmem:[%s969 + $0x738] sm:$0xff]
        %v1276 = vld [vmem:[%s969 + $0x740] sm:$0xff]
        %v1277 = vld [vmem:[%s969 + $0x748] sm:$0xff]
        %v1278 = vld [vmem:[%s969 + $0x750] sm:$0xff]
        %v1279 = vld [vmem:[%s969 + $0x758] sm:$0xff]
        %v1280 = vld [vmem:[%s969 + $0x760] sm:$0xff]
        %v1281 = vld [vmem:[%s969 + $0x768] sm:$0xff]
        %v1282 = vld [vmem:[%s969 + $0x770] sm:$0xff]
        %v1283 = vld [vmem:[%s969 + $0x778] sm:$0xff]
        %v1284 = vld [vmem:[%s969 + $0x780] sm:$0xff]
        %v1285 = vld [vmem:[%s969 + $0x788] sm:$0xff]
        %v1286 = vld [vmem:[%s969 + $0x790] sm:$0xff]
        %v1287 = vld [vmem:[%s969 + $0x798] sm:$0xff]
        %v1288 = vld [vmem:[%s969 + $0x7a0] sm:$0xff]
        %v1289 = vld [vmem:[%s969 + $0x7a8] sm:$0xff]
        %v1290 = vld [vmem:[%s969 + $0x7b0] sm:$0xff]
        %v1291 = vld [vmem:[%s969 + $0x7b8] sm:$0xff]
        %v1292 = vld [vmem:[%s969 + $0x7c0] sm:$0xff]
        %v1293 = vld [vmem:[%s969 + $0x7c8] sm:$0xff]
        %v1294 = vld [vmem:[%s969 + $0x7d0] sm:$0xff]
        %v1295 = vld [vmem:[%s969 + $0x7d8] sm:$0xff]
        %v1296 = vld [vmem:[%s969 + $0x7e0] sm:$0xff]
        %v1297 = vld [vmem:[%s969 + $0x7e8] sm:$0xff]
        %v1298 = vld [vmem:[%s969 + $0x7f0] sm:$0xff]
        %v1299 = vld [vmem:[%s969 + $0x7f8] sm:$0xff]
        %v1300 = vld [vmem:[%s969 + $0x800] sm:$0xff]
        %v1301 = vld [vmem:[%s969 + $0x808] sm:$0xff]
        %v1302 = vld [vmem:[%s969 + $0x810] sm:$0xff]
        %v1303 = vld [vmem:[%s969 + $0x818] sm:$0xff]
        %v1304 = vld [vmem:[%s969 + $0x820] sm:$0xff]
        %v1305 = vld [vmem:[%s969 + $0x828] sm:$0xff]
        %v1306 = vld [vmem:[%s969 + $0x830] sm:$0xff]
        %v1307 = vld [vmem:[%s969 + $0x838] sm:$0xff]
        %v1308 = vld [vmem:[%s969 + $0x840] sm:$0xff]
        %v1309 = vld [vmem:[%s969 + $0x848] sm:$0xff]
        %v1310 = vld [vmem:[%s969 + $0x850] sm:$0xff]
        %v1311 = vld [vmem:[%s969 + $0x858] sm:$0xff]
        %v1312 = vld [vmem:[%s969 + $0x860] sm:$0xff]
        %v1313 = vld [vmem:[%s969 + $0x868] sm:$0xff]
        %v1314 = vld [vmem:[%s969 + $0x870] sm:$0xff]
        %v1315 = vld [vmem:[%s969 + $0x878] sm:$0xff]
        %v1316 = vld [vmem:[%s969 + $0x880] sm:$0xff]
        %v1317 = vld [vmem:[%s969 + $0x888] sm:$0xff]
        %v1318 = vld [vmem:[%s969 + $0x890] sm:$0xff]
        %v1319 = vld [vmem:[%s969 + $0x898] sm:$0xff]
        %v1320 = vld [vmem:[%s969 + $0x8a0] sm:$0xff]
        %v1321 = vld [vmem:[%s969 + $0x8a8] sm:$0xff]
        %v1322 = vld [vmem:[%s969 + $0x8b0] sm:$0xff]
        %v1323 = vld [vmem:[%s969 + $0x8b8] sm:$0xff]
        %v1324 = vld [vmem:[%s969 + $0x8c0] sm:$0xff]
        %v1325 = vld [vmem:[%s969 + $0x8c8] sm:$0xff]
        %v1326 = vld [vmem:[%s969 + $0x8d0] sm:$0xff]
        %v1327 = vld [vmem:[%s969 + $0x8d8] sm:$0xff]
        %v1328 = vld [vmem:[%s969 + $0x8e0] sm:$0xff]
        %v1329 = vld [vmem:[%s969 + $0x8e8] sm:$0xff]
        %v1330 = vld [vmem:[%s969 + $0x8f0] sm:$0xff]
        %v1331 = vld [vmem:[%s969 + $0x8f8] sm:$0xff]
        %v1332 = vld [vmem:[%s969 + $0x900] sm:$0xff]
        %v1333 = vld [vmem:[%s969 + $0x908] sm:$0xff]
        %v1334 = vld [vmem:[%s969 + $0x910] sm:$0xff]
        %v1335 = vld [vmem:[%s969 + $0x918] sm:$0xff]
        %v1336 = vld [vmem:[%s969 + $0x920] sm:$0xff]
        %v1337 = vld [vmem:[%s969 + $0x928] sm:$0xff]
        %v1338 = vld [vmem:[%s969 + $0x930] sm:$0xff]
        %v1339 = vld [vmem:[%s969 + $0x938] sm:$0xff]
        %v1340 = vld [vmem:[%s969 + $0x940] sm:$0xff]
        %v1341 = vld [vmem:[%s969 + $0x948] sm:$0xff]
        %v1342 = vld [vmem:[%s969 + $0x950] sm:$0xff]
        %v1343 = vld [vmem:[%s969 + $0x958] sm:$0xff]
        %v1344 = vld [vmem:[%s969 + $0x960] sm:$0xff]
        %v1345 = vld [vmem:[%s969 + $0x968] sm:$0xff]
        %v1346 = vld [vmem:[%s969 + $0x970] sm:$0xff]
        %v1347 = vld [vmem:[%s969 + $0x978] sm:$0xff]
        %v1348 = vld [vmem:[%s969 + $0x980] sm:$0xff]
        %v1349 = vld [vmem:[%s969 + $0x988] sm:$0xff]
        %v1350 = vld [vmem:[%s969 + $0x990] sm:$0xff]
        %v1351 = vld [vmem:[%s969 + $0x998] sm:$0xff]
        %v1352 = vld [vmem:[%s969 + $0x9a0] sm:$0xff]
        %v1353 = vld [vmem:[%s969 + $0x9a8] sm:$0xff]
        %v1354 = vld [vmem:[%s969 + $0x9b0] sm:$0xff]
        %v1355 = vld [vmem:[%s969 + $0x9b8] sm:$0xff]
        %v1356 = vld [vmem:[%s969 + $0x9c0] sm:$0xff]
        %v1357 = vld [vmem:[%s969 + $0x9c8] sm:$0xff]
        %v1358 = vld [vmem:[%s969 + $0x9d0] sm:$0xff]
        %v1359 = vld [vmem:[%s969 + $0x9d8] sm:$0xff]
        %v1360 = vld [vmem:[%s969 + $0x9e0] sm:$0xff]
        %v1361 = vld [vmem:[%s969 + $0x9e8] sm:$0xff]
        %v1362 = vld [vmem:[%s969 + $0x9f0] sm:$0xff]
        %v1363 = vld [vmem:[%s969 + $0x9f8] sm:$0xff]
        %v1364 = vld [vmem:[%s969 + $0xa00] sm:$0xff]
        %v1365 = vld [vmem:[%s969 + $0xa08] sm:$0xff]
        %v1366 = vld [vmem:[%s969 + $0xa10] sm:$0xff]
        %v1367 = vld [vmem:[%s969 + $0xa18] sm:$0xff]
        %v1368 = vld [vmem:[%s969 + $0xa20] sm:$0xff]
        %v1369 = vld [vmem:[%s969 + $0xa28] sm:$0xff]
        %v1370 = vld [vmem:[%s969 + $0xa30] sm:$0xff]
        %v1371 = vld [vmem:[%s969 + $0xa38] sm:$0xff]
        %v1372 = vld [vmem:[%s969 + $0xa40] sm:$0xff]
        %v1373 = vld [vmem:[%s969 + $0xa48] sm:$0xff]
        %v1374 = vld [vmem:[%s969 + $0xa50] sm:$0xff]
        %v1375 = vld [vmem:[%s969 + $0xa58] sm:$0xff]
        %v1376 = vld [vmem:[%s969 + $0xa60] sm:$0xff]
        %v1377 = vld [vmem:[%s969 + $0xa68] sm:$0xff]
        %v1378 = vld [vmem:[%s969 + $0xa70] sm:$0xff]
        %v1379 = vld [vmem:[%s969 + $0xa78] sm:$0xff]
        %v1380 = vld [vmem:[%s969 + $0xa80] sm:$0xff]
        %v1381 = vld [vmem:[%s969 + $0xa88] sm:$0xff]
        %v1382 = vld [vmem:[%s969 + $0xa90] sm:$0xff]
        %v1383 = vld [vmem:[%s969 + $0xa98] sm:$0xff]
        %v1384 = vld [vmem:[%s969 + $0xaa0] sm:$0xff]
        %v1385 = vld [vmem:[%s969 + $0xaa8] sm:$0xff]
        %v1386 = vld [vmem:[%s969 + $0xab0] sm:$0xff]
        %v1387 = vld [vmem:[%s969 + $0xab8] sm:$0xff]
        %v1388 = vld [vmem:[%s969 + $0xac0] sm:$0xff]
        %v1389 = vld [vmem:[%s969 + $0xac8] sm:$0xff]
        %v1390 = vld [vmem:[%s969 + $0xad0] sm:$0xff]
        %v1391 = vld [vmem:[%s969 + $0xad8] sm:$0xff]
        %v1392 = vld [vmem:[%s969 + $0xae0] sm:$0xff]
        %v1393 = vld [vmem:[%s969 + $0xae8] sm:$0xff]
        %v1394 = vld [vmem:[%s969 + $0xaf0] sm:$0xff]
        %v1395 = vld [vmem:[%s969 + $0xaf8] sm:$0xff]
        %v1396 = vld [vmem:[%s969 + $0xb00] sm:$0xff]
        %v1397 = vld [vmem:[%s969 + $0xb08] sm:$0xff]
        %v1398 = vld [vmem:[%s969 + $0xb10] sm:$0xff]
        %v1399 = vld [vmem:[%s969 + $0xb18] sm:$0xff]
        %v1400 = vld [vmem:[%s969 + $0xb20] sm:$0xff]
        %v1401 = vld [vmem:[%s969 + $0xb28] sm:$0xff]
        %v1402 = vld [vmem:[%s969 + $0xb30] sm:$0xff]
        %v1403 = vld [vmem:[%s969 + $0xb38] sm:$0xff]
        %v1404 = vld [vmem:[%s969 + $0xb40] sm:$0xff]
        %v1405 = vld [vmem:[%s969 + $0xb48] sm:$0xff]
        %v1406 = vld [vmem:[%s969 + $0xb50] sm:$0xff]
        %v1407 = vld [vmem:[%s969 + $0xb58] sm:$0xff]
        %v1408 = vld [vmem:[%s969 + $0xb60] sm:$0xff]
        %v1409 = vld [vmem:[%s969 + $0xb68] sm:$0xff]
        %v1410 = vld [vmem:[%s969 + $0xb70] sm:$0xff]
        %v1411 = vld [vmem:[%s969 + $0xb78] sm:$0xff]
        %v1412 = vld [vmem:[%s969 + $0xb80] sm:$0xff]
        %v1413 = vld [vmem:[%s969 + $0xb88] sm:$0xff]
        %v1414 = vld [vmem:[%s969 + $0xb90] sm:$0xff]
        %v1415 = vld [vmem:[%s969 + $0xb98] sm:$0xff]
        %v1416 = vld [vmem:[%s969 + $0xba0] sm:$0xff]
        %v1417 = vld [vmem:[%s969 + $0xba8] sm:$0xff]
        %v1418 = vld [vmem:[%s969 + $0xbb0] sm:$0xff]
        %v1419 = vld [vmem:[%s969 + $0xbb8] sm:$0xff]
        %v1420 = vld [vmem:[%s969 + $0xbc0] sm:$0xff]
        %v1421 = vld [vmem:[%s969 + $0xbc8] sm:$0xff]
        %v1422 = vld [vmem:[%s969 + $0xbd0] sm:$0xff]
        %v1423 = vld [vmem:[%s969 + $0xbd8] sm:$0xff]
        %v1424 = vld [vmem:[%s969 + $0xbe0] sm:$0xff]
        %v1425 = vld [vmem:[%s969 + $0xbe8] sm:$0xff]
        %v1426 = vld [vmem:[%s969 + $0xbf0] sm:$0xff]
        %v1427 = vld [vmem:[%s969 + $0xbf8] sm:$0xff]
        %v1440 = vunpack.c.l.b16 %v1032
        %v1441 = vunpack.c.h.b16 %v1032
        %v1442 = vunpack.c.l.b16 %v1033
        %v1443 = vunpack.c.h.b16 %v1033
        %v1444 = vunpack.c.l.b16 %v1034
        %v1445 = vunpack.c.h.b16 %v1034
        %v1446 = vunpack.c.l.b16 %v1035
        %v1447 = vunpack.c.h.b16 %v1035
        %v1448 = vunpack.c.l.b16 %v1036
        %v1449 = vunpack.c.h.b16 %v1036
        %v1450 = vunpack.c.l.b16 %v1037
        %v1451 = vunpack.c.h.b16 %v1037
        %v1452 = vunpack.c.l.b16 %v1038
        %v1453 = vunpack.c.h.b16 %v1038
        %v1454 = vunpack.c.l.b16 %v1039
        %v1455 = vunpack.c.h.b16 %v1039
        %v1456 = vunpack.c.l.b16 %v1040
        %v1457 = vunpack.c.h.b16 %v1040
        %v1458 = vunpack.c.l.b16 %v1041
        %v1459 = vunpack.c.h.b16 %v1041
        %v1460 = vunpack.c.l.b16 %v1042
        %v1461 = vunpack.c.h.b16 %v1042
        %v1462 = vunpack.c.l.b16 %v1043
        %v1463 = vunpack.c.h.b16 %v1043
        %v1464 = vpack.c.b16 %v1452, %v1440
        %v1465 = vpack.c.b16 %v1453, %v1441
        %v1466 = vpack.c.b16 %v1454, %v1442
        %v1467 = vpack.c.b16 %v1455, %v1443
        %v1468 = vpack.c.b16 %v1456, %v1444
        %v1469 = vpack.c.b16 %v1457, %v1445
        %v1470 = vpack.c.b16 %v1458, %v1446
        %v1471 = vpack.c.b16 %v1459, %v1447
        %v1472 = vpack.c.b16 %v1460, %v1448
        %v1473 = vpack.c.b16 %v1461, %v1449
        %v1474 = vpack.c.b16 %v1462, %v1450
        %v1475 = vpack.c.b16 %v1463, %v1451
        %v1872 = vunpack.c.l.b16 %v1044
        %v1873 = vunpack.c.h.b16 %v1044
        %v1874 = vunpack.c.l.b16 %v1045
        %v1875 = vunpack.c.h.b16 %v1045
        %v1876 = vunpack.c.l.b16 %v1046
        %v1877 = vunpack.c.h.b16 %v1046
        %v1878 = vunpack.c.l.b16 %v1047
        %v1879 = vunpack.c.h.b16 %v1047
        %v1880 = vunpack.c.l.b16 %v1048
        %v1881 = vunpack.c.h.b16 %v1048
        %v1882 = vunpack.c.l.b16 %v1049
        %v1883 = vunpack.c.h.b16 %v1049
        %v1884 = vunpack.c.l.b16 %v1050
        %v1885 = vunpack.c.h.b16 %v1050
        %v1886 = vunpack.c.l.b16 %v1051
        %v1887 = vunpack.c.h.b16 %v1051
        %v1888 = vunpack.c.l.b16 %v1052
        %v1889 = vunpack.c.h.b16 %v1052
        %v1890 = vunpack.c.l.b16 %v1053
        %v1891 = vunpack.c.h.b16 %v1053
        %v1892 = vunpack.c.l.b16 %v1054
        %v1893 = vunpack.c.h.b16 %v1054
        %v1894 = vunpack.c.l.b16 %v1055
        %v1895 = vunpack.c.h.b16 %v1055
        %v1896 = vunpack.c.l.b16 %v1056
        %v1897 = vunpack.c.h.b16 %v1056
        %v1898 = vunpack.c.l.b16 %v1057
        %v1899 = vunpack.c.h.b16 %v1057
        %v1900 = vunpack.c.l.b16 %v1058
        %v1901 = vunpack.c.h.b16 %v1058
        %v1902 = vunpack.c.l.b16 %v1059
        %v1903 = vunpack.c.h.b16 %v1059
        %v1904 = vunpack.c.l.b16 %v1060
        %v1905 = vunpack.c.h.b16 %v1060
        %v1906 = vunpack.c.l.b16 %v1061
        %v1907 = vunpack.c.h.b16 %v1061
        %v1908 = vunpack.c.l.b16 %v1062
        %v1909 = vunpack.c.h.b16 %v1062
        %v1910 = vunpack.c.l.b16 %v1063
        %v1911 = vunpack.c.h.b16 %v1063
        %v1912 = vunpack.c.l.b16 %v1064
        %v1913 = vunpack.c.h.b16 %v1064
        %v1914 = vunpack.c.l.b16 %v1065
        %v1915 = vunpack.c.h.b16 %v1065
        %v1916 = vunpack.c.l.b16 %v1066
        %v1917 = vunpack.c.h.b16 %v1066
        %v1918 = vunpack.c.l.b16 %v1067
        %v1919 = vunpack.c.h.b16 %v1067
        %v1920 = vunpack.c.l.b16 %v1068
        %v1921 = vunpack.c.h.b16 %v1068
        %v1922 = vunpack.c.l.b16 %v1069
        %v1923 = vunpack.c.h.b16 %v1069
        %v1924 = vunpack.c.l.b16 %v1070
        %v1925 = vunpack.c.h.b16 %v1070
        %v1926 = vunpack.c.l.b16 %v1071
        %v1927 = vunpack.c.h.b16 %v1071
        %v1928 = vunpack.c.l.b16 %v1072
        %v1929 = vunpack.c.h.b16 %v1072
        %v1930 = vunpack.c.l.b16 %v1073
        %v1931 = vunpack.c.h.b16 %v1073
        %v1932 = vunpack.c.l.b16 %v1074
        %v1933 = vunpack.c.h.b16 %v1074
        %v1934 = vunpack.c.l.b16 %v1075
        %v1935 = vunpack.c.h.b16 %v1075
        %v1936 = vunpack.c.l.b16 %v1076
        %v1937 = vunpack.c.h.b16 %v1076
        %v1938 = vunpack.c.l.b16 %v1077
        %v1939 = vunpack.c.h.b16 %v1077
        %v1940 = vunpack.c.l.b16 %v1078
        %v1941 = vunpack.c.h.b16 %v1078
        %v1942 = vunpack.c.l.b16 %v1079
        %v1943 = vunpack.c.h.b16 %v1079
        %v1944 = vunpack.c.l.b16 %v1080
        %v1945 = vunpack.c.h.b16 %v1080
        %v1946 = vunpack.c.l.b16 %v1081
        %v1947 = vunpack.c.h.b16 %v1081
        %v1948 = vunpack.c.l.b16 %v1082
        %v1949 = vunpack.c.h.b16 %v1082
        %v1950 = vunpack.c.l.b16 %v1083
        %v1951 = vunpack.c.h.b16 %v1083
        %v1952 = vunpack.c.l.b16 %v1084
        %v1953 = vunpack.c.h.b16 %v1084
        %v1954 = vunpack.c.l.b16 %v1085
        %v1955 = vunpack.c.h.b16 %v1085
        %v1956 = vunpack.c.l.b16 %v1086
        %v1957 = vunpack.c.h.b16 %v1086
        %v1958 = vunpack.c.l.b16 %v1087
        %v1959 = vunpack.c.h.b16 %v1087
        %v1960 = vunpack.c.l.b16 %v1088
        %v1961 = vunpack.c.h.b16 %v1088
        %v1962 = vunpack.c.l.b16 %v1089
        %v1963 = vunpack.c.h.b16 %v1089
        %v1964 = vunpack.c.l.b16 %v1090
        %v1965 = vunpack.c.h.b16 %v1090
        %v1966 = vunpack.c.l.b16 %v1091
        %v1967 = vunpack.c.h.b16 %v1091
        %v1968 = vunpack.c.l.b16 %v1092
        %v1969 = vunpack.c.h.b16 %v1092
        %v1970 = vunpack.c.l.b16 %v1093
        %v1971 = vunpack.c.h.b16 %v1093
        %v1972 = vunpack.c.l.b16 %v1094
        %v1973 = vunpack.c.h.b16 %v1094
        %v1974 = vunpack.c.l.b16 %v1095
        %v1975 = vunpack.c.h.b16 %v1095
        %v1976 = vunpack.c.l.b16 %v1096
        %v1977 = vunpack.c.h.b16 %v1096
        %v1978 = vunpack.c.l.b16 %v1097
        %v1979 = vunpack.c.h.b16 %v1097
        %v1980 = vunpack.c.l.b16 %v1098
        %v1981 = vunpack.c.h.b16 %v1098
        %v1982 = vunpack.c.l.b16 %v1099
        %v1983 = vunpack.c.h.b16 %v1099
        %v1984 = vunpack.c.l.b16 %v1100
        %v1985 = vunpack.c.h.b16 %v1100
        %v1986 = vunpack.c.l.b16 %v1101
        %v1987 = vunpack.c.h.b16 %v1101
        %v1988 = vunpack.c.l.b16 %v1102
        %v1989 = vunpack.c.h.b16 %v1102
        %v1990 = vunpack.c.l.b16 %v1103
        %v1991 = vunpack.c.h.b16 %v1103
        %v1992 = vunpack.c.l.b16 %v1104
        %v1993 = vunpack.c.h.b16 %v1104
        %v1994 = vunpack.c.l.b16 %v1105
        %v1995 = vunpack.c.h.b16 %v1105
        %v1996 = vunpack.c.l.b16 %v1106
        %v1997 = vunpack.c.h.b16 %v1106
        %v1998 = vunpack.c.l.b16 %v1107
        %v1999 = vunpack.c.h.b16 %v1107
        %v2000 = vunpack.c.l.b16 %v1108
        %v2001 = vunpack.c.h.b16 %v1108
        %v2002 = vunpack.c.l.b16 %v1109
        %v2003 = vunpack.c.h.b16 %v1109
        %v2004 = vunpack.c.l.b16 %v1110
        %v2005 = vunpack.c.h.b16 %v1110
        %v2006 = vunpack.c.l.b16 %v1111
        %v2007 = vunpack.c.h.b16 %v1111
        %v2008 = vunpack.c.l.b16 %v1112
        %v2009 = vunpack.c.h.b16 %v1112
        %v2010 = vunpack.c.l.b16 %v1113
        %v2011 = vunpack.c.h.b16 %v1113
        %v2012 = vunpack.c.l.b16 %v1114
        %v2013 = vunpack.c.h.b16 %v1114
        %v2014 = vunpack.c.l.b16 %v1115
        %v2015 = vunpack.c.h.b16 %v1115
        %v2016 = vunpack.c.l.b16 %v1116
        %v2017 = vunpack.c.h.b16 %v1116
        %v2018 = vunpack.c.l.b16 %v1117
        %v2019 = vunpack.c.h.b16 %v1117
        %v2020 = vunpack.c.l.b16 %v1118
        %v2021 = vunpack.c.h.b16 %v1118
        %v2022 = vunpack.c.l.b16 %v1119
        %v2023 = vunpack.c.h.b16 %v1119
        %v2024 = vunpack.c.l.b16 %v1120
        %v2025 = vunpack.c.h.b16 %v1120
        %v2026 = vunpack.c.l.b16 %v1121
        %v2027 = vunpack.c.h.b16 %v1121
        %v2028 = vunpack.c.l.b16 %v1122
        %v2029 = vunpack.c.h.b16 %v1122
        %v2030 = vunpack.c.l.b16 %v1123
        %v2031 = vunpack.c.h.b16 %v1123
        %v2032 = vunpack.c.l.b16 %v1124
        %v2033 = vunpack.c.h.b16 %v1124
        %v2034 = vunpack.c.l.b16 %v1125
        %v2035 = vunpack.c.h.b16 %v1125
        %v2036 = vunpack.c.l.b16 %v1126
        %v2037 = vunpack.c.h.b16 %v1126
        %v2038 = vunpack.c.l.b16 %v1127
        %v2039 = vunpack.c.h.b16 %v1127
        %v2040 = vunpack.c.l.b16 %v1128
        %v2041 = vunpack.c.h.b16 %v1128
        %v2042 = vunpack.c.l.b16 %v1129
        %v2043 = vunpack.c.h.b16 %v1129
        %v2044 = vunpack.c.l.b16 %v1130
        %v2045 = vunpack.c.h.b16 %v1130
        %v2046 = vunpack.c.l.b16 %v1131
        %v2047 = vunpack.c.h.b16 %v1131
        %v2048 = vunpack.c.l.b16 %v1132
        %v2049 = vunpack.c.h.b16 %v1132
        %v2050 = vunpack.c.l.b16 %v1133
        %v2051 = vunpack.c.h.b16 %v1133
        %v2052 = vunpack.c.l.b16 %v1134
        %v2053 = vunpack.c.h.b16 %v1134
        %v2054 = vunpack.c.l.b16 %v1135
        %v2055 = vunpack.c.h.b16 %v1135
        %v2056 = vunpack.c.l.b16 %v1136
        %v2057 = vunpack.c.h.b16 %v1136
        %v2058 = vunpack.c.l.b16 %v1137
        %v2059 = vunpack.c.h.b16 %v1137
        %v2060 = vunpack.c.l.b16 %v1138
        %v2061 = vunpack.c.h.b16 %v1138
        %v2062 = vunpack.c.l.b16 %v1139
        %v2063 = vunpack.c.h.b16 %v1139
        %v2064 = vunpack.c.l.b16 %v1140
        %v2065 = vunpack.c.h.b16 %v1140
        %v2066 = vunpack.c.l.b16 %v1141
        %v2067 = vunpack.c.h.b16 %v1141
        %v2068 = vunpack.c.l.b16 %v1142
        %v2069 = vunpack.c.h.b16 %v1142
        %v2070 = vunpack.c.l.b16 %v1143
        %v2071 = vunpack.c.h.b16 %v1143
        %v2072 = vunpack.c.l.b16 %v1144
        %v2073 = vunpack.c.h.b16 %v1144
        %v2074 = vunpack.c.l.b16 %v1145
        %v2075 = vunpack.c.h.b16 %v1145
        %v2076 = vunpack.c.l.b16 %v1146
        %v2077 = vunpack.c.h.b16 %v1146
        %v2078 = vunpack.c.l.b16 %v1147
        %v2079 = vunpack.c.h.b16 %v1147
        %v2080 = vunpack.c.l.b16 %v1148
        %v2081 = vunpack.c.h.b16 %v1148
        %v2082 = vunpack.c.l.b16 %v1149
        %v2083 = vunpack.c.h.b16 %v1149
        %v2084 = vunpack.c.l.b16 %v1150
        %v2085 = vunpack.c.h.b16 %v1150
        %v2086 = vunpack.c.l.b16 %v1151
        %v2087 = vunpack.c.h.b16 %v1151
        %v2088 = vunpack.c.l.b16 %v1152
        %v2089 = vunpack.c.h.b16 %v1152
        %v2090 = vunpack.c.l.b16 %v1153
        %v2091 = vunpack.c.h.b16 %v1153
        %v2092 = vunpack.c.l.b16 %v1154
        %v2093 = vunpack.c.h.b16 %v1154
        %v2094 = vunpack.c.l.b16 %v1155
        %v2095 = vunpack.c.h.b16 %v1155
        %v2096 = vunpack.c.l.b16 %v1156
        %v2097 = vunpack.c.h.b16 %v1156
        %v2098 = vunpack.c.l.b16 %v1157
        %v2099 = vunpack.c.h.b16 %v1157
        %v2100 = vunpack.c.l.b16 %v1158
        %v2101 = vunpack.c.h.b16 %v1158
        %v2102 = vunpack.c.l.b16 %v1159
        %v2103 = vunpack.c.h.b16 %v1159
        %v2104 = vunpack.c.l.b16 %v1160
        %v2105 = vunpack.c.h.b16 %v1160
        %v2106 = vunpack.c.l.b16 %v1161
        %v2107 = vunpack.c.h.b16 %v1161
        %v2108 = vunpack.c.l.b16 %v1162
        %v2109 = vunpack.c.h.b16 %v1162
        %v2110 = vunpack.c.l.b16 %v1163
        %v2111 = vunpack.c.h.b16 %v1163
        %v2112 = vunpack.c.l.b16 %v1164
        %v2113 = vunpack.c.h.b16 %v1164
        %v2114 = vunpack.c.l.b16 %v1165
        %v2115 = vunpack.c.h.b16 %v1165
        %v2116 = vunpack.c.l.b16 %v1166
        %v2117 = vunpack.c.h.b16 %v1166
        %v2118 = vunpack.c.l.b16 %v1167
        %v2119 = vunpack.c.h.b16 %v1167
        %v2120 = vunpack.c.l.b16 %v1168
        %v2121 = vunpack.c.h.b16 %v1168
        %v2122 = vunpack.c.l.b16 %v1169
        %v2123 = vunpack.c.h.b16 %v1169
        %v2124 = vunpack.c.l.b16 %v1170
        %v2125 = vunpack.c.h.b16 %v1170
        %v2126 = vunpack.c.l.b16 %v1171
        %v2127 = vunpack.c.h.b16 %v1171
        %v2128 = vunpack.c.l.b16 %v1172
        %v2129 = vunpack.c.h.b16 %v1172
        %v2130 = vunpack.c.l.b16 %v1173
        %v2131 = vunpack.c.h.b16 %v1173
        %v2132 = vunpack.c.l.b16 %v1174
        %v2133 = vunpack.c.h.b16 %v1174
        %v2134 = vunpack.c.l.b16 %v1175
        %v2135 = vunpack.c.h.b16 %v1175
        %v2136 = vunpack.c.l.b16 %v1176
        %v2137 = vunpack.c.h.b16 %v1176
        %v2138 = vunpack.c.l.b16 %v1177
        %v2139 = vunpack.c.h.b16 %v1177
        %v2140 = vunpack.c.l.b16 %v1178
        %v2141 = vunpack.c.h.b16 %v1178
        %v2142 = vunpack.c.l.b16 %v1179
        %v2143 = vunpack.c.h.b16 %v1179
        %v2144 = vunpack.c.l.b16 %v1180
        %v2145 = vunpack.c.h.b16 %v1180
        %v2146 = vunpack.c.l.b16 %v1181
        %v2147 = vunpack.c.h.b16 %v1181
        %v2148 = vunpack.c.l.b16 %v1182
        %v2149 = vunpack.c.h.b16 %v1182
        %v2150 = vunpack.c.l.b16 %v1183
        %v2151 = vunpack.c.h.b16 %v1183
        %v2152 = vunpack.c.l.b16 %v1184
        %v2153 = vunpack.c.h.b16 %v1184
        %v2154 = vunpack.c.l.b16 %v1185
        %v2155 = vunpack.c.h.b16 %v1185
        %v2156 = vunpack.c.l.b16 %v1186
        %v2157 = vunpack.c.h.b16 %v1186
        %v2158 = vunpack.c.l.b16 %v1187
        %v2159 = vunpack.c.h.b16 %v1187
        %v2160 = vunpack.c.l.b16 %v1188
        %v2161 = vunpack.c.h.b16 %v1188
        %v2162 = vunpack.c.l.b16 %v1189
        %v2163 = vunpack.c.h.b16 %v1189
        %v2164 = vunpack.c.l.b16 %v1190
        %v2165 = vunpack.c.h.b16 %v1190
        %v2166 = vunpack.c.l.b16 %v1191
        %v2167 = vunpack.c.h.b16 %v1191
        %v2168 = vunpack.c.l.b16 %v1192
        %v2169 = vunpack.c.h.b16 %v1192
        %v2170 = vunpack.c.l.b16 %v1193
        %v2171 = vunpack.c.h.b16 %v1193
        %v2172 = vunpack.c.l.b16 %v1194
        %v2173 = vunpack.c.h.b16 %v1194
        %v2174 = vunpack.c.l.b16 %v1195
        %v2175 = vunpack.c.h.b16 %v1195
        %v2176 = vunpack.c.l.b16 %v1196
        %v2177 = vunpack.c.h.b16 %v1196
        %v2178 = vunpack.c.l.b16 %v1197
        %v2179 = vunpack.c.h.b16 %v1197
        %v2180 = vunpack.c.l.b16 %v1198
        %v2181 = vunpack.c.h.b16 %v1198
        %v2182 = vunpack.c.l.b16 %v1199
        %v2183 = vunpack.c.h.b16 %v1199
        %v2184 = vunpack.c.l.b16 %v1200
        %v2185 = vunpack.c.h.b16 %v1200
        %v2186 = vunpack.c.l.b16 %v1201
        %v2187 = vunpack.c.h.b16 %v1201
        %v2188 = vunpack.c.l.b16 %v1202
        %v2189 = vunpack.c.h.b16 %v1202
        %v2190 = vunpack.c.l.b16 %v1203
        %v2191 = vunpack.c.h.b16 %v1203
        %v2192 = vunpack.c.l.b16 %v1204
        %v2193 = vunpack.c.h.b16 %v1204
        %v2194 = vunpack.c.l.b16 %v1205
        %v2195 = vunpack.c.h.b16 %v1205
        %v2196 = vunpack.c.l.b16 %v1206
        %v2197 = vunpack.c.h.b16 %v1206
        %v2198 = vunpack.c.l.b16 %v1207
        %v2199 = vunpack.c.h.b16 %v1207
        %v2200 = vunpack.c.l.b16 %v1208
        %v2201 = vunpack.c.h.b16 %v1208
        %v2202 = vunpack.c.l.b16 %v1209
        %v2203 = vunpack.c.h.b16 %v1209
        %v2204 = vunpack.c.l.b16 %v1210
        %v2205 = vunpack.c.h.b16 %v1210
        %v2206 = vunpack.c.l.b16 %v1211
        %v2207 = vunpack.c.h.b16 %v1211
        %v2208 = vunpack.c.l.b16 %v1212
        %v2209 = vunpack.c.h.b16 %v1212
        %v2210 = vunpack.c.l.b16 %v1213
        %v2211 = vunpack.c.h.b16 %v1213
        %v2212 = vunpack.c.l.b16 %v1214
        %v2213 = vunpack.c.h.b16 %v1214
        %v2214 = vunpack.c.l.b16 %v1215
        %v2215 = vunpack.c.h.b16 %v1215
        %v2216 = vunpack.c.l.b16 %v1216
        %v2217 = vunpack.c.h.b16 %v1216
        %v2218 = vunpack.c.l.b16 %v1217
        %v2219 = vunpack.c.h.b16 %v1217
        %v2220 = vunpack.c.l.b16 %v1218
        %v2221 = vunpack.c.h.b16 %v1218
        %v2222 = vunpack.c.l.b16 %v1219
        %v2223 = vunpack.c.h.b16 %v1219
        %v2224 = vunpack.c.l.b16 %v1220
        %v2225 = vunpack.c.h.b16 %v1220
        %v2226 = vunpack.c.l.b16 %v1221
        %v2227 = vunpack.c.h.b16 %v1221
        %v2228 = vunpack.c.l.b16 %v1222
        %v2229 = vunpack.c.h.b16 %v1222
        %v2230 = vunpack.c.l.b16 %v1223
        %v2231 = vunpack.c.h.b16 %v1223
        %v2232 = vunpack.c.l.b16 %v1224
        %v2233 = vunpack.c.h.b16 %v1224
        %v2234 = vunpack.c.l.b16 %v1225
        %v2235 = vunpack.c.h.b16 %v1225
        %v2236 = vunpack.c.l.b16 %v1226
        %v2237 = vunpack.c.h.b16 %v1226
        %v2238 = vunpack.c.l.b16 %v1227
        %v2239 = vunpack.c.h.b16 %v1227
        %v2240 = vunpack.c.l.b16 %v1228
        %v2241 = vunpack.c.h.b16 %v1228
        %v2242 = vunpack.c.l.b16 %v1229
        %v2243 = vunpack.c.h.b16 %v1229
        %v2244 = vunpack.c.l.b16 %v1230
        %v2245 = vunpack.c.h.b16 %v1230
        %v2246 = vunpack.c.l.b16 %v1231
        %v2247 = vunpack.c.h.b16 %v1231
        %v2248 = vunpack.c.l.b16 %v1232
        %v2249 = vunpack.c.h.b16 %v1232
        %v2250 = vunpack.c.l.b16 %v1233
        %v2251 = vunpack.c.h.b16 %v1233
        %v2252 = vunpack.c.l.b16 %v1234
        %v2253 = vunpack.c.h.b16 %v1234
        %v2254 = vunpack.c.l.b16 %v1235
        %v2255 = vunpack.c.h.b16 %v1235
        %v2256 = vunpack.c.l.b16 %v1236
        %v2257 = vunpack.c.h.b16 %v1236
        %v2258 = vunpack.c.l.b16 %v1237
        %v2259 = vunpack.c.h.b16 %v1237
        %v2260 = vunpack.c.l.b16 %v1238
        %v2261 = vunpack.c.h.b16 %v1238
        %v2262 = vunpack.c.l.b16 %v1239
        %v2263 = vunpack.c.h.b16 %v1239
        %v2264 = vunpack.c.l.b16 %v1240
        %v2265 = vunpack.c.h.b16 %v1240
        %v2266 = vunpack.c.l.b16 %v1241
        %v2267 = vunpack.c.h.b16 %v1241
        %v2268 = vunpack.c.l.b16 %v1242
        %v2269 = vunpack.c.h.b16 %v1242
        %v2270 = vunpack.c.l.b16 %v1243
        %v2271 = vunpack.c.h.b16 %v1243
        %v2272 = vunpack.c.l.b16 %v1244
        %v2273 = vunpack.c.h.b16 %v1244
        %v2274 = vunpack.c.l.b16 %v1245
        %v2275 = vunpack.c.h.b16 %v1245
        %v2276 = vunpack.c.l.b16 %v1246
        %v2277 = vunpack.c.h.b16 %v1246
        %v2278 = vunpack.c.l.b16 %v1247
        %v2279 = vunpack.c.h.b16 %v1247
        %v2280 = vunpack.c.l.b16 %v1248
        %v2281 = vunpack.c.h.b16 %v1248
        %v2282 = vunpack.c.l.b16 %v1249
        %v2283 = vunpack.c.h.b16 %v1249
        %v2284 = vunpack.c.l.b16 %v1250
        %v2285 = vunpack.c.h.b16 %v1250
        %v2286 = vunpack.c.l.b16 %v1251
        %v2287 = vunpack.c.h.b16 %v1251
        %v2288 = vunpack.c.l.b16 %v1252
        %v2289 = vunpack.c.h.b16 %v1252
        %v2290 = vunpack.c.l.b16 %v1253
        %v2291 = vunpack.c.h.b16 %v1253
        %v2292 = vunpack.c.l.b16 %v1254
        %v2293 = vunpack.c.h.b16 %v1254
        %v2294 = vunpack.c.l.b16 %v1255
        %v2295 = vunpack.c.h.b16 %v1255
        %v2296 = vunpack.c.l.b16 %v1256
        %v2297 = vunpack.c.h.b16 %v1256
        %v2298 = vunpack.c.l.b16 %v1257
        %v2299 = vunpack.c.h.b16 %v1257
        %v2300 = vunpack.c.l.b16 %v1258
        %v2301 = vunpack.c.h.b16 %v1258
        %v2302 = vunpack.c.l.b16 %v1259
        %v2303 = vunpack.c.h.b16 %v1259
        %v2304 = vunpack.c.l.b16 %v1260
        %v2305 = vunpack.c.h.b16 %v1260
        %v2306 = vunpack.c.l.b16 %v1261
        %v2307 = vunpack.c.h.b16 %v1261
        %v2308 = vunpack.c.l.b16 %v1262
        %v2309 = vunpack.c.h.b16 %v1262
        %v2310 = vunpack.c.l.b16 %v1263
        %v2311 = vunpack.c.h.b16 %v1263
        %v2312 = vunpack.c.l.b16 %v1264
        %v2313 = vunpack.c.h.b16 %v1264
        %v2314 = vunpack.c.l.b16 %v1265
        %v2315 = vunpack.c.h.b16 %v1265
        %v2316 = vunpack.c.l.b16 %v1266
        %v2317 = vunpack.c.h.b16 %v1266
        %v2318 = vunpack.c.l.b16 %v1267
        %v2319 = vunpack.c.h.b16 %v1267
        %v2320 = vunpack.c.l.b16 %v1268
        %v2321 = vunpack.c.h.b16 %v1268
        %v2322 = vunpack.c.l.b16 %v1269
        %v2323 = vunpack.c.h.b16 %v1269
        %v2324 = vunpack.c.l.b16 %v1270
        %v2325 = vunpack.c.h.b16 %v1270
        %v2326 = vunpack.c.l.b16 %v1271
        %v2327 = vunpack.c.h.b16 %v1271
        %v2328 = vunpack.c.l.b16 %v1272
        %v2329 = vunpack.c.h.b16 %v1272
        %v2330 = vunpack.c.l.b16 %v1273
        %v2331 = vunpack.c.h.b16 %v1273
        %v2332 = vunpack.c.l.b16 %v1274
        %v2333 = vunpack.c.h.b16 %v1274
        %v2334 = vunpack.c.l.b16 %v1275
        %v2335 = vunpack.c.h.b16 %v1275
        %v2336 = vunpack.c.l.b16 %v1276
        %v2337 = vunpack.c.h.b16 %v1276
        %v2338 = vunpack.c.l.b16 %v1277
        %v2339 = vunpack.c.h.b16 %v1277
        %v2340 = vunpack.c.l.b16 %v1278
        %v2341 = vunpack.c.h.b16 %v1278
        %v2342 = vunpack.c.l.b16 %v1279
        %v2343 = vunpack.c.h.b16 %v1279
        %v2344 = vunpack.c.l.b16 %v1280
        %v2345 = vunpack.c.h.b16 %v1280
        %v2346 = vunpack.c.l.b16 %v1281
        %v2347 = vunpack.c.h.b16 %v1281
        %v2348 = vunpack.c.l.b16 %v1282
        %v2349 = vunpack.c.h.b16 %v1282
        %v2350 = vunpack.c.l.b16 %v1283
        %v2351 = vunpack.c.h.b16 %v1283
        %v2352 = vunpack.c.l.b16 %v1284
        %v2353 = vunpack.c.h.b16 %v1284
        %v2354 = vunpack.c.l.b16 %v1285
        %v2355 = vunpack.c.h.b16 %v1285
        %v2356 = vunpack.c.l.b16 %v1286
        %v2357 = vunpack.c.h.b16 %v1286
        %v2358 = vunpack.c.l.b16 %v1287
        %v2359 = vunpack.c.h.b16 %v1287
        %v2360 = vunpack.c.l.b16 %v1288
        %v2361 = vunpack.c.h.b16 %v1288
        %v2362 = vunpack.c.l.b16 %v1289
        %v2363 = vunpack.c.h.b16 %v1289
        %v2364 = vunpack.c.l.b16 %v1290
        %v2365 = vunpack.c.h.b16 %v1290
        %v2366 = vunpack.c.l.b16 %v1291
        %v2367 = vunpack.c.h.b16 %v1291
        %v2368 = vunpack.c.l.b16 %v1292
        %v2369 = vunpack.c.h.b16 %v1292
        %v2370 = vunpack.c.l.b16 %v1293
        %v2371 = vunpack.c.h.b16 %v1293
        %v2372 = vunpack.c.l.b16 %v1294
        %v2373 = vunpack.c.h.b16 %v1294
        %v2374 = vunpack.c.l.b16 %v1295
        %v2375 = vunpack.c.h.b16 %v1295
        %v2376 = vunpack.c.l.b16 %v1296
        %v2377 = vunpack.c.h.b16 %v1296
        %v2378 = vunpack.c.l.b16 %v1297
        %v2379 = vunpack.c.h.b16 %v1297
        %v2380 = vunpack.c.l.b16 %v1298
        %v2381 = vunpack.c.h.b16 %v1298
        %v2382 = vunpack.c.l.b16 %v1299
        %v2383 = vunpack.c.h.b16 %v1299
        %v2384 = vunpack.c.l.b16 %v1300
        %v2385 = vunpack.c.h.b16 %v1300
        %v2386 = vunpack.c.l.b16 %v1301
        %v2387 = vunpack.c.h.b16 %v1301
        %v2388 = vunpack.c.l.b16 %v1302
        %v2389 = vunpack.c.h.b16 %v1302
        %v2390 = vunpack.c.l.b16 %v1303
        %v2391 = vunpack.c.h.b16 %v1303
        %v2392 = vunpack.c.l.b16 %v1304
        %v2393 = vunpack.c.h.b16 %v1304
        %v2394 = vunpack.c.l.b16 %v1305
        %v2395 = vunpack.c.h.b16 %v1305
        %v2396 = vunpack.c.l.b16 %v1306
        %v2397 = vunpack.c.h.b16 %v1306
        %v2398 = vunpack.c.l.b16 %v1307
        %v2399 = vunpack.c.h.b16 %v1307
        %v2400 = vunpack.c.l.b16 %v1308
        %v2401 = vunpack.c.h.b16 %v1308
        %v2402 = vunpack.c.l.b16 %v1309
        %v2403 = vunpack.c.h.b16 %v1309
        %v2404 = vunpack.c.l.b16 %v1310
        %v2405 = vunpack.c.h.b16 %v1310
        %v2406 = vunpack.c.l.b16 %v1311
        %v2407 = vunpack.c.h.b16 %v1311
        %v2408 = vunpack.c.l.b16 %v1312
        %v2409 = vunpack.c.h.b16 %v1312
        %v2410 = vunpack.c.l.b16 %v1313
        %v2411 = vunpack.c.h.b16 %v1313
        %v2412 = vunpack.c.l.b16 %v1314
        %v2413 = vunpack.c.h.b16 %v1314
        %v2414 = vunpack.c.l.b16 %v1315
        %v2415 = vunpack.c.h.b16 %v1315
        %v2416 = vunpack.c.l.b16 %v1316
        %v2417 = vunpack.c.h.b16 %v1316
        %v2418 = vunpack.c.l.b16 %v1317
        %v2419 = vunpack.c.h.b16 %v1317
        %v2420 = vunpack.c.l.b16 %v1318
        %v2421 = vunpack.c.h.b16 %v1318
        %v2422 = vunpack.c.l.b16 %v1319
        %v2423 = vunpack.c.h.b16 %v1319
        %v2424 = vunpack.c.l.b16 %v1320
        %v2425 = vunpack.c.h.b16 %v1320
        %v2426 = vunpack.c.l.b16 %v1321
        %v2427 = vunpack.c.h.b16 %v1321
        %v2428 = vunpack.c.l.b16 %v1322
        %v2429 = vunpack.c.h.b16 %v1322
        %v2430 = vunpack.c.l.b16 %v1323
        %v2431 = vunpack.c.h.b16 %v1323
        %v2432 = vunpack.c.l.b16 %v1324
        %v2433 = vunpack.c.h.b16 %v1324
        %v2434 = vunpack.c.l.b16 %v1325
        %v2435 = vunpack.c.h.b16 %v1325
        %v2436 = vunpack.c.l.b16 %v1326
        %v2437 = vunpack.c.h.b16 %v1326
        %v2438 = vunpack.c.l.b16 %v1327
        %v2439 = vunpack.c.h.b16 %v1327
        %v2440 = vunpack.c.l.b16 %v1328
        %v2441 = vunpack.c.h.b16 %v1328
        %v2442 = vunpack.c.l.b16 %v1329
        %v2443 = vunpack.c.h.b16 %v1329
        %v2444 = vunpack.c.l.b16 %v1330
        %v2445 = vunpack.c.h.b16 %v1330
        %v2446 = vunpack.c.l.b16 %v1331
        %v2447 = vunpack.c.h.b16 %v1331
        %v2448 = vunpack.c.l.b16 %v1332
        %v2449 = vunpack.c.h.b16 %v1332
        %v2450 = vunpack.c.l.b16 %v1333
        %v2451 = vunpack.c.h.b16 %v1333
        %v2452 = vunpack.c.l.b16 %v1334
        %v2453 = vunpack.c.h.b16 %v1334
        %v2454 = vunpack.c.l.b16 %v1335
        %v2455 = vunpack.c.h.b16 %v1335
        %v2456 = vunpack.c.l.b16 %v1336
        %v2457 = vunpack.c.h.b16 %v1336
        %v2458 = vunpack.c.l.b16 %v1337
        %v2459 = vunpack.c.h.b16 %v1337
        %v2460 = vunpack.c.l.b16 %v1338
        %v2461 = vunpack.c.h.b16 %v1338
        %v2462 = vunpack.c.l.b16 %v1339
        %v2463 = vunpack.c.h.b16 %v1339
        %v2464 = vunpack.c.l.b16 %v1340
        %v2465 = vunpack.c.h.b16 %v1340
        %v2466 = vunpack.c.l.b16 %v1341
        %v2467 = vunpack.c.h.b16 %v1341
        %v2468 = vunpack.c.l.b16 %v1342
        %v2469 = vunpack.c.h.b16 %v1342
        %v2470 = vunpack.c.l.b16 %v1343
        %v2471 = vunpack.c.h.b16 %v1343
        %v2472 = vunpack.c.l.b16 %v1344
        %v2473 = vunpack.c.h.b16 %v1344
        %v2474 = vunpack.c.l.b16 %v1345
        %v2475 = vunpack.c.h.b16 %v1345
        %v2476 = vunpack.c.l.b16 %v1346
        %v2477 = vunpack.c.h.b16 %v1346
        %v2478 = vunpack.c.l.b16 %v1347
        %v2479 = vunpack.c.h.b16 %v1347
        %v2480 = vunpack.c.l.b16 %v1348
        %v2481 = vunpack.c.h.b16 %v1348
        %v2482 = vunpack.c.l.b16 %v1349
        %v2483 = vunpack.c.h.b16 %v1349
        %v2484 = vunpack.c.l.b16 %v1350
        %v2485 = vunpack.c.h.b16 %v1350
        %v2486 = vunpack.c.l.b16 %v1351
        %v2487 = vunpack.c.h.b16 %v1351
        %v2488 = vunpack.c.l.b16 %v1352
        %v2489 = vunpack.c.h.b16 %v1352
        %v2490 = vunpack.c.l.b16 %v1353
        %v2491 = vunpack.c.h.b16 %v1353
        %v2492 = vunpack.c.l.b16 %v1354
        %v2493 = vunpack.c.h.b16 %v1354
        %v2494 = vunpack.c.l.b16 %v1355
        %v2495 = vunpack.c.h.b16 %v1355
        %v2496 = vunpack.c.l.b16 %v1356
        %v2497 = vunpack.c.h.b16 %v1356
        %v2498 = vunpack.c.l.b16 %v1357
        %v2499 = vunpack.c.h.b16 %v1357
        %v2500 = vunpack.c.l.b16 %v1358
        %v2501 = vunpack.c.h.b16 %v1358
        %v2502 = vunpack.c.l.b16 %v1359
        %v2503 = vunpack.c.h.b16 %v1359
        %v2504 = vunpack.c.l.b16 %v1360
        %v2505 = vunpack.c.h.b16 %v1360
        %v2506 = vunpack.c.l.b16 %v1361
        %v2507 = vunpack.c.h.b16 %v1361
        %v2508 = vunpack.c.l.b16 %v1362
        %v2509 = vunpack.c.h.b16 %v1362
        %v2510 = vunpack.c.l.b16 %v1363
        %v2511 = vunpack.c.h.b16 %v1363
        %v2512 = vunpack.c.l.b16 %v1364
        %v2513 = vunpack.c.h.b16 %v1364
        %v2514 = vunpack.c.l.b16 %v1365
        %v2515 = vunpack.c.h.b16 %v1365
        %v2516 = vunpack.c.l.b16 %v1366
        %v2517 = vunpack.c.h.b16 %v1366
        %v2518 = vunpack.c.l.b16 %v1367
        %v2519 = vunpack.c.h.b16 %v1367
        %v2520 = vunpack.c.l.b16 %v1368
        %v2521 = vunpack.c.h.b16 %v1368
        %v2522 = vunpack.c.l.b16 %v1369
        %v2523 = vunpack.c.h.b16 %v1369
        %v2524 = vunpack.c.l.b16 %v1370
        %v2525 = vunpack.c.h.b16 %v1370
        %v2526 = vunpack.c.l.b16 %v1371
        %v2527 = vunpack.c.h.b16 %v1371
        %v2528 = vunpack.c.l.b16 %v1372
        %v2529 = vunpack.c.h.b16 %v1372
        %v2530 = vunpack.c.l.b16 %v1373
        %v2531 = vunpack.c.h.b16 %v1373
        %v2532 = vunpack.c.l.b16 %v1374
        %v2533 = vunpack.c.h.b16 %v1374
        %v2534 = vunpack.c.l.b16 %v1375
        %v2535 = vunpack.c.h.b16 %v1375
        %v2536 = vunpack.c.l.b16 %v1376
        %v2537 = vunpack.c.h.b16 %v1376
        %v2538 = vunpack.c.l.b16 %v1377
        %v2539 = vunpack.c.h.b16 %v1377
        %v2540 = vunpack.c.l.b16 %v1378
        %v2541 = vunpack.c.h.b16 %v1378
        %v2542 = vunpack.c.l.b16 %v1379
        %v2543 = vunpack.c.h.b16 %v1379
        %v2544 = vunpack.c.l.b16 %v1380
        %v2545 = vunpack.c.h.b16 %v1380
        %v2546 = vunpack.c.l.b16 %v1381
        %v2547 = vunpack.c.h.b16 %v1381
        %v2548 = vunpack.c.l.b16 %v1382
        %v2549 = vunpack.c.h.b16 %v1382
        %v2550 = vunpack.c.l.b16 %v1383
        %v2551 = vunpack.c.h.b16 %v1383
        %v2552 = vunpack.c.l.b16 %v1384
        %v2553 = vunpack.c.h.b16 %v1384
        %v2554 = vunpack.c.l.b16 %v1385
        %v2555 = vunpack.c.h.b16 %v1385
        %v2556 = vunpack.c.l.b16 %v1386
        %v2557 = vunpack.c.h.b16 %v1386
        %v2558 = vunpack.c.l.b16 %v1387
        %v2559 = vunpack.c.h.b16 %v1387
        %v2560 = vunpack.c.l.b16 %v1388
        %v2561 = vunpack.c.h.b16 %v1388
        %v2562 = vunpack.c.l.b16 %v1389
        %v2563 = vunpack.c.h.b16 %v1389
        %v2564 = vunpack.c.l.b16 %v1390
        %v2565 = vunpack.c.h.b16 %v1390
        %v2566 = vunpack.c.l.b16 %v1391
        %v2567 = vunpack.c.h.b16 %v1391
        %v2568 = vunpack.c.l.b16 %v1392
        %v2569 = vunpack.c.h.b16 %v1392
        %v2570 = vunpack.c.l.b16 %v1393
        %v2571 = vunpack.c.h.b16 %v1393
        %v2572 = vunpack.c.l.b16 %v1394
        %v2573 = vunpack.c.h.b16 %v1394
        %v2574 = vunpack.c.l.b16 %v1395
        %v2575 = vunpack.c.h.b16 %v1395
        %v2576 = vunpack.c.l.b16 %v1396
        %v2577 = vunpack.c.h.b16 %v1396
        %v2578 = vunpack.c.l.b16 %v1397
        %v2579 = vunpack.c.h.b16 %v1397
        %v2580 = vunpack.c.l.b16 %v1398
        %v2581 = vunpack.c.h.b16 %v1398
        %v2582 = vunpack.c.l.b16 %v1399
        %v2583 = vunpack.c.h.b16 %v1399
        %v2584 = vunpack.c.l.b16 %v1400
        %v2585 = vunpack.c.h.b16 %v1400
        %v2586 = vunpack.c.l.b16 %v1401
        %v2587 = vunpack.c.h.b16 %v1401
        %v2588 = vunpack.c.l.b16 %v1402
        %v2589 = vunpack.c.h.b16 %v1402
        %v2590 = vunpack.c.l.b16 %v1403
        %v2591 = vunpack.c.h.b16 %v1403
        %v2592 = vunpack.c.l.b16 %v1404
        %v2593 = vunpack.c.h.b16 %v1404
        %v2594 = vunpack.c.l.b16 %v1405
        %v2595 = vunpack.c.h.b16 %v1405
        %v2596 = vunpack.c.l.b16 %v1406
        %v2597 = vunpack.c.h.b16 %v1406
        %v2598 = vunpack.c.l.b16 %v1407
        %v2599 = vunpack.c.h.b16 %v1407
        %v2600 = vunpack.c.l.b16 %v1408
        %v2601 = vunpack.c.h.b16 %v1408
        %v2602 = vunpack.c.l.b16 %v1409
        %v2603 = vunpack.c.h.b16 %v1409
        %v2604 = vunpack.c.l.b16 %v1410
        %v2605 = vunpack.c.h.b16 %v1410
        %v2606 = vunpack.c.l.b16 %v1411
        %v2607 = vunpack.c.h.b16 %v1411
        %v2608 = vunpack.c.l.b16 %v1412
        %v2609 = vunpack.c.h.b16 %v1412
        %v2610 = vunpack.c.l.b16 %v1413
        %v2611 = vunpack.c.h.b16 %v1413
        %v2612 = vunpack.c.l.b16 %v1414
        %v2613 = vunpack.c.h.b16 %v1414
        %v2614 = vunpack.c.l.b16 %v1415
        %v2615 = vunpack.c.h.b16 %v1415
        %v2616 = vunpack.c.l.b16 %v1416
        %v2617 = vunpack.c.h.b16 %v1416
        %v2618 = vunpack.c.l.b16 %v1417
        %v2619 = vunpack.c.h.b16 %v1417
        %v2620 = vunpack.c.l.b16 %v1418
        %v2621 = vunpack.c.h.b16 %v1418
        %v2622 = vunpack.c.l.b16 %v1419
        %v2623 = vunpack.c.h.b16 %v1419
        %v2624 = vunpack.c.l.b16 %v1420
        %v2625 = vunpack.c.h.b16 %v1420
        %v2626 = vunpack.c.l.b16 %v1421
        %v2627 = vunpack.c.h.b16 %v1421
        %v2628 = vunpack.c.l.b16 %v1422
        %v2629 = vunpack.c.h.b16 %v1422
        %v2630 = vunpack.c.l.b16 %v1423
        %v2631 = vunpack.c.h.b16 %v1423
        %v2632 = vunpack.c.l.b16 %v1424
        %v2633 = vunpack.c.h.b16 %v1424
        %v2634 = vunpack.c.l.b16 %v1425
        %v2635 = vunpack.c.h.b16 %v1425
        %v2636 = vunpack.c.l.b16 %v1426
        %v2637 = vunpack.c.h.b16 %v1426
        %v2638 = vunpack.c.l.b16 %v1427
        %v2639 = vunpack.c.h.b16 %v1427
        %v2640 = vpack.c.b16 %v1876, %v1872
        %v2641 = vpack.c.b16 %v1877, %v1873
        %v2642 = vpack.c.b16 %v1878, %v1874
        %v2643 = vpack.c.b16 %v1879, %v1875
        %v2644 = vpack.c.b16 %v1884, %v1880
        %v2645 = vpack.c.b16 %v1885, %v1881
        %v2646 = vpack.c.b16 %v1886, %v1882
        %v2647 = vpack.c.b16 %v1887, %v1883
        %v2648 = vpack.c.b16 %v1892, %v1888
        %v2649 = vpack.c.b16 %v1893, %v1889
        %v2650 = vpack.c.b16 %v1894, %v1890
        %v2651 = vpack.c.b16 %v1895, %v1891
        %v2652 = vpack.c.b16 %v1900, %v1896
        %v2653 = vpack.c.b16 %v1901, %v1897
        %v2654 = vpack.c.b16 %v1902, %v1898
        %v2655 = vpack.c.b16 %v1903, %v1899
        %v2656 = vpack.c.b16 %v1908, %v1904
        %v2657 = vpack.c.b16 %v1909, %v1905
        %v2658 = vpack.c.b16 %v1910, %v1906
        %v2659 = vpack.c.b16 %v1911, %v1907
        %v2660 = vpack.c.b16 %v1916, %v1912
        %v2661 = vpack.c.b16 %v1917, %v1913
        %v2662 = vpack.c.b16 %v1918, %v1914
        %v2663 = vpack.c.b16 %v1919, %v1915
        %v2664 = vpack.c.b16 %v1924, %v1920
        %v2665 = vpack.c.b16 %v1925, %v1921
        %v2666 = vpack.c.b16 %v1926, %v1922
        %v2667 = vpack.c.b16 %v1927, %v1923
        %v2668 = vpack.c.b16 %v1932, %v1928
        %v2669 = vpack.c.b16 %v1933, %v1929
        %v2670 = vpack.c.b16 %v1934, %v1930
        %v2671 = vpack.c.b16 %v1935, %v1931
        %v2672 = vpack.c.b16 %v1940, %v1936
        %v2673 = vpack.c.b16 %v1941, %v1937
        %v2674 = vpack.c.b16 %v1942, %v1938
        %v2675 = vpack.c.b16 %v1943, %v1939
        %v2676 = vpack.c.b16 %v1948, %v1944
        %v2677 = vpack.c.b16 %v1949, %v1945
        %v2678 = vpack.c.b16 %v1950, %v1946
        %v2679 = vpack.c.b16 %v1951, %v1947
        %v2680 = vpack.c.b16 %v1956, %v1952
        %v2681 = vpack.c.b16 %v1957, %v1953
        %v2682 = vpack.c.b16 %v1958, %v1954
        %v2683 = vpack.c.b16 %v1959, %v1955
        %v2684 = vpack.c.b16 %v1964, %v1960
        %v2685 = vpack.c.b16 %v1965, %v1961
        %v2686 = vpack.c.b16 %v1966, %v1962
        %v2687 = vpack.c.b16 %v1967, %v1963
        %v2688 = vpack.c.b16 %v1972, %v1968
        %v2689 = vpack.c.b16 %v1973, %v1969
        %v2690 = vpack.c.b16 %v1974, %v1970
        %v2691 = vpack.c.b16 %v1975, %v1971
        %v2692 = vpack.c.b16 %v1980, %v1976
        %v2693 = vpack.c.b16 %v1981, %v1977
        %v2694 = vpack.c.b16 %v1982, %v1978
        %v2695 = vpack.c.b16 %v1983, %v1979
        %v2696 = vpack.c.b16 %v1988, %v1984
        %v2697 = vpack.c.b16 %v1989, %v1985
        %v2698 = vpack.c.b16 %v1990, %v1986
        %v2699 = vpack.c.b16 %v1991, %v1987
        %v2700 = vpack.c.b16 %v1996, %v1992
        %v2701 = vpack.c.b16 %v1997, %v1993
        %v2702 = vpack.c.b16 %v1998, %v1994
        %v2703 = vpack.c.b16 %v1999, %v1995
        %v2704 = vpack.c.b16 %v2004, %v2000
        %v2705 = vpack.c.b16 %v2005, %v2001
        %v2706 = vpack.c.b16 %v2006, %v2002
        %v2707 = vpack.c.b16 %v2007, %v2003
        %v2708 = vpack.c.b16 %v2012, %v2008
        %v2709 = vpack.c.b16 %v2013, %v2009
        %v2710 = vpack.c.b16 %v2014, %v2010
        %v2711 = vpack.c.b16 %v2015, %v2011
        %v2712 = vpack.c.b16 %v2020, %v2016
        %v2713 = vpack.c.b16 %v2021, %v2017
        %v2714 = vpack.c.b16 %v2022, %v2018
        %v2715 = vpack.c.b16 %v2023, %v2019
        %v2716 = vpack.c.b16 %v2028, %v2024
        %v2717 = vpack.c.b16 %v2029, %v2025
        %v2718 = vpack.c.b16 %v2030, %v2026
        %v2719 = vpack.c.b16 %v2031, %v2027
        %v2720 = vpack.c.b16 %v2036, %v2032
        %v2721 = vpack.c.b16 %v2037, %v2033
        %v2722 = vpack.c.b16 %v2038, %v2034
        %v2723 = vpack.c.b16 %v2039, %v2035
        %v2724 = vpack.c.b16 %v2044, %v2040
        %v2725 = vpack.c.b16 %v2045, %v2041
        %v2726 = vpack.c.b16 %v2046, %v2042
        %v2727 = vpack.c.b16 %v2047, %v2043
        %v2728 = vpack.c.b16 %v2052, %v2048
        %v2729 = vpack.c.b16 %v2053, %v2049
        %v2730 = vpack.c.b16 %v2054, %v2050
        %v2731 = vpack.c.b16 %v2055, %v2051
        %v2732 = vpack.c.b16 %v2060, %v2056
        %v2733 = vpack.c.b16 %v2061, %v2057
        %v2734 = vpack.c.b16 %v2062, %v2058
        %v2735 = vpack.c.b16 %v2063, %v2059
        %v2736 = vpack.c.b16 %v2068, %v2064
        %v2737 = vpack.c.b16 %v2069, %v2065
        %v2738 = vpack.c.b16 %v2070, %v2066
        %v2739 = vpack.c.b16 %v2071, %v2067
        %v2740 = vpack.c.b16 %v2076, %v2072
        %v2741 = vpack.c.b16 %v2077, %v2073
        %v2742 = vpack.c.b16 %v2078, %v2074
        %v2743 = vpack.c.b16 %v2079, %v2075
        %v2744 = vpack.c.b16 %v2084, %v2080
        %v2745 = vpack.c.b16 %v2085, %v2081
        %v2746 = vpack.c.b16 %v2086, %v2082
        %v2747 = vpack.c.b16 %v2087, %v2083
        %v2748 = vpack.c.b16 %v2092, %v2088
        %v2749 = vpack.c.b16 %v2093, %v2089
        %v2750 = vpack.c.b16 %v2094, %v2090
        %v2751 = vpack.c.b16 %v2095, %v2091
        %v2752 = vpack.c.b16 %v2100, %v2096
        %v2753 = vpack.c.b16 %v2101, %v2097
        %v2754 = vpack.c.b16 %v2102, %v2098
        %v2755 = vpack.c.b16 %v2103, %v2099
        %v2756 = vpack.c.b16 %v2108, %v2104
        %v2757 = vpack.c.b16 %v2109, %v2105
        %v2758 = vpack.c.b16 %v2110, %v2106
        %v2759 = vpack.c.b16 %v2111, %v2107
        %v2760 = vpack.c.b16 %v2116, %v2112
        %v2761 = vpack.c.b16 %v2117, %v2113
        %v2762 = vpack.c.b16 %v2118, %v2114
        %v2763 = vpack.c.b16 %v2119, %v2115
        %v2764 = vpack.c.b16 %v2124, %v2120
        %v2765 = vpack.c.b16 %v2125, %v2121
        %v2766 = vpack.c.b16 %v2126, %v2122
        %v2767 = vpack.c.b16 %v2127, %v2123
        %v2768 = vpack.c.b16 %v2132, %v2128
        %v2769 = vpack.c.b16 %v2133, %v2129
        %v2770 = vpack.c.b16 %v2134, %v2130
        %v2771 = vpack.c.b16 %v2135, %v2131
        %v2772 = vpack.c.b16 %v2140, %v2136
        %v2773 = vpack.c.b16 %v2141, %v2137
        %v2774 = vpack.c.b16 %v2142, %v2138
        %v2775 = vpack.c.b16 %v2143, %v2139
        %v2776 = vpack.c.b16 %v2148, %v2144
        %v2777 = vpack.c.b16 %v2149, %v2145
        %v2778 = vpack.c.b16 %v2150, %v2146
        %v2779 = vpack.c.b16 %v2151, %v2147
        %v2780 = vpack.c.b16 %v2156, %v2152
        %v2781 = vpack.c.b16 %v2157, %v2153
        %v2782 = vpack.c.b16 %v2158, %v2154
        %v2783 = vpack.c.b16 %v2159, %v2155
        %v2784 = vpack.c.b16 %v2164, %v2160
        %v2785 = vpack.c.b16 %v2165, %v2161
        %v2786 = vpack.c.b16 %v2166, %v2162
        %v2787 = vpack.c.b16 %v2167, %v2163
        %v2788 = vpack.c.b16 %v2172, %v2168
        %v2789 = vpack.c.b16 %v2173, %v2169
        %v2790 = vpack.c.b16 %v2174, %v2170
        %v2791 = vpack.c.b16 %v2175, %v2171
        %v2792 = vpack.c.b16 %v2180, %v2176
        %v2793 = vpack.c.b16 %v2181, %v2177
        %v2794 = vpack.c.b16 %v2182, %v2178
        %v2795 = vpack.c.b16 %v2183, %v2179
        %v2796 = vpack.c.b16 %v2188, %v2184
        %v2797 = vpack.c.b16 %v2189, %v2185
        %v2798 = vpack.c.b16 %v2190, %v2186
        %v2799 = vpack.c.b16 %v2191, %v2187
        %v2800 = vpack.c.b16 %v2196, %v2192
        %v2801 = vpack.c.b16 %v2197, %v2193
        %v2802 = vpack.c.b16 %v2198, %v2194
        %v2803 = vpack.c.b16 %v2199, %v2195
        %v2804 = vpack.c.b16 %v2204, %v2200
        %v2805 = vpack.c.b16 %v2205, %v2201
        %v2806 = vpack.c.b16 %v2206, %v2202
        %v2807 = vpack.c.b16 %v2207, %v2203
        %v2808 = vpack.c.b16 %v2212, %v2208
        %v2809 = vpack.c.b16 %v2213, %v2209
        %v2810 = vpack.c.b16 %v2214, %v2210
        %v2811 = vpack.c.b16 %v2215, %v2211
        %v2812 = vpack.c.b16 %v2220, %v2216
        %v2813 = vpack.c.b16 %v2221, %v2217
        %v2814 = vpack.c.b16 %v2222, %v2218
        %v2815 = vpack.c.b16 %v2223, %v2219
        %v2816 = vpack.c.b16 %v2228, %v2224
        %v2817 = vpack.c.b16 %v2229, %v2225
        %v2818 = vpack.c.b16 %v2230, %v2226
        %v2819 = vpack.c.b16 %v2231, %v2227
        %v2820 = vpack.c.b16 %v2236, %v2232
        %v2821 = vpack.c.b16 %v2237, %v2233
        %v2822 = vpack.c.b16 %v2238, %v2234
        %v2823 = vpack.c.b16 %v2239, %v2235
        %v2824 = vpack.c.b16 %v2244, %v2240
        %v2825 = vpack.c.b16 %v2245, %v2241
        %v2826 = vpack.c.b16 %v2246, %v2242
        %v2827 = vpack.c.b16 %v2247, %v2243
        %v2828 = vpack.c.b16 %v2252, %v2248
        %v2829 = vpack.c.b16 %v2253, %v2249
        %v2830 = vpack.c.b16 %v2254, %v2250
        %v2831 = vpack.c.b16 %v2255, %v2251
        %v2832 = vpack.c.b16 %v2260, %v2256
        %v2833 = vpack.c.b16 %v2261, %v2257
        %v2834 = vpack.c.b16 %v2262, %v2258
        %v2835 = vpack.c.b16 %v2263, %v2259
        %v2836 = vpack.c.b16 %v2268, %v2264
        %v2837 = vpack.c.b16 %v2269, %v2265
        %v2838 = vpack.c.b16 %v2270, %v2266
        %v2839 = vpack.c.b16 %v2271, %v2267
        %v2840 = vpack.c.b16 %v2276, %v2272
        %v2841 = vpack.c.b16 %v2277, %v2273
        %v2842 = vpack.c.b16 %v2278, %v2274
        %v2843 = vpack.c.b16 %v2279, %v2275
        %v2844 = vpack.c.b16 %v2284, %v2280
        %v2845 = vpack.c.b16 %v2285, %v2281
        %v2846 = vpack.c.b16 %v2286, %v2282
        %v2847 = vpack.c.b16 %v2287, %v2283
        %v2848 = vpack.c.b16 %v2292, %v2288
        %v2849 = vpack.c.b16 %v2293, %v2289
        %v2850 = vpack.c.b16 %v2294, %v2290
        %v2851 = vpack.c.b16 %v2295, %v2291
        %v2852 = vpack.c.b16 %v2300, %v2296
        %v2853 = vpack.c.b16 %v2301, %v2297
        %v2854 = vpack.c.b16 %v2302, %v2298
        %v2855 = vpack.c.b16 %v2303, %v2299
        %v2856 = vpack.c.b16 %v2308, %v2304
        %v2857 = vpack.c.b16 %v2309, %v2305
        %v2858 = vpack.c.b16 %v2310, %v2306
        %v2859 = vpack.c.b16 %v2311, %v2307
        %v2860 = vpack.c.b16 %v2316, %v2312
        %v2861 = vpack.c.b16 %v2317, %v2313
        %v2862 = vpack.c.b16 %v2318, %v2314
        %v2863 = vpack.c.b16 %v2319, %v2315
        %v2864 = vpack.c.b16 %v2324, %v2320
        %v2865 = vpack.c.b16 %v2325, %v2321
        %v2866 = vpack.c.b16 %v2326, %v2322
        %v2867 = vpack.c.b16 %v2327, %v2323
        %v2868 = vpack.c.b16 %v2332, %v2328
        %v2869 = vpack.c.b16 %v2333, %v2329
        %v2870 = vpack.c.b16 %v2334, %v2330
        %v2871 = vpack.c.b16 %v2335, %v2331
        %v2872 = vpack.c.b16 %v2340, %v2336
        %v2873 = vpack.c.b16 %v2341, %v2337
        %v2874 = vpack.c.b16 %v2342, %v2338
        %v2875 = vpack.c.b16 %v2343, %v2339
        %v2876 = vpack.c.b16 %v2348, %v2344
        %v2877 = vpack.c.b16 %v2349, %v2345
        %v2878 = vpack.c.b16 %v2350, %v2346
        %v2879 = vpack.c.b16 %v2351, %v2347
        %v2880 = vpack.c.b16 %v2356, %v2352
        %v2881 = vpack.c.b16 %v2357, %v2353
        %v2882 = vpack.c.b16 %v2358, %v2354
        %v2883 = vpack.c.b16 %v2359, %v2355
        %v2884 = vpack.c.b16 %v2364, %v2360
        %v2885 = vpack.c.b16 %v2365, %v2361
        %v2886 = vpack.c.b16 %v2366, %v2362
        %v2887 = vpack.c.b16 %v2367, %v2363
        %v2888 = vpack.c.b16 %v2372, %v2368
        %v2889 = vpack.c.b16 %v2373, %v2369
        %v2890 = vpack.c.b16 %v2374, %v2370
        %v2891 = vpack.c.b16 %v2375, %v2371
        %v2892 = vpack.c.b16 %v2380, %v2376
        %v2893 = vpack.c.b16 %v2381, %v2377
        %v2894 = vpack.c.b16 %v2382, %v2378
        %v2895 = vpack.c.b16 %v2383, %v2379
        %v2896 = vpack.c.b16 %v2388, %v2384
        %v2897 = vpack.c.b16 %v2389, %v2385
        %v2898 = vpack.c.b16 %v2390, %v2386
        %v2899 = vpack.c.b16 %v2391, %v2387
        %v2900 = vpack.c.b16 %v2396, %v2392
        %v2901 = vpack.c.b16 %v2397, %v2393
        %v2902 = vpack.c.b16 %v2398, %v2394
        %v2903 = vpack.c.b16 %v2399, %v2395
        %v2904 = vpack.c.b16 %v2404, %v2400
        %v2905 = vpack.c.b16 %v2405, %v2401
        %v2906 = vpack.c.b16 %v2406, %v2402
        %v2907 = vpack.c.b16 %v2407, %v2403
        %v2908 = vpack.c.b16 %v2412, %v2408
        %v2909 = vpack.c.b16 %v2413, %v2409
        %v2910 = vpack.c.b16 %v2414, %v2410
        %v2911 = vpack.c.b16 %v2415, %v2411
        %v2912 = vpack.c.b16 %v2420, %v2416
        %v2913 = vpack.c.b16 %v2421, %v2417
        %v2914 = vpack.c.b16 %v2422, %v2418
        %v2915 = vpack.c.b16 %v2423, %v2419
        %v2916 = vpack.c.b16 %v2428, %v2424
        %v2917 = vpack.c.b16 %v2429, %v2425
        %v2918 = vpack.c.b16 %v2430, %v2426
        %v2919 = vpack.c.b16 %v2431, %v2427
        %v2920 = vpack.c.b16 %v2436, %v2432
        %v2921 = vpack.c.b16 %v2437, %v2433
        %v2922 = vpack.c.b16 %v2438, %v2434
        %v2923 = vpack.c.b16 %v2439, %v2435
        %v2924 = vpack.c.b16 %v2444, %v2440
        %v2925 = vpack.c.b16 %v2445, %v2441
        %v2926 = vpack.c.b16 %v2446, %v2442
        %v2927 = vpack.c.b16 %v2447, %v2443
        %v2928 = vpack.c.b16 %v2452, %v2448
        %v2929 = vpack.c.b16 %v2453, %v2449
        %v2930 = vpack.c.b16 %v2454, %v2450
        %v2931 = vpack.c.b16 %v2455, %v2451
        %v2932 = vpack.c.b16 %v2460, %v2456
        %v2933 = vpack.c.b16 %v2461, %v2457
        %v2934 = vpack.c.b16 %v2462, %v2458
        %v2935 = vpack.c.b16 %v2463, %v2459
        %v2936 = vpack.c.b16 %v2468, %v2464
        %v2937 = vpack.c.b16 %v2469, %v2465
        %v2938 = vpack.c.b16 %v2470, %v2466
        %v2939 = vpack.c.b16 %v2471, %v2467
        %v2940 = vpack.c.b16 %v2476, %v2472
        %v2941 = vpack.c.b16 %v2477, %v2473
        %v2942 = vpack.c.b16 %v2478, %v2474
        %v2943 = vpack.c.b16 %v2479, %v2475
        %v2944 = vpack.c.b16 %v2484, %v2480
        %v2945 = vpack.c.b16 %v2485, %v2481
        %v2946 = vpack.c.b16 %v2486, %v2482
        %v2947 = vpack.c.b16 %v2487, %v2483
        %v2948 = vpack.c.b16 %v2492, %v2488
        %v2949 = vpack.c.b16 %v2493, %v2489
        %v2950 = vpack.c.b16 %v2494, %v2490
        %v2951 = vpack.c.b16 %v2495, %v2491
        %v2952 = vpack.c.b16 %v2500, %v2496
        %v2953 = vpack.c.b16 %v2501, %v2497
        %v2954 = vpack.c.b16 %v2502, %v2498
        %v2955 = vpack.c.b16 %v2503, %v2499
        %v2956 = vpack.c.b16 %v2508, %v2504
        %v2957 = vpack.c.b16 %v2509, %v2505
        %v2958 = vpack.c.b16 %v2510, %v2506
        %v2959 = vpack.c.b16 %v2511, %v2507
        %v2960 = vpack.c.b16 %v2516, %v2512
        %v2961 = vpack.c.b16 %v2517, %v2513
        %v2962 = vpack.c.b16 %v2518, %v2514
        %v2963 = vpack.c.b16 %v2519, %v2515
        %v2964 = vpack.c.b16 %v2524, %v2520
        %v2965 = vpack.c.b16 %v2525, %v2521
        %v2966 = vpack.c.b16 %v2526, %v2522
        %v2967 = vpack.c.b16 %v2527, %v2523
        %v2968 = vpack.c.b16 %v2532, %v2528
        %v2969 = vpack.c.b16 %v2533, %v2529
        %v2970 = vpack.c.b16 %v2534, %v2530
        %v2971 = vpack.c.b16 %v2535, %v2531
        %v2972 = vpack.c.b16 %v2540, %v2536
        %v2973 = vpack.c.b16 %v2541, %v2537
        %v2974 = vpack.c.b16 %v2542, %v2538
        %v2975 = vpack.c.b16 %v2543, %v2539
        %v2976 = vpack.c.b16 %v2548, %v2544
        %v2977 = vpack.c.b16 %v2549, %v2545
        %v2978 = vpack.c.b16 %v2550, %v2546
        %v2979 = vpack.c.b16 %v2551, %v2547
        %v2980 = vpack.c.b16 %v2556, %v2552
        %v2981 = vpack.c.b16 %v2557, %v2553
        %v2982 = vpack.c.b16 %v2558, %v2554
        %v2983 = vpack.c.b16 %v2559, %v2555
        %v2984 = vpack.c.b16 %v2564, %v2560
        %v2985 = vpack.c.b16 %v2565, %v2561
        %v2986 = vpack.c.b16 %v2566, %v2562
        %v2987 = vpack.c.b16 %v2567, %v2563
        %v2988 = vpack.c.b16 %v2572, %v2568
        %v2989 = vpack.c.b16 %v2573, %v2569
        %v2990 = vpack.c.b16 %v2574, %v2570
        %v2991 = vpack.c.b16 %v2575, %v2571
        %v2992 = vpack.c.b16 %v2580, %v2576
        %v2993 = vpack.c.b16 %v2581, %v2577
        %v2994 = vpack.c.b16 %v2582, %v2578
        %v2995 = vpack.c.b16 %v2583, %v2579
        %v2996 = vpack.c.b16 %v2588, %v2584
        %v2997 = vpack.c.b16 %v2589, %v2585
        %v2998 = vpack.c.b16 %v2590, %v2586
        %v2999 = vpack.c.b16 %v2591, %v2587
        %v3000 = vpack.c.b16 %v2596, %v2592
        %v3001 = vpack.c.b16 %v2597, %v2593
        %v3002 = vpack.c.b16 %v2598, %v2594
        %v3003 = vpack.c.b16 %v2599, %v2595
        %v3004 = vpack.c.b16 %v2604, %v2600
        %v3005 = vpack.c.b16 %v2605, %v2601
        %v3006 = vpack.c.b16 %v2606, %v2602
        %v3007 = vpack.c.b16 %v2607, %v2603
        %v3008 = vpack.c.b16 %v2612, %v2608
        %v3009 = vpack.c.b16 %v2613, %v2609
        %v3010 = vpack.c.b16 %v2614, %v2610
        %v3011 = vpack.c.b16 %v2615, %v2611
        %v3012 = vpack.c.b16 %v2620, %v2616
        %v3013 = vpack.c.b16 %v2621, %v2617
        %v3014 = vpack.c.b16 %v2622, %v2618
        %v3015 = vpack.c.b16 %v2623, %v2619
        %v3016 = vpack.c.b16 %v2628, %v2624
        %v3017 = vpack.c.b16 %v2629, %v2625
        %v3018 = vpack.c.b16 %v2630, %v2626
        %v3019 = vpack.c.b16 %v2631, %v2627
        %v3020 = vpack.c.b16 %v2636, %v2632
        %v3021 = vpack.c.b16 %v2637, %v2633
        %v3022 = vpack.c.b16 %v2638, %v2634
        %v3023 = vpack.c.b16 %v2639, %v2635
        %3408 = vmatprep.subr.bf16.mxu0 %v2641
        %3409 = vmatpush1.bf16.msra.mxu0 %v2640
        %3410 = vmatprep.subr.bf16.mxu0 %v2645
        %3411 = vmatpush1.bf16.msra.mxu0 %v2644
        %3412 = vmatprep.subr.bf16.mxu0 %v2649
        %3413 = vmatpush1.bf16.msra.mxu0 %v2648
        %3414 = vmatprep.subr.bf16.mxu0 %v2653
        %3415 = vmatpush1.bf16.msra.mxu0 %v2652
        %3416 = vmatprep.subr.bf16.mxu0 %v2657
        %3417 = vmatpush1.bf16.msra.mxu0 %v2656
        %3418 = vmatprep.subr.bf16.mxu0 %v2661
        %3419 = vmatpush1.bf16.msra.mxu0 %v2660
        %3420 = vmatprep.subr.bf16.mxu0 %v2665
        %3421 = vmatpush1.bf16.msra.mxu0 %v2664
        %3422 = vmatprep.subr.bf16.mxu0 %v2669
        %3423 = vmatpush1.bf16.msra.mxu0 %v2668
        %3424 = vmatprep.subr.bf16.mxu0 %v2673
        %3425 = vmatpush1.bf16.msra.mxu0 %v2672
        %3426 = vmatprep.subr.bf16.mxu0 %v2677
        %3427 = vmatpush1.bf16.msra.mxu0 %v2676
        %3428 = vmatprep.subr.bf16.mxu0 %v2681
        %3429 = vmatpush1.bf16.msra.mxu0 %v2680
        %3430 = vmatprep.subr.bf16.mxu0 %v2685
        %3431 = vmatpush1.bf16.msra.mxu0 %v2684
        %3432 = vmatprep.subr.bf16.mxu0 %v2689
        %3433 = vmatpush1.bf16.msra.mxu0 %v2688
        %3434 = vmatprep.subr.bf16.mxu0 %v2693
        %3435 = vmatpush1.bf16.msra.mxu0 %v2692
        %3436 = vmatprep.subr.bf16.mxu0 %v2697
        %3437 = vmatpush1.bf16.msra.mxu0 %v2696
        %3438 = vmatprep.subr.bf16.mxu0 %v2701
        %3439 = vmatpush1.bf16.msra.mxu0 %v2700
        %3440 = vmatprep.mubr.bf16.mxu0 %v1465
        %3441 = vmatmul.mubr.bf16.gmra.mrb[0].mxu0 %v1464
        %v3442 = vpop.f32.mrb[0].mxu0
        %v3443 = vadd.f32 0.0, %v3442
        %v3444 = vpop.f32.mrb[0].mxu0
        %v3445 = vadd.f32 0.0, %v3444
        %v3446 = vpop.f32.mrb[0].mxu0
        %v3447 = vadd.f32 0.0, %v3446
        %v3448 = vpop.f32.mrb[0].mxu0
        %v3449 = vadd.f32 0.0, %v3448
        %3450 = vdwg.mxu0
        %3451 = vmatprep.subr.bf16.mxu0 %v2705
        %3452 = vmatpush1.bf16.msra.mxu0 %v2704
        %3453 = vmatprep.subr.bf16.mxu0 %v2709
        %3454 = vmatpush1.bf16.msra.mxu0 %v2708
        %3455 = vmatprep.subr.bf16.mxu0 %v2713
        %3456 = vmatpush1.bf16.msra.mxu0 %v2712
        %3457 = vmatprep.subr.bf16.mxu0 %v2717
        %3458 = vmatpush1.bf16.msra.mxu0 %v2716
        %3459 = vmatprep.subr.bf16.mxu0 %v2721
        %3460 = vmatpush1.bf16.msra.mxu0 %v2720
        %3461 = vmatprep.subr.bf16.mxu0 %v2725
        %3462 = vmatpush1.bf16.msra.mxu0 %v2724
        %3463 = vmatprep.subr.bf16.mxu0 %v2729
        %3464 = vmatpush1.bf16.msra.mxu0 %v2728
        %3465 = vmatprep.subr.bf16.mxu0 %v2733
        %3466 = vmatpush1.bf16.msra.mxu0 %v2732
        %3467 = vmatprep.subr.bf16.mxu0 %v2737
        %3468 = vmatpush1.bf16.msra.mxu0 %v2736
        %3469 = vmatprep.subr.bf16.mxu0 %v2741
        %3470 = vmatpush1.bf16.msra.mxu0 %v2740
        %3471 = vmatprep.subr.bf16.mxu0 %v2745
        %3472 = vmatpush1.bf16.msra.mxu0 %v2744
        %3473 = vmatprep.subr.bf16.mxu0 %v2749
        %3474 = vmatpush1.bf16.msra.mxu0 %v2748
        %3475 = vmatprep.subr.bf16.mxu0 %v2753
        %3476 = vmatpush1.bf16.msra.mxu0 %v2752
        %3477 = vmatprep.subr.bf16.mxu0 %v2757
        %3478 = vmatpush1.bf16.msra.mxu0 %v2756
        %3479 = vmatprep.subr.bf16.mxu0 %v2761
        %3480 = vmatpush1.bf16.msra.mxu0 %v2760
        %3481 = vmatprep.subr.bf16.mxu0 %v2765
        %3482 = vmatpush1.bf16.msra.mxu0 %v2764
        %3483 = vmatprep.mubr.bf16.mxu0 %v1467
        %3484 = vmatmul.mubr.bf16.gmra.mrb[0].mxu0 %v1466
        %v3485 = vpop.f32.mrb[0].mxu0
        %v3486 = vadd.f32 %v3443, %v3485
        %v3487 = vpop.f32.mrb[0].mxu0
        %v3488 = vadd.f32 %v3445, %v3487
        %v3489 = vpop.f32.mrb[0].mxu0
        %v3490 = vadd.f32 %v3447, %v3489
        %v3491 = vpop.f32.mrb[0].mxu0
        %v3492 = vadd.f32 %v3449, %v3491
        %3493 = vdwg.mxu0
        %3494 = vmatprep.subr.bf16.mxu0 %v2769
        %3495 = vmatpush1.bf16.msra.mxu0 %v2768
        %3496 = vmatprep.subr.bf16.mxu0 %v2773
        %3497 = vmatpush1.bf16.msra.mxu0 %v2772
        %3498 = vmatprep.subr.bf16.mxu0 %v2777
        %3499 = vmatpush1.bf16.msra.mxu0 %v2776
        %3500 = vmatprep.subr.bf16.mxu0 %v2781
        %3501 = vmatpush1.bf16.msra.mxu0 %v2780
        %3502 = vmatprep.subr.bf16.mxu0 %v2785
        %3503 = vmatpush1.bf16.msra.mxu0 %v2784
        %3504 = vmatprep.subr.bf16.mxu0 %v2789
        %3505 = vmatpush1.bf16.msra.mxu0 %v2788
        %3506 = vmatprep.subr.bf16.mxu0 %v2793
        %3507 = vmatpush1.bf16.msra.mxu0 %v2792
        %3508 = vmatprep.subr.bf16.mxu0 %v2797
        %3509 = vmatpush1.bf16.msra.mxu0 %v2796
        %3510 = vmatprep.subr.bf16.mxu0 %v2801
        %3511 = vmatpush1.bf16.msra.mxu0 %v2800
        %3512 = vmatprep.subr.bf16.mxu0 %v2805
        %3513 = vmatpush1.bf16.msra.mxu0 %v2804
        %3514 = vmatprep.subr.bf16.mxu0 %v2809
        %3515 = vmatpush1.bf16.msra.mxu0 %v2808
        %3516 = vmatprep.subr.bf16.mxu0 %v2813
        %3517 = vmatpush1.bf16.msra.mxu0 %v2812
        %3518 = vmatprep.subr.bf16.mxu0 %v2817
        %3519 = vmatpush1.bf16.msra.mxu0 %v2816
        %3520 = vmatprep.subr.bf16.mxu0 %v2821
        %3521 = vmatpush1.bf16.msra.mxu0 %v2820
        %3522 = vmatprep.subr.bf16.mxu0 %v2825
        %3523 = vmatpush1.bf16.msra.mxu0 %v2824
        %3524 = vmatprep.subr.bf16.mxu0 %v2829
        %3525 = vmatpush1.bf16.msra.mxu0 %v2828
        %3526 = vmatprep.mubr.bf16.mxu0 %v1469
        %3527 = vmatmul.mubr.bf16.gmra.mrb[0].mxu0 %v1468
        %v3528 = vpop.f32.mrb[0].mxu0
        %v3529 = vadd.f32 %v3486, %v3528
        %v3530 = vpop.f32.mrb[0].mxu0
        %v3531 = vadd.f32 %v3488, %v3530
        %v3532 = vpop.f32.mrb[0].mxu0
        %v3533 = vadd.f32 %v3490, %v3532
        %v3534 = vpop.f32.mrb[0].mxu0
        %v3535 = vadd.f32 %v3492, %v3534
        %3536 = vdwg.mxu0
        %3537 = vmatprep.subr.bf16.mxu0 %v2833
        %3538 = vmatpush1.bf16.msra.mxu0 %v2832
        %3539 = vmatprep.subr.bf16.mxu0 %v2837
        %3540 = vmatpush1.bf16.msra.mxu0 %v2836
        %3541 = vmatprep.subr.bf16.mxu0 %v2841
        %3542 = vmatpush1.bf16.msra.mxu0 %v2840
        %3543 = vmatprep.subr.bf16.mxu0 %v2845
        %3544 = vmatpush1.bf16.msra.mxu0 %v2844
        %3545 = vmatprep.subr.bf16.mxu0 %v2849
        %3546 = vmatpush1.bf16.msra.mxu0 %v2848
        %3547 = vmatprep.subr.bf16.mxu0 %v2853
        %3548 = vmatpush1.bf16.msra.mxu0 %v2852
        %3549 = vmatprep.subr.bf16.mxu0 %v2857
        %3550 = vmatpush1.bf16.msra.mxu0 %v2856
        %3551 = vmatprep.subr.bf16.mxu0 %v2861
        %3552 = vmatpush1.bf16.msra.mxu0 %v2860
        %3553 = vmatprep.subr.bf16.mxu0 %v2865
        %3554 = vmatpush1.bf16.msra.mxu0 %v2864
        %3555 = vmatprep.subr.bf16.mxu0 %v2869
        %3556 = vmatpush1.bf16.msra.mxu0 %v2868
        %3557 = vmatprep.subr.bf16.mxu0 %v2873
        %3558 = vmatpush1.bf16.msra.mxu0 %v2872
        %3559 = vmatprep.subr.bf16.mxu0 %v2877
        %3560 = vmatpush1.bf16.msra.mxu0 %v2876
        %3561 = vmatprep.subr.bf16.mxu0 %v2881
        %3562 = vmatpush1.bf16.msra.mxu0 %v2880
        %3563 = vmatprep.subr.bf16.mxu0 %v2885
        %3564 = vmatpush1.bf16.msra.mxu0 %v2884
        %3565 = vmatprep.subr.bf16.mxu0 %v2889
        %3566 = vmatpush1.bf16.msra.mxu0 %v2888
        %3567 = vmatprep.subr.bf16.mxu0 %v2893
        %3568 = vmatpush1.bf16.msra.mxu0 %v2892
        %3569 = vmatprep.mubr.bf16.mxu0 %v1471
        %3570 = vmatmul.mubr.bf16.gmra.mrb[0].mxu0 %v1470
        %v3571 = vpop.f32.mrb[0].mxu0
        %v3572 = vadd.f32 %v3529, %v3571
        %v3573 = vpop.f32.mrb[0].mxu0
        %v3574 = vadd.f32 %v3531, %v3573
        %v3575 = vpop.f32.mrb[0].mxu0
        %v3576 = vadd.f32 %v3533, %v3575
        %v3577 = vpop.f32.mrb[0].mxu0
        %v3578 = vadd.f32 %v3535, %v3577
        %3579 = vdwg.mxu0
        %3580 = vmatprep.subr.bf16.mxu0 %v2897
        %3581 = vmatpush1.bf16.msra.mxu0 %v2896
        %3582 = vmatprep.subr.bf16.mxu0 %v2901
        %3583 = vmatpush1.bf16.msra.mxu0 %v2900
        %3584 = vmatprep.subr.bf16.mxu0 %v2905
        %3585 = vmatpush1.bf16.msra.mxu0 %v2904
        %3586 = vmatprep.subr.bf16.mxu0 %v2909
        %3587 = vmatpush1.bf16.msra.mxu0 %v2908
        %3588 = vmatprep.subr.bf16.mxu0 %v2913
        %3589 = vmatpush1.bf16.msra.mxu0 %v2912
        %3590 = vmatprep.subr.bf16.mxu0 %v2917
        %3591 = vmatpush1.bf16.msra.mxu0 %v2916
        %3592 = vmatprep.subr.bf16.mxu0 %v2921
        %3593 = vmatpush1.bf16.msra.mxu0 %v2920
        %3594 = vmatprep.subr.bf16.mxu0 %v2925
        %3595 = vmatpush1.bf16.msra.mxu0 %v2924
        %3596 = vmatprep.subr.bf16.mxu0 %v2929
        %3597 = vmatpush1.bf16.msra.mxu0 %v2928
        %3598 = vmatprep.subr.bf16.mxu0 %v2933
        %3599 = vmatpush1.bf16.msra.mxu0 %v2932
        %3600 = vmatprep.subr.bf16.mxu0 %v2937
        %3601 = vmatpush1.bf16.msra.mxu0 %v2936
        %3602 = vmatprep.subr.bf16.mxu0 %v2941
        %3603 = vmatpush1.bf16.msra.mxu0 %v2940
        %3604 = vmatprep.subr.bf16.mxu0 %v2945
        %3605 = vmatpush1.bf16.msra.mxu0 %v2944
        %3606 = vmatprep.subr.bf16.mxu0 %v2949
        %3607 = vmatpush1.bf16.msra.mxu0 %v2948
        %3608 = vmatprep.subr.bf16.mxu0 %v2953
        %3609 = vmatpush1.bf16.msra.mxu0 %v2952
        %3610 = vmatprep.subr.bf16.mxu0 %v2957
        %3611 = vmatpush1.bf16.msra.mxu0 %v2956
        %3612 = vmatprep.mubr.bf16.mxu0 %v1473
        %3613 = vmatmul.mubr.bf16.gmra.mrb[0].mxu0 %v1472
        %v3614 = vpop.f32.mrb[0].mxu0
        %v3615 = vadd.f32 %v3572, %v3614
        %v3616 = vpop.f32.mrb[0].mxu0
        %v3617 = vadd.f32 %v3574, %v3616
        %v3618 = vpop.f32.mrb[0].mxu0
        %v3619 = vadd.f32 %v3576, %v3618
        %v3620 = vpop.f32.mrb[0].mxu0
        %v3621 = vadd.f32 %v3578, %v3620
        %3622 = vdwg.mxu0
        %3623 = vmatprep.subr.bf16.mxu0 %v2961
        %3624 = vmatpush1.bf16.msra.mxu0 %v2960
        %3625 = vmatprep.subr.bf16.mxu0 %v2965
        %3626 = vmatpush1.bf16.msra.mxu0 %v2964
        %3627 = vmatprep.subr.bf16.mxu0 %v2969
        %3628 = vmatpush1.bf16.msra.mxu0 %v2968
        %3629 = vmatprep.subr.bf16.mxu0 %v2973
        %3630 = vmatpush1.bf16.msra.mxu0 %v2972
        %3631 = vmatprep.subr.bf16.mxu0 %v2977
        %3632 = vmatpush1.bf16.msra.mxu0 %v2976
        %3633 = vmatprep.subr.bf16.mxu0 %v2981
        %3634 = vmatpush1.bf16.msra.mxu0 %v2980
        %3635 = vmatprep.subr.bf16.mxu0 %v2985
        %3636 = vmatpush1.bf16.msra.mxu0 %v2984
        %3637 = vmatprep.subr.bf16.mxu0 %v2989
        %3638 = vmatpush1.bf16.msra.mxu0 %v2988
        %3639 = vmatprep.subr.bf16.mxu0 %v2993
        %3640 = vmatpush1.bf16.msra.mxu0 %v2992
        %3641 = vmatprep.subr.bf16.mxu0 %v2997
        %3642 = vmatpush1.bf16.msra.mxu0 %v2996
        %3643 = vmatprep.subr.bf16.mxu0 %v3001
        %3644 = vmatpush1.bf16.msra.mxu0 %v3000
        %3645 = vmatprep.subr.bf16.mxu0 %v3005
        %3646 = vmatpush1.bf16.msra.mxu0 %v3004
        %3647 = vmatprep.subr.bf16.mxu0 %v3009
        %3648 = vmatpush1.bf16.msra.mxu0 %v3008
        %3649 = vmatprep.subr.bf16.mxu0 %v3013
        %3650 = vmatpush1.bf16.msra.mxu0 %v3012
        %3651 = vmatprep.subr.bf16.mxu0 %v3017
        %3652 = vmatpush1.bf16.msra.mxu0 %v3016
        %3653 = vmatprep.subr.bf16.mxu0 %v3021
        %3654 = vmatpush1.bf16.msra.mxu0 %v3020
        %3655 = vmatprep.mubr.bf16.mxu0 %v1475
        %3656 = vmatmul.mubr.bf16.gmra.mrb[0].mxu0 %v1474
        %v3657 = vpop.f32.mrb[0].mxu0
        %v3658 = vadd.f32 %v3615, %v3657
        %v3659 = vpop.f32.mrb[0].mxu0
        %v3660 = vadd.f32 %v3617, %v3659
        %v3661 = vpop.f32.mrb[0].mxu0
        %v3662 = vadd.f32 %v3619, %v3661
        %v3663 = vpop.f32.mrb[0].mxu0
        %v3664 = vadd.f32 %v3621, %v3663
        %3665 = vdwg.mxu0
        %3666 = vmatprep.subr.bf16.mxu0 %v2643
        %3667 = vmatpush1.bf16.msra.mxu0 %v2642
        %3668 = vmatprep.subr.bf16.mxu0 %v2647
        %3669 = vmatpush1.bf16.msra.mxu0 %v2646
        %3670 = vmatprep.subr.bf16.mxu0 %v2651
        %3671 = vmatpush1.bf16.msra.mxu0 %v2650
        %3672 = vmatprep.subr.bf16.mxu0 %v2655
        %3673 = vmatpush1.bf16.msra.mxu0 %v2654
        %3674 = vmatprep.subr.bf16.mxu0 %v2659
        %3675 = vmatpush1.bf16.msra.mxu0 %v2658
        %3676 = vmatprep.subr.bf16.mxu0 %v2663
        %3677 = vmatpush1.bf16.msra.mxu0 %v2662
        %3678 = vmatprep.subr.bf16.mxu0 %v2667
        %3679 = vmatpush1.bf16.msra.mxu0 %v2666
        %3680 = vmatprep.subr.bf16.mxu0 %v2671
        %3681 = vmatpush1.bf16.msra.mxu0 %v2670
        %3682 = vmatprep.subr.bf16.mxu0 %v2675
        %3683 = vmatpush1.bf16.msra.mxu0 %v2674
        %3684 = vmatprep.subr.bf16.mxu0 %v2679
        %3685 = vmatpush1.bf16.msra.mxu0 %v2678
        %3686 = vmatprep.subr.bf16.mxu0 %v2683
        %3687 = vmatpush1.bf16.msra.mxu0 %v2682
        %3688 = vmatprep.subr.bf16.mxu0 %v2687
        %3689 = vmatpush1.bf16.msra.mxu0 %v2686
        %3690 = vmatprep.subr.bf16.mxu0 %v2691
        %3691 = vmatpush1.bf16.msra.mxu0 %v2690
        %3692 = vmatprep.subr.bf16.mxu0 %v2695
        %3693 = vmatpush1.bf16.msra.mxu0 %v2694
        %3694 = vmatprep.subr.bf16.mxu0 %v2699
        %3695 = vmatpush1.bf16.msra.mxu0 %v2698
        %3696 = vmatprep.subr.bf16.mxu0 %v2703
        %3697 = vmatpush1.bf16.msra.mxu0 %v2702
        %3698 = vmatprep.mubr.bf16.mxu0 %v1465
        %3699 = vmatmul.mubr.bf16.gmra.mrb[0].mxu0 %v1464
        %v3700 = vpop.f32.mrb[0].mxu0
        %v3701 = vadd.f32 0.0, %v3700
        %v3702 = vpop.f32.mrb[0].mxu0
        %v3703 = vadd.f32 0.0, %v3702
        %v3704 = vpop.f32.mrb[0].mxu0
        %v3705 = vadd.f32 0.0, %v3704
        %v3706 = vpop.f32.mrb[0].mxu0
        %v3707 = vadd.f32 0.0, %v3706
        %3708 = vdwg.mxu0
        %3709 = vmatprep.subr.bf16.mxu0 %v2707
        %3710 = vmatpush1.bf16.msra.mxu0 %v2706
        %3711 = vmatprep.subr.bf16.mxu0 %v2711
        %3712 = vmatpush1.bf16.msra.mxu0 %v2710
        %3713 = vmatprep.subr.bf16.mxu0 %v2715
        %3714 = vmatpush1.bf16.msra.mxu0 %v2714
        %3715 = vmatprep.subr.bf16.mxu0 %v2719
        %3716 = vmatpush1.bf16.msra.mxu0 %v2718
        %3717 = vmatprep.subr.bf16.mxu0 %v2723
        %3718 = vmatpush1.bf16.msra.mxu0 %v2722
        %3719 = vmatprep.subr.bf16.mxu0 %v2727
        %3720 = vmatpush1.bf16.msra.mxu0 %v2726
        %3721 = vmatprep.subr.bf16.mxu0 %v2731
        %3722 = vmatpush1.bf16.msra.mxu0 %v2730
        %3723 = vmatprep.subr.bf16.mxu0 %v2735
        %3724 = vmatpush1.bf16.msra.mxu0 %v2734
        %3725 = vmatprep.subr.bf16.mxu0 %v2739
        %3726 = vmatpush1.bf16.msra.mxu0 %v2738
        %3727 = vmatprep.subr.bf16.mxu0 %v2743
        %3728 = vmatpush1.bf16.msra.mxu0 %v2742
        %3729 = vmatprep.subr.bf16.mxu0 %v2747
        %3730 = vmatpush1.bf16.msra.mxu0 %v2746
        %3731 = vmatprep.subr.bf16.mxu0 %v2751
        %3732 = vmatpush1.bf16.msra.mxu0 %v2750
        %3733 = vmatprep.subr.bf16.mxu0 %v2755
        %3734 = vmatpush1.bf16.msra.mxu0 %v2754
        %3735 = vmatprep.subr.bf16.mxu0 %v2759
        %3736 = vmatpush1.bf16.msra.mxu0 %v2758
        %3737 = vmatprep.subr.bf16.mxu0 %v2763
        %3738 = vmatpush1.bf16.msra.mxu0 %v2762
        %3739 = vmatprep.subr.bf16.mxu0 %v2767
        %3740 = vmatpush1.bf16.msra.mxu0 %v2766
        %3741 = vmatprep.mubr.bf16.mxu0 %v1467
        %3742 = vmatmul.mubr.bf16.gmra.mrb[0].mxu0 %v1466
        %v3743 = vpop.f32.mrb[0].mxu0
        %v3744 = vadd.f32 %v3701, %v3743
        %v3745 = vpop.f32.mrb[0].mxu0
        %v3746 = vadd.f32 %v3703, %v3745
        %v3747 = vpop.f32.mrb[0].mxu0
        %v3748 = vadd.f32 %v3705, %v3747
        %v3749 = vpop.f32.mrb[0].mxu0
        %v3750 = vadd.f32 %v3707, %v3749
        %3751 = vdwg.mxu0
        %3752 = vmatprep.subr.bf16.mxu0 %v2771
        %3753 = vmatpush1.bf16.msra.mxu0 %v2770
        %3754 = vmatprep.subr.bf16.mxu0 %v2775
        %3755 = vmatpush1.bf16.msra.mxu0 %v2774
        %3756 = vmatprep.subr.bf16.mxu0 %v2779
        %3757 = vmatpush1.bf16.msra.mxu0 %v2778
        %3758 = vmatprep.subr.bf16.mxu0 %v2783
        %3759 = vmatpush1.bf16.msra.mxu0 %v2782
        %3760 = vmatprep.subr.bf16.mxu0 %v2787
        %3761 = vmatpush1.bf16.msra.mxu0 %v2786
        %3762 = vmatprep.subr.bf16.mxu0 %v2791
        %3763 = vmatpush1.bf16.msra.mxu0 %v2790
        %3764 = vmatprep.subr.bf16.mxu0 %v2795
        %3765 = vmatpush1.bf16.msra.mxu0 %v2794
        %3766 = vmatprep.subr.bf16.mxu0 %v2799
        %3767 = vmatpush1.bf16.msra.mxu0 %v2798
        %3768 = vmatprep.subr.bf16.mxu0 %v2803
        %3769 = vmatpush1.bf16.msra.mxu0 %v2802
        %3770 = vmatprep.subr.bf16.mxu0 %v2807
        %3771 = vmatpush1.bf16.msra.mxu0 %v2806
        %3772 = vmatprep.subr.bf16.mxu0 %v2811
        %3773 = vmatpush1.bf16.msra.mxu0 %v2810
        %3774 = vmatprep.subr.bf16.mxu0 %v2815
        %3775 = vmatpush1.bf16.msra.mxu0 %v2814
        %3776 = vmatprep.subr.bf16.mxu0 %v2819
        %3777 = vmatpush1.bf16.msra.mxu0 %v2818
        %3778 = vmatprep.subr.bf16.mxu0 %v2823
        %3779 = vmatpush1.bf16.msra.mxu0 %v2822
        %3780 = vmatprep.subr.bf16.mxu0 %v2827
        %3781 = vmatpush1.bf16.msra.mxu0 %v2826
        %3782 = vmatprep.subr.bf16.mxu0 %v2831
        %3783 = vmatpush1.bf16.msra.mxu0 %v2830
        %3784 = vmatprep.mubr.bf16.mxu0 %v1469
        %3785 = vmatmul.mubr.bf16.gmra.mrb[0].mxu0 %v1468
        %v3786 = vpop.f32.mrb[0].mxu0
        %v3787 = vadd.f32 %v3744, %v3786
        %v3788 = vpop.f32.mrb[0].mxu0
        %v3789 = vadd.f32 %v3746, %v3788
        %v3790 = vpop.f32.mrb[0].mxu0
        %v3791 = vadd.f32 %v3748, %v3790
        %v3792 = vpop.f32.mrb[0].mxu0
        %v3793 = vadd.f32 %v3750, %v3792
        %3794 = vdwg.mxu0
        %3795 = vmatprep.subr.bf16.mxu0 %v2835
        %3796 = vmatpush1.bf16.msra.mxu0 %v2834
        %3797 = vmatprep.subr.bf16.mxu0 %v2839
        %3798 = vmatpush1.bf16.msra.mxu0 %v2838
        %3799 = vmatprep.subr.bf16.mxu0 %v2843
        %3800 = vmatpush1.bf16.msra.mxu0 %v2842
        %3801 = vmatprep.subr.bf16.mxu0 %v2847
        %3802 = vmatpush1.bf16.msra.mxu0 %v2846
        %3803 = vmatprep.subr.bf16.mxu0 %v2851
        %3804 = vmatpush1.bf16.msra.mxu0 %v2850
        %3805 = vmatprep.subr.bf16.mxu0 %v2855
        %3806 = vmatpush1.bf16.msra.mxu0 %v2854
        %3807 = vmatprep.subr.bf16.mxu0 %v2859
        %3808 = vmatpush1.bf16.msra.mxu0 %v2858
        %3809 = vmatprep.subr.bf16.mxu0 %v2863
        %3810 = vmatpush1.bf16.msra.mxu0 %v2862
        %3811 = vmatprep.subr.bf16.mxu0 %v2867
        %3812 = vmatpush1.bf16.msra.mxu0 %v2866
        %3813 = vmatprep.subr.bf16.mxu0 %v2871
        %3814 = vmatpush1.bf16.msra.mxu0 %v2870
        %3815 = vmatprep.subr.bf16.mxu0 %v2875
        %3816 = vmatpush1.bf16.msra.mxu0 %v2874
        %3817 = vmatprep.subr.bf16.mxu0 %v2879
        %3818 = vmatpush1.bf16.msra.mxu0 %v2878
        %3819 = vmatprep.subr.bf16.mxu0 %v2883
        %3820 = vmatpush1.bf16.msra.mxu0 %v2882
        %3821 = vmatprep.subr.bf16.mxu0 %v2887
        %3822 = vmatpush1.bf16.msra.mxu0 %v2886
        %3823 = vmatprep.subr.bf16.mxu0 %v2891
        %3824 = vmatpush1.bf16.msra.mxu0 %v2890
        %3825 = vmatprep.subr.bf16.mxu0 %v2895
        %3826 = vmatpush1.bf16.msra.mxu0 %v2894
        %3827 = vmatprep.mubr.bf16.mxu0 %v1471
        %3828 = vmatmul.mubr.bf16.gmra.mrb[0].mxu0 %v1470
        %v3829 = vpop.f32.mrb[0].mxu0
        %v3830 = vadd.f32 %v3787, %v3829
        %v3831 = vpop.f32.mrb[0].mxu0
        %v3832 = vadd.f32 %v3789, %v3831
        %v3833 = vpop.f32.mrb[0].mxu0
        %v3834 = vadd.f32 %v3791, %v3833
        %v3835 = vpop.f32.mrb[0].mxu0
        %v3836 = vadd.f32 %v3793, %v3835
        %3837 = vdwg.mxu0
        %3838 = vmatprep.subr.bf16.mxu0 %v2899
        %3839 = vmatpush1.bf16.msra.mxu0 %v2898
        %3840 = vmatprep.subr.bf16.mxu0 %v2903
        %3841 = vmatpush1.bf16.msra.mxu0 %v2902
        %3842 = vmatprep.subr.bf16.mxu0 %v2907
        %3843 = vmatpush1.bf16.msra.mxu0 %v2906
        %3844 = vmatprep.subr.bf16.mxu0 %v2911
        %3845 = vmatpush1.bf16.msra.mxu0 %v2910
        %3846 = vmatprep.subr.bf16.mxu0 %v2915
        %3847 = vmatpush1.bf16.msra.mxu0 %v2914
        %3848 = vmatprep.subr.bf16.mxu0 %v2919
        %3849 = vmatpush1.bf16.msra.mxu0 %v2918
        %3850 = vmatprep.subr.bf16.mxu0 %v2923
        %3851 = vmatpush1.bf16.msra.mxu0 %v2922
        %3852 = vmatprep.subr.bf16.mxu0 %v2927
        %3853 = vmatpush1.bf16.msra.mxu0 %v2926
        %3854 = vmatprep.subr.bf16.mxu0 %v2931
        %3855 = vmatpush1.bf16.msra.mxu0 %v2930
        %3856 = vmatprep.subr.bf16.mxu0 %v2935
        %3857 = vmatpush1.bf16.msra.mxu0 %v2934
        %3858 = vmatprep.subr.bf16.mxu0 %v2939
        %3859 = vmatpush1.bf16.msra.mxu0 %v2938
        %3860 = vmatprep.subr.bf16.mxu0 %v2943
        %3861 = vmatpush1.bf16.msra.mxu0 %v2942
        %3862 = vmatprep.subr.bf16.mxu0 %v2947
        %3863 = vmatpush1.bf16.msra.mxu0 %v2946
        %3864 = vmatprep.subr.bf16.mxu0 %v2951
        %3865 = vmatpush1.bf16.msra.mxu0 %v2950
        %3866 = vmatprep.subr.bf16.mxu0 %v2955
        %3867 = vmatpush1.bf16.msra.mxu0 %v2954
        %3868 = vmatprep.subr.bf16.mxu0 %v2959
        %3869 = vmatpush1.bf16.msra.mxu0 %v2958
        %3870 = vmatprep.mubr.bf16.mxu0 %v1473
        %3871 = vmatmul.mubr.bf16.gmra.mrb[0].mxu0 %v1472
        %v3872 = vpop.f32.mrb[0].mxu0
        %v3873 = vadd.f32 %v3830, %v3872
        %v3874 = vpop.f32.mrb[0].mxu0
        %v3875 = vadd.f32 %v3832, %v3874
        %v3876 = vpop.f32.mrb[0].mxu0
        %v3877 = vadd.f32 %v3834, %v3876
        %v3878 = vpop.f32.mrb[0].mxu0
        %v3879 = vadd.f32 %v3836, %v3878
        %3880 = vdwg.mxu0
        %3881 = vmatprep.subr.bf16.mxu0 %v2963
        %3882 = vmatpush1.bf16.msra.mxu0 %v2962
        %3883 = vmatprep.subr.bf16.mxu0 %v2967
        %3884 = vmatpush1.bf16.msra.mxu0 %v2966
        %3885 = vmatprep.subr.bf16.mxu0 %v2971
        %3886 = vmatpush1.bf16.msra.mxu0 %v2970
        %3887 = vmatprep.subr.bf16.mxu0 %v2975
        %3888 = vmatpush1.bf16.msra.mxu0 %v2974
        %3889 = vmatprep.subr.bf16.mxu0 %v2979
        %3890 = vmatpush1.bf16.msra.mxu0 %v2978
        %3891 = vmatprep.subr.bf16.mxu0 %v2983
        %3892 = vmatpush1.bf16.msra.mxu0 %v2982
        %3893 = vmatprep.subr.bf16.mxu0 %v2987
        %3894 = vmatpush1.bf16.msra.mxu0 %v2986
        %3895 = vmatprep.subr.bf16.mxu0 %v2991
        %3896 = vmatpush1.bf16.msra.mxu0 %v2990
        %3897 = vmatprep.subr.bf16.mxu0 %v2995
        %3898 = vmatpush1.bf16.msra.mxu0 %v2994
        %3899 = vmatprep.subr.bf16.mxu0 %v2999
        %3900 = vmatpush1.bf16.msra.mxu0 %v2998
        %3901 = vmatprep.subr.bf16.mxu0 %v3003
        %3902 = vmatpush1.bf16.msra.mxu0 %v3002
        %3903 = vmatprep.subr.bf16.mxu0 %v3007
        %3904 = vmatpush1.bf16.msra.mxu0 %v3006
        %3905 = vmatprep.subr.bf16.mxu0 %v3011
        %3906 = vmatpush1.bf16.msra.mxu0 %v3010
        %3907 = vmatprep.subr.bf16.mxu0 %v3015
        %3908 = vmatpush1.bf16.msra.mxu0 %v3014
        %3909 = vmatprep.subr.bf16.mxu0 %v3019
        %3910 = vmatpush1.bf16.msra.mxu0 %v3018
        %3911 = vmatprep.subr.bf16.mxu0 %v3023
        %3912 = vmatpush1.bf16.msra.mxu0 %v3022
        %3913 = vmatprep.mubr.bf16.mxu0 %v1475
        %3914 = vmatmul.mubr.bf16.gmra.mrb[0].mxu0 %v1474
        %v3915 = vpop.f32.mrb[0].mxu0
        %v3916 = vadd.f32 %v3873, %v3915
        %v3917 = vpop.f32.mrb[0].mxu0
        %v3918 = vadd.f32 %v3875, %v3917
        %v3919 = vpop.f32.mrb[0].mxu0
        %v3920 = vadd.f32 %v3877, %v3919
        %v3921 = vpop.f32.mrb[0].mxu0
        %v3922 = vadd.f32 %v3879, %v3921
        %3923 = vdwg.mxu0
        %v3924 = vadd.f32 %v1024, %v3658
        %v3925 = vadd.f32 %v1025, %v3660
        %v3926 = vadd.f32 %v1026, %v3916
        %v3927 = vadd.f32 %v1027, %v3918
        %v3928 = vadd.f32 %v1028, %v3662
        %v3929 = vadd.f32 %v1029, %v3664
        %v3930 = vadd.f32 %v1030, %v3920
        %v3931 = vadd.f32 %v1031, %v3922
        %3932 = vst [vmem:[#allocation2] sm:$0xff] %v3924
        %3933 = vst [vmem:[#allocation2 + $0x8] sm:$0xff] %v3925
        %3934 = vst [vmem:[#allocation2 + $0x10] sm:$0xff] %v3926
        %3935 = vst [vmem:[#allocation2 + $0x18] sm:$0xff] %v3927
        %3936 = vst [vmem:[#allocation2 + $0x20] sm:$0xff] %v3928
        %3937 = vst [vmem:[#allocation2 + $0x28] sm:$0xff] %v3929
        %3938 = vst [vmem:[#allocation2 + $0x30] sm:$0xff] %v3930
        %3939 = vst [vmem:[#allocation2 + $0x38] sm:$0xff] %v3931
        // Predicated region
        $region60: #{_lambda_.14} parent=50 // pred_check
          %p3940 = pneg %p1012
        $region61: #{_lambda_.14} parent=50 // pred_check_branch
          %3942 = sbr.rel (%p3940) target = $region63
        $region62: #{_lambda_.14} parent=50 // pred_region
          %v3943 = vld [vmem:[#allocation2] sm:$0xff]
          %v3944 = vld [vmem:[#allocation2 + $0x8] sm:$0xff]
          %v3945 = vld [vmem:[#allocation2 + $0x10] sm:$0xff]
          %v3946 = vld [vmem:[#allocation2 + $0x18] sm:$0xff]
          %v3947 = vld [vmem:[#allocation2 + $0x20] sm:$0xff]
          %v3948 = vld [vmem:[#allocation2 + $0x28] sm:$0xff]
          %v3949 = vld [vmem:[#allocation2 + $0x30] sm:$0xff]
          %v3950 = vld [vmem:[#allocation2 + $0x38] sm:$0xff]
          %v3951 = vld [vmem:[%s1009] sm:$0xf]
          %v3953 = vlaneseq
          %v3954 = vshrl.u32 %v3953, 7
          %v3955 = vsub.s32 0, %v3954
          %v3956 = vrot.slane %v3951, %v3955
          %v3957 = vlaneseq
          %v3958 = vshrl.u32 %v3957, 7
          %v3959 = vsub.s32 1, %v3958
          %v3960 = vrot.slane %v3951, %v3959
          %v3961 = vlaneseq
          %v3962 = vshrl.u32 %v3961, 7
          %v3963 = vsub.s32 2, %v3962
          %v3964 = vrot.slane %v3951, %v3963
          %v3965 = vlaneseq
          %v3966 = vshrl.u32 %v3965, 7
          %v3967 = vsub.s32 3, %v3966
          %v3968 = vrot.slane %v3951, %v3967
          %v3973 = vadd.f32 %v3943, %v3956
          %v3974 = vadd.f32 %v3944, %v3960
          %v3975 = vadd.f32 %v3945, %v3964
          %v3976 = vadd.f32 %v3946, %v3968
          %v3977 = vadd.f32 %v3947, %v3956
          %v3978 = vadd.f32 %v3948, %v3960
          %v3979 = vadd.f32 %v3949, %v3964
          %v3980 = vadd.f32 %v3950, %v3968
          %v3981 = vmax.f32 %v3973, 0.0
          %v3982 = vmax.f32 %v3974, 0.0
          %v3983 = vmax.f32 %v3975, 0.0
          %v3984 = vmax.f32 %v3976, 0.0
          %v3985 = vmax.f32 %v3977, 0.0
          %v3986 = vmax.f32 %v3978, 0.0
          %v3987 = vmax.f32 %v3979, 0.0
          %v3988 = vmax.f32 %v3980, 0.0
          %v3989 = vpack.c.bf16 %v3985, %v3981
          %v3990 = vpack.c.bf16 %v3986, %v3982
          %v3991 = vpack.c.bf16 %v3987, %v3983
          %v3992 = vpack.c.bf16 %v3988, %v3984
          %v3997 = vunpack.c.l.b16 %v3989
          %v3998 = vunpack.c.l.b16 %v3990
          %v3999 = vunpack.c.l.b16 %v3991
          %v4000 = vunpack.c.l.b16 %v3992
          %v4001 = vunpack.c.h.b16 %v3989
          %v4002 = vunpack.c.h.b16 %v3990
          %v4003 = vunpack.c.h.b16 %v3991
          %v4004 = vunpack.c.h.b16 %v3992
          %v4005 = vpack.c.b16 %v3998, %v3997
          %v4006 = vpack.c.b16 %v4000, %v3999
          %v4007 = vpack.c.b16 %v4002, %v4001
          %v4008 = vpack.c.b16 %v4004, %v4003
          %4013 = vst [vmem:[%s997] sm:$0xff] %v4005
          %4014 = vst [vmem:[%s997 + $0x8] sm:$0xff] %v4006
          %4015 = vst [vmem:[%s997 + $0x10] sm:$0xff] %v4007
          %4016 = vst [vmem:[%s997 + $0x18] sm:$0xff] %v4008
        $region63: #{_lambda_.14} parent=50 // pred_fallthru
          _
        %s4017 = sand.u32 %s114, 1
        %s4018 = sand.u32 %s114, 1
        %s4019 = smul.addr %s4018, 32
        %s4020 = scalar_lea.vmem [#allocation4], %s4019
        // Predicated region
        $region64: #{_lambda_.14} parent=50 // pred_check
          %p4021 = pneg %p124
        $region65: #{_lambda_.14} parent=50 // pred_check_branch
          %4023 = sbr.rel (%p4021) target = $region67
        $region66: #{_lambda_.14} parent=50 // pred_region
          %s4024 = smul.u32 4, %s18
          %s4025 = smul.addr %s4024, 4
          %s4026 = scalar_lea.vmem %s3, %s4025
          // Predicated region
          $region68: #{_lambda_.14} parent=66 // pred_check
            _
          $region69: #{_lambda_.14} parent=66 // pred_check_branch
            %4028 = sbr.rel (0) target = $region71
          $region70: #{_lambda_.14} parent=66 // pred_region
            // Predicated region
            $region72: #{_lambda_.14} parent=70 // pred_check
              _
            $region73: #{_lambda_.14} parent=70 // pred_check_branch
              %4030 = sbr.rel (0) target = $region75
            $region74: #{_lambda_.14} parent=70 // pred_region
              loop: start=0, step=1, limit=1
              $region76: #{_lambda_.14} parent=74 // loop_pre_header
                _
              $region77: #{_lambda_.14} parent=74 // loop_header
                %s4032 = sphi 0, %s4036
                %p4033 = scmp.ge.s32.totalorder %s4032, 1
                %s4037 = sphi %s4020, %s4020
                %s4038 = sphi %s4026, %s4026
              $region78: #{_lambda_.14} parent=74 // loop_header_branch
                %4035 = sbr.rel (%p4033) target = $region82
              $region79: #{_lambda_.14} parent=74 // loop_body
                %v4039 = vld [vmem:[%s4037] sm:$0xff]
                %4040 = vst [vmem:[%s4038] sm:$0xff] %v4039
                %v4041 = vld [vmem:[%s4037 + $0x8] sm:$0xff]
                %4042 = vst [vmem:[%s4038 + $0x8] sm:$0xff] %v4041
                %v4043 = vld [vmem:[%s4037 + $0x10] sm:$0xff]
                %4044 = vst [vmem:[%s4038 + $0x20] sm:$0xff] %v4043
                %v4045 = vld [vmem:[%s4037 + $0x18] sm:$0xff]
                %4046 = vst [vmem:[%s4038 + $0x28] sm:$0xff] %v4045
              $region80: #{_lambda_.14} parent=74 // loop_footer
                %s4036 = sadd.s32 1, %s4032
              $region81: #{_lambda_.14} parent=74 // loop_footer_branch
                %4031 = sbr.rel target = $region77
              $region82: #{_lambda_.14} parent=74 // loop_exit
                _
            $region75: #{_lambda_.14} parent=70 // pred_fallthru
              _
            // Predicated region
            $region83: #{_lambda_.14} parent=70 // pred_check
              _
            $region84: #{_lambda_.14} parent=70 // pred_check_branch
              %4048 = sbr.rel target = $region86
            $region85: #{_lambda_.14} parent=70 // pred_region
              _
            $region86: #{_lambda_.14} parent=70 // pred_fallthru
              _
          $region71: #{_lambda_.14} parent=66 // pred_fallthru
            _
          %4049 = vnop
        $region67: #{_lambda_.14} parent=50 // pred_fallthru
          _
      $region51: #{_lambda_.14} parent=5 // pred_fallthru
        _
      %p4050 = scmp.le.s32.totalorder 2, %s9
      // Predicated region
      $region87: #{_lambda_.14} parent=5 // pred_check
        %p4051 = pneg %p4050
      $region88: #{_lambda_.14} parent=5 // pred_check_branch
        %4053 = sbr.rel (%p4051) target = $region90
      $region89: #{_lambda_.14} parent=5 // pred_region
        %s4054 = ssub.s32 %s9, 2
        // Predicated region
        $region91: #{_lambda_.14} parent=89 // pred_check
          %p4055 = pneg %p130
        $region92: #{_lambda_.14} parent=89 // pred_check_branch
          %4057 = sbr.rel (%p4055) target = $region94
        $region93: #{_lambda_.14} parent=89 // pred_region
          %s4058 = sand.u32 %s115, 1
          %s4059 = sand.u32 %s115, 1
          %s4060 = smul.addr %s4059, 32
          %s4061 = scalar_lea.vmem [#allocation4], %s4060
        $region94: #{_lambda_.14} parent=89 // pred_fallthru
          _
      $region90: #{_lambda_.14} parent=5 // pred_fallthru
        _
    $region6: #{_lambda_.14} parent=1 // loop_footer
      %s13 = sadd.s32 1, %s9
    $region7: #{_lambda_.14} parent=1 // loop_footer_branch
      %8 = sbr.rel target = $region3
    $region8: #{_lambda_.14} parent=1 // loop_exit
      _

// kernel: _lambda_.15
$region0: #{_lambda_.15}
  #allocation0 [shape = 'u32[]', space=smem, size = 0x4, offset = 0x4, fixed_abs, tag = 'smem constant byte address 0x4 - core index']
  #allocation1 [shape = 'u32[144,128]{1,0:T(1,128)}', space=vmem, size = 0x12000, scoped, tag = 'internal scratch']
  #allocation2 [shape = 'f32[1,1]{1,0:T(1,128)S(1)}', space=vmem, size = 0x200, scoped, tag = 'scoped memory for _lambda_.15']
  %s0 = inlined_call_operand.vmem [shape: bf16[16,1024], index: 0, kind: input, shape index: {}]
  %s1 = inlined_call_operand.vmem [shape: bf16[1024,512], index: 1, kind: input, shape index: {}]
  %s2 = inlined_call_operand.vmem [shape: f32[1,512], index: 2, kind: input, shape index: {}]
  %s3 = inlined_call_operand.vmem [shape: bf16[512,256], index: 3, kind: input, shape index: {}]
  %s4 = inlined_call_operand.vmem [shape: f32[1,256], index: 4, kind: input, shape index: {}]
  %s5 = inlined_call_operand.vmem [shape: f32[1,256], index: 5, kind: input, shape index: {}]
  %s6 = inlined_call_operand.<no memory space> [shape: f32[1,1], index: 6, kind: input, shape index: {}]
  %s7 = inlined_call_operand.vmem [shape: f32[16,1], index: 7, kind: output, shape index: {}]
  %s8 = sld [smem:[#allocation0]]
  $region38: #{_lambda_.15} parent=0
    _
  %s10 = ssub.s32 1, %s8
  %s11 = scalar_select 0, %s10, %s8
  %v12 = vstv %s6
  %13 = vst [vmem:[#allocation2] sm:$0x1] %v12
  // Predicated region
  $region2: #{_lambda_.15} parent=0 // pred_check
    _
  $region3: #{_lambda_.15} parent=0 // pred_check_branch
    %15 = sbr.rel (0) target = $region5
  $region4: #{_lambda_.15} parent=0 // pred_region
    _
  $region5: #{_lambda_.15} parent=0 // pred_fallthru
    _
  // Predicated region
  $region6: #{_lambda_.15} parent=0 // pred_check
    _
  $region7: #{_lambda_.15} parent=0 // pred_check_branch
    %17 = sbr.rel (0) target = $region9
  $region8: #{_lambda_.15} parent=0 // pred_region
    _
  $region9: #{_lambda_.15} parent=0 // pred_fallthru
    _
  // Predicated region
  $region10: #{_lambda_.15} parent=0 // pred_check
    _
  $region11: #{_lambda_.15} parent=0 // pred_check_branch
    %19 = sbr.rel (0) target = $region13
  $region12: #{_lambda_.15} parent=0 // pred_region
    _
  $region13: #{_lambda_.15} parent=0 // pred_fallthru
    _
  // Predicated region
  $region14: #{_lambda_.15} parent=0 // pred_check
    _
  $region15: #{_lambda_.15} parent=0 // pred_check_branch
    %21 = sbr.rel (0) target = $region17
  $region16: #{_lambda_.15} parent=0 // pred_region
    _
  $region17: #{_lambda_.15} parent=0 // pred_fallthru
    _
  // Predicated region
  $region18: #{_lambda_.15} parent=0 // pred_check
    _
  $region19: #{_lambda_.15} parent=0 // pred_check_branch
    %23 = sbr.rel (0) target = $region21
  $region20: #{_lambda_.15} parent=0 // pred_region
    _
  $region21: #{_lambda_.15} parent=0 // pred_fallthru
    _
  // Predicated region
  $region22: #{_lambda_.15} parent=0 // pred_check
    _
  $region23: #{_lambda_.15} parent=0 // pred_check_branch
    %25 = sbr.rel (0) target = $region25
  $region24: #{_lambda_.15} parent=0 // pred_region
    _
  $region25: #{_lambda_.15} parent=0 // pred_fallthru
    _
  // Predicated region
  $region26: #{_lambda_.15} parent=0 // pred_check
    _
  $region27: #{_lambda_.15} parent=0 // pred_check_branch
    %27 = sbr.rel (0) target = $region29
  $region28: #{_lambda_.15} parent=0 // pred_region
    _
  $region29: #{_lambda_.15} parent=0 // pred_fallthru
    _
  %v28 = vld [vmem:[%s0] sm:$0xff]
  %v29 = vld [vmem:[%s0 + $0x8] sm:$0xff]
  %v30 = vld [vmem:[%s0 + $0x10] sm:$0xff]
  %v31 = vld [vmem:[%s0 + $0x18] sm:$0xff]
  %v32 = vld [vmem:[%s0 + $0x20] sm:$0xff]
  %v33 = vld [vmem:[%s0 + $0x28] sm:$0xff]
  %v34 = vld [vmem:[%s0 + $0x30] sm:$0xff]
  %v35 = vld [vmem:[%s0 + $0x38] sm:$0xff]
  %v36 = vld [vmem:[%s1] sm:$0xff]
  %v37 = vld [vmem:[%s1 + $0x8] sm:$0xff]
  %v38 = vld [vmem:[%s1 + $0x10] sm:$0xff]
  %v39 = vld [vmem:[%s1 + $0x18] sm:$0xff]
  %v40 = vld [vmem:[%s1 + $0x20] sm:$0xff]
  %v41 = vld [vmem:[%s1 + $0x28] sm:$0xff]
  %v42 = vld [vmem:[%s1 + $0x30] sm:$0xff]
  %v43 = vld [vmem:[%s1 + $0x38] sm:$0xff]
  %v44 = vld [vmem:[%s1 + $0x40] sm:$0xff]
  %v45 = vld [vmem:[%s1 + $0x48] sm:$0xff]
  %v46 = vld [vmem:[%s1 + $0x50] sm:$0xff]
  %v47 = vld [vmem:[%s1 + $0x58] sm:$0xff]
  %v48 = vld [vmem:[%s1 + $0x60] sm:$0xff]
  %v49 = vld [vmem:[%s1 + $0x68] sm:$0xff]
  %v50 = vld [vmem:[%s1 + $0x70] sm:$0xff]
  %v51 = vld [vmem:[%s1 + $0x78] sm:$0xff]
  %v52 = vld [vmem:[%s1 + $0x80] sm:$0xff]
  %v53 = vld [vmem:[%s1 + $0x88] sm:$0xff]
  %v54 = vld [vmem:[%s1 + $0x90] sm:$0xff]
  %v55 = vld [vmem:[%s1 + $0x98] sm:$0xff]
  %v56 = vld [vmem:[%s1 + $0xa0] sm:$0xff]
  %v57 = vld [vmem:[%s1 + $0xa8] sm:$0xff]
  %v58 = vld [vmem:[%s1 + $0xb0] sm:$0xff]
  %v59 = vld [vmem:[%s1 + $0xb8] sm:$0xff]
  %v60 = vld [vmem:[%s1 + $0xc0] sm:$0xff]
  %v61 = vld [vmem:[%s1 + $0xc8] sm:$0xff]
  %v62 = vld [vmem:[%s1 + $0xd0] sm:$0xff]
  %v63 = vld [vmem:[%s1 + $0xd8] sm:$0xff]
  %v64 = vld [vmem:[%s1 + $0xe0] sm:$0xff]
  %v65 = vld [vmem:[%s1 + $0xe8] sm:$0xff]
  %v66 = vld [vmem:[%s1 + $0xf0] sm:$0xff]
  %v67 = vld [vmem:[%s1 + $0xf8] sm:$0xff]
  %v68 = vld [vmem:[%s1 + $0x100] sm:$0xff]
  %v69 = vld [vmem:[%s1 + $0x108] sm:$0xff]
  %v70 = vld [vmem:[%s1 + $0x110] sm:$0xff]
  %v71 = vld [vmem:[%s1 + $0x118] sm:$0xff]
  %v72 = vld [vmem:[%s1 + $0x120] sm:$0xff]
  %v73 = vld [vmem:[%s1 + $0x128] sm:$0xff]
  %v74 = vld [vmem:[%s1 + $0x130] sm:$0xff]
  %v75 = vld [vmem:[%s1 + $0x138] sm:$0xff]
  %v76 = vld [vmem:[%s1 + $0x140] sm:$0xff]
  %v77 = vld [vmem:[%s1 + $0x148] sm:$0xff]
  %v78 = vld [vmem:[%s1 + $0x150] sm:$0xff]
  %v79 = vld [vmem:[%s1 + $0x158] sm:$0xff]
  %v80 = vld [vmem:[%s1 + $0x160] sm:$0xff]
  %v81 = vld [vmem:[%s1 + $0x168] sm:$0xff]
  %v82 = vld [vmem:[%s1 + $0x170] sm:$0xff]
  %v83 = vld [vmem:[%s1 + $0x178] sm:$0xff]
  %v84 = vld [vmem:[%s1 + $0x180] sm:$0xff]
  %v85 = vld [vmem:[%s1 + $0x188] sm:$0xff]
  %v86 = vld [vmem:[%s1 + $0x190] sm:$0xff]
  %v87 = vld [vmem:[%s1 + $0x198] sm:$0xff]
  %v88 = vld [vmem:[%s1 + $0x1a0] sm:$0xff]
  %v89 = vld [vmem:[%s1 + $0x1a8] sm:$0xff]
  %v90 = vld [vmem:[%s1 + $0x1b0] sm:$0xff]
  %v91 = vld [vmem:[%s1 + $0x1b8] sm:$0xff]
  %v92 = vld [vmem:[%s1 + $0x1c0] sm:$0xff]
  %v93 = vld [vmem:[%s1 + $0x1c8] sm:$0xff]
  %v94 = vld [vmem:[%s1 + $0x1d0] sm:$0xff]
  %v95 = vld [vmem:[%s1 + $0x1d8] sm:$0xff]
  %v96 = vld [vmem:[%s1 + $0x1e0] sm:$0xff]
  %v97 = vld [vmem:[%s1 + $0x1e8] sm:$0xff]
  %v98 = vld [vmem:[%s1 + $0x1f0] sm:$0xff]
  %v99 = vld [vmem:[%s1 + $0x1f8] sm:$0xff]
  %v100 = vld [vmem:[%s1 + $0x200] sm:$0xff]
  %v101 = vld [vmem:[%s1 + $0x208] sm:$0xff]
  %v102 = vld [vmem:[%s1 + $0x210] sm:$0xff]
  %v103 = vld [vmem:[%s1 + $0x218] sm:$0xff]
  %v104 = vld [vmem:[%s1 + $0x220] sm:$0xff]
  %v105 = vld [vmem:[%s1 + $0x228] sm:$0xff]
  %v106 = vld [vmem:[%s1 + $0x230] sm:$0xff]
  %v107 = vld [vmem:[%s1 + $0x238] sm:$0xff]
  %v108 = vld [vmem:[%s1 + $0x240] sm:$0xff]
  %v109 = vld [vmem:[%s1 + $0x248] sm:$0xff]
  %v110 = vld [vmem:[%s1 + $0x250] sm:$0xff]
  %v111 = vld [vmem:[%s1 + $0x258] sm:$0xff]
  %v112 = vld [vmem:[%s1 + $0x260] sm:$0xff]
  %v113 = vld [vmem:[%s1 + $0x268] sm:$0xff]
  %v114 = vld [vmem:[%s1 + $0x270] sm:$0xff]
  %v115 = vld [vmem:[%s1 + $0x278] sm:$0xff]
  %v116 = vld [vmem:[%s1 + $0x280] sm:$0xff]
  %v117 = vld [vmem:[%s1 + $0x288] sm:$0xff]
  %v118 = vld [vmem:[%s1 + $0x290] sm:$0xff]
  %v119 = vld [vmem:[%s1 + $0x298] sm:$0xff]
  %v120 = vld [vmem:[%s1 + $0x2a0] sm:$0xff]
  %v121 = vld [vmem:[%s1 + $0x2a8] sm:$0xff]
  %v122 = vld [vmem:[%s1 + $0x2b0] sm:$0xff]
  %v123 = vld [vmem:[%s1 + $0x2b8] sm:$0xff]
  %v124 = vld [vmem:[%s1 + $0x2c0] sm:$0xff]
  %v125 = vld [vmem:[%s1 + $0x2c8] sm:$0xff]
  %v126 = vld [vmem:[%s1 + $0x2d0] sm:$0xff]
  %v127 = vld [vmem:[%s1 + $0x2d8] sm:$0xff]
  %v128 = vld [vmem:[%s1 + $0x2e0] sm:$0xff]
  %v129 = vld [vmem:[%s1 + $0x2e8] sm:$0xff]
  %v130 = vld [vmem:[%s1 + $0x2f0] sm:$0xff]
  %v131 = vld [vmem:[%s1 + $0x2f8] sm:$0xff]
  %v132 = vld [vmem:[%s1 + $0x300] sm:$0xff]
  %v133 = vld [vmem:[%s1 + $0x308] sm:$0xff]
  %v134 = vld [vmem:[%s1 + $0x310] sm:$0xff]
  %v135 = vld [vmem:[%s1 + $0x318] sm:$0xff]
  %v136 = vld [vmem:[%s1 + $0x320] sm:$0xff]
  %v137 = vld [vmem:[%s1 + $0x328] sm:$0xff]
  %v138 = vld [vmem:[%s1 + $0x330] sm:$0xff]
  %v139 = vld [vmem:[%s1 + $0x338] sm:$0xff]
  %v140 = vld [vmem:[%s1 + $0x340] sm:$0xff]
  %v141 = vld [vmem:[%s1 + $0x348] sm:$0xff]
  %v142 = vld [vmem:[%s1 + $0x350] sm:$0xff]
  %v143 = vld [vmem:[%s1 + $0x358] sm:$0xff]
  %v144 = vld [vmem:[%s1 + $0x360] sm:$0xff]
  %v145 = vld [vmem:[%s1 + $0x368] sm:$0xff]
  %v146 = vld [vmem:[%s1 + $0x370] sm:$0xff]
  %v147 = vld [vmem:[%s1 + $0x378] sm:$0xff]
  %v148 = vld [vmem:[%s1 + $0x380] sm:$0xff]
  %v149 = vld [vmem:[%s1 + $0x388] sm:$0xff]
  %v150 = vld [vmem:[%s1 + $0x390] sm:$0xff]
  %v151 = vld [vmem:[%s1 + $0x398] sm:$0xff]
  %v152 = vld [vmem:[%s1 + $0x3a0] sm:$0xff]
  %v153 = vld [vmem:[%s1 + $0x3a8] sm:$0xff]
  %v154 = vld [vmem:[%s1 + $0x3b0] sm:$0xff]
  %v155 = vld [vmem:[%s1 + $0x3b8] sm:$0xff]
  %v156 = vld [vmem:[%s1 + $0x3c0] sm:$0xff]
  %v157 = vld [vmem:[%s1 + $0x3c8] sm:$0xff]
  %v158 = vld [vmem:[%s1 + $0x3d0] sm:$0xff]
  %v159 = vld [vmem:[%s1 + $0x3d8] sm:$0xff]
  %v160 = vld [vmem:[%s1 + $0x3e0] sm:$0xff]
  %v161 = vld [vmem:[%s1 + $0x3e8] sm:$0xff]
  %v162 = vld [vmem:[%s1 + $0x3f0] sm:$0xff]
  %v163 = vld [vmem:[%s1 + $0x3f8] sm:$0xff]
  %v164 = vld [vmem:[%s1 + $0x400] sm:$0xff]
  %v165 = vld [vmem:[%s1 + $0x408] sm:$0xff]
  %v166 = vld [vmem:[%s1 + $0x410] sm:$0xff]
  %v167 = vld [vmem:[%s1 + $0x418] sm:$0xff]
  %v168 = vld [vmem:[%s1 + $0x420] sm:$0xff]
  %v169 = vld [vmem:[%s1 + $0x428] sm:$0xff]
  %v170 = vld [vmem:[%s1 + $0x430] sm:$0xff]
  %v171 = vld [vmem:[%s1 + $0x438] sm:$0xff]
  %v172 = vld [vmem:[%s1 + $0x440] sm:$0xff]
  %v173 = vld [vmem:[%s1 + $0x448] sm:$0xff]
  %v174 = vld [vmem:[%s1 + $0x450] sm:$0xff]
  %v175 = vld [vmem:[%s1 + $0x458] sm:$0xff]
  %v176 = vld [vmem:[%s1 + $0x460] sm:$0xff]
  %v177 = vld [vmem:[%s1 + $0x468] sm:$0xff]
  %v178 = vld [vmem:[%s1 + $0x470] sm:$0xff]
  %v179 = vld [vmem:[%s1 + $0x478] sm:$0xff]
  %v180 = vld [vmem:[%s1 + $0x480] sm:$0xff]
  %v181 = vld [vmem:[%s1 + $0x488] sm:$0xff]
  %v182 = vld [vmem:[%s1 + $0x490] sm:$0xff]
  %v183 = vld [vmem:[%s1 + $0x498] sm:$0xff]
  %v184 = vld [vmem:[%s1 + $0x4a0] sm:$0xff]
  %v185 = vld [vmem:[%s1 + $0x4a8] sm:$0xff]
  %v186 = vld [vmem:[%s1 + $0x4b0] sm:$0xff]
  %v187 = vld [vmem:[%s1 + $0x4b8] sm:$0xff]
  %v188 = vld [vmem:[%s1 + $0x4c0] sm:$0xff]
  %v189 = vld [vmem:[%s1 + $0x4c8] sm:$0xff]
  %v190 = vld [vmem:[%s1 + $0x4d0] sm:$0xff]
  %v191 = vld [vmem:[%s1 + $0x4d8] sm:$0xff]
  %v192 = vld [vmem:[%s1 + $0x4e0] sm:$0xff]
  %v193 = vld [vmem:[%s1 + $0x4e8] sm:$0xff]
  %v194 = vld [vmem:[%s1 + $0x4f0] sm:$0xff]
  %v195 = vld [vmem:[%s1 + $0x4f8] sm:$0xff]
  %v196 = vld [vmem:[%s1 + $0x500] sm:$0xff]
  %v197 = vld [vmem:[%s1 + $0x508] sm:$0xff]
  %v198 = vld [vmem:[%s1 + $0x510] sm:$0xff]
  %v199 = vld [vmem:[%s1 + $0x518] sm:$0xff]
  %v200 = vld [vmem:[%s1 + $0x520] sm:$0xff]
  %v201 = vld [vmem:[%s1 + $0x528] sm:$0xff]
  %v202 = vld [vmem:[%s1 + $0x530] sm:$0xff]
  %v203 = vld [vmem:[%s1 + $0x538] sm:$0xff]
  %v204 = vld [vmem:[%s1 + $0x540] sm:$0xff]
  %v205 = vld [vmem:[%s1 + $0x548] sm:$0xff]
  %v206 = vld [vmem:[%s1 + $0x550] sm:$0xff]
  %v207 = vld [vmem:[%s1 + $0x558] sm:$0xff]
  %v208 = vld [vmem:[%s1 + $0x560] sm:$0xff]
  %v209 = vld [vmem:[%s1 + $0x568] sm:$0xff]
  %v210 = vld [vmem:[%s1 + $0x570] sm:$0xff]
  %v211 = vld [vmem:[%s1 + $0x578] sm:$0xff]
  %v212 = vld [vmem:[%s1 + $0x580] sm:$0xff]
  %v213 = vld [vmem:[%s1 + $0x588] sm:$0xff]
  %v214 = vld [vmem:[%s1 + $0x590] sm:$0xff]
  %v215 = vld [vmem:[%s1 + $0x598] sm:$0xff]
  %v216 = vld [vmem:[%s1 + $0x5a0] sm:$0xff]
  %v217 = vld [vmem:[%s1 + $0x5a8] sm:$0xff]
  %v218 = vld [vmem:[%s1 + $0x5b0] sm:$0xff]
  %v219 = vld [vmem:[%s1 + $0x5b8] sm:$0xff]
  %v220 = vld [vmem:[%s1 + $0x5c0] sm:$0xff]
  %v221 = vld [vmem:[%s1 + $0x5c8] sm:$0xff]
  %v222 = vld [vmem:[%s1 + $0x5d0] sm:$0xff]
  %v223 = vld [vmem:[%s1 + $0x5d8] sm:$0xff]
  %v224 = vld [vmem:[%s1 + $0x5e0] sm:$0xff]
  %v225 = vld [vmem:[%s1 + $0x5e8] sm:$0xff]
  %v226 = vld [vmem:[%s1 + $0x5f0] sm:$0xff]
  %v227 = vld [vmem:[%s1 + $0x5f8] sm:$0xff]
  %v228 = vld [vmem:[%s1 + $0x600] sm:$0xff]
  %v229 = vld [vmem:[%s1 + $0x608] sm:$0xff]
  %v230 = vld [vmem:[%s1 + $0x610] sm:$0xff]
  %v231 = vld [vmem:[%s1 + $0x618] sm:$0xff]
  %v232 = vld [vmem:[%s1 + $0x620] sm:$0xff]
  %v233 = vld [vmem:[%s1 + $0x628] sm:$0xff]
  %v234 = vld [vmem:[%s1 + $0x630] sm:$0xff]
  %v235 = vld [vmem:[%s1 + $0x638] sm:$0xff]
  %v236 = vld [vmem:[%s1 + $0x640] sm:$0xff]
  %v237 = vld [vmem:[%s1 + $0x648] sm:$0xff]
  %v238 = vld [vmem:[%s1 + $0x650] sm:$0xff]
  %v239 = vld [vmem:[%s1 + $0x658] sm:$0xff]
  %v240 = vld [vmem:[%s1 + $0x660] sm:$0xff]
  %v241 = vld [vmem:[%s1 + $0x668] sm:$0xff]
  %v242 = vld [vmem:[%s1 + $0x670] sm:$0xff]
  %v243 = vld [vmem:[%s1 + $0x678] sm:$0xff]
  %v244 = vld [vmem:[%s1 + $0x680] sm:$0xff]
  %v245 = vld [vmem:[%s1 + $0x688] sm:$0xff]
  %v246 = vld [vmem:[%s1 + $0x690] sm:$0xff]
  %v247 = vld [vmem:[%s1 + $0x698] sm:$0xff]
  %v248 = vld [vmem:[%s1 + $0x6a0] sm:$0xff]
  %v249 = vld [vmem:[%s1 + $0x6a8] sm:$0xff]
  %v250 = vld [vmem:[%s1 + $0x6b0] sm:$0xff]
  %v251 = vld [vmem:[%s1 + $0x6b8] sm:$0xff]
  %v252 = vld [vmem:[%s1 + $0x6c0] sm:$0xff]
  %v253 = vld [vmem:[%s1 + $0x6c8] sm:$0xff]
  %v254 = vld [vmem:[%s1 + $0x6d0] sm:$0xff]
  %v255 = vld [vmem:[%s1 + $0x6d8] sm:$0xff]
  %v256 = vld [vmem:[%s1 + $0x6e0] sm:$0xff]
  %v257 = vld [vmem:[%s1 + $0x6e8] sm:$0xff]
  %v258 = vld [vmem:[%s1 + $0x6f0] sm:$0xff]
  %v259 = vld [vmem:[%s1 + $0x6f8] sm:$0xff]
  %v260 = vld [vmem:[%s1 + $0x700] sm:$0xff]
  %v261 = vld [vmem:[%s1 + $0x708] sm:$0xff]
  %v262 = vld [vmem:[%s1 + $0x710] sm:$0xff]
  %v263 = vld [vmem:[%s1 + $0x718] sm:$0xff]
  %v264 = vld [vmem:[%s1 + $0x720] sm:$0xff]
  %v265 = vld [vmem:[%s1 + $0x728] sm:$0xff]
  %v266 = vld [vmem:[%s1 + $0x730] sm:$0xff]
  %v267 = vld [vmem:[%s1 + $0x738] sm:$0xff]
  %v268 = vld [vmem:[%s1 + $0x740] sm:$0xff]
  %v269 = vld [vmem:[%s1 + $0x748] sm:$0xff]
  %v270 = vld [vmem:[%s1 + $0x750] sm:$0xff]
  %v271 = vld [vmem:[%s1 + $0x758] sm:$0xff]
  %v272 = vld [vmem:[%s1 + $0x760] sm:$0xff]
  %v273 = vld [vmem:[%s1 + $0x768] sm:$0xff]
  %v274 = vld [vmem:[%s1 + $0x770] sm:$0xff]
  %v275 = vld [vmem:[%s1 + $0x778] sm:$0xff]
  %v276 = vld [vmem:[%s1 + $0x780] sm:$0xff]
  %v277 = vld [vmem:[%s1 + $0x788] sm:$0xff]
  %v278 = vld [vmem:[%s1 + $0x790] sm:$0xff]
  %v279 = vld [vmem:[%s1 + $0x798] sm:$0xff]
  %v280 = vld [vmem:[%s1 + $0x7a0] sm:$0xff]
  %v281 = vld [vmem:[%s1 + $0x7a8] sm:$0xff]
  %v282 = vld [vmem:[%s1 + $0x7b0] sm:$0xff]
  %v283 = vld [vmem:[%s1 + $0x7b8] sm:$0xff]
  %v284 = vld [vmem:[%s1 + $0x7c0] sm:$0xff]
  %v285 = vld [vmem:[%s1 + $0x7c8] sm:$0xff]
  %v286 = vld [vmem:[%s1 + $0x7d0] sm:$0xff]
  %v287 = vld [vmem:[%s1 + $0x7d8] sm:$0xff]
  %v288 = vld [vmem:[%s1 + $0x7e0] sm:$0xff]
  %v289 = vld [vmem:[%s1 + $0x7e8] sm:$0xff]
  %v290 = vld [vmem:[%s1 + $0x7f0] sm:$0xff]
  %v291 = vld [vmem:[%s1 + $0x7f8] sm:$0xff]
  %v292 = vld [vmem:[%s2] sm:$0xf]
  %v294 = vlaneseq
  %v295 = vshrl.u32 %v294, 7
  %v296 = vsub.s32 0, %v295
  %v297 = vrot.slane %v292, %v296
  %v298 = vlaneseq
  %v299 = vshrl.u32 %v298, 7
  %v300 = vsub.s32 1, %v299
  %v301 = vrot.slane %v292, %v300
  %v302 = vlaneseq
  %v303 = vshrl.u32 %v302, 7
  %v304 = vsub.s32 2, %v303
  %v305 = vrot.slane %v292, %v304
  %v306 = vlaneseq
  %v307 = vshrl.u32 %v306, 7
  %v308 = vsub.s32 3, %v307
  %v309 = vrot.slane %v292, %v308
  %v322 = vunpack.c.l.b16 %v28
  %v323 = vunpack.c.h.b16 %v28
  %v324 = vunpack.c.l.b16 %v29
  %v325 = vunpack.c.h.b16 %v29
  %v326 = vunpack.c.l.b16 %v30
  %v327 = vunpack.c.h.b16 %v30
  %v328 = vunpack.c.l.b16 %v31
  %v329 = vunpack.c.h.b16 %v31
  %v330 = vunpack.c.l.b16 %v32
  %v331 = vunpack.c.h.b16 %v32
  %v332 = vunpack.c.l.b16 %v33
  %v333 = vunpack.c.h.b16 %v33
  %v334 = vunpack.c.l.b16 %v34
  %v335 = vunpack.c.h.b16 %v34
  %v336 = vunpack.c.l.b16 %v35
  %v337 = vunpack.c.h.b16 %v35
  %v338 = vpack.c.b16 %v330, %v322
  %v339 = vpack.c.b16 %v331, %v323
  %v340 = vpack.c.b16 %v332, %v324
  %v341 = vpack.c.b16 %v333, %v325
  %v342 = vpack.c.b16 %v334, %v326
  %v343 = vpack.c.b16 %v335, %v327
  %v344 = vpack.c.b16 %v336, %v328
  %v345 = vpack.c.b16 %v337, %v329
  %v610 = vunpack.c.l.b16 %v36
  %v611 = vunpack.c.h.b16 %v36
  %v612 = vunpack.c.l.b16 %v37
  %v613 = vunpack.c.h.b16 %v37
  %v614 = vunpack.c.l.b16 %v38
  %v615 = vunpack.c.h.b16 %v38
  %v616 = vunpack.c.l.b16 %v39
  %v617 = vunpack.c.h.b16 %v39
  %v618 = vunpack.c.l.b16 %v40
  %v619 = vunpack.c.h.b16 %v40
  %v620 = vunpack.c.l.b16 %v41
  %v621 = vunpack.c.h.b16 %v41
  %v622 = vunpack.c.l.b16 %v42
  %v623 = vunpack.c.h.b16 %v42
  %v624 = vunpack.c.l.b16 %v43
  %v625 = vunpack.c.h.b16 %v43
  %v626 = vunpack.c.l.b16 %v44
  %v627 = vunpack.c.h.b16 %v44
  %v628 = vunpack.c.l.b16 %v45
  %v629 = vunpack.c.h.b16 %v45
  %v630 = vunpack.c.l.b16 %v46
  %v631 = vunpack.c.h.b16 %v46
  %v632 = vunpack.c.l.b16 %v47
  %v633 = vunpack.c.h.b16 %v47
  %v634 = vunpack.c.l.b16 %v48
  %v635 = vunpack.c.h.b16 %v48
  %v636 = vunpack.c.l.b16 %v49
  %v637 = vunpack.c.h.b16 %v49
  %v638 = vunpack.c.l.b16 %v50
  %v639 = vunpack.c.h.b16 %v50
  %v640 = vunpack.c.l.b16 %v51
  %v641 = vunpack.c.h.b16 %v51
  %v642 = vunpack.c.l.b16 %v52
  %v643 = vunpack.c.h.b16 %v52
  %v644 = vunpack.c.l.b16 %v53
  %v645 = vunpack.c.h.b16 %v53
  %v646 = vunpack.c.l.b16 %v54
  %v647 = vunpack.c.h.b16 %v54
  %v648 = vunpack.c.l.b16 %v55
  %v649 = vunpack.c.h.b16 %v55
  %v650 = vunpack.c.l.b16 %v56
  %v651 = vunpack.c.h.b16 %v56
  %v652 = vunpack.c.l.b16 %v57
  %v653 = vunpack.c.h.b16 %v57
  %v654 = vunpack.c.l.b16 %v58
  %v655 = vunpack.c.h.b16 %v58
  %v656 = vunpack.c.l.b16 %v59
  %v657 = vunpack.c.h.b16 %v59
  %v658 = vunpack.c.l.b16 %v60
  %v659 = vunpack.c.h.b16 %v60
  %v660 = vunpack.c.l.b16 %v61
  %v661 = vunpack.c.h.b16 %v61
  %v662 = vunpack.c.l.b16 %v62
  %v663 = vunpack.c.h.b16 %v62
  %v664 = vunpack.c.l.b16 %v63
  %v665 = vunpack.c.h.b16 %v63
  %v666 = vunpack.c.l.b16 %v64
  %v667 = vunpack.c.h.b16 %v64
  %v668 = vunpack.c.l.b16 %v65
  %v669 = vunpack.c.h.b16 %v65
  %v670 = vunpack.c.l.b16 %v66
  %v671 = vunpack.c.h.b16 %v66
  %v672 = vunpack.c.l.b16 %v67
  %v673 = vunpack.c.h.b16 %v67
  %v674 = vunpack.c.l.b16 %v68
  %v675 = vunpack.c.h.b16 %v68
  %v676 = vunpack.c.l.b16 %v69
  %v677 = vunpack.c.h.b16 %v69
  %v678 = vunpack.c.l.b16 %v70
  %v679 = vunpack.c.h.b16 %v70
  %v680 = vunpack.c.l.b16 %v71
  %v681 = vunpack.c.h.b16 %v71
  %v682 = vunpack.c.l.b16 %v72
  %v683 = vunpack.c.h.b16 %v72
  %v684 = vunpack.c.l.b16 %v73
  %v685 = vunpack.c.h.b16 %v73
  %v686 = vunpack.c.l.b16 %v74
  %v687 = vunpack.c.h.b16 %v74
  %v688 = vunpack.c.l.b16 %v75
  %v689 = vunpack.c.h.b16 %v75
  %v690 = vunpack.c.l.b16 %v76
  %v691 = vunpack.c.h.b16 %v76
  %v692 = vunpack.c.l.b16 %v77
  %v693 = vunpack.c.h.b16 %v77
  %v694 = vunpack.c.l.b16 %v78
  %v695 = vunpack.c.h.b16 %v78
  %v696 = vunpack.c.l.b16 %v79
  %v697 = vunpack.c.h.b16 %v79
  %v698 = vunpack.c.l.b16 %v80
  %v699 = vunpack.c.h.b16 %v80
  %v700 = vunpack.c.l.b16 %v81
  %v701 = vunpack.c.h.b16 %v81
  %v702 = vunpack.c.l.b16 %v82
  %v703 = vunpack.c.h.b16 %v82
  %v704 = vunpack.c.l.b16 %v83
  %v705 = vunpack.c.h.b16 %v83
  %v706 = vunpack.c.l.b16 %v84
  %v707 = vunpack.c.h.b16 %v84
  %v708 = vunpack.c.l.b16 %v85
  %v709 = vunpack.c.h.b16 %v85
  %v710 = vunpack.c.l.b16 %v86
  %v711 = vunpack.c.h.b16 %v86
  %v712 = vunpack.c.l.b16 %v87
  %v713 = vunpack.c.h.b16 %v87
  %v714 = vunpack.c.l.b16 %v88
  %v715 = vunpack.c.h.b16 %v88
  %v716 = vunpack.c.l.b16 %v89
  %v717 = vunpack.c.h.b16 %v89
  %v718 = vunpack.c.l.b16 %v90
  %v719 = vunpack.c.h.b16 %v90
  %v720 = vunpack.c.l.b16 %v91
  %v721 = vunpack.c.h.b16 %v91
  %v722 = vunpack.c.l.b16 %v92
  %v723 = vunpack.c.h.b16 %v92
  %v724 = vunpack.c.l.b16 %v93
  %v725 = vunpack.c.h.b16 %v93
  %v726 = vunpack.c.l.b16 %v94
  %v727 = vunpack.c.h.b16 %v94
  %v728 = vunpack.c.l.b16 %v95
  %v729 = vunpack.c.h.b16 %v95
  %v730 = vunpack.c.l.b16 %v96
  %v731 = vunpack.c.h.b16 %v96
  %v732 = vunpack.c.l.b16 %v97
  %v733 = vunpack.c.h.b16 %v97
  %v734 = vunpack.c.l.b16 %v98
  %v735 = vunpack.c.h.b16 %v98
  %v736 = vunpack.c.l.b16 %v99
  %v737 = vunpack.c.h.b16 %v99
  %v738 = vunpack.c.l.b16 %v100
  %v739 = vunpack.c.h.b16 %v100
  %v740 = vunpack.c.l.b16 %v101
  %v741 = vunpack.c.h.b16 %v101
  %v742 = vunpack.c.l.b16 %v102
  %v743 = vunpack.c.h.b16 %v102
  %v744 = vunpack.c.l.b16 %v103
  %v745 = vunpack.c.h.b16 %v103
  %v746 = vunpack.c.l.b16 %v104
  %v747 = vunpack.c.h.b16 %v104
  %v748 = vunpack.c.l.b16 %v105
  %v749 = vunpack.c.h.b16 %v105
  %v750 = vunpack.c.l.b16 %v106
  %v751 = vunpack.c.h.b16 %v106
  %v752 = vunpack.c.l.b16 %v107
  %v753 = vunpack.c.h.b16 %v107
  %v754 = vunpack.c.l.b16 %v108
  %v755 = vunpack.c.h.b16 %v108
  %v756 = vunpack.c.l.b16 %v109
  %v757 = vunpack.c.h.b16 %v109
  %v758 = vunpack.c.l.b16 %v110
  %v759 = vunpack.c.h.b16 %v110
  %v760 = vunpack.c.l.b16 %v111
  %v761 = vunpack.c.h.b16 %v111
  %v762 = vunpack.c.l.b16 %v112
  %v763 = vunpack.c.h.b16 %v112
  %v764 = vunpack.c.l.b16 %v113
  %v765 = vunpack.c.h.b16 %v113
  %v766 = vunpack.c.l.b16 %v114
  %v767 = vunpack.c.h.b16 %v114
  %v768 = vunpack.c.l.b16 %v115
  %v769 = vunpack.c.h.b16 %v115
  %v770 = vunpack.c.l.b16 %v116
  %v771 = vunpack.c.h.b16 %v116
  %v772 = vunpack.c.l.b16 %v117
  %v773 = vunpack.c.h.b16 %v117
  %v774 = vunpack.c.l.b16 %v118
  %v775 = vunpack.c.h.b16 %v118
  %v776 = vunpack.c.l.b16 %v119
  %v777 = vunpack.c.h.b16 %v119
  %v778 = vunpack.c.l.b16 %v120
  %v779 = vunpack.c.h.b16 %v120
  %v780 = vunpack.c.l.b16 %v121
  %v781 = vunpack.c.h.b16 %v121
  %v782 = vunpack.c.l.b16 %v122
  %v783 = vunpack.c.h.b16 %v122
  %v784 = vunpack.c.l.b16 %v123
  %v785 = vunpack.c.h.b16 %v123
  %v786 = vunpack.c.l.b16 %v124
  %v787 = vunpack.c.h.b16 %v124
  %v788 = vunpack.c.l.b16 %v125
  %v789 = vunpack.c.h.b16 %v125
  %v790 = vunpack.c.l.b16 %v126
  %v791 = vunpack.c.h.b16 %v126
  %v792 = vunpack.c.l.b16 %v127
  %v793 = vunpack.c.h.b16 %v127
  %v794 = vunpack.c.l.b16 %v128
  %v795 = vunpack.c.h.b16 %v128
  %v796 = vunpack.c.l.b16 %v129
  %v797 = vunpack.c.h.b16 %v129
  %v798 = vunpack.c.l.b16 %v130
  %v799 = vunpack.c.h.b16 %v130
  %v800 = vunpack.c.l.b16 %v131
  %v801 = vunpack.c.h.b16 %v131
  %v802 = vunpack.c.l.b16 %v132
  %v803 = vunpack.c.h.b16 %v132
  %v804 = vunpack.c.l.b16 %v133
  %v805 = vunpack.c.h.b16 %v133
  %v806 = vunpack.c.l.b16 %v134
  %v807 = vunpack.c.h.b16 %v134
  %v808 = vunpack.c.l.b16 %v135
  %v809 = vunpack.c.h.b16 %v135
  %v810 = vunpack.c.l.b16 %v136
  %v811 = vunpack.c.h.b16 %v136
  %v812 = vunpack.c.l.b16 %v137
  %v813 = vunpack.c.h.b16 %v137
  %v814 = vunpack.c.l.b16 %v138
  %v815 = vunpack.c.h.b16 %v138
  %v816 = vunpack.c.l.b16 %v139
  %v817 = vunpack.c.h.b16 %v139
  %v818 = vunpack.c.l.b16 %v140
  %v819 = vunpack.c.h.b16 %v140
  %v820 = vunpack.c.l.b16 %v141
  %v821 = vunpack.c.h.b16 %v141
  %v822 = vunpack.c.l.b16 %v142
  %v823 = vunpack.c.h.b16 %v142
  %v824 = vunpack.c.l.b16 %v143
  %v825 = vunpack.c.h.b16 %v143
  %v826 = vunpack.c.l.b16 %v144
  %v827 = vunpack.c.h.b16 %v144
  %v828 = vunpack.c.l.b16 %v145
  %v829 = vunpack.c.h.b16 %v145
  %v830 = vunpack.c.l.b16 %v146
  %v831 = vunpack.c.h.b16 %v146
  %v832 = vunpack.c.l.b16 %v147
  %v833 = vunpack.c.h.b16 %v147
  %v834 = vunpack.c.l.b16 %v148
  %v835 = vunpack.c.h.b16 %v148
  %v836 = vunpack.c.l.b16 %v149
  %v837 = vunpack.c.h.b16 %v149
  %v838 = vunpack.c.l.b16 %v150
  %v839 = vunpack.c.h.b16 %v150
  %v840 = vunpack.c.l.b16 %v151
  %v841 = vunpack.c.h.b16 %v151
  %v842 = vunpack.c.l.b16 %v152
  %v843 = vunpack.c.h.b16 %v152
  %v844 = vunpack.c.l.b16 %v153
  %v845 = vunpack.c.h.b16 %v153
  %v846 = vunpack.c.l.b16 %v154
  %v847 = vunpack.c.h.b16 %v154
  %v848 = vunpack.c.l.b16 %v155
  %v849 = vunpack.c.h.b16 %v155
  %v850 = vunpack.c.l.b16 %v156
  %v851 = vunpack.c.h.b16 %v156
  %v852 = vunpack.c.l.b16 %v157
  %v853 = vunpack.c.h.b16 %v157
  %v854 = vunpack.c.l.b16 %v158
  %v855 = vunpack.c.h.b16 %v158
  %v856 = vunpack.c.l.b16 %v159
  %v857 = vunpack.c.h.b16 %v159
  %v858 = vunpack.c.l.b16 %v160
  %v859 = vunpack.c.h.b16 %v160
  %v860 = vunpack.c.l.b16 %v161
  %v861 = vunpack.c.h.b16 %v161
  %v862 = vunpack.c.l.b16 %v162
  %v863 = vunpack.c.h.b16 %v162
  %v864 = vunpack.c.l.b16 %v163
  %v865 = vunpack.c.h.b16 %v163
  %v866 = vunpack.c.l.b16 %v164
  %v867 = vunpack.c.h.b16 %v164
  %v868 = vunpack.c.l.b16 %v165
  %v869 = vunpack.c.h.b16 %v165
  %v870 = vunpack.c.l.b16 %v166
  %v871 = vunpack.c.h.b16 %v166
  %v872 = vunpack.c.l.b16 %v167
  %v873 = vunpack.c.h.b16 %v167
  %v874 = vunpack.c.l.b16 %v168
  %v875 = vunpack.c.h.b16 %v168
  %v876 = vunpack.c.l.b16 %v169
  %v877 = vunpack.c.h.b16 %v169
  %v878 = vunpack.c.l.b16 %v170
  %v879 = vunpack.c.h.b16 %v170
  %v880 = vunpack.c.l.b16 %v171
  %v881 = vunpack.c.h.b16 %v171
  %v882 = vunpack.c.l.b16 %v172
  %v883 = vunpack.c.h.b16 %v172
  %v884 = vunpack.c.l.b16 %v173
  %v885 = vunpack.c.h.b16 %v173
  %v886 = vunpack.c.l.b16 %v174
  %v887 = vunpack.c.h.b16 %v174
  %v888 = vunpack.c.l.b16 %v175
  %v889 = vunpack.c.h.b16 %v175
  %v890 = vunpack.c.l.b16 %v176
  %v891 = vunpack.c.h.b16 %v176
  %v892 = vunpack.c.l.b16 %v177
  %v893 = vunpack.c.h.b16 %v177
  %v894 = vunpack.c.l.b16 %v178
  %v895 = vunpack.c.h.b16 %v178
  %v896 = vunpack.c.l.b16 %v179
  %v897 = vunpack.c.h.b16 %v179
  %v898 = vunpack.c.l.b16 %v180
  %v899 = vunpack.c.h.b16 %v180
  %v900 = vunpack.c.l.b16 %v181
  %v901 = vunpack.c.h.b16 %v181
  %v902 = vunpack.c.l.b16 %v182
  %v903 = vunpack.c.h.b16 %v182
  %v904 = vunpack.c.l.b16 %v183
  %v905 = vunpack.c.h.b16 %v183
  %v906 = vunpack.c.l.b16 %v184
  %v907 = vunpack.c.h.b16 %v184
  %v908 = vunpack.c.l.b16 %v185
  %v909 = vunpack.c.h.b16 %v185
  %v910 = vunpack.c.l.b16 %v186
  %v911 = vunpack.c.h.b16 %v186
  %v912 = vunpack.c.l.b16 %v187
  %v913 = vunpack.c.h.b16 %v187
  %v914 = vunpack.c.l.b16 %v188
  %v915 = vunpack.c.h.b16 %v188
  %v916 = vunpack.c.l.b16 %v189
  %v917 = vunpack.c.h.b16 %v189
  %v918 = vunpack.c.l.b16 %v190
  %v919 = vunpack.c.h.b16 %v190
  %v920 = vunpack.c.l.b16 %v191
  %v921 = vunpack.c.h.b16 %v191
  %v922 = vunpack.c.l.b16 %v192
  %v923 = vunpack.c.h.b16 %v192
  %v924 = vunpack.c.l.b16 %v193
  %v925 = vunpack.c.h.b16 %v193
  %v926 = vunpack.c.l.b16 %v194
  %v927 = vunpack.c.h.b16 %v194
  %v928 = vunpack.c.l.b16 %v195
  %v929 = vunpack.c.h.b16 %v195
  %v930 = vunpack.c.l.b16 %v196
  %v931 = vunpack.c.h.b16 %v196
  %v932 = vunpack.c.l.b16 %v197
  %v933 = vunpack.c.h.b16 %v197
  %v934 = vunpack.c.l.b16 %v198
  %v935 = vunpack.c.h.b16 %v198
  %v936 = vunpack.c.l.b16 %v199
  %v937 = vunpack.c.h.b16 %v199
  %v938 = vunpack.c.l.b16 %v200
  %v939 = vunpack.c.h.b16 %v200
  %v940 = vunpack.c.l.b16 %v201
  %v941 = vunpack.c.h.b16 %v201
  %v942 = vunpack.c.l.b16 %v202
  %v943 = vunpack.c.h.b16 %v202
  %v944 = vunpack.c.l.b16 %v203
  %v945 = vunpack.c.h.b16 %v203
  %v946 = vunpack.c.l.b16 %v204
  %v947 = vunpack.c.h.b16 %v204
  %v948 = vunpack.c.l.b16 %v205
  %v949 = vunpack.c.h.b16 %v205
  %v950 = vunpack.c.l.b16 %v206
  %v951 = vunpack.c.h.b16 %v206
  %v952 = vunpack.c.l.b16 %v207
  %v953 = vunpack.c.h.b16 %v207
  %v954 = vunpack.c.l.b16 %v208
  %v955 = vunpack.c.h.b16 %v208
  %v956 = vunpack.c.l.b16 %v209
  %v957 = vunpack.c.h.b16 %v209
  %v958 = vunpack.c.l.b16 %v210
  %v959 = vunpack.c.h.b16 %v210
  %v960 = vunpack.c.l.b16 %v211
  %v961 = vunpack.c.h.b16 %v211
  %v962 = vunpack.c.l.b16 %v212
  %v963 = vunpack.c.h.b16 %v212
  %v964 = vunpack.c.l.b16 %v213
  %v965 = vunpack.c.h.b16 %v213
  %v966 = vunpack.c.l.b16 %v214
  %v967 = vunpack.c.h.b16 %v214
  %v968 = vunpack.c.l.b16 %v215
  %v969 = vunpack.c.h.b16 %v215
  %v970 = vunpack.c.l.b16 %v216
  %v971 = vunpack.c.h.b16 %v216
  %v972 = vunpack.c.l.b16 %v217
  %v973 = vunpack.c.h.b16 %v217
  %v974 = vunpack.c.l.b16 %v218
  %v975 = vunpack.c.h.b16 %v218
  %v976 = vunpack.c.l.b16 %v219
  %v977 = vunpack.c.h.b16 %v219
  %v978 = vunpack.c.l.b16 %v220
  %v979 = vunpack.c.h.b16 %v220
  %v980 = vunpack.c.l.b16 %v221
  %v981 = vunpack.c.h.b16 %v221
  %v982 = vunpack.c.l.b16 %v222
  %v983 = vunpack.c.h.b16 %v222
  %v984 = vunpack.c.l.b16 %v223
  %v985 = vunpack.c.h.b16 %v223
  %v986 = vunpack.c.l.b16 %v224
  %v987 = vunpack.c.h.b16 %v224
  %v988 = vunpack.c.l.b16 %v225
  %v989 = vunpack.c.h.b16 %v225
  %v990 = vunpack.c.l.b16 %v226
  %v991 = vunpack.c.h.b16 %v226
  %v992 = vunpack.c.l.b16 %v227
  %v993 = vunpack.c.h.b16 %v227
  %v994 = vunpack.c.l.b16 %v228
  %v995 = vunpack.c.h.b16 %v228
  %v996 = vunpack.c.l.b16 %v229
  %v997 = vunpack.c.h.b16 %v229
  %v998 = vunpack.c.l.b16 %v230
  %v999 = vunpack.c.h.b16 %v230
  %v1000 = vunpack.c.l.b16 %v231
  %v1001 = vunpack.c.h.b16 %v231
  %v1002 = vunpack.c.l.b16 %v232
  %v1003 = vunpack.c.h.b16 %v232
  %v1004 = vunpack.c.l.b16 %v233
  %v1005 = vunpack.c.h.b16 %v233
  %v1006 = vunpack.c.l.b16 %v234
  %v1007 = vunpack.c.h.b16 %v234
  %v1008 = vunpack.c.l.b16 %v235
  %v1009 = vunpack.c.h.b16 %v235
  %v1010 = vunpack.c.l.b16 %v236
  %v1011 = vunpack.c.h.b16 %v236
  %v1012 = vunpack.c.l.b16 %v237
  %v1013 = vunpack.c.h.b16 %v237
  %v1014 = vunpack.c.l.b16 %v238
  %v1015 = vunpack.c.h.b16 %v238
  %v1016 = vunpack.c.l.b16 %v239
  %v1017 = vunpack.c.h.b16 %v239
  %v1018 = vunpack.c.l.b16 %v240
  %v1019 = vunpack.c.h.b16 %v240
  %v1020 = vunpack.c.l.b16 %v241
  %v1021 = vunpack.c.h.b16 %v241
  %v1022 = vunpack.c.l.b16 %v242
  %v1023 = vunpack.c.h.b16 %v242
  %v1024 = vunpack.c.l.b16 %v243
  %v1025 = vunpack.c.h.b16 %v243
  %v1026 = vunpack.c.l.b16 %v244
  %v1027 = vunpack.c.h.b16 %v244
  %v1028 = vunpack.c.l.b16 %v245
  %v1029 = vunpack.c.h.b16 %v245
  %v1030 = vunpack.c.l.b16 %v246
  %v1031 = vunpack.c.h.b16 %v246
  %v1032 = vunpack.c.l.b16 %v247
  %v1033 = vunpack.c.h.b16 %v247
  %v1034 = vunpack.c.l.b16 %v248
  %v1035 = vunpack.c.h.b16 %v248
  %v1036 = vunpack.c.l.b16 %v249
  %v1037 = vunpack.c.h.b16 %v249
  %v1038 = vunpack.c.l.b16 %v250
  %v1039 = vunpack.c.h.b16 %v250
  %v1040 = vunpack.c.l.b16 %v251
  %v1041 = vunpack.c.h.b16 %v251
  %v1042 = vunpack.c.l.b16 %v252
  %v1043 = vunpack.c.h.b16 %v252
  %v1044 = vunpack.c.l.b16 %v253
  %v1045 = vunpack.c.h.b16 %v253
  %v1046 = vunpack.c.l.b16 %v254
  %v1047 = vunpack.c.h.b16 %v254
  %v1048 = vunpack.c.l.b16 %v255
  %v1049 = vunpack.c.h.b16 %v255
  %v1050 = vunpack.c.l.b16 %v256
  %v1051 = vunpack.c.h.b16 %v256
  %v1052 = vunpack.c.l.b16 %v257
  %v1053 = vunpack.c.h.b16 %v257
  %v1054 = vunpack.c.l.b16 %v258
  %v1055 = vunpack.c.h.b16 %v258
  %v1056 = vunpack.c.l.b16 %v259
  %v1057 = vunpack.c.h.b16 %v259
  %v1058 = vunpack.c.l.b16 %v260
  %v1059 = vunpack.c.h.b16 %v260
  %v1060 = vunpack.c.l.b16 %v261
  %v1061 = vunpack.c.h.b16 %v261
  %v1062 = vunpack.c.l.b16 %v262
  %v1063 = vunpack.c.h.b16 %v262
  %v1064 = vunpack.c.l.b16 %v263
  %v1065 = vunpack.c.h.b16 %v263
  %v1066 = vunpack.c.l.b16 %v264
  %v1067 = vunpack.c.h.b16 %v264
  %v1068 = vunpack.c.l.b16 %v265
  %v1069 = vunpack.c.h.b16 %v265
  %v1070 = vunpack.c.l.b16 %v266
  %v1071 = vunpack.c.h.b16 %v266
  %v1072 = vunpack.c.l.b16 %v267
  %v1073 = vunpack.c.h.b16 %v267
  %v1074 = vunpack.c.l.b16 %v268
  %v1075 = vunpack.c.h.b16 %v268
  %v1076 = vunpack.c.l.b16 %v269
  %v1077 = vunpack.c.h.b16 %v269
  %v1078 = vunpack.c.l.b16 %v270
  %v1079 = vunpack.c.h.b16 %v270
  %v1080 = vunpack.c.l.b16 %v271
  %v1081 = vunpack.c.h.b16 %v271
  %v1082 = vunpack.c.l.b16 %v272
  %v1083 = vunpack.c.h.b16 %v272
  %v1084 = vunpack.c.l.b16 %v273
  %v1085 = vunpack.c.h.b16 %v273
  %v1086 = vunpack.c.l.b16 %v274
  %v1087 = vunpack.c.h.b16 %v274
  %v1088 = vunpack.c.l.b16 %v275
  %v1089 = vunpack.c.h.b16 %v275
  %v1090 = vunpack.c.l.b16 %v276
  %v1091 = vunpack.c.h.b16 %v276
  %v1092 = vunpack.c.l.b16 %v277
  %v1093 = vunpack.c.h.b16 %v277
  %v1094 = vunpack.c.l.b16 %v278
  %v1095 = vunpack.c.h.b16 %v278
  %v1096 = vunpack.c.l.b16 %v279
  %v1097 = vunpack.c.h.b16 %v279
  %v1098 = vunpack.c.l.b16 %v280
  %v1099 = vunpack.c.h.b16 %v280
  %v1100 = vunpack.c.l.b16 %v281
  %v1101 = vunpack.c.h.b16 %v281
  %v1102 = vunpack.c.l.b16 %v282
  %v1103 = vunpack.c.h.b16 %v282
  %v1104 = vunpack.c.l.b16 %v283
  %v1105 = vunpack.c.h.b16 %v283
  %v1106 = vunpack.c.l.b16 %v284
  %v1107 = vunpack.c.h.b16 %v284
  %v1108 = vunpack.c.l.b16 %v285
  %v1109 = vunpack.c.h.b16 %v285
  %v1110 = vunpack.c.l.b16 %v286
  %v1111 = vunpack.c.h.b16 %v286
  %v1112 = vunpack.c.l.b16 %v287
  %v1113 = vunpack.c.h.b16 %v287
  %v1114 = vunpack.c.l.b16 %v288
  %v1115 = vunpack.c.h.b16 %v288
  %v1116 = vunpack.c.l.b16 %v289
  %v1117 = vunpack.c.h.b16 %v289
  %v1118 = vunpack.c.l.b16 %v290
  %v1119 = vunpack.c.h.b16 %v290
  %v1120 = vunpack.c.l.b16 %v291
  %v1121 = vunpack.c.h.b16 %v291
  %v1122 = vpack.c.b16 %v614, %v610
  %v1123 = vpack.c.b16 %v615, %v611
  %v1124 = vpack.c.b16 %v616, %v612
  %v1125 = vpack.c.b16 %v617, %v613
  %v1126 = vpack.c.b16 %v622, %v618
  %v1127 = vpack.c.b16 %v623, %v619
  %v1128 = vpack.c.b16 %v624, %v620
  %v1129 = vpack.c.b16 %v625, %v621
  %v1130 = vpack.c.b16 %v630, %v626
  %v1131 = vpack.c.b16 %v631, %v627
  %v1132 = vpack.c.b16 %v632, %v628
  %v1133 = vpack.c.b16 %v633, %v629
  %v1134 = vpack.c.b16 %v638, %v634
  %v1135 = vpack.c.b16 %v639, %v635
  %v1136 = vpack.c.b16 %v640, %v636
  %v1137 = vpack.c.b16 %v641, %v637
  %v1138 = vpack.c.b16 %v646, %v642
  %v1139 = vpack.c.b16 %v647, %v643
  %v1140 = vpack.c.b16 %v648, %v644
  %v1141 = vpack.c.b16 %v649, %v645
  %v1142 = vpack.c.b16 %v654, %v650
  %v1143 = vpack.c.b16 %v655, %v651
  %v1144 = vpack.c.b16 %v656, %v652
  %v1145 = vpack.c.b16 %v657, %v653
  %v1146 = vpack.c.b16 %v662, %v658
  %v1147 = vpack.c.b16 %v663, %v659
  %v1148 = vpack.c.b16 %v664, %v660
  %v1149 = vpack.c.b16 %v665, %v661
  %v1150 = vpack.c.b16 %v670, %v666
  %v1151 = vpack.c.b16 %v671, %v667
  %v1152 = vpack.c.b16 %v672, %v668
  %v1153 = vpack.c.b16 %v673, %v669
  %v1154 = vpack.c.b16 %v678, %v674
  %v1155 = vpack.c.b16 %v679, %v675
  %v1156 = vpack.c.b16 %v680, %v676
  %v1157 = vpack.c.b16 %v681, %v677
  %v1158 = vpack.c.b16 %v686, %v682
  %v1159 = vpack.c.b16 %v687, %v683
  %v1160 = vpack.c.b16 %v688, %v684
  %v1161 = vpack.c.b16 %v689, %v685
  %v1162 = vpack.c.b16 %v694, %v690
  %v1163 = vpack.c.b16 %v695, %v691
  %v1164 = vpack.c.b16 %v696, %v692
  %v1165 = vpack.c.b16 %v697, %v693
  %v1166 = vpack.c.b16 %v702, %v698
  %v1167 = vpack.c.b16 %v703, %v699
  %v1168 = vpack.c.b16 %v704, %v700
  %v1169 = vpack.c.b16 %v705, %v701
  %v1170 = vpack.c.b16 %v710, %v706
  %v1171 = vpack.c.b16 %v711, %v707
  %v1172 = vpack.c.b16 %v712, %v708
  %v1173 = vpack.c.b16 %v713, %v709
  %v1174 = vpack.c.b16 %v718, %v714
  %v1175 = vpack.c.b16 %v719, %v715
  %v1176 = vpack.c.b16 %v720, %v716
  %v1177 = vpack.c.b16 %v721, %v717
  %v1178 = vpack.c.b16 %v726, %v722
  %v1179 = vpack.c.b16 %v727, %v723
  %v1180 = vpack.c.b16 %v728, %v724
  %v1181 = vpack.c.b16 %v729, %v725
  %v1182 = vpack.c.b16 %v734, %v730
  %v1183 = vpack.c.b16 %v735, %v731
  %v1184 = vpack.c.b16 %v736, %v732
  %v1185 = vpack.c.b16 %v737, %v733
  %v1186 = vpack.c.b16 %v742, %v738
  %v1187 = vpack.c.b16 %v743, %v739
  %v1188 = vpack.c.b16 %v744, %v740
  %v1189 = vpack.c.b16 %v745, %v741
  %v1190 = vpack.c.b16 %v750, %v746
  %v1191 = vpack.c.b16 %v751, %v747
  %v1192 = vpack.c.b16 %v752, %v748
  %v1193 = vpack.c.b16 %v753, %v749
  %v1194 = vpack.c.b16 %v758, %v754
  %v1195 = vpack.c.b16 %v759, %v755
  %v1196 = vpack.c.b16 %v760, %v756
  %v1197 = vpack.c.b16 %v761, %v757
  %v1198 = vpack.c.b16 %v766, %v762
  %v1199 = vpack.c.b16 %v767, %v763
  %v1200 = vpack.c.b16 %v768, %v764
  %v1201 = vpack.c.b16 %v769, %v765
  %v1202 = vpack.c.b16 %v774, %v770
  %v1203 = vpack.c.b16 %v775, %v771
  %v1204 = vpack.c.b16 %v776, %v772
  %v1205 = vpack.c.b16 %v777, %v773
  %v1206 = vpack.c.b16 %v782, %v778
  %v1207 = vpack.c.b16 %v783, %v779
  %v1208 = vpack.c.b16 %v784, %v780
  %v1209 = vpack.c.b16 %v785, %v781
  %v1210 = vpack.c.b16 %v790, %v786
  %v1211 = vpack.c.b16 %v791, %v787
  %v1212 = vpack.c.b16 %v792, %v788
  %v1213 = vpack.c.b16 %v793, %v789
  %v1214 = vpack.c.b16 %v798, %v794
  %v1215 = vpack.c.b16 %v799, %v795
  %v1216 = vpack.c.b16 %v800, %v796
  %v1217 = vpack.c.b16 %v801, %v797
  %v1218 = vpack.c.b16 %v806, %v802
  %v1219 = vpack.c.b16 %v807, %v803
  %v1220 = vpack.c.b16 %v808, %v804
  %v1221 = vpack.c.b16 %v809, %v805
  %v1222 = vpack.c.b16 %v814, %v810
  %v1223 = vpack.c.b16 %v815, %v811
  %v1224 = vpack.c.b16 %v816, %v812
  %v1225 = vpack.c.b16 %v817, %v813
  %v1226 = vpack.c.b16 %v822, %v818
  %v1227 = vpack.c.b16 %v823, %v819
  %v1228 = vpack.c.b16 %v824, %v820
  %v1229 = vpack.c.b16 %v825, %v821
  %v1230 = vpack.c.b16 %v830, %v826
  %v1231 = vpack.c.b16 %v831, %v827
  %v1232 = vpack.c.b16 %v832, %v828
  %v1233 = vpack.c.b16 %v833, %v829
  %v1234 = vpack.c.b16 %v838, %v834
  %v1235 = vpack.c.b16 %v839, %v835
  %v1236 = vpack.c.b16 %v840, %v836
  %v1237 = vpack.c.b16 %v841, %v837
  %v1238 = vpack.c.b16 %v846, %v842
  %v1239 = vpack.c.b16 %v847, %v843
  %v1240 = vpack.c.b16 %v848, %v844
  %v1241 = vpack.c.b16 %v849, %v845
  %v1242 = vpack.c.b16 %v854, %v850
  %v1243 = vpack.c.b16 %v855, %v851
  %v1244 = vpack.c.b16 %v856, %v852
  %v1245 = vpack.c.b16 %v857, %v853
  %v1246 = vpack.c.b16 %v862, %v858
  %v1247 = vpack.c.b16 %v863, %v859
  %v1248 = vpack.c.b16 %v864, %v860
  %v1249 = vpack.c.b16 %v865, %v861
  %v1250 = vpack.c.b16 %v870, %v866
  %v1251 = vpack.c.b16 %v871, %v867
  %v1252 = vpack.c.b16 %v872, %v868
  %v1253 = vpack.c.b16 %v873, %v869
  %v1254 = vpack.c.b16 %v878, %v874
  %v1255 = vpack.c.b16 %v879, %v875
  %v1256 = vpack.c.b16 %v880, %v876
  %v1257 = vpack.c.b16 %v881, %v877
  %v1258 = vpack.c.b16 %v886, %v882
  %v1259 = vpack.c.b16 %v887, %v883
  %v1260 = vpack.c.b16 %v888, %v884
  %v1261 = vpack.c.b16 %v889, %v885
  %v1262 = vpack.c.b16 %v894, %v890
  %v1263 = vpack.c.b16 %v895, %v891
  %v1264 = vpack.c.b16 %v896, %v892
  %v1265 = vpack.c.b16 %v897, %v893
  %v1266 = vpack.c.b16 %v902, %v898
  %v1267 = vpack.c.b16 %v903, %v899
  %v1268 = vpack.c.b16 %v904, %v900
  %v1269 = vpack.c.b16 %v905, %v901
  %v1270 = vpack.c.b16 %v910, %v906
  %v1271 = vpack.c.b16 %v911, %v907
  %v1272 = vpack.c.b16 %v912, %v908
  %v1273 = vpack.c.b16 %v913, %v909
  %v1274 = vpack.c.b16 %v918, %v914
  %v1275 = vpack.c.b16 %v919, %v915
  %v1276 = vpack.c.b16 %v920, %v916
  %v1277 = vpack.c.b16 %v921, %v917
  %v1278 = vpack.c.b16 %v926, %v922
  %v1279 = vpack.c.b16 %v927, %v923
  %v1280 = vpack.c.b16 %v928, %v924
  %v1281 = vpack.c.b16 %v929, %v925
  %v1282 = vpack.c.b16 %v934, %v930
  %v1283 = vpack.c.b16 %v935, %v931
  %v1284 = vpack.c.b16 %v936, %v932
  %v1285 = vpack.c.b16 %v937, %v933
  %v1286 = vpack.c.b16 %v942, %v938
  %v1287 = vpack.c.b16 %v943, %v939
  %v1288 = vpack.c.b16 %v944, %v940
  %v1289 = vpack.c.b16 %v945, %v941
  %v1290 = vpack.c.b16 %v950, %v946
  %v1291 = vpack.c.b16 %v951, %v947
  %v1292 = vpack.c.b16 %v952, %v948
  %v1293 = vpack.c.b16 %v953, %v949
  %v1294 = vpack.c.b16 %v958, %v954
  %v1295 = vpack.c.b16 %v959, %v955
  %v1296 = vpack.c.b16 %v960, %v956
  %v1297 = vpack.c.b16 %v961, %v957
  %v1298 = vpack.c.b16 %v966, %v962
  %v1299 = vpack.c.b16 %v967, %v963
  %v1300 = vpack.c.b16 %v968, %v964
  %v1301 = vpack.c.b16 %v969, %v965
  %v1302 = vpack.c.b16 %v974, %v970
  %v1303 = vpack.c.b16 %v975, %v971
  %v1304 = vpack.c.b16 %v976, %v972
  %v1305 = vpack.c.b16 %v977, %v973
  %v1306 = vpack.c.b16 %v982, %v978
  %v1307 = vpack.c.b16 %v983, %v979
  %v1308 = vpack.c.b16 %v984, %v980
  %v1309 = vpack.c.b16 %v985, %v981
  %v1310 = vpack.c.b16 %v990, %v986
  %v1311 = vpack.c.b16 %v991, %v987
  %v1312 = vpack.c.b16 %v992, %v988
  %v1313 = vpack.c.b16 %v993, %v989
  %v1314 = vpack.c.b16 %v998, %v994
  %v1315 = vpack.c.b16 %v999, %v995
  %v1316 = vpack.c.b16 %v1000, %v996
  %v1317 = vpack.c.b16 %v1001, %v997
  %v1318 = vpack.c.b16 %v1006, %v1002
  %v1319 = vpack.c.b16 %v1007, %v1003
  %v1320 = vpack.c.b16 %v1008, %v1004
  %v1321 = vpack.c.b16 %v1009, %v1005
  %v1322 = vpack.c.b16 %v1014, %v1010
  %v1323 = vpack.c.b16 %v1015, %v1011
  %v1324 = vpack.c.b16 %v1016, %v1012
  %v1325 = vpack.c.b16 %v1017, %v1013
  %v1326 = vpack.c.b16 %v1022, %v1018
  %v1327 = vpack.c.b16 %v1023, %v1019
  %v1328 = vpack.c.b16 %v1024, %v1020
  %v1329 = vpack.c.b16 %v1025, %v1021
  %v1330 = vpack.c.b16 %v1030, %v1026
  %v1331 = vpack.c.b16 %v1031, %v1027
  %v1332 = vpack.c.b16 %v1032, %v1028
  %v1333 = vpack.c.b16 %v1033, %v1029
  %v1334 = vpack.c.b16 %v1038, %v1034
  %v1335 = vpack.c.b16 %v1039, %v1035
  %v1336 = vpack.c.b16 %v1040, %v1036
  %v1337 = vpack.c.b16 %v1041, %v1037
  %v1338 = vpack.c.b16 %v1046, %v1042
  %v1339 = vpack.c.b16 %v1047, %v1043
  %v1340 = vpack.c.b16 %v1048, %v1044
  %v1341 = vpack.c.b16 %v1049, %v1045
  %v1342 = vpack.c.b16 %v1054, %v1050
  %v1343 = vpack.c.b16 %v1055, %v1051
  %v1344 = vpack.c.b16 %v1056, %v1052
  %v1345 = vpack.c.b16 %v1057, %v1053
  %v1346 = vpack.c.b16 %v1062, %v1058
  %v1347 = vpack.c.b16 %v1063, %v1059
  %v1348 = vpack.c.b16 %v1064, %v1060
  %v1349 = vpack.c.b16 %v1065, %v1061
  %v1350 = vpack.c.b16 %v1070, %v1066
  %v1351 = vpack.c.b16 %v1071, %v1067
  %v1352 = vpack.c.b16 %v1072, %v1068
  %v1353 = vpack.c.b16 %v1073, %v1069
  %v1354 = vpack.c.b16 %v1078, %v1074
  %v1355 = vpack.c.b16 %v1079, %v1075
  %v1356 = vpack.c.b16 %v1080, %v1076
  %v1357 = vpack.c.b16 %v1081, %v1077
  %v1358 = vpack.c.b16 %v1086, %v1082
  %v1359 = vpack.c.b16 %v1087, %v1083
  %v1360 = vpack.c.b16 %v1088, %v1084
  %v1361 = vpack.c.b16 %v1089, %v1085
  %v1362 = vpack.c.b16 %v1094, %v1090
  %v1363 = vpack.c.b16 %v1095, %v1091
  %v1364 = vpack.c.b16 %v1096, %v1092
  %v1365 = vpack.c.b16 %v1097, %v1093
  %v1366 = vpack.c.b16 %v1102, %v1098
  %v1367 = vpack.c.b16 %v1103, %v1099
  %v1368 = vpack.c.b16 %v1104, %v1100
  %v1369 = vpack.c.b16 %v1105, %v1101
  %v1370 = vpack.c.b16 %v1110, %v1106
  %v1371 = vpack.c.b16 %v1111, %v1107
  %v1372 = vpack.c.b16 %v1112, %v1108
  %v1373 = vpack.c.b16 %v1113, %v1109
  %v1374 = vpack.c.b16 %v1118, %v1114
  %v1375 = vpack.c.b16 %v1119, %v1115
  %v1376 = vpack.c.b16 %v1120, %v1116
  %v1377 = vpack.c.b16 %v1121, %v1117
  %1634 = vmatprep.subr.bf16.mxu0 %v1123
  %1635 = vmatpush1.bf16.msra.mxu0 %v1122
  %1636 = vmatprep.subr.bf16.mxu0 %v1127
  %1637 = vmatpush1.bf16.msra.mxu0 %v1126
  %1638 = vmatprep.subr.bf16.mxu0 %v1131
  %1639 = vmatpush1.bf16.msra.mxu0 %v1130
  %1640 = vmatprep.subr.bf16.mxu0 %v1135
  %1641 = vmatpush1.bf16.msra.mxu0 %v1134
  %1642 = vmatprep.subr.bf16.mxu0 %v1139
  %1643 = vmatpush1.bf16.msra.mxu0 %v1138
  %1644 = vmatprep.subr.bf16.mxu0 %v1143
  %1645 = vmatpush1.bf16.msra.mxu0 %v1142
  %1646 = vmatprep.subr.bf16.mxu0 %v1147
  %1647 = vmatpush1.bf16.msra.mxu0 %v1146
  %1648 = vmatprep.subr.bf16.mxu0 %v1151
  %1649 = vmatpush1.bf16.msra.mxu0 %v1150
  %1650 = vmatprep.subr.bf16.mxu0 %v1155
  %1651 = vmatpush1.bf16.msra.mxu0 %v1154
  %1652 = vmatprep.subr.bf16.mxu0 %v1159
  %1653 = vmatpush1.bf16.msra.mxu0 %v1158
  %1654 = vmatprep.subr.bf16.mxu0 %v1163
  %1655 = vmatpush1.bf16.msra.mxu0 %v1162
  %1656 = vmatprep.subr.bf16.mxu0 %v1167
  %1657 = vmatpush1.bf16.msra.mxu0 %v1166
  %1658 = vmatprep.subr.bf16.mxu0 %v1171
  %1659 = vmatpush1.bf16.msra.mxu0 %v1170
  %1660 = vmatprep.subr.bf16.mxu0 %v1175
  %1661 = vmatpush1.bf16.msra.mxu0 %v1174
  %1662 = vmatprep.subr.bf16.mxu0 %v1179
  %1663 = vmatpush1.bf16.msra.mxu0 %v1178
  %1664 = vmatprep.subr.bf16.mxu0 %v1183
  %1665 = vmatpush1.bf16.msra.mxu0 %v1182
  %1666 = vmatprep.mubr.bf16.mxu0 %v339
  %1667 = vmatmul.mubr.bf16.gmra.mrb[0].mxu0 %v338
  %v1668 = vpop.f32.mrb[0].mxu0
  %v1669 = vadd.f32 %v297, %v1668
  %v1670 = vpop.f32.mrb[0].mxu0
  %v1671 = vadd.f32 %v301, %v1670
  %v1672 = vpop.f32.mrb[0].mxu0
  %v1673 = vadd.f32 %v297, %v1672
  %v1674 = vpop.f32.mrb[0].mxu0
  %v1675 = vadd.f32 %v301, %v1674
  %1676 = vdwg.mxu0
  %1677 = vmatprep.subr.bf16.mxu0 %v1187
  %1678 = vmatpush1.bf16.msra.mxu0 %v1186
  %1679 = vmatprep.subr.bf16.mxu0 %v1191
  %1680 = vmatpush1.bf16.msra.mxu0 %v1190
  %1681 = vmatprep.subr.bf16.mxu0 %v1195
  %1682 = vmatpush1.bf16.msra.mxu0 %v1194
  %1683 = vmatprep.subr.bf16.mxu0 %v1199
  %1684 = vmatpush1.bf16.msra.mxu0 %v1198
  %1685 = vmatprep.subr.bf16.mxu0 %v1203
  %1686 = vmatpush1.bf16.msra.mxu0 %v1202
  %1687 = vmatprep.subr.bf16.mxu0 %v1207
  %1688 = vmatpush1.bf16.msra.mxu0 %v1206
  %1689 = vmatprep.subr.bf16.mxu0 %v1211
  %1690 = vmatpush1.bf16.msra.mxu0 %v1210
  %1691 = vmatprep.subr.bf16.mxu0 %v1215
  %1692 = vmatpush1.bf16.msra.mxu0 %v1214
  %1693 = vmatprep.subr.bf16.mxu0 %v1219
  %1694 = vmatpush1.bf16.msra.mxu0 %v1218
  %1695 = vmatprep.subr.bf16.mxu0 %v1223
  %1696 = vmatpush1.bf16.msra.mxu0 %v1222
  %1697 = vmatprep.subr.bf16.mxu0 %v1227
  %1698 = vmatpush1.bf16.msra.mxu0 %v1226
  %1699 = vmatprep.subr.bf16.mxu0 %v1231
  %1700 = vmatpush1.bf16.msra.mxu0 %v1230
  %1701 = vmatprep.subr.bf16.mxu0 %v1235
  %1702 = vmatpush1.bf16.msra.mxu0 %v1234
  %1703 = vmatprep.subr.bf16.mxu0 %v1239
  %1704 = vmatpush1.bf16.msra.mxu0 %v1238
  %1705 = vmatprep.subr.bf16.mxu0 %v1243
  %1706 = vmatpush1.bf16.msra.mxu0 %v1242
  %1707 = vmatprep.subr.bf16.mxu0 %v1247
  %1708 = vmatpush1.bf16.msra.mxu0 %v1246
  %1709 = vmatprep.mubr.bf16.mxu0 %v341
  %1710 = vmatmul.mubr.bf16.gmra.mrb[0].mxu0 %v340
  %v1711 = vpop.f32.mrb[0].mxu0
  %v1712 = vadd.f32 %v1669, %v1711
  %v1713 = vpop.f32.mrb[0].mxu0
  %v1714 = vadd.f32 %v1671, %v1713
  %v1715 = vpop.f32.mrb[0].mxu0
  %v1716 = vadd.f32 %v1673, %v1715
  %v1717 = vpop.f32.mrb[0].mxu0
  %v1718 = vadd.f32 %v1675, %v1717
  %1719 = vdwg.mxu0
  %1720 = vmatprep.subr.bf16.mxu0 %v1251
  %1721 = vmatpush1.bf16.msra.mxu0 %v1250
  %1722 = vmatprep.subr.bf16.mxu0 %v1255
  %1723 = vmatpush1.bf16.msra.mxu0 %v1254
  %1724 = vmatprep.subr.bf16.mxu0 %v1259
  %1725 = vmatpush1.bf16.msra.mxu0 %v1258
  %1726 = vmatprep.subr.bf16.mxu0 %v1263
  %1727 = vmatpush1.bf16.msra.mxu0 %v1262
  %1728 = vmatprep.subr.bf16.mxu0 %v1267
  %1729 = vmatpush1.bf16.msra.mxu0 %v1266
  %1730 = vmatprep.subr.bf16.mxu0 %v1271
  %1731 = vmatpush1.bf16.msra.mxu0 %v1270
  %1732 = vmatprep.subr.bf16.mxu0 %v1275
  %1733 = vmatpush1.bf16.msra.mxu0 %v1274
  %1734 = vmatprep.subr.bf16.mxu0 %v1279
  %1735 = vmatpush1.bf16.msra.mxu0 %v1278
  %1736 = vmatprep.subr.bf16.mxu0 %v1283
  %1737 = vmatpush1.bf16.msra.mxu0 %v1282
  %1738 = vmatprep.subr.bf16.mxu0 %v1287
  %1739 = vmatpush1.bf16.msra.mxu0 %v1286
  %1740 = vmatprep.subr.bf16.mxu0 %v1291
  %1741 = vmatpush1.bf16.msra.mxu0 %v1290
  %1742 = vmatprep.subr.bf16.mxu0 %v1295
  %1743 = vmatpush1.bf16.msra.mxu0 %v1294
  %1744 = vmatprep.subr.bf16.mxu0 %v1299
  %1745 = vmatpush1.bf16.msra.mxu0 %v1298
  %1746 = vmatprep.subr.bf16.mxu0 %v1303
  %1747 = vmatpush1.bf16.msra.mxu0 %v1302
  %1748 = vmatprep.subr.bf16.mxu0 %v1307
  %1749 = vmatpush1.bf16.msra.mxu0 %v1306
  %1750 = vmatprep.subr.bf16.mxu0 %v1311
  %1751 = vmatpush1.bf16.msra.mxu0 %v1310
  %1752 = vmatprep.mubr.bf16.mxu0 %v343
  %1753 = vmatmul.mubr.bf16.gmra.mrb[0].mxu0 %v342
  %v1754 = vpop.f32.mrb[0].mxu0
  %v1755 = vadd.f32 %v1712, %v1754
  %v1756 = vpop.f32.mrb[0].mxu0
  %v1757 = vadd.f32 %v1714, %v1756
  %v1758 = vpop.f32.mrb[0].mxu0
  %v1759 = vadd.f32 %v1716, %v1758
  %v1760 = vpop.f32.mrb[0].mxu0
  %v1761 = vadd.f32 %v1718, %v1760
  %1762 = vdwg.mxu0
  %1763 = vmatprep.subr.bf16.mxu0 %v1315
  %1764 = vmatpush1.bf16.msra.mxu0 %v1314
  %1765 = vmatprep.subr.bf16.mxu0 %v1319
  %1766 = vmatpush1.bf16.msra.mxu0 %v1318
  %1767 = vmatprep.subr.bf16.mxu0 %v1323
  %1768 = vmatpush1.bf16.msra.mxu0 %v1322
  %1769 = vmatprep.subr.bf16.mxu0 %v1327
  %1770 = vmatpush1.bf16.msra.mxu0 %v1326
  %1771 = vmatprep.subr.bf16.mxu0 %v1331
  %1772 = vmatpush1.bf16.msra.mxu0 %v1330
  %1773 = vmatprep.subr.bf16.mxu0 %v1335
  %1774 = vmatpush1.bf16.msra.mxu0 %v1334
  %1775 = vmatprep.subr.bf16.mxu0 %v1339
  %1776 = vmatpush1.bf16.msra.mxu0 %v1338
  %1777 = vmatprep.subr.bf16.mxu0 %v1343
  %1778 = vmatpush1.bf16.msra.mxu0 %v1342
  %1779 = vmatprep.subr.bf16.mxu0 %v1347
  %1780 = vmatpush1.bf16.msra.mxu0 %v1346
  %1781 = vmatprep.subr.bf16.mxu0 %v1351
  %1782 = vmatpush1.bf16.msra.mxu0 %v1350
  %1783 = vmatprep.subr.bf16.mxu0 %v1355
  %1784 = vmatpush1.bf16.msra.mxu0 %v1354
  %1785 = vmatprep.subr.bf16.mxu0 %v1359
  %1786 = vmatpush1.bf16.msra.mxu0 %v1358
  %1787 = vmatprep.subr.bf16.mxu0 %v1363
  %1788 = vmatpush1.bf16.msra.mxu0 %v1362
  %1789 = vmatprep.subr.bf16.mxu0 %v1367
  %1790 = vmatpush1.bf16.msra.mxu0 %v1366
  %1791 = vmatprep.subr.bf16.mxu0 %v1371
  %1792 = vmatpush1.bf16.msra.mxu0 %v1370
  %1793 = vmatprep.subr.bf16.mxu0 %v1375
  %1794 = vmatpush1.bf16.msra.mxu0 %v1374
  %1795 = vmatprep.mubr.bf16.mxu0 %v345
  %1796 = vmatmul.mubr.bf16.gmra.mrb[0].mxu0 %v344
  %v1797 = vpop.f32.mrb[0].mxu0
  %v1798 = vadd.f32 %v1755, %v1797
  %v1799 = vpop.f32.mrb[0].mxu0
  %v1800 = vadd.f32 %v1757, %v1799
  %v1801 = vpop.f32.mrb[0].mxu0
  %v1802 = vadd.f32 %v1759, %v1801
  %v1803 = vpop.f32.mrb[0].mxu0
  %v1804 = vadd.f32 %v1761, %v1803
  %1805 = vdwg.mxu0
  %1806 = vmatprep.subr.bf16.mxu0 %v1125
  %1807 = vmatpush1.bf16.msra.mxu0 %v1124
  %1808 = vmatprep.subr.bf16.mxu0 %v1129
  %1809 = vmatpush1.bf16.msra.mxu0 %v1128
  %1810 = vmatprep.subr.bf16.mxu0 %v1133
  %1811 = vmatpush1.bf16.msra.mxu0 %v1132
  %1812 = vmatprep.subr.bf16.mxu0 %v1137
  %1813 = vmatpush1.bf16.msra.mxu0 %v1136
  %1814 = vmatprep.subr.bf16.mxu0 %v1141
  %1815 = vmatpush1.bf16.msra.mxu0 %v1140
  %1816 = vmatprep.subr.bf16.mxu0 %v1145
  %1817 = vmatpush1.bf16.msra.mxu0 %v1144
  %1818 = vmatprep.subr.bf16.mxu0 %v1149
  %1819 = vmatpush1.bf16.msra.mxu0 %v1148
  %1820 = vmatprep.subr.bf16.mxu0 %v1153
  %1821 = vmatpush1.bf16.msra.mxu0 %v1152
  %1822 = vmatprep.subr.bf16.mxu0 %v1157
  %1823 = vmatpush1.bf16.msra.mxu0 %v1156
  %1824 = vmatprep.subr.bf16.mxu0 %v1161
  %1825 = vmatpush1.bf16.msra.mxu0 %v1160
  %1826 = vmatprep.subr.bf16.mxu0 %v1165
  %1827 = vmatpush1.bf16.msra.mxu0 %v1164
  %1828 = vmatprep.subr.bf16.mxu0 %v1169
  %1829 = vmatpush1.bf16.msra.mxu0 %v1168
  %1830 = vmatprep.subr.bf16.mxu0 %v1173
  %1831 = vmatpush1.bf16.msra.mxu0 %v1172
  %1832 = vmatprep.subr.bf16.mxu0 %v1177
  %1833 = vmatpush1.bf16.msra.mxu0 %v1176
  %1834 = vmatprep.subr.bf16.mxu0 %v1181
  %1835 = vmatpush1.bf16.msra.mxu0 %v1180
  %1836 = vmatprep.subr.bf16.mxu0 %v1185
  %1837 = vmatpush1.bf16.msra.mxu0 %v1184
  %1838 = vmatprep.mubr.bf16.mxu0 %v339
  %1839 = vmatmul.mubr.bf16.gmra.mrb[0].mxu0 %v338
  %v1840 = vpop.f32.mrb[0].mxu0
  %v1841 = vadd.f32 %v305, %v1840
  %v1842 = vpop.f32.mrb[0].mxu0
  %v1843 = vadd.f32 %v309, %v1842
  %v1844 = vpop.f32.mrb[0].mxu0
  %v1845 = vadd.f32 %v305, %v1844
  %v1846 = vpop.f32.mrb[0].mxu0
  %v1847 = vadd.f32 %v309, %v1846
  %1848 = vdwg.mxu0
  %1849 = vmatprep.subr.bf16.mxu0 %v1189
  %1850 = vmatpush1.bf16.msra.mxu0 %v1188
  %1851 = vmatprep.subr.bf16.mxu0 %v1193
  %1852 = vmatpush1.bf16.msra.mxu0 %v1192
  %1853 = vmatprep.subr.bf16.mxu0 %v1197
  %1854 = vmatpush1.bf16.msra.mxu0 %v1196
  %1855 = vmatprep.subr.bf16.mxu0 %v1201
  %1856 = vmatpush1.bf16.msra.mxu0 %v1200
  %1857 = vmatprep.subr.bf16.mxu0 %v1205
  %1858 = vmatpush1.bf16.msra.mxu0 %v1204
  %1859 = vmatprep.subr.bf16.mxu0 %v1209
  %1860 = vmatpush1.bf16.msra.mxu0 %v1208
  %1861 = vmatprep.subr.bf16.mxu0 %v1213
  %1862 = vmatpush1.bf16.msra.mxu0 %v1212
  %1863 = vmatprep.subr.bf16.mxu0 %v1217
  %1864 = vmatpush1.bf16.msra.mxu0 %v1216
  %1865 = vmatprep.subr.bf16.mxu0 %v1221
  %1866 = vmatpush1.bf16.msra.mxu0 %v1220
  %1867 = vmatprep.subr.bf16.mxu0 %v1225
  %1868 = vmatpush1.bf16.msra.mxu0 %v1224
  %1869 = vmatprep.subr.bf16.mxu0 %v1229
  %1870 = vmatpush1.bf16.msra.mxu0 %v1228
  %1871 = vmatprep.subr.bf16.mxu0 %v1233
  %1872 = vmatpush1.bf16.msra.mxu0 %v1232
  %1873 = vmatprep.subr.bf16.mxu0 %v1237
  %1874 = vmatpush1.bf16.msra.mxu0 %v1236
  %1875 = vmatprep.subr.bf16.mxu0 %v1241
  %1876 = vmatpush1.bf16.msra.mxu0 %v1240
  %1877 = vmatprep.subr.bf16.mxu0 %v1245
  %1878 = vmatpush1.bf16.msra.mxu0 %v1244
  %1879 = vmatprep.subr.bf16.mxu0 %v1249
  %1880 = vmatpush1.bf16.msra.mxu0 %v1248
  %1881 = vmatprep.mubr.bf16.mxu0 %v341
  %1882 = vmatmul.mubr.bf16.gmra.mrb[0].mxu0 %v340
  %v1883 = vpop.f32.mrb[0].mxu0
  %v1884 = vadd.f32 %v1841, %v1883
  %v1885 = vpop.f32.mrb[0].mxu0
  %v1886 = vadd.f32 %v1843, %v1885
  %v1887 = vpop.f32.mrb[0].mxu0
  %v1888 = vadd.f32 %v1845, %v1887
  %v1889 = vpop.f32.mrb[0].mxu0
  %v1890 = vadd.f32 %v1847, %v1889
  %1891 = vdwg.mxu0
  %1892 = vmatprep.subr.bf16.mxu0 %v1253
  %1893 = vmatpush1.bf16.msra.mxu0 %v1252
  %1894 = vmatprep.subr.bf16.mxu0 %v1257
  %1895 = vmatpush1.bf16.msra.mxu0 %v1256
  %1896 = vmatprep.subr.bf16.mxu0 %v1261
  %1897 = vmatpush1.bf16.msra.mxu0 %v1260
  %1898 = vmatprep.subr.bf16.mxu0 %v1265
  %1899 = vmatpush1.bf16.msra.mxu0 %v1264
  %1900 = vmatprep.subr.bf16.mxu0 %v1269
  %1901 = vmatpush1.bf16.msra.mxu0 %v1268
  %1902 = vmatprep.subr.bf16.mxu0 %v1273
  %1903 = vmatpush1.bf16.msra.mxu0 %v1272
  %1904 = vmatprep.subr.bf16.mxu0 %v1277
  %1905 = vmatpush1.bf16.msra.mxu0 %v1276
  %1906 = vmatprep.subr.bf16.mxu0 %v1281
  %1907 = vmatpush1.bf16.msra.mxu0 %v1280
  %1908 = vmatprep.subr.bf16.mxu0 %v1285
  %1909 = vmatpush1.bf16.msra.mxu0 %v1284
  %1910 = vmatprep.subr.bf16.mxu0 %v1289
  %1911 = vmatpush1.bf16.msra.mxu0 %v1288
  %1912 = vmatprep.subr.bf16.mxu0 %v1293
  %1913 = vmatpush1.bf16.msra.mxu0 %v1292
  %1914 = vmatprep.subr.bf16.mxu0 %v1297
  %1915 = vmatpush1.bf16.msra.mxu0 %v1296
  %1916 = vmatprep.subr.bf16.mxu0 %v1301
  %1917 = vmatpush1.bf16.msra.mxu0 %v1300
  %1918 = vmatprep.subr.bf16.mxu0 %v1305
  %1919 = vmatpush1.bf16.msra.mxu0 %v1304
  %1920 = vmatprep.subr.bf16.mxu0 %v1309
  %1921 = vmatpush1.bf16.msra.mxu0 %v1308
  %1922 = vmatprep.subr.bf16.mxu0 %v1313
  %1923 = vmatpush1.bf16.msra.mxu0 %v1312
  %1924 = vmatprep.mubr.bf16.mxu0 %v343
  %1925 = vmatmul.mubr.bf16.gmra.mrb[0].mxu0 %v342
  %v1926 = vpop.f32.mrb[0].mxu0
  %v1927 = vadd.f32 %v1884, %v1926
  %v1928 = vpop.f32.mrb[0].mxu0
  %v1929 = vadd.f32 %v1886, %v1928
  %v1930 = vpop.f32.mrb[0].mxu0
  %v1931 = vadd.f32 %v1888, %v1930
  %v1932 = vpop.f32.mrb[0].mxu0
  %v1933 = vadd.f32 %v1890, %v1932
  %1934 = vdwg.mxu0
  %1935 = vmatprep.subr.bf16.mxu0 %v1317
  %1936 = vmatpush1.bf16.msra.mxu0 %v1316
  %1937 = vmatprep.subr.bf16.mxu0 %v1321
  %1938 = vmatpush1.bf16.msra.mxu0 %v1320
  %1939 = vmatprep.subr.bf16.mxu0 %v1325
  %1940 = vmatpush1.bf16.msra.mxu0 %v1324
  %1941 = vmatprep.subr.bf16.mxu0 %v1329
  %1942 = vmatpush1.bf16.msra.mxu0 %v1328
  %1943 = vmatprep.subr.bf16.mxu0 %v1333
  %1944 = vmatpush1.bf16.msra.mxu0 %v1332
  %1945 = vmatprep.subr.bf16.mxu0 %v1337
  %1946 = vmatpush1.bf16.msra.mxu0 %v1336
  %1947 = vmatprep.subr.bf16.mxu0 %v1341
  %1948 = vmatpush1.bf16.msra.mxu0 %v1340
  %1949 = vmatprep.subr.bf16.mxu0 %v1345
  %1950 = vmatpush1.bf16.msra.mxu0 %v1344
  %1951 = vmatprep.subr.bf16.mxu0 %v1349
  %1952 = vmatpush1.bf16.msra.mxu0 %v1348
  %1953 = vmatprep.subr.bf16.mxu0 %v1353
  %1954 = vmatpush1.bf16.msra.mxu0 %v1352
  %1955 = vmatprep.subr.bf16.mxu0 %v1357
  %1956 = vmatpush1.bf16.msra.mxu0 %v1356
  %1957 = vmatprep.subr.bf16.mxu0 %v1361
  %1958 = vmatpush1.bf16.msra.mxu0 %v1360
  %1959 = vmatprep.subr.bf16.mxu0 %v1365
  %1960 = vmatpush1.bf16.msra.mxu0 %v1364
  %1961 = vmatprep.subr.bf16.mxu0 %v1369
  %1962 = vmatpush1.bf16.msra.mxu0 %v1368
  %1963 = vmatprep.subr.bf16.mxu0 %v1373
  %1964 = vmatpush1.bf16.msra.mxu0 %v1372
  %1965 = vmatprep.subr.bf16.mxu0 %v1377
  %1966 = vmatpush1.bf16.msra.mxu0 %v1376
  %1967 = vmatprep.mubr.bf16.mxu0 %v345
  %1968 = vmatmul.mubr.bf16.gmra.mrb[0].mxu0 %v344
  %v1969 = vpop.f32.mrb[0].mxu0
  %v1970 = vadd.f32 %v1927, %v1969
  %v1971 = vpop.f32.mrb[0].mxu0
  %v1972 = vadd.f32 %v1929, %v1971
  %v1973 = vpop.f32.mrb[0].mxu0
  %v1974 = vadd.f32 %v1931, %v1973
  %v1975 = vpop.f32.mrb[0].mxu0
  %v1976 = vadd.f32 %v1933, %v1975
  %1977 = vdwg.mxu0
  %v1978 = vmax.f32 %v1798, 0.0
  %v1979 = vmax.f32 %v1800, 0.0
  %v1980 = vmax.f32 %v1970, 0.0
  %v1981 = vmax.f32 %v1972, 0.0
  %v1982 = vmax.f32 %v1802, 0.0
  %v1983 = vmax.f32 %v1804, 0.0
  %v1984 = vmax.f32 %v1974, 0.0
  %v1985 = vmax.f32 %v1976, 0.0
  %v1986 = vpack.c.bf16 %v1982, %v1978
  %v1987 = vpack.c.bf16 %v1983, %v1979
  %v1988 = vpack.c.bf16 %v1984, %v1980
  %v1989 = vpack.c.bf16 %v1985, %v1981
  %v1990 = vld [vmem:[%s3] sm:$0xff]
  %v1991 = vld [vmem:[%s3 + $0x8] sm:$0xff]
  %v1992 = vld [vmem:[%s3 + $0x10] sm:$0xff]
  %v1993 = vld [vmem:[%s3 + $0x18] sm:$0xff]
  %v1994 = vld [vmem:[%s3 + $0x20] sm:$0xff]
  %v1995 = vld [vmem:[%s3 + $0x28] sm:$0xff]
  %v1996 = vld [vmem:[%s3 + $0x30] sm:$0xff]
  %v1997 = vld [vmem:[%s3 + $0x38] sm:$0xff]
  %v1998 = vld [vmem:[%s3 + $0x40] sm:$0xff]
  %v1999 = vld [vmem:[%s3 + $0x48] sm:$0xff]
  %v2000 = vld [vmem:[%s3 + $0x50] sm:$0xff]
  %v2001 = vld [vmem:[%s3 + $0x58] sm:$0xff]
  %v2002 = vld [vmem:[%s3 + $0x60] sm:$0xff]
  %v2003 = vld [vmem:[%s3 + $0x68] sm:$0xff]
  %v2004 = vld [vmem:[%s3 + $0x70] sm:$0xff]
  %v2005 = vld [vmem:[%s3 + $0x78] sm:$0xff]
  %v2006 = vld [vmem:[%s3 + $0x80] sm:$0xff]
  %v2007 = vld [vmem:[%s3 + $0x88] sm:$0xff]
  %v2008 = vld [vmem:[%s3 + $0x90] sm:$0xff]
  %v2009 = vld [vmem:[%s3 + $0x98] sm:$0xff]
  %v2010 = vld [vmem:[%s3 + $0xa0] sm:$0xff]
  %v2011 = vld [vmem:[%s3 + $0xa8] sm:$0xff]
  %v2012 = vld [vmem:[%s3 + $0xb0] sm:$0xff]
  %v2013 = vld [vmem:[%s3 + $0xb8] sm:$0xff]
  %v2014 = vld [vmem:[%s3 + $0xc0] sm:$0xff]
  %v2015 = vld [vmem:[%s3 + $0xc8] sm:$0xff]
  %v2016 = vld [vmem:[%s3 + $0xd0] sm:$0xff]
  %v2017 = vld [vmem:[%s3 + $0xd8] sm:$0xff]
  %v2018 = vld [vmem:[%s3 + $0xe0] sm:$0xff]
  %v2019 = vld [vmem:[%s3 + $0xe8] sm:$0xff]
  %v2020 = vld [vmem:[%s3 + $0xf0] sm:$0xff]
  %v2021 = vld [vmem:[%s3 + $0xf8] sm:$0xff]
  %v2022 = vld [vmem:[%s3 + $0x100] sm:$0xff]
  %v2023 = vld [vmem:[%s3 + $0x108] sm:$0xff]
  %v2024 = vld [vmem:[%s3 + $0x110] sm:$0xff]
  %v2025 = vld [vmem:[%s3 + $0x118] sm:$0xff]
  %v2026 = vld [vmem:[%s3 + $0x120] sm:$0xff]
  %v2027 = vld [vmem:[%s3 + $0x128] sm:$0xff]
  %v2028 = vld [vmem:[%s3 + $0x130] sm:$0xff]
  %v2029 = vld [vmem:[%s3 + $0x138] sm:$0xff]
  %v2030 = vld [vmem:[%s3 + $0x140] sm:$0xff]
  %v2031 = vld [vmem:[%s3 + $0x148] sm:$0xff]
  %v2032 = vld [vmem:[%s3 + $0x150] sm:$0xff]
  %v2033 = vld [vmem:[%s3 + $0x158] sm:$0xff]
  %v2034 = vld [vmem:[%s3 + $0x160] sm:$0xff]
  %v2035 = vld [vmem:[%s3 + $0x168] sm:$0xff]
  %v2036 = vld [vmem:[%s3 + $0x170] sm:$0xff]
  %v2037 = vld [vmem:[%s3 + $0x178] sm:$0xff]
  %v2038 = vld [vmem:[%s3 + $0x180] sm:$0xff]
  %v2039 = vld [vmem:[%s3 + $0x188] sm:$0xff]
  %v2040 = vld [vmem:[%s3 + $0x190] sm:$0xff]
  %v2041 = vld [vmem:[%s3 + $0x198] sm:$0xff]
  %v2042 = vld [vmem:[%s3 + $0x1a0] sm:$0xff]
  %v2043 = vld [vmem:[%s3 + $0x1a8] sm:$0xff]
  %v2044 = vld [vmem:[%s3 + $0x1b0] sm:$0xff]
  %v2045 = vld [vmem:[%s3 + $0x1b8] sm:$0xff]
  %v2046 = vld [vmem:[%s3 + $0x1c0] sm:$0xff]
  %v2047 = vld [vmem:[%s3 + $0x1c8] sm:$0xff]
  %v2048 = vld [vmem:[%s3 + $0x1d0] sm:$0xff]
  %v2049 = vld [vmem:[%s3 + $0x1d8] sm:$0xff]
  %v2050 = vld [vmem:[%s3 + $0x1e0] sm:$0xff]
  %v2051 = vld [vmem:[%s3 + $0x1e8] sm:$0xff]
  %v2052 = vld [vmem:[%s3 + $0x1f0] sm:$0xff]
  %v2053 = vld [vmem:[%s3 + $0x1f8] sm:$0xff]
  %v2054 = vld [vmem:[%s4] sm:$0x3]
  %v2056 = vlaneseq
  %v2057 = vshrl.u32 %v2056, 7
  %v2058 = vsub.s32 0, %v2057
  %v2059 = vrot.slane %v2054, %v2058
  %v2060 = vlaneseq
  %v2061 = vshrl.u32 %v2060, 7
  %v2062 = vsub.s32 1, %v2061
  %v2063 = vrot.slane %v2054, %v2062
  %v2130 = vunpack.c.l.b16 %v1990
  %v2131 = vunpack.c.h.b16 %v1990
  %v2132 = vunpack.c.l.b16 %v1991
  %v2133 = vunpack.c.h.b16 %v1991
  %v2134 = vunpack.c.l.b16 %v1992
  %v2135 = vunpack.c.h.b16 %v1992
  %v2136 = vunpack.c.l.b16 %v1993
  %v2137 = vunpack.c.h.b16 %v1993
  %v2138 = vunpack.c.l.b16 %v1994
  %v2139 = vunpack.c.h.b16 %v1994
  %v2140 = vunpack.c.l.b16 %v1995
  %v2141 = vunpack.c.h.b16 %v1995
  %v2142 = vunpack.c.l.b16 %v1996
  %v2143 = vunpack.c.h.b16 %v1996
  %v2144 = vunpack.c.l.b16 %v1997
  %v2145 = vunpack.c.h.b16 %v1997
  %v2146 = vunpack.c.l.b16 %v1998
  %v2147 = vunpack.c.h.b16 %v1998
  %v2148 = vunpack.c.l.b16 %v1999
  %v2149 = vunpack.c.h.b16 %v1999
  %v2150 = vunpack.c.l.b16 %v2000
  %v2151 = vunpack.c.h.b16 %v2000
  %v2152 = vunpack.c.l.b16 %v2001
  %v2153 = vunpack.c.h.b16 %v2001
  %v2154 = vunpack.c.l.b16 %v2002
  %v2155 = vunpack.c.h.b16 %v2002
  %v2156 = vunpack.c.l.b16 %v2003
  %v2157 = vunpack.c.h.b16 %v2003
  %v2158 = vunpack.c.l.b16 %v2004
  %v2159 = vunpack.c.h.b16 %v2004
  %v2160 = vunpack.c.l.b16 %v2005
  %v2161 = vunpack.c.h.b16 %v2005
  %v2162 = vunpack.c.l.b16 %v2006
  %v2163 = vunpack.c.h.b16 %v2006
  %v2164 = vunpack.c.l.b16 %v2007
  %v2165 = vunpack.c.h.b16 %v2007
  %v2166 = vunpack.c.l.b16 %v2008
  %v2167 = vunpack.c.h.b16 %v2008
  %v2168 = vunpack.c.l.b16 %v2009
  %v2169 = vunpack.c.h.b16 %v2009
  %v2170 = vunpack.c.l.b16 %v2010
  %v2171 = vunpack.c.h.b16 %v2010
  %v2172 = vunpack.c.l.b16 %v2011
  %v2173 = vunpack.c.h.b16 %v2011
  %v2174 = vunpack.c.l.b16 %v2012
  %v2175 = vunpack.c.h.b16 %v2012
  %v2176 = vunpack.c.l.b16 %v2013
  %v2177 = vunpack.c.h.b16 %v2013
  %v2178 = vunpack.c.l.b16 %v2014
  %v2179 = vunpack.c.h.b16 %v2014
  %v2180 = vunpack.c.l.b16 %v2015
  %v2181 = vunpack.c.h.b16 %v2015
  %v2182 = vunpack.c.l.b16 %v2016
  %v2183 = vunpack.c.h.b16 %v2016
  %v2184 = vunpack.c.l.b16 %v2017
  %v2185 = vunpack.c.h.b16 %v2017
  %v2186 = vunpack.c.l.b16 %v2018
  %v2187 = vunpack.c.h.b16 %v2018
  %v2188 = vunpack.c.l.b16 %v2019
  %v2189 = vunpack.c.h.b16 %v2019
  %v2190 = vunpack.c.l.b16 %v2020
  %v2191 = vunpack.c.h.b16 %v2020
  %v2192 = vunpack.c.l.b16 %v2021
  %v2193 = vunpack.c.h.b16 %v2021
  %v2194 = vunpack.c.l.b16 %v2022
  %v2195 = vunpack.c.h.b16 %v2022
  %v2196 = vunpack.c.l.b16 %v2023
  %v2197 = vunpack.c.h.b16 %v2023
  %v2198 = vunpack.c.l.b16 %v2024
  %v2199 = vunpack.c.h.b16 %v2024
  %v2200 = vunpack.c.l.b16 %v2025
  %v2201 = vunpack.c.h.b16 %v2025
  %v2202 = vunpack.c.l.b16 %v2026
  %v2203 = vunpack.c.h.b16 %v2026
  %v2204 = vunpack.c.l.b16 %v2027
  %v2205 = vunpack.c.h.b16 %v2027
  %v2206 = vunpack.c.l.b16 %v2028
  %v2207 = vunpack.c.h.b16 %v2028
  %v2208 = vunpack.c.l.b16 %v2029
  %v2209 = vunpack.c.h.b16 %v2029
  %v2210 = vunpack.c.l.b16 %v2030
  %v2211 = vunpack.c.h.b16 %v2030
  %v2212 = vunpack.c.l.b16 %v2031
  %v2213 = vunpack.c.h.b16 %v2031
  %v2214 = vunpack.c.l.b16 %v2032
  %v2215 = vunpack.c.h.b16 %v2032
  %v2216 = vunpack.c.l.b16 %v2033
  %v2217 = vunpack.c.h.b16 %v2033
  %v2218 = vunpack.c.l.b16 %v2034
  %v2219 = vunpack.c.h.b16 %v2034
  %v2220 = vunpack.c.l.b16 %v2035
  %v2221 = vunpack.c.h.b16 %v2035
  %v2222 = vunpack.c.l.b16 %v2036
  %v2223 = vunpack.c.h.b16 %v2036
  %v2224 = vunpack.c.l.b16 %v2037
  %v2225 = vunpack.c.h.b16 %v2037
  %v2226 = vunpack.c.l.b16 %v2038
  %v2227 = vunpack.c.h.b16 %v2038
  %v2228 = vunpack.c.l.b16 %v2039
  %v2229 = vunpack.c.h.b16 %v2039
  %v2230 = vunpack.c.l.b16 %v2040
  %v2231 = vunpack.c.h.b16 %v2040
  %v2232 = vunpack.c.l.b16 %v2041
  %v2233 = vunpack.c.h.b16 %v2041
  %v2234 = vunpack.c.l.b16 %v2042
  %v2235 = vunpack.c.h.b16 %v2042
  %v2236 = vunpack.c.l.b16 %v2043
  %v2237 = vunpack.c.h.b16 %v2043
  %v2238 = vunpack.c.l.b16 %v2044
  %v2239 = vunpack.c.h.b16 %v2044
  %v2240 = vunpack.c.l.b16 %v2045
  %v2241 = vunpack.c.h.b16 %v2045
  %v2242 = vunpack.c.l.b16 %v2046
  %v2243 = vunpack.c.h.b16 %v2046
  %v2244 = vunpack.c.l.b16 %v2047
  %v2245 = vunpack.c.h.b16 %v2047
  %v2246 = vunpack.c.l.b16 %v2048
  %v2247 = vunpack.c.h.b16 %v2048
  %v2248 = vunpack.c.l.b16 %v2049
  %v2249 = vunpack.c.h.b16 %v2049
  %v2250 = vunpack.c.l.b16 %v2050
  %v2251 = vunpack.c.h.b16 %v2050
  %v2252 = vunpack.c.l.b16 %v2051
  %v2253 = vunpack.c.h.b16 %v2051
  %v2254 = vunpack.c.l.b16 %v2052
  %v2255 = vunpack.c.h.b16 %v2052
  %v2256 = vunpack.c.l.b16 %v2053
  %v2257 = vunpack.c.h.b16 %v2053
  %v2258 = vpack.c.b16 %v2132, %v2130
  %v2259 = vpack.c.b16 %v2133, %v2131
  %v2260 = vpack.c.b16 %v2136, %v2134
  %v2261 = vpack.c.b16 %v2137, %v2135
  %v2262 = vpack.c.b16 %v2140, %v2138
  %v2263 = vpack.c.b16 %v2141, %v2139
  %v2264 = vpack.c.b16 %v2144, %v2142
  %v2265 = vpack.c.b16 %v2145, %v2143
  %v2266 = vpack.c.b16 %v2148, %v2146
  %v2267 = vpack.c.b16 %v2149, %v2147
  %v2268 = vpack.c.b16 %v2152, %v2150
  %v2269 = vpack.c.b16 %v2153, %v2151
  %v2270 = vpack.c.b16 %v2156, %v2154
  %v2271 = vpack.c.b16 %v2157, %v2155
  %v2272 = vpack.c.b16 %v2160, %v2158
  %v2273 = vpack.c.b16 %v2161, %v2159
  %v2274 = vpack.c.b16 %v2164, %v2162
  %v2275 = vpack.c.b16 %v2165, %v2163
  %v2276 = vpack.c.b16 %v2168, %v2166
  %v2277 = vpack.c.b16 %v2169, %v2167
  %v2278 = vpack.c.b16 %v2172, %v2170
  %v2279 = vpack.c.b16 %v2173, %v2171
  %v2280 = vpack.c.b16 %v2176, %v2174
  %v2281 = vpack.c.b16 %v2177, %v2175
  %v2282 = vpack.c.b16 %v2180, %v2178
  %v2283 = vpack.c.b16 %v2181, %v2179
  %v2284 = vpack.c.b16 %v2184, %v2182
  %v2285 = vpack.c.b16 %v2185, %v2183
  %v2286 = vpack.c.b16 %v2188, %v2186
  %v2287 = vpack.c.b16 %v2189, %v2187
  %v2288 = vpack.c.b16 %v2192, %v2190
  %v2289 = vpack.c.b16 %v2193, %v2191
  %v2290 = vpack.c.b16 %v2196, %v2194
  %v2291 = vpack.c.b16 %v2197, %v2195
  %v2292 = vpack.c.b16 %v2200, %v2198
  %v2293 = vpack.c.b16 %v2201, %v2199
  %v2294 = vpack.c.b16 %v2204, %v2202
  %v2295 = vpack.c.b16 %v2205, %v2203
  %v2296 = vpack.c.b16 %v2208, %v2206
  %v2297 = vpack.c.b16 %v2209, %v2207
  %v2298 = vpack.c.b16 %v2212, %v2210
  %v2299 = vpack.c.b16 %v2213, %v2211
  %v2300 = vpack.c.b16 %v2216, %v2214
  %v2301 = vpack.c.b16 %v2217, %v2215
  %v2302 = vpack.c.b16 %v2220, %v2218
  %v2303 = vpack.c.b16 %v2221, %v2219
  %v2304 = vpack.c.b16 %v2224, %v2222
  %v2305 = vpack.c.b16 %v2225, %v2223
  %v2306 = vpack.c.b16 %v2228, %v2226
  %v2307 = vpack.c.b16 %v2229, %v2227
  %v2308 = vpack.c.b16 %v2232, %v2230
  %v2309 = vpack.c.b16 %v2233, %v2231
  %v2310 = vpack.c.b16 %v2236, %v2234
  %v2311 = vpack.c.b16 %v2237, %v2235
  %v2312 = vpack.c.b16 %v2240, %v2238
  %v2313 = vpack.c.b16 %v2241, %v2239
  %v2314 = vpack.c.b16 %v2244, %v2242
  %v2315 = vpack.c.b16 %v2245, %v2243
  %v2316 = vpack.c.b16 %v2248, %v2246
  %v2317 = vpack.c.b16 %v2249, %v2247
  %v2318 = vpack.c.b16 %v2252, %v2250
  %v2319 = vpack.c.b16 %v2253, %v2251
  %v2320 = vpack.c.b16 %v2256, %v2254
  %v2321 = vpack.c.b16 %v2257, %v2255
  %2386 = vmatprep.subr.bf16.mxu0 %v2259
  %2387 = vmatpush1.bf16.msra.mxu0 %v2258
  %2388 = vmatprep.subr.bf16.mxu0 %v2261
  %2389 = vmatpush1.bf16.msra.mxu0 %v2260
  %2390 = vmatprep.subr.bf16.mxu0 %v2263
  %2391 = vmatpush1.bf16.msra.mxu0 %v2262
  %2392 = vmatprep.subr.bf16.mxu0 %v2265
  %2393 = vmatpush1.bf16.msra.mxu0 %v2264
  %2394 = vmatprep.subr.bf16.mxu0 %v2267
  %2395 = vmatpush1.bf16.msra.mxu0 %v2266
  %2396 = vmatprep.subr.bf16.mxu0 %v2269
  %2397 = vmatpush1.bf16.msra.mxu0 %v2268
  %2398 = vmatprep.subr.bf16.mxu0 %v2271
  %2399 = vmatpush1.bf16.msra.mxu0 %v2270
  %2400 = vmatprep.subr.bf16.mxu0 %v2273
  %2401 = vmatpush1.bf16.msra.mxu0 %v2272
  %2402 = vmatprep.subr.bf16.mxu0 %v2275
  %2403 = vmatpush1.bf16.msra.mxu0 %v2274
  %2404 = vmatprep.subr.bf16.mxu0 %v2277
  %2405 = vmatpush1.bf16.msra.mxu0 %v2276
  %2406 = vmatprep.subr.bf16.mxu0 %v2279
  %2407 = vmatpush1.bf16.msra.mxu0 %v2278
  %2408 = vmatprep.subr.bf16.mxu0 %v2281
  %2409 = vmatpush1.bf16.msra.mxu0 %v2280
  %2410 = vmatprep.subr.bf16.mxu0 %v2283
  %2411 = vmatpush1.bf16.msra.mxu0 %v2282
  %2412 = vmatprep.subr.bf16.mxu0 %v2285
  %2413 = vmatpush1.bf16.msra.mxu0 %v2284
  %2414 = vmatprep.subr.bf16.mxu0 %v2287
  %2415 = vmatpush1.bf16.msra.mxu0 %v2286
  %2416 = vmatprep.subr.bf16.mxu0 %v2289
  %2417 = vmatpush1.bf16.msra.mxu0 %v2288
  %2418 = vmatprep.mubr.bf16.mxu0 %v1987
  %2419 = vmatmul.mubr.bf16.gmra.mrb[0].mxu0 %v1986
  %v2420 = vpop.f32.mrb[0].mxu0
  %v2421 = vadd.f32 %v2059, %v2420
  %v2422 = vpop.f32.mrb[0].mxu0
  %v2423 = vadd.f32 %v2063, %v2422
  %v2424 = vpop.f32.mrb[0].mxu0
  %v2425 = vadd.f32 %v2059, %v2424
  %v2426 = vpop.f32.mrb[0].mxu0
  %v2427 = vadd.f32 %v2063, %v2426
  %2428 = vdwg.mxu0
  %2429 = vmatprep.subr.bf16.mxu0 %v2291
  %2430 = vmatpush1.bf16.msra.mxu0 %v2290
  %2431 = vmatprep.subr.bf16.mxu0 %v2293
  %2432 = vmatpush1.bf16.msra.mxu0 %v2292
  %2433 = vmatprep.subr.bf16.mxu0 %v2295
  %2434 = vmatpush1.bf16.msra.mxu0 %v2294
  %2435 = vmatprep.subr.bf16.mxu0 %v2297
  %2436 = vmatpush1.bf16.msra.mxu0 %v2296
  %2437 = vmatprep.subr.bf16.mxu0 %v2299
  %2438 = vmatpush1.bf16.msra.mxu0 %v2298
  %2439 = vmatprep.subr.bf16.mxu0 %v2301
  %2440 = vmatpush1.bf16.msra.mxu0 %v2300
  %2441 = vmatprep.subr.bf16.mxu0 %v2303
  %2442 = vmatpush1.bf16.msra.mxu0 %v2302
  %2443 = vmatprep.subr.bf16.mxu0 %v2305
  %2444 = vmatpush1.bf16.msra.mxu0 %v2304
  %2445 = vmatprep.subr.bf16.mxu0 %v2307
  %2446 = vmatpush1.bf16.msra.mxu0 %v2306
  %2447 = vmatprep.subr.bf16.mxu0 %v2309
  %2448 = vmatpush1.bf16.msra.mxu0 %v2308
  %2449 = vmatprep.subr.bf16.mxu0 %v2311
  %2450 = vmatpush1.bf16.msra.mxu0 %v2310
  %2451 = vmatprep.subr.bf16.mxu0 %v2313
  %2452 = vmatpush1.bf16.msra.mxu0 %v2312
  %2453 = vmatprep.subr.bf16.mxu0 %v2315
  %2454 = vmatpush1.bf16.msra.mxu0 %v2314
  %2455 = vmatprep.subr.bf16.mxu0 %v2317
  %2456 = vmatpush1.bf16.msra.mxu0 %v2316
  %2457 = vmatprep.subr.bf16.mxu0 %v2319
  %2458 = vmatpush1.bf16.msra.mxu0 %v2318
  %2459 = vmatprep.subr.bf16.mxu0 %v2321
  %2460 = vmatpush1.bf16.msra.mxu0 %v2320
  %2461 = vmatprep.mubr.bf16.mxu0 %v1989
  %2462 = vmatmul.mubr.bf16.gmra.mrb[0].mxu0 %v1988
  %v2463 = vpop.f32.mrb[0].mxu0
  %v2464 = vadd.f32 %v2421, %v2463
  %v2465 = vpop.f32.mrb[0].mxu0
  %v2466 = vadd.f32 %v2423, %v2465
  %v2467 = vpop.f32.mrb[0].mxu0
  %v2468 = vadd.f32 %v2425, %v2467
  %v2469 = vpop.f32.mrb[0].mxu0
  %v2470 = vadd.f32 %v2427, %v2469
  %2471 = vdwg.mxu0
  %v2472 = vmax.f32 %v2464, 0.0
  %v2473 = vmax.f32 %v2466, 0.0
  %v2474 = vmax.f32 %v2468, 0.0
  %v2475 = vmax.f32 %v2470, 0.0
  %v2476 = vld [vmem:[%s5] sm:$0x3]
  %v2478 = vlaneseq
  %v2479 = vshrl.u32 %v2478, 7
  %v2480 = vsub.s32 0, %v2479
  %v2481 = vrot.slane %v2476, %v2480
  %v2482 = vlaneseq
  %v2483 = vshrl.u32 %v2482, 7
  %v2484 = vsub.s32 1, %v2483
  %v2485 = vrot.slane %v2476, %v2484
  %v2488 = vmul.f32 %v2472, %v2481
  %v2489 = vmul.f32 %v2473, %v2485
  %v2490 = vmul.f32 %v2474, %v2481
  %v2491 = vmul.f32 %v2475, %v2485
  %v2492 = vadd.f32 %v2488, %v2489
  %2493 = vadd.xlane.f32.xlu0 %v2492
  %v2494 = vpop.xlane.xlu0 %2493
  %v2495 = vadd.f32 %v2490, %v2491
  %2496 = vadd.xlane.f32.xlu0 %v2495
  %v2497 = vpop.xlane.xlu0 %2496
  %v2498 = vld [vmem:[#allocation2] sm:$0x1]
  %v2500 = vlaneseq
  %v2501 = vshrl.u32 %v2500, 7
  %v2502 = vsub.s32 0, %v2501
  %v2503 = vrot.slane %v2498, %v2502
  %v2505 = vadd.f32 %v2494, %v2503
  %v2506 = vadd.f32 %v2497, %v2503
  %vm2507 = vcmask 7168
  %2508 = vst.msk [vmem:[%s7] sm:$0xff] %vm2507, %v2505
  %2509 = vst.msk [vmem:[%s7 + $0x8] sm:$0xff] %vm2507, %v2506
  // Predicated region
  $region30: #{_lambda_.15} parent=0 // pred_check
    _
  $region31: #{_lambda_.15} parent=0 // pred_check_branch
    %2511 = sbr.rel (0) target = $region33
  $region32: #{_lambda_.15} parent=0 // pred_region
    _
  $region33: #{_lambda_.15} parent=0 // pred_fallthru
    _
  // Predicated region
  $region34: #{_lambda_.15} parent=0 // pred_check
    _
  $region35: #{_lambda_.15} parent=0 // pred_check_branch
    %2513 = sbr.rel (0) target = $region37
  $region36: #{_lambda_.15} parent=0 // pred_region
    _
  $region37: #{_lambda_.15} parent=0 // pred_fallthru
    _

</llo_original>
